<compile_context>
chip_gen: v7x
topology: tpu7x:2x2x1
jax: 0.10.0
libtpu: 0.0.40
codegen_flags: <defaults>
</compile_context>

<pallas_src>
import numpy as np
import jax
import jax.numpy as jnp
from jax.experimental import pallas as pl
from jax.experimental.pallas import tpu as pltpu

# ----- problem sizes (small, consistent with LearnedPrimalDual defaults) -----
BATCH = 2
N_PRIMAL = 5
N_DUAL = 5
SHAPE_PRIMAL = 128   # L_p
SHAPE_DUAL = 128     # L_d
N_ITER = 3
HIDDEN = 32          # conv hidden channels (fixed to 32 in the module)

C_MAX = HIDDEN       # padded Cout slot (rows per tap in a packed weight)
C_PAD = 8            # padded n_primal / n_dual channel slab (sublane aligned)
CIN_FIRST = 16       # padded Cin of the first conv layer of each block

# per layer: (cin_real, cout_real, cin_pad, cout_pad, has_prelu)
DUAL_SPECS = ((N_DUAL + 2, HIDDEN, CIN_FIRST, C_MAX, True),
              (HIDDEN, HIDDEN, C_MAX, C_MAX, True),
              (HIDDEN, N_DUAL, C_MAX, C_PAD, False))
PRIMAL_SPECS = ((N_PRIMAL + 1, HIDDEN, CIN_FIRST, C_MAX, True),
                (HIDDEN, HIDDEN, C_MAX, C_MAX, True),
                (HIDDEN, HIDDEN, C_MAX, C_MAX, True),
                (HIDDEN, N_PRIMAL, C_MAX, C_PAD, False))
N_DUAL_ALPHA = sum(1 for s in DUAL_SPECS if s[4])      # 2 per dual net
N_PRIMAL_ALPHA = sum(1 for s in PRIMAL_SPECS if s[4])  # 3 per primal net

# Input-channel placement of the first conv layer of each block inside the
# padded 16-channel slab: rows 0..4 = h/f, row 8 = Op(f)/OpAdj(h), row 9 = g.
DUAL_COL_MAP = list(range(N_DUAL)) + [C_PAD, C_PAD + 1]
PRIMAL_COL_MAP = list(range(N_PRIMAL)) + [C_PAD]


# ------------------------------ fused kernel --------------------------------
def _conv_block(x, w_ref, b_ref, a_ref, layer_base, alpha_base, specs,
                ml_ref, mr_ref):
    """One DualNet/PrimalNet conv block. x: (cin_pad0, B*L) f32."""
    bl = x.shape[1]
    y = x
    a_idx = alpha_base
    for j, (_, _, cin_p, cout_p, has_prelu) in enumerate(specs):
        li = layer_base + j
        wrows = -(-3 * cout_p // 16) * 16          # bf16 sublane-tile aligned
        w = w_ref[li][0:wrows, 0:cin_p]            # (wrows, cin_p) bf16
        b = b_ref[li][0:cout_p]                    # (cout_p, 1) f32
        # One stacked-output MXU matmul: u[t*cout_p + o, :] = (W_t @ y)[o, :]
        u = jnp.dot(w, y.astype(jnp.bfloat16),
                    preferred_element_type=jnp.float32)      # (wrows, B*L)
        # kernel_size=3 / padding=1: shift the per-tap outputs (the shift
        # commutes with the channel mixing).  The masks zero the per-batch
        # edge lanes, which also kills the cross-batch roll wrap-around.
        y = (pltpu.roll(u[0:cout_p], shift=1, axis=1) * ml_ref[0:cout_p, :]
             + u[cout_p:2 * cout_p]
             + pltpu.roll(u[2 * cout_p:3 * cout_p], shift=bl - 1, axis=1)
             * mr_ref[0:cout_p, :]
             + b)
        if has_prelu:
            a = a_ref[a_idx]                                  # SMEM scalar
            y = jnp.where(y >= 0.0, y, y * a)
            a_idx += 1
    return y


def lpd_kernel(x_ref, g_ref, kbd_ref, ktbd_ref, dw_ref, db_ref, pw_ref, pb_ref,
               ml_ref, mr_ref, a_ref, out_ref):
    bl_p = x_ref.shape[1]
    bl_d = g_ref.shape[1]

    # Constant zero-padded tails for the 16-channel first-layer inputs.
    g_tail = jnp.concatenate(
        [g_ref[...], jnp.zeros((CIN_FIRST - C_PAD - 2, bl_d), jnp.float32)],
        axis=0)                                               # (7, B*Ld)
    z_tail_p = jnp.zeros((CIN_FIRST - C_PAD - 1, bl_p), jnp.float32)  # (7, B*Lp)

    # f = repeat_interleave(x_gn, n_primal, dim=1) (rows 5..7 zero); h = zeros.
    f = jnp.concatenate(
        [jnp.broadcast_to(x_ref[...], (N_PRIMAL, bl_p)),
         jnp.zeros((C_PAD - N_PRIMAL, bl_p), jnp.float32)], axis=0)  # (8, B*Lp)
    h = jnp.zeros((C_PAD, bl_d), jnp.float32)                        # (8, B*Ld)

    # TODO(synk): N_ITER kept statically unrolled (21 conv layers); switch to a
    # lax.fori_loop over iterations (dynamic layer/alpha bases) if spills show
    # up in the bundle dump.
    for i in range(N_ITER):
        # Op(f_2) = f_2 @ blockdiag(K, ..., K), directly in the lane layout.
        op_f = jnp.dot(f[1:2], kbd_ref[...],
                       preferred_element_type=jnp.float32)    # (1, B*Ld)
        x_dual = jnp.concatenate([h, op_f, g_tail], axis=0)   # (16, B*Ld)
        h = h + _conv_block(x_dual, dw_ref, db_ref, a_ref,
                            i * len(DUAL_SPECS), i * N_DUAL_ALPHA,
                            DUAL_SPECS, ml_ref, mr_ref)

        # OpAdj(h_1) = h_1 @ blockdiag(K^T, ..., K^T)
        adj = jnp.dot(h[0:1], ktbd_ref[...],
                      preferred_element_type=jnp.float32)     # (1, B*Lp)
        x_primal = jnp.concatenate([f, adj, z_tail_p], axis=0)  # (16, B*Lp)
        f = f + _conv_block(x_primal, pw_ref, pb_ref, a_ref,
                            i * len(PRIMAL_SPECS),
                            N_ITER * N_DUAL_ALPHA + i * N_PRIMAL_ALPHA,
                            PRIMAL_SPECS, ml_ref, mr_ref)

    out_ref[...] = f[0:1]                                     # (1, B*Lp)


# ------------------------------ jitted wrapper -------------------------------
@jax.jit
def lpd_forward(x_lane, g_lane, k_bd, kt_bd, dw, db, pw, pb,
                mask_l, mask_r, alphas):
    vmem = pl.BlockSpec(memory_space=pltpu.MemorySpace.VMEM)
    smem = pl.BlockSpec(memory_space=pltpu.MemorySpace.SMEM)
    return pl.pallas_call(
        lpd_kernel,
        out_shape=jax.ShapeDtypeStruct(x_lane.shape, jnp.float32),
        in_specs=[vmem] * 10 + [smem],
        out_specs=vmem,
    )(x_lane, g_lane, k_bd, kt_bd, dw, db, pw, pb, mask_l, mask_r, alphas)


# -------------------- one-time host-side parameter packing -------------------
def pack_conv_params(nets, specs, first_col_map):
    """Packs [(w(3,Cout,Cin), b(Cout,1), alpha|None), ...] per net into
    stacked-OUTPUT weights (n_layers, 3*C_MAX, C_MAX): tap t of layer j lives
    at rows [t*cout_pad, t*cout_pad+cout); first-layer input channels are
    scattered into the padded 16-channel slab via first_col_map."""
    ws, bs, alphas = [], [], []
    for net in nets:
        for j, ((w, b, a), (_, _, _, cout_p, _)) in enumerate(zip(net, specs)):
            w = np.asarray(w, np.float32)               # (3, cout, cin)
            b = np.asarray(b, np.float32)               # (cout, 1)
            cout, cin = w.shape[1], w.shape[2]
            cols = np.asarray(first_col_map) if j == 0 else np.arange(cin)
            wp = np.zeros((3 * C_MAX, C_MAX), np.float32)
            for t in range(3):
                wp[t * cout_p:t * cout_p + cout, cols] = w[t]
            bp = np.zeros((C_MAX, 1), np.float32)
            bp[:cout] = b
            ws.append(wp)
            bs.append(bp)
            if a is not None:
                alphas.append(float(np.asarray(a).reshape(())))
    return (jnp.asarray(np.stack(ws), dtype=jnp.bfloat16),
            jnp.asarray(np.stack(bs), dtype=jnp.float32),
            alphas)


def block_diag_batch(K, batch):
    Lp, Ld = K.shape
    out = np.zeros((batch * Lp, batch * Ld), np.float32)
    for b in range(batch):
        out[b * Lp:(b + 1) * Lp, b * Ld:(b + 1) * Ld] = K
    return jnp.asarray(out)


def boundary_masks(batch, L):
    lane = np.arange(batch * L) % L
    ml = np.broadcast_to((lane != 0).astype(np.float32), (C_MAX, batch * L))
    mr = np.broadcast_to((lane != L - 1).astype(np.float32), (C_MAX, batch * L))
    return (jnp.asarray(np.ascontiguousarray(ml)),
            jnp.asarray(np.ascontiguousarray(mr)))


# ------------------------- parameter initialization -------------------------
def _init_conv(key, cin, cout):
    kw, kb = jax.random.split(key)
    w = jax.random.normal(kw, (3, cout, cin), jnp.float32) / jnp.sqrt(3.0 * cin)
    b = 0.05 * jax.random.normal(kb, (cout, 1), jnp.float32)
    return w, b


def init_dual_net(key):
    ks = jax.random.split(key, 3)
    a = lambda: jnp.full((1, 1), 0.25, jnp.float32)   # per-layer PReLU (0.25)
    return [(*_init_conv(ks[0], N_DUAL + 2, HIDDEN), a()),
            (*_init_conv(ks[1], HIDDEN, HIDDEN), a()),
            (*_init_conv(ks[2], HIDDEN, N_DUAL), None)]


def init_primal_net(key):
    ks = jax.random.split(key, 4)
    a = lambda: jnp.full((1, 1), 0.25, jnp.float32)
    return [(*_init_conv(ks[0], N_PRIMAL + 1, HIDDEN), a()),
            (*_init_conv(ks[1], HIDDEN, HIDDEN), a()),
            (*_init_conv(ks[2], HIDDEN, HIDDEN), a()),
            (*_init_conv(ks[3], HIDDEN, N_PRIMAL), None)]


# ----------------------- plain-JAX reference (checking) ----------------------
def _conv1d_ref(x, w, b):
    xp = jnp.pad(x, ((0, 0), (0, 0), (1, 1)))
    y = (jnp.einsum('oc,bcl->bol', w[0], xp[:, :, :-2])
         + jnp.einsum('oc,bcl->bol', w[1], xp[:, :, 1:-1])
         + jnp.einsum('oc,bcl->bol', w[2], xp[:, :, 2:]))
    return y + b[None]


def _block_ref(x, layers):
    y = x
    for (w, b, a) in layers:
        y = _conv1d_ref(y, w, b)
        if a is not None:
            y = jnp.where(y >= 0.0, y, a[0, 0] * y)
    return y


def lpd_reference(x_gn, g, dual_nets, primal_nets, K, KT):
    f = jnp.repeat(x_gn, N_PRIMAL, axis=1)
    h = jnp.zeros((g.shape[0], N_DUAL, g.shape[2]), jnp.float32)
    for i in range(N_ITER):
        Op_f = jnp.einsum('bil,lm->bim', f[:, 1:2], K)
        h = h + _block_ref(jnp.concatenate([h, Op_f, g], axis=1), dual_nets[i])
        OpAdj_h = jnp.einsum('bil,lm->bim', h[:, 0:1], KT)
        f = f + _block_ref(jnp.concatenate([f, OpAdj_h], axis=1), primal_nets[i])
    return f[:, 0:1]


if __name__ == "__main__":
    root = jax.random.PRNGKey(0)
    k_x, k_g, k_K, k_nets = jax.random.split(root, 4)

    x_gn = jax.random.normal(k_x, (BATCH, 1, SHAPE_PRIMAL), jnp.float32)
    g = jax.random.normal(k_g, (BATCH, 1, SHAPE_DUAL), jnp.float32)

    # synthetic linear forward operator; grad_K == K^T for every batch element
    K = jax.random.normal(k_K, (SHAPE_PRIMAL, SHAPE_DUAL),
                          jnp.float32) / jnp.sqrt(float(SHAPE_PRIMAL))
    KT = K.T

    net_keys = jax.random.split(k_nets, 2 * N_ITER)
    dual_nets = [init_dual_net(net_keys[2 * i]) for i in range(N_ITER)]
    primal_nets = [init_primal_net(net_keys[2 * i + 1]) for i in range(N_ITER)]

    # ----- one-time packing (hoisted out of the per-call path) -----
    assert SHAPE_PRIMAL == SHAPE_DUAL  # shared boundary mask; TODO(synk): use separate masks if L_p != L_d
    dw, db, d_alpha = pack_conv_params(dual_nets, DUAL_SPECS, DUAL_COL_MAP)
    pw, pb, p_alpha = pack_conv_params(primal_nets, PRIMAL_SPECS, PRIMAL_COL_MAP)
    alphas_np = np.asarray(d_alpha + p_alpha, np.float32)
    alphas = jnp.asarray(np.pad(alphas_np, (0, (-len(alphas_np)) % 8)))
    k_bd = block_diag_batch(np.asarray(K), BATCH)
    kt_bd = block_diag_batch(np.asarray(KT), BATCH)
    mask_l, mask_r = boundary_masks(BATCH, SHAPE_PRIMAL)

    # batch tiled along the lane axis: (B, 1, L) -> (1, B*L), lane-dense.
    x_lane = x_gn.reshape(1, BATCH * SHAPE_PRIMAL)
    g_lane = g.reshape(1, BATCH * SHAPE_DUAL)

    out = lpd_forward(x_lane, g_lane, k_bd, kt_bd, dw, db, pw, pb,
                      mask_l, mask_r, alphas)
    out = jax.block_until_ready(out).reshape(BATCH, 1, SHAPE_PRIMAL)
    assert out.shape == (BATCH, 1, SHAPE_PRIMAL), out.shape

    ref = lpd_reference(x_gn, g, dual_nets, primal_nets, K, KT)
    max_err = float(jnp.max(jnp.abs(out - ref)))
    assert max_err < 5e-2, f"mismatch vs reference: {max_err}"
    print("KERNEL_OK")
</pallas_src>

<mosaic_0001>
module attributes {stable_mosaic.version = 11 : i64} {
  func.func @lpd_kernel(%arg0: memref<1x256xf32, #tpu.memory_space<vmem>>, %arg1: memref<1x256xf32, #tpu.memory_space<vmem>>, %arg2: memref<256x256xf32, #tpu.memory_space<vmem>>, %arg3: memref<256x256xf32, #tpu.memory_space<vmem>>, %arg4: memref<9x96x32xbf16, #tpu.memory_space<vmem>>, %arg5: memref<9x32x1xf32, #tpu.memory_space<vmem>>, %arg6: memref<12x96x32xbf16, #tpu.memory_space<vmem>>, %arg7: memref<12x32x1xf32, #tpu.memory_space<vmem>>, %arg8: memref<32x256xf32, #tpu.memory_space<vmem>>, %arg9: memref<32x256xf32, #tpu.memory_space<vmem>>, %arg10: memref<16xf32, #tpu.memory_space<smem>>, %arg11: memref<1x256xf32, #tpu.memory_space<vmem>>) attributes {dimension_semantics = [], scalar_prefetch = 0 : i64, scratch_operands = 0 : i64, tpu.core_type = #tpu.core_type<tc>} {
    %c0 = arith.constant 0 : index
    %c0_0 = arith.constant 0 : index
    %0 = vector.load %arg1[%c0, %c0_0] : memref<1x256xf32, #tpu.memory_space<vmem>>, vector<1x256xf32>
    %cst = arith.constant 0.000000e+00 : f32
    %1 = vector.broadcast %cst : f32 to vector<6x256xf32>
    %2 = tpu.concatenate %0, %1 in 0 : vector<1x256xf32>, vector<6x256xf32> -> vector<7x256xf32>
    %cst_1 = arith.constant 0.000000e+00 : f32
    %3 = vector.broadcast %cst_1 : f32 to vector<7x256xf32>
    %c0_2 = arith.constant 0 : index
    %c0_3 = arith.constant 0 : index
    %4 = vector.load %arg0[%c0_2, %c0_3] : memref<1x256xf32, #tpu.memory_space<vmem>>, vector<1x256xf32>
    %5 = vector.shape_cast %4 : vector<1x256xf32> to vector<1x256xf32>
    %6 = vector.broadcast %5 : vector<1x256xf32> to vector<5x256xf32>
    %cst_4 = arith.constant 0.000000e+00 : f32
    %7 = vector.broadcast %cst_4 : f32 to vector<3x256xf32>
    %8 = tpu.concatenate %6, %7 in 0 : vector<5x256xf32>, vector<3x256xf32> -> vector<8x256xf32>
    %cst_5 = arith.constant 0.000000e+00 : f32
    %9 = vector.broadcast %cst_5 : f32 to vector<8x256xf32>
    %10 = vector.extract_strided_slice %8 {offsets = [1, 0], sizes = [1, 256], strides = [1, 1]} : vector<8x256xf32> to vector<1x256xf32>
    %c0_6 = arith.constant 0 : index
    %c0_7 = arith.constant 0 : index
    %11 = vector.load %arg2[%c0_6, %c0_7] : memref<256x256xf32, #tpu.memory_space<vmem>>, vector<256x256xf32>
    %cst_8 = arith.constant dense<0.000000e+00> : vector<1x256xf32>
    %12 = tpu.matmul %10, %11, %cst_8 {dimension_numbers = #tpu.dot_dimension_numbers<[1], [0], [0], [1], [0, 0, 1, 1], [], []>} : vector<1x256xf32>, vector<256x256xf32>, vector<1x256xf32> -> vector<1x256xf32>
    %13 = tpu.concatenate %9, %12, %2 in 0 : vector<8x256xf32>, vector<1x256xf32>, vector<7x256xf32> -> vector<16x256xf32>
    %c0_9 = arith.constant 0 : index
    %c0_10 = arith.constant 0 : index
    %c0_11 = arith.constant 0 : index
    %14 = vector.load %arg4[%c0_9, %c0_10, %c0_11] : memref<9x96x32xbf16, #tpu.memory_space<vmem>>, vector<1x96x32xbf16>
    %15 = vector.shape_cast %14 : vector<1x96x32xbf16> to vector<96x32xbf16>
    %16 = vector.extract_strided_slice %15 {offsets = [0, 0], sizes = [96, 16], strides = [1, 1]} : vector<96x32xbf16> to vector<96x16xbf16>
    %c0_12 = arith.constant 0 : index
    %c0_13 = arith.constant 0 : index
    %c0_14 = arith.constant 0 : index
    %17 = vector.load %arg5[%c0_12, %c0_13, %c0_14] : memref<9x32x1xf32, #tpu.memory_space<vmem>>, vector<1x32x1xf32>
    %18 = vector.shape_cast %17 : vector<1x32x1xf32> to vector<32x1xf32>
    %19 = arith.truncf %13 : vector<16x256xf32> to vector<16x256xbf16>
    %cst_15 = arith.constant dense<0.000000e+00> : vector<96x256xf32>
    %20 = tpu.matmul %16, %19, %cst_15 {dimension_numbers = #tpu.dot_dimension_numbers<[1], [0], [0], [1], [0, 0, 1, 1], [], []>} : vector<96x16xbf16>, vector<16x256xbf16>, vector<96x256xf32> -> vector<96x256xf32>
    %21 = vector.extract_strided_slice %20 {offsets = [0, 0], sizes = [32, 256], strides = [1, 1]} : vector<96x256xf32> to vector<32x256xf32>
    %c1_i32 = arith.constant 1 : i32
    %22 = tpu.dynamic_rotate %21 by %c1_i32 dim 1 : vector<32x256xf32>, i32 -> vector<32x256xf32>
    %c0_16 = arith.constant 0 : index
    %c0_17 = arith.constant 0 : index
    %23 = vector.load %arg8[%c0_16, %c0_17] : memref<32x256xf32, #tpu.memory_space<vmem>>, vector<32x256xf32>
    %24 = arith.mulf %22, %23 : vector<32x256xf32>
    %25 = vector.extract_strided_slice %20 {offsets = [32, 0], sizes = [32, 256], strides = [1, 1]} : vector<96x256xf32> to vector<32x256xf32>
    %26 = arith.addf %24, %25 : vector<32x256xf32>
    %27 = vector.extract_strided_slice %20 {offsets = [64, 0], sizes = [32, 256], strides = [1, 1]} : vector<96x256xf32> to vector<32x256xf32>
    %c255_i32 = arith.constant 255 : i32
    %28 = tpu.dynamic_rotate %27 by %c255_i32 dim 1 : vector<32x256xf32>, i32 -> vector<32x256xf32>
    %c0_18 = arith.constant 0 : index
    %c0_19 = arith.constant 0 : index
    %29 = vector.load %arg9[%c0_18, %c0_19] : memref<32x256xf32, #tpu.memory_space<vmem>>, vector<32x256xf32>
    %30 = arith.mulf %28, %29 : vector<32x256xf32>
    %31 = arith.addf %26, %30 : vector<32x256xf32>
    %32 = vector.broadcast %18 : vector<32x1xf32> to vector<32x256xf32>
    %33 = arith.addf %31, %32 : vector<32x256xf32>
    %c0_20 = arith.constant 0 : index
    %34 = memref.load %arg10[%c0_20] : memref<16xf32, #tpu.memory_space<smem>>
    %cst_21 = arith.constant 0.000000e+00 : f32
    %35 = vector.broadcast %cst_21 : f32 to vector<32x256xf32>
    %36 = arith.cmpf oge, %33, %35 : vector<32x256xf32>
    %37 = vector.broadcast %34 : f32 to vector<32x256xf32>
    %38 = arith.mulf %33, %37 : vector<32x256xf32>
    %39 = arith.select %36, %33, %38 : vector<32x256xi1>, vector<32x256xf32>
    %c1 = arith.constant 1 : index
    %c0_22 = arith.constant 0 : index
    %c0_23 = arith.constant 0 : index
    %40 = vector.load %arg4[%c1, %c0_22, %c0_23] : memref<9x96x32xbf16, #tpu.memory_space<vmem>>, vector<1x96x32xbf16>
    %41 = vector.shape_cast %40 : vector<1x96x32xbf16> to vector<96x32xbf16>
    %c1_24 = arith.constant 1 : index
    %c0_25 = arith.constant 0 : index
    %c0_26 = arith.constant 0 : index
    %42 = vector.load %arg5[%c1_24, %c0_25, %c0_26] : memref<9x32x1xf32, #tpu.memory_space<vmem>>, vector<1x32x1xf32>
    %43 = vector.shape_cast %42 : vector<1x32x1xf32> to vector<32x1xf32>
    %44 = arith.truncf %39 : vector<32x256xf32> to vector<32x256xbf16>
    %cst_27 = arith.constant dense<0.000000e+00> : vector<96x256xf32>
    %45 = tpu.matmul %41, %44, %cst_27 {dimension_numbers = #tpu.dot_dimension_numbers<[1], [0], [0], [1], [0, 0, 1, 1], [], []>} : vector<96x32xbf16>, vector<32x256xbf16>, vector<96x256xf32> -> vector<96x256xf32>
    %46 = vector.extract_strided_slice %45 {offsets = [0, 0], sizes = [32, 256], strides = [1, 1]} : vector<96x256xf32> to vector<32x256xf32>
    %c1_i32_28 = arith.constant 1 : i32
    %47 = tpu.dynamic_rotate %46 by %c1_i32_28 dim 1 : vector<32x256xf32>, i32 -> vector<32x256xf32>
    %c0_29 = arith.constant 0 : index
    %c0_30 = arith.constant 0 : index
    %48 = vector.load %arg8[%c0_29, %c0_30] : memref<32x256xf32, #tpu.memory_space<vmem>>, vector<32x256xf32>
    %49 = arith.mulf %47, %48 : vector<32x256xf32>
    %50 = vector.extract_strided_slice %45 {offsets = [32, 0], sizes = [32, 256], strides = [1, 1]} : vector<96x256xf32> to vector<32x256xf32>
    %51 = arith.addf %49, %50 : vector<32x256xf32>
    %52 = vector.extract_strided_slice %45 {offsets = [64, 0], sizes = [32, 256], strides = [1, 1]} : vector<96x256xf32> to vector<32x256xf32>
    %c255_i32_31 = arith.constant 255 : i32
    %53 = tpu.dynamic_rotate %52 by %c255_i32_31 dim 1 : vector<32x256xf32>, i32 -> vector<32x256xf32>
    %c0_32 = arith.constant 0 : index
    %c0_33 = arith.constant 0 : index
    %54 = vector.load %arg9[%c0_32, %c0_33] : memref<32x256xf32, #tpu.memory_space<vmem>>, vector<32x256xf32>
    %55 = arith.mulf %53, %54 : vector<32x256xf32>
    %56 = arith.addf %51, %55 : vector<32x256xf32>
    %57 = vector.broadcast %43 : vector<32x1xf32> to vector<32x256xf32>
    %58 = arith.addf %56, %57 : vector<32x256xf32>
    %c1_34 = arith.constant 1 : index
    %59 = memref.load %arg10[%c1_34] : memref<16xf32, #tpu.memory_space<smem>>
    %cst_35 = arith.constant 0.000000e+00 : f32
    %60 = vector.broadcast %cst_35 : f32 to vector<32x256xf32>
    %61 = arith.cmpf oge, %58, %60 : vector<32x256xf32>
    %62 = vector.broadcast %59 : f32 to vector<32x256xf32>
    %63 = arith.mulf %58, %62 : vector<32x256xf32>
    %64 = arith.select %61, %58, %63 : vector<32x256xi1>, vector<32x256xf32>
    %c2 = arith.constant 2 : index
    %c0_36 = arith.constant 0 : index
    %c0_37 = arith.constant 0 : index
    %65 = vector.load %arg4[%c2, %c0_36, %c0_37] : memref<9x96x32xbf16, #tpu.memory_space<vmem>>, vector<1x96x32xbf16>
    %66 = vector.shape_cast %65 : vector<1x96x32xbf16> to vector<96x32xbf16>
    %67 = vector.extract_strided_slice %66 {offsets = [0, 0], sizes = [32, 32], strides = [1, 1]} : vector<96x32xbf16> to vector<32x32xbf16>
    %c2_38 = arith.constant 2 : index
    %c0_39 = arith.constant 0 : index
    %c0_40 = arith.constant 0 : index
    %68 = vector.load %arg5[%c2_38, %c0_39, %c0_40] : memref<9x32x1xf32, #tpu.memory_space<vmem>>, vector<1x32x1xf32>
    %69 = vector.shape_cast %68 : vector<1x32x1xf32> to vector<32x1xf32>
    %70 = vector.extract_strided_slice %69 {offsets = [0, 0], sizes = [8, 1], strides = [1, 1]} : vector<32x1xf32> to vector<8x1xf32>
    %71 = arith.truncf %64 : vector<32x256xf32> to vector<32x256xbf16>
    %cst_41 = arith.constant dense<0.000000e+00> : vector<32x256xf32>
    %72 = tpu.matmul %67, %71, %cst_41 {dimension_numbers = #tpu.dot_dimension_numbers<[1], [0], [0], [1], [0, 0, 1, 1], [], []>} : vector<32x32xbf16>, vector<32x256xbf16>, vector<32x256xf32> -> vector<32x256xf32>
    %73 = vector.extract_strided_slice %72 {offsets = [0, 0], sizes = [8, 256], strides = [1, 1]} : vector<32x256xf32> to vector<8x256xf32>
    %c1_i32_42 = arith.constant 1 : i32
    %74 = tpu.dynamic_rotate %73 by %c1_i32_42 dim 1 : vector<8x256xf32>, i32 -> vector<8x256xf32>
    %c0_43 = arith.constant 0 : index
    %c0_44 = arith.constant 0 : index
    %75 = vector.load %arg8[%c0_43, %c0_44] : memref<32x256xf32, #tpu.memory_space<vmem>>, vector<8x256xf32>
    %76 = arith.mulf %74, %75 : vector<8x256xf32>
    %77 = vector.extract_strided_slice %72 {offsets = [8, 0], sizes = [8, 256], strides = [1, 1]} : vector<32x256xf32> to vector<8x256xf32>
    %78 = arith.addf %76, %77 : vector<8x256xf32>
    %79 = vector.extract_strided_slice %72 {offsets = [16, 0], sizes = [8, 256], strides = [1, 1]} : vector<32x256xf32> to vector<8x256xf32>
    %c255_i32_45 = arith.constant 255 : i32
    %80 = tpu.dynamic_rotate %79 by %c255_i32_45 dim 1 : vector<8x256xf32>, i32 -> vector<8x256xf32>
    %c0_46 = arith.constant 0 : index
    %c0_47 = arith.constant 0 : index
    %81 = vector.load %arg9[%c0_46, %c0_47] : memref<32x256xf32, #tpu.memory_space<vmem>>, vector<8x256xf32>
    %82 = arith.mulf %80, %81 : vector<8x256xf32>
    %83 = arith.addf %78, %82 : vector<8x256xf32>
    %84 = vector.broadcast %70 : vector<8x1xf32> to vector<8x256xf32>
    %85 = arith.addf %83, %84 : vector<8x256xf32>
    %86 = arith.addf %9, %85 : vector<8x256xf32>
    %87 = vector.extract_strided_slice %86 {offsets = [0, 0], sizes = [1, 256], strides = [1, 1]} : vector<8x256xf32> to vector<1x256xf32>
    %c0_48 = arith.constant 0 : index
    %c0_49 = arith.constant 0 : index
    %88 = vector.load %arg3[%c0_48, %c0_49] : memref<256x256xf32, #tpu.memory_space<vmem>>, vector<256x256xf32>
    %cst_50 = arith.constant dense<0.000000e+00> : vector<1x256xf32>
    %89 = tpu.matmul %87, %88, %cst_50 {dimension_numbers = #tpu.dot_dimension_numbers<[1], [0], [0], [1], [0, 0, 1, 1], [], []>} : vector<1x256xf32>, vector<256x256xf32>, vector<1x256xf32> -> vector<1x256xf32>
    %90 = tpu.concatenate %8, %89, %3 in 0 : vector<8x256xf32>, vector<1x256xf32>, vector<7x256xf32> -> vector<16x256xf32>
    %c0_51 = arith.constant 0 : index
    %c0_52 = arith.constant 0 : index
    %c0_53 = arith.constant 0 : index
    %91 = vector.load %arg6[%c0_51, %c0_52, %c0_53] : memref<12x96x32xbf16, #tpu.memory_space<vmem>>, vector<1x96x32xbf16>
    %92 = vector.shape_cast %91 : vector<1x96x32xbf16> to vector<96x32xbf16>
    %93 = vector.extract_strided_slice %92 {offsets = [0, 0], sizes = [96, 16], strides = [1, 1]} : vector<96x32xbf16> to vector<96x16xbf16>
    %c0_54 = arith.constant 0 : index
    %c0_55 = arith.constant 0 : index
    %c0_56 = arith.constant 0 : index
    %94 = vector.load %arg7[%c0_54, %c0_55, %c0_56] : memref<12x32x1xf32, #tpu.memory_space<vmem>>, vector<1x32x1xf32>
    %95 = vector.shape_cast %94 : vector<1x32x1xf32> to vector<32x1xf32>
    %96 = arith.truncf %90 : vector<16x256xf32> to vector<16x256xbf16>
    %cst_57 = arith.constant dense<0.000000e+00> : vector<96x256xf32>
    %97 = tpu.matmul %93, %96, %cst_57 {dimension_numbers = #tpu.dot_dimension_numbers<[1], [0], [0], [1], [0, 0, 1, 1], [], []>} : vector<96x16xbf16>, vector<16x256xbf16>, vector<96x256xf32> -> vector<96x256xf32>
    %98 = vector.extract_strided_slice %97 {offsets = [0, 0], sizes = [32, 256], strides = [1, 1]} : vector<96x256xf32> to vector<32x256xf32>
    %c1_i32_58 = arith.constant 1 : i32
    %99 = tpu.dynamic_rotate %98 by %c1_i32_58 dim 1 : vector<32x256xf32>, i32 -> vector<32x256xf32>
    %c0_59 = arith.constant 0 : index
    %c0_60 = arith.constant 0 : index
    %100 = vector.load %arg8[%c0_59, %c0_60] : memref<32x256xf32, #tpu.memory_space<vmem>>, vector<32x256xf32>
    %101 = arith.mulf %99, %100 : vector<32x256xf32>
    %102 = vector.extract_strided_slice %97 {offsets = [32, 0], sizes = [32, 256], strides = [1, 1]} : vector<96x256xf32> to vector<32x256xf32>
    %103 = arith.addf %101, %102 : vector<32x256xf32>
    %104 = vector.extract_strided_slice %97 {offsets = [64, 0], sizes = [32, 256], strides = [1, 1]} : vector<96x256xf32> to vector<32x256xf32>
    %c255_i32_61 = arith.constant 255 : i32
    %105 = tpu.dynamic_rotate %104 by %c255_i32_61 dim 1 : vector<32x256xf32>, i32 -> vector<32x256xf32>
    %c0_62 = arith.constant 0 : index
    %c0_63 = arith.constant 0 : index
    %106 = vector.load %arg9[%c0_62, %c0_63] : memref<32x256xf32, #tpu.memory_space<vmem>>, vector<32x256xf32>
    %107 = arith.mulf %105, %106 : vector<32x256xf32>
    %108 = arith.addf %103, %107 : vector<32x256xf32>
    %109 = vector.broadcast %95 : vector<32x1xf32> to vector<32x256xf32>
    %110 = arith.addf %108, %109 : vector<32x256xf32>
    %c6 = arith.constant 6 : index
    %111 = memref.load %arg10[%c6] : memref<16xf32, #tpu.memory_space<smem>>
    %cst_64 = arith.constant 0.000000e+00 : f32
    %112 = vector.broadcast %cst_64 : f32 to vector<32x256xf32>
    %113 = arith.cmpf oge, %110, %112 : vector<32x256xf32>
    %114 = vector.broadcast %111 : f32 to vector<32x256xf32>
    %115 = arith.mulf %110, %114 : vector<32x256xf32>
    %116 = arith.select %113, %110, %115 : vector<32x256xi1>, vector<32x256xf32>
    %c1_65 = arith.constant 1 : index
    %c0_66 = arith.constant 0 : index
    %c0_67 = arith.constant 0 : index
    %117 = vector.load %arg6[%c1_65, %c0_66, %c0_67] : memref<12x96x32xbf16, #tpu.memory_space<vmem>>, vector<1x96x32xbf16>
    %118 = vector.shape_cast %117 : vector<1x96x32xbf16> to vector<96x32xbf16>
    %c1_68 = arith.constant 1 : index
    %c0_69 = arith.constant 0 : index
    %c0_70 = arith.constant 0 : index
    %119 = vector.load %arg7[%c1_68, %c0_69, %c0_70] : memref<12x32x1xf32, #tpu.memory_space<vmem>>, vector<1x32x1xf32>
    %120 = vector.shape_cast %119 : vector<1x32x1xf32> to vector<32x1xf32>
    %121 = arith.truncf %116 : vector<32x256xf32> to vector<32x256xbf16>
    %cst_71 = arith.constant dense<0.000000e+00> : vector<96x256xf32>
    %122 = tpu.matmul %118, %121, %cst_71 {dimension_numbers = #tpu.dot_dimension_numbers<[1], [0], [0], [1], [0, 0, 1, 1], [], []>} : vector<96x32xbf16>, vector<32x256xbf16>, vector<96x256xf32> -> vector<96x256xf32>
    %123 = vector.extract_strided_slice %122 {offsets = [0, 0], sizes = [32, 256], strides = [1, 1]} : vector<96x256xf32> to vector<32x256xf32>
    %c1_i32_72 = arith.constant 1 : i32
    %124 = tpu.dynamic_rotate %123 by %c1_i32_72 dim 1 : vector<32x256xf32>, i32 -> vector<32x256xf32>
    %c0_73 = arith.constant 0 : index
    %c0_74 = arith.constant 0 : index
    %125 = vector.load %arg8[%c0_73, %c0_74] : memref<32x256xf32, #tpu.memory_space<vmem>>, vector<32x256xf32>
    %126 = arith.mulf %124, %125 : vector<32x256xf32>
    %127 = vector.extract_strided_slice %122 {offsets = [32, 0], sizes = [32, 256], strides = [1, 1]} : vector<96x256xf32> to vector<32x256xf32>
    %128 = arith.addf %126, %127 : vector<32x256xf32>
    %129 = vector.extract_strided_slice %122 {offsets = [64, 0], sizes = [32, 256], strides = [1, 1]} : vector<96x256xf32> to vector<32x256xf32>
    %c255_i32_75 = arith.constant 255 : i32
    %130 = tpu.dynamic_rotate %129 by %c255_i32_75 dim 1 : vector<32x256xf32>, i32 -> vector<32x256xf32>
    %c0_76 = arith.constant 0 : index
    %c0_77 = arith.constant 0 : index
    %131 = vector.load %arg9[%c0_76, %c0_77] : memref<32x256xf32, #tpu.memory_space<vmem>>, vector<32x256xf32>
    %132 = arith.mulf %130, %131 : vector<32x256xf32>
    %133 = arith.addf %128, %132 : vector<32x256xf32>
    %134 = vector.broadcast %120 : vector<32x1xf32> to vector<32x256xf32>
    %135 = arith.addf %133, %134 : vector<32x256xf32>
    %c7 = arith.constant 7 : index
    %136 = memref.load %arg10[%c7] : memref<16xf32, #tpu.memory_space<smem>>
    %cst_78 = arith.constant 0.000000e+00 : f32
    %137 = vector.broadcast %cst_78 : f32 to vector<32x256xf32>
    %138 = arith.cmpf oge, %135, %137 : vector<32x256xf32>
    %139 = vector.broadcast %136 : f32 to vector<32x256xf32>
    %140 = arith.mulf %135, %139 : vector<32x256xf32>
    %141 = arith.select %138, %135, %140 : vector<32x256xi1>, vector<32x256xf32>
    %c2_79 = arith.constant 2 : index
    %c0_80 = arith.constant 0 : index
    %c0_81 = arith.constant 0 : index
    %142 = vector.load %arg6[%c2_79, %c0_80, %c0_81] : memref<12x96x32xbf16, #tpu.memory_space<vmem>>, vector<1x96x32xbf16>
    %143 = vector.shape_cast %142 : vector<1x96x32xbf16> to vector<96x32xbf16>
    %c2_82 = arith.constant 2 : index
    %c0_83 = arith.constant 0 : index
    %c0_84 = arith.constant 0 : index
    %144 = vector.load %arg7[%c2_82, %c0_83, %c0_84] : memref<12x32x1xf32, #tpu.memory_space<vmem>>, vector<1x32x1xf32>
    %145 = vector.shape_cast %144 : vector<1x32x1xf32> to vector<32x1xf32>
    %146 = arith.truncf %141 : vector<32x256xf32> to vector<32x256xbf16>
    %cst_85 = arith.constant dense<0.000000e+00> : vector<96x256xf32>
    %147 = tpu.matmul %143, %146, %cst_85 {dimension_numbers = #tpu.dot_dimension_numbers<[1], [0], [0], [1], [0, 0, 1, 1], [], []>} : vector<96x32xbf16>, vector<32x256xbf16>, vector<96x256xf32> -> vector<96x256xf32>
    %148 = vector.extract_strided_slice %147 {offsets = [0, 0], sizes = [32, 256], strides = [1, 1]} : vector<96x256xf32> to vector<32x256xf32>
    %c1_i32_86 = arith.constant 1 : i32
    %149 = tpu.dynamic_rotate %148 by %c1_i32_86 dim 1 : vector<32x256xf32>, i32 -> vector<32x256xf32>
    %c0_87 = arith.constant 0 : index
    %c0_88 = arith.constant 0 : index
    %150 = vector.load %arg8[%c0_87, %c0_88] : memref<32x256xf32, #tpu.memory_space<vmem>>, vector<32x256xf32>
    %151 = arith.mulf %149, %150 : vector<32x256xf32>
    %152 = vector.extract_strided_slice %147 {offsets = [32, 0], sizes = [32, 256], strides = [1, 1]} : vector<96x256xf32> to vector<32x256xf32>
    %153 = arith.addf %151, %152 : vector<32x256xf32>
    %154 = vector.extract_strided_slice %147 {offsets = [64, 0], sizes = [32, 256], strides = [1, 1]} : vector<96x256xf32> to vector<32x256xf32>
    %c255_i32_89 = arith.constant 255 : i32
    %155 = tpu.dynamic_rotate %154 by %c255_i32_89 dim 1 : vector<32x256xf32>, i32 -> vector<32x256xf32>
    %c0_90 = arith.constant 0 : index
    %c0_91 = arith.constant 0 : index
    %156 = vector.load %arg9[%c0_90, %c0_91] : memref<32x256xf32, #tpu.memory_space<vmem>>, vector<32x256xf32>
    %157 = arith.mulf %155, %156 : vector<32x256xf32>
    %158 = arith.addf %153, %157 : vector<32x256xf32>
    %159 = vector.broadcast %145 : vector<32x1xf32> to vector<32x256xf32>
    %160 = arith.addf %158, %159 : vector<32x256xf32>
    %c8 = arith.constant 8 : index
    %161 = memref.load %arg10[%c8] : memref<16xf32, #tpu.memory_space<smem>>
    %cst_92 = arith.constant 0.000000e+00 : f32
    %162 = vector.broadcast %cst_92 : f32 to vector<32x256xf32>
    %163 = arith.cmpf oge, %160, %162 : vector<32x256xf32>
    %164 = vector.broadcast %161 : f32 to vector<32x256xf32>
    %165 = arith.mulf %160, %164 : vector<32x256xf32>
    %166 = arith.select %163, %160, %165 : vector<32x256xi1>, vector<32x256xf32>
    %c3 = arith.constant 3 : index
    %c0_93 = arith.constant 0 : index
    %c0_94 = arith.constant 0 : index
    %167 = vector.load %arg6[%c3, %c0_93, %c0_94] : memref<12x96x32xbf16, #tpu.memory_space<vmem>>, vector<1x96x32xbf16>
    %168 = vector.shape_cast %167 : vector<1x96x32xbf16> to vector<96x32xbf16>
    %169 = vector.extract_strided_slice %168 {offsets = [0, 0], sizes = [32, 32], strides = [1, 1]} : vector<96x32xbf16> to vector<32x32xbf16>
    %c3_95 = arith.constant 3 : index
    %c0_96 = arith.constant 0 : index
    %c0_97 = arith.constant 0 : index
    %170 = vector.load %arg7[%c3_95, %c0_96, %c0_97] : memref<12x32x1xf32, #tpu.memory_space<vmem>>, vector<1x32x1xf32>
    %171 = vector.shape_cast %170 : vector<1x32x1xf32> to vector<32x1xf32>
    %172 = vector.extract_strided_slice %171 {offsets = [0, 0], sizes = [8, 1], strides = [1, 1]} : vector<32x1xf32> to vector<8x1xf32>
    %173 = arith.truncf %166 : vector<32x256xf32> to vector<32x256xbf16>
    %cst_98 = arith.constant dense<0.000000e+00> : vector<32x256xf32>
    %174 = tpu.matmul %169, %173, %cst_98 {dimension_numbers = #tpu.dot_dimension_numbers<[1], [0], [0], [1], [0, 0, 1, 1], [], []>} : vector<32x32xbf16>, vector<32x256xbf16>, vector<32x256xf32> -> vector<32x256xf32>
    %175 = vector.extract_strided_slice %174 {offsets = [0, 0], sizes = [8, 256], strides = [1, 1]} : vector<32x256xf32> to vector<8x256xf32>
    %c1_i32_99 = arith.constant 1 : i32
    %176 = tpu.dynamic_rotate %175 by %c1_i32_99 dim 1 : vector<8x256xf32>, i32 -> vector<8x256xf32>
    %c0_100 = arith.constant 0 : index
    %c0_101 = arith.constant 0 : index
    %177 = vector.load %arg8[%c0_100, %c0_101] : memref<32x256xf32, #tpu.memory_space<vmem>>, vector<8x256xf32>
    %178 = arith.mulf %176, %177 : vector<8x256xf32>
    %179 = vector.extract_strided_slice %174 {offsets = [8, 0], sizes = [8, 256], strides = [1, 1]} : vector<32x256xf32> to vector<8x256xf32>
    %180 = arith.addf %178, %179 : vector<8x256xf32>
    %181 = vector.extract_strided_slice %174 {offsets = [16, 0], sizes = [8, 256], strides = [1, 1]} : vector<32x256xf32> to vector<8x256xf32>
    %c255_i32_102 = arith.constant 255 : i32
    %182 = tpu.dynamic_rotate %181 by %c255_i32_102 dim 1 : vector<8x256xf32>, i32 -> vector<8x256xf32>
    %c0_103 = arith.constant 0 : index
    %c0_104 = arith.constant 0 : index
    %183 = vector.load %arg9[%c0_103, %c0_104] : memref<32x256xf32, #tpu.memory_space<vmem>>, vector<8x256xf32>
    %184 = arith.mulf %182, %183 : vector<8x256xf32>
    %185 = arith.addf %180, %184 : vector<8x256xf32>
    %186 = vector.broadcast %172 : vector<8x1xf32> to vector<8x256xf32>
    %187 = arith.addf %185, %186 : vector<8x256xf32>
    %188 = arith.addf %8, %187 : vector<8x256xf32>
    %189 = vector.extract_strided_slice %188 {offsets = [1, 0], sizes = [1, 256], strides = [1, 1]} : vector<8x256xf32> to vector<1x256xf32>
    %c0_105 = arith.constant 0 : index
    %c0_106 = arith.constant 0 : index
    %190 = vector.load %arg2[%c0_105, %c0_106] : memref<256x256xf32, #tpu.memory_space<vmem>>, vector<256x256xf32>
    %cst_107 = arith.constant dense<0.000000e+00> : vector<1x256xf32>
    %191 = tpu.matmul %189, %190, %cst_107 {dimension_numbers = #tpu.dot_dimension_numbers<[1], [0], [0], [1], [0, 0, 1, 1], [], []>} : vector<1x256xf32>, vector<256x256xf32>, vector<1x256xf32> -> vector<1x256xf32>
    %192 = tpu.concatenate %86, %191, %2 in 0 : vector<8x256xf32>, vector<1x256xf32>, vector<7x256xf32> -> vector<16x256xf32>
    %c3_108 = arith.constant 3 : index
    %c0_109 = arith.constant 0 : index
    %c0_110 = arith.constant 0 : index
    %193 = vector.load %arg4[%c3_108, %c0_109, %c0_110] : memref<9x96x32xbf16, #tpu.memory_space<vmem>>, vector<1x96x32xbf16>
    %194 = vector.shape_cast %193 : vector<1x96x32xbf16> to vector<96x32xbf16>
    %195 = vector.extract_strided_slice %194 {offsets = [0, 0], sizes = [96, 16], strides = [1, 1]} : vector<96x32xbf16> to vector<96x16xbf16>
    %c3_111 = arith.constant 3 : index
    %c0_112 = arith.constant 0 : index
    %c0_113 = arith.constant 0 : index
    %196 = vector.load %arg5[%c3_111, %c0_112, %c0_113] : memref<9x32x1xf32, #tpu.memory_space<vmem>>, vector<1x32x1xf32>
    %197 = vector.shape_cast %196 : vector<1x32x1xf32> to vector<32x1xf32>
    %198 = arith.truncf %192 : vector<16x256xf32> to vector<16x256xbf16>
    %cst_114 = arith.constant dense<0.000000e+00> : vector<96x256xf32>
    %199 = tpu.matmul %195, %198, %cst_114 {dimension_numbers = #tpu.dot_dimension_numbers<[1], [0], [0], [1], [0, 0, 1, 1], [], []>} : vector<96x16xbf16>, vector<16x256xbf16>, vector<96x256xf32> -> vector<96x256xf32>
    %200 = vector.extract_strided_slice %199 {offsets = [0, 0], sizes = [32, 256], strides = [1, 1]} : vector<96x256xf32> to vector<32x256xf32>
    %c1_i32_115 = arith.constant 1 : i32
    %201 = tpu.dynamic_rotate %200 by %c1_i32_115 dim 1 : vector<32x256xf32>, i32 -> vector<32x256xf32>
    %c0_116 = arith.constant 0 : index
    %c0_117 = arith.constant 0 : index
    %202 = vector.load %arg8[%c0_116, %c0_117] : memref<32x256xf32, #tpu.memory_space<vmem>>, vector<32x256xf32>
    %203 = arith.mulf %201, %202 : vector<32x256xf32>
    %204 = vector.extract_strided_slice %199 {offsets = [32, 0], sizes = [32, 256], strides = [1, 1]} : vector<96x256xf32> to vector<32x256xf32>
    %205 = arith.addf %203, %204 : vector<32x256xf32>
    %206 = vector.extract_strided_slice %199 {offsets = [64, 0], sizes = [32, 256], strides = [1, 1]} : vector<96x256xf32> to vector<32x256xf32>
    %c255_i32_118 = arith.constant 255 : i32
    %207 = tpu.dynamic_rotate %206 by %c255_i32_118 dim 1 : vector<32x256xf32>, i32 -> vector<32x256xf32>
    %c0_119 = arith.constant 0 : index
    %c0_120 = arith.constant 0 : index
    %208 = vector.load %arg9[%c0_119, %c0_120] : memref<32x256xf32, #tpu.memory_space<vmem>>, vector<32x256xf32>
    %209 = arith.mulf %207, %208 : vector<32x256xf32>
    %210 = arith.addf %205, %209 : vector<32x256xf32>
    %211 = vector.broadcast %197 : vector<32x1xf32> to vector<32x256xf32>
    %212 = arith.addf %210, %211 : vector<32x256xf32>
    %c2_121 = arith.constant 2 : index
    %213 = memref.load %arg10[%c2_121] : memref<16xf32, #tpu.memory_space<smem>>
    %cst_122 = arith.constant 0.000000e+00 : f32
    %214 = vector.broadcast %cst_122 : f32 to vector<32x256xf32>
    %215 = arith.cmpf oge, %212, %214 : vector<32x256xf32>
    %216 = vector.broadcast %213 : f32 to vector<32x256xf32>
    %217 = arith.mulf %212, %216 : vector<32x256xf32>
    %218 = arith.select %215, %212, %217 : vector<32x256xi1>, vector<32x256xf32>
    %c4 = arith.constant 4 : index
    %c0_123 = arith.constant 0 : index
    %c0_124 = arith.constant 0 : index
    %219 = vector.load %arg4[%c4, %c0_123, %c0_124] : memref<9x96x32xbf16, #tpu.memory_space<vmem>>, vector<1x96x32xbf16>
    %220 = vector.shape_cast %219 : vector<1x96x32xbf16> to vector<96x32xbf16>
    %c4_125 = arith.constant 4 : index
    %c0_126 = arith.constant 0 : index
    %c0_127 = arith.constant 0 : index
    %221 = vector.load %arg5[%c4_125, %c0_126, %c0_127] : memref<9x32x1xf32, #tpu.memory_space<vmem>>, vector<1x32x1xf32>
    %222 = vector.shape_cast %221 : vector<1x32x1xf32> to vector<32x1xf32>
    %223 = arith.truncf %218 : vector<32x256xf32> to vector<32x256xbf16>
    %cst_128 = arith.constant dense<0.000000e+00> : vector<96x256xf32>
    %224 = tpu.matmul %220, %223, %cst_128 {dimension_numbers = #tpu.dot_dimension_numbers<[1], [0], [0], [1], [0, 0, 1, 1], [], []>} : vector<96x32xbf16>, vector<32x256xbf16>, vector<96x256xf32> -> vector<96x256xf32>
    %225 = vector.extract_strided_slice %224 {offsets = [0, 0], sizes = [32, 256], strides = [1, 1]} : vector<96x256xf32> to vector<32x256xf32>
    %c1_i32_129 = arith.constant 1 : i32
    %226 = tpu.dynamic_rotate %225 by %c1_i32_129 dim 1 : vector<32x256xf32>, i32 -> vector<32x256xf32>
    %c0_130 = arith.constant 0 : index
    %c0_131 = arith.constant 0 : index
    %227 = vector.load %arg8[%c0_130, %c0_131] : memref<32x256xf32, #tpu.memory_space<vmem>>, vector<32x256xf32>
    %228 = arith.mulf %226, %227 : vector<32x256xf32>
    %229 = vector.extract_strided_slice %224 {offsets = [32, 0], sizes = [32, 256], strides = [1, 1]} : vector<96x256xf32> to vector<32x256xf32>
    %230 = arith.addf %228, %229 : vector<32x256xf32>
    %231 = vector.extract_strided_slice %224 {offsets = [64, 0], sizes = [32, 256], strides = [1, 1]} : vector<96x256xf32> to vector<32x256xf32>
    %c255_i32_132 = arith.constant 255 : i32
    %232 = tpu.dynamic_rotate %231 by %c255_i32_132 dim 1 : vector<32x256xf32>, i32 -> vector<32x256xf32>
    %c0_133 = arith.constant 0 : index
    %c0_134 = arith.constant 0 : index
    %233 = vector.load %arg9[%c0_133, %c0_134] : memref<32x256xf32, #tpu.memory_space<vmem>>, vector<32x256xf32>
    %234 = arith.mulf %232, %233 : vector<32x256xf32>
    %235 = arith.addf %230, %234 : vector<32x256xf32>
    %236 = vector.broadcast %222 : vector<32x1xf32> to vector<32x256xf32>
    %237 = arith.addf %235, %236 : vector<32x256xf32>
    %c3_135 = arith.constant 3 : index
    %238 = memref.load %arg10[%c3_135] : memref<16xf32, #tpu.memory_space<smem>>
    %cst_136 = arith.constant 0.000000e+00 : f32
    %239 = vector.broadcast %cst_136 : f32 to vector<32x256xf32>
    %240 = arith.cmpf oge, %237, %239 : vector<32x256xf32>
    %241 = vector.broadcast %238 : f32 to vector<32x256xf32>
    %242 = arith.mulf %237, %241 : vector<32x256xf32>
    %243 = arith.select %240, %237, %242 : vector<32x256xi1>, vector<32x256xf32>
    %c5 = arith.constant 5 : index
    %c0_137 = arith.constant 0 : index
    %c0_138 = arith.constant 0 : index
    %244 = vector.load %arg4[%c5, %c0_137, %c0_138] : memref<9x96x32xbf16, #tpu.memory_space<vmem>>, vector<1x96x32xbf16>
    %245 = vector.shape_cast %244 : vector<1x96x32xbf16> to vector<96x32xbf16>
    %246 = vector.extract_strided_slice %245 {offsets = [0, 0], sizes = [32, 32], strides = [1, 1]} : vector<96x32xbf16> to vector<32x32xbf16>
    %c5_139 = arith.constant 5 : index
    %c0_140 = arith.constant 0 : index
    %c0_141 = arith.constant 0 : index
    %247 = vector.load %arg5[%c5_139, %c0_140, %c0_141] : memref<9x32x1xf32, #tpu.memory_space<vmem>>, vector<1x32x1xf32>
    %248 = vector.shape_cast %247 : vector<1x32x1xf32> to vector<32x1xf32>
    %249 = vector.extract_strided_slice %248 {offsets = [0, 0], sizes = [8, 1], strides = [1, 1]} : vector<32x1xf32> to vector<8x1xf32>
    %250 = arith.truncf %243 : vector<32x256xf32> to vector<32x256xbf16>
    %cst_142 = arith.constant dense<0.000000e+00> : vector<32x256xf32>
    %251 = tpu.matmul %246, %250, %cst_142 {dimension_numbers = #tpu.dot_dimension_numbers<[1], [0], [0], [1], [0, 0, 1, 1], [], []>} : vector<32x32xbf16>, vector<32x256xbf16>, vector<32x256xf32> -> vector<32x256xf32>
    %252 = vector.extract_strided_slice %251 {offsets = [0, 0], sizes = [8, 256], strides = [1, 1]} : vector<32x256xf32> to vector<8x256xf32>
    %c1_i32_143 = arith.constant 1 : i32
    %253 = tpu.dynamic_rotate %252 by %c1_i32_143 dim 1 : vector<8x256xf32>, i32 -> vector<8x256xf32>
    %c0_144 = arith.constant 0 : index
    %c0_145 = arith.constant 0 : index
    %254 = vector.load %arg8[%c0_144, %c0_145] : memref<32x256xf32, #tpu.memory_space<vmem>>, vector<8x256xf32>
    %255 = arith.mulf %253, %254 : vector<8x256xf32>
    %256 = vector.extract_strided_slice %251 {offsets = [8, 0], sizes = [8, 256], strides = [1, 1]} : vector<32x256xf32> to vector<8x256xf32>
    %257 = arith.addf %255, %256 : vector<8x256xf32>
    %258 = vector.extract_strided_slice %251 {offsets = [16, 0], sizes = [8, 256], strides = [1, 1]} : vector<32x256xf32> to vector<8x256xf32>
    %c255_i32_146 = arith.constant 255 : i32
    %259 = tpu.dynamic_rotate %258 by %c255_i32_146 dim 1 : vector<8x256xf32>, i32 -> vector<8x256xf32>
    %c0_147 = arith.constant 0 : index
    %c0_148 = arith.constant 0 : index
    %260 = vector.load %arg9[%c0_147, %c0_148] : memref<32x256xf32, #tpu.memory_space<vmem>>, vector<8x256xf32>
    %261 = arith.mulf %259, %260 : vector<8x256xf32>
    %262 = arith.addf %257, %261 : vector<8x256xf32>
    %263 = vector.broadcast %249 : vector<8x1xf32> to vector<8x256xf32>
    %264 = arith.addf %262, %263 : vector<8x256xf32>
    %265 = arith.addf %86, %264 : vector<8x256xf32>
    %266 = vector.extract_strided_slice %265 {offsets = [0, 0], sizes = [1, 256], strides = [1, 1]} : vector<8x256xf32> to vector<1x256xf32>
    %c0_149 = arith.constant 0 : index
    %c0_150 = arith.constant 0 : index
    %267 = vector.load %arg3[%c0_149, %c0_150] : memref<256x256xf32, #tpu.memory_space<vmem>>, vector<256x256xf32>
    %cst_151 = arith.constant dense<0.000000e+00> : vector<1x256xf32>
    %268 = tpu.matmul %266, %267, %cst_151 {dimension_numbers = #tpu.dot_dimension_numbers<[1], [0], [0], [1], [0, 0, 1, 1], [], []>} : vector<1x256xf32>, vector<256x256xf32>, vector<1x256xf32> -> vector<1x256xf32>
    %269 = tpu.concatenate %188, %268, %3 in 0 : vector<8x256xf32>, vector<1x256xf32>, vector<7x256xf32> -> vector<16x256xf32>
    %c4_152 = arith.constant 4 : index
    %c0_153 = arith.constant 0 : index
    %c0_154 = arith.constant 0 : index
    %270 = vector.load %arg6[%c4_152, %c0_153, %c0_154] : memref<12x96x32xbf16, #tpu.memory_space<vmem>>, vector<1x96x32xbf16>
    %271 = vector.shape_cast %270 : vector<1x96x32xbf16> to vector<96x32xbf16>
    %272 = vector.extract_strided_slice %271 {offsets = [0, 0], sizes = [96, 16], strides = [1, 1]} : vector<96x32xbf16> to vector<96x16xbf16>
    %c4_155 = arith.constant 4 : index
    %c0_156 = arith.constant 0 : index
    %c0_157 = arith.constant 0 : index
    %273 = vector.load %arg7[%c4_155, %c0_156, %c0_157] : memref<12x32x1xf32, #tpu.memory_space<vmem>>, vector<1x32x1xf32>
    %274 = vector.shape_cast %273 : vector<1x32x1xf32> to vector<32x1xf32>
    %275 = arith.truncf %269 : vector<16x256xf32> to vector<16x256xbf16>
    %cst_158 = arith.constant dense<0.000000e+00> : vector<96x256xf32>
    %276 = tpu.matmul %272, %275, %cst_158 {dimension_numbers = #tpu.dot_dimension_numbers<[1], [0], [0], [1], [0, 0, 1, 1], [], []>} : vector<96x16xbf16>, vector<16x256xbf16>, vector<96x256xf32> -> vector<96x256xf32>
    %277 = vector.extract_strided_slice %276 {offsets = [0, 0], sizes = [32, 256], strides = [1, 1]} : vector<96x256xf32> to vector<32x256xf32>
    %c1_i32_159 = arith.constant 1 : i32
    %278 = tpu.dynamic_rotate %277 by %c1_i32_159 dim 1 : vector<32x256xf32>, i32 -> vector<32x256xf32>
    %c0_160 = arith.constant 0 : index
    %c0_161 = arith.constant 0 : index
    %279 = vector.load %arg8[%c0_160, %c0_161] : memref<32x256xf32, #tpu.memory_space<vmem>>, vector<32x256xf32>
    %280 = arith.mulf %278, %279 : vector<32x256xf32>
    %281 = vector.extract_strided_slice %276 {offsets = [32, 0], sizes = [32, 256], strides = [1, 1]} : vector<96x256xf32> to vector<32x256xf32>
    %282 = arith.addf %280, %281 : vector<32x256xf32>
    %283 = vector.extract_strided_slice %276 {offsets = [64, 0], sizes = [32, 256], strides = [1, 1]} : vector<96x256xf32> to vector<32x256xf32>
    %c255_i32_162 = arith.constant 255 : i32
    %284 = tpu.dynamic_rotate %283 by %c255_i32_162 dim 1 : vector<32x256xf32>, i32 -> vector<32x256xf32>
    %c0_163 = arith.constant 0 : index
    %c0_164 = arith.constant 0 : index
    %285 = vector.load %arg9[%c0_163, %c0_164] : memref<32x256xf32, #tpu.memory_space<vmem>>, vector<32x256xf32>
    %286 = arith.mulf %284, %285 : vector<32x256xf32>
    %287 = arith.addf %282, %286 : vector<32x256xf32>
    %288 = vector.broadcast %274 : vector<32x1xf32> to vector<32x256xf32>
    %289 = arith.addf %287, %288 : vector<32x256xf32>
    %c9 = arith.constant 9 : index
    %290 = memref.load %arg10[%c9] : memref<16xf32, #tpu.memory_space<smem>>
    %cst_165 = arith.constant 0.000000e+00 : f32
    %291 = vector.broadcast %cst_165 : f32 to vector<32x256xf32>
    %292 = arith.cmpf oge, %289, %291 : vector<32x256xf32>
    %293 = vector.broadcast %290 : f32 to vector<32x256xf32>
    %294 = arith.mulf %289, %293 : vector<32x256xf32>
    %295 = arith.select %292, %289, %294 : vector<32x256xi1>, vector<32x256xf32>
    %c5_166 = arith.constant 5 : index
    %c0_167 = arith.constant 0 : index
    %c0_168 = arith.constant 0 : index
    %296 = vector.load %arg6[%c5_166, %c0_167, %c0_168] : memref<12x96x32xbf16, #tpu.memory_space<vmem>>, vector<1x96x32xbf16>
    %297 = vector.shape_cast %296 : vector<1x96x32xbf16> to vector<96x32xbf16>
    %c5_169 = arith.constant 5 : index
    %c0_170 = arith.constant 0 : index
    %c0_171 = arith.constant 0 : index
    %298 = vector.load %arg7[%c5_169, %c0_170, %c0_171] : memref<12x32x1xf32, #tpu.memory_space<vmem>>, vector<1x32x1xf32>
    %299 = vector.shape_cast %298 : vector<1x32x1xf32> to vector<32x1xf32>
    %300 = arith.truncf %295 : vector<32x256xf32> to vector<32x256xbf16>
    %cst_172 = arith.constant dense<0.000000e+00> : vector<96x256xf32>
    %301 = tpu.matmul %297, %300, %cst_172 {dimension_numbers = #tpu.dot_dimension_numbers<[1], [0], [0], [1], [0, 0, 1, 1], [], []>} : vector<96x32xbf16>, vector<32x256xbf16>, vector<96x256xf32> -> vector<96x256xf32>
    %302 = vector.extract_strided_slice %301 {offsets = [0, 0], sizes = [32, 256], strides = [1, 1]} : vector<96x256xf32> to vector<32x256xf32>
    %c1_i32_173 = arith.constant 1 : i32
    %303 = tpu.dynamic_rotate %302 by %c1_i32_173 dim 1 : vector<32x256xf32>, i32 -> vector<32x256xf32>
    %c0_174 = arith.constant 0 : index
    %c0_175 = arith.constant 0 : index
    %304 = vector.load %arg8[%c0_174, %c0_175] : memref<32x256xf32, #tpu.memory_space<vmem>>, vector<32x256xf32>
    %305 = arith.mulf %303, %304 : vector<32x256xf32>
    %306 = vector.extract_strided_slice %301 {offsets = [32, 0], sizes = [32, 256], strides = [1, 1]} : vector<96x256xf32> to vector<32x256xf32>
    %307 = arith.addf %305, %306 : vector<32x256xf32>
    %308 = vector.extract_strided_slice %301 {offsets = [64, 0], sizes = [32, 256], strides = [1, 1]} : vector<96x256xf32> to vector<32x256xf32>
    %c255_i32_176 = arith.constant 255 : i32
    %309 = tpu.dynamic_rotate %308 by %c255_i32_176 dim 1 : vector<32x256xf32>, i32 -> vector<32x256xf32>
    %c0_177 = arith.constant 0 : index
    %c0_178 = arith.constant 0 : index
    %310 = vector.load %arg9[%c0_177, %c0_178] : memref<32x256xf32, #tpu.memory_space<vmem>>, vector<32x256xf32>
    %311 = arith.mulf %309, %310 : vector<32x256xf32>
    %312 = arith.addf %307, %311 : vector<32x256xf32>
    %313 = vector.broadcast %299 : vector<32x1xf32> to vector<32x256xf32>
    %314 = arith.addf %312, %313 : vector<32x256xf32>
    %c10 = arith.constant 10 : index
    %315 = memref.load %arg10[%c10] : memref<16xf32, #tpu.memory_space<smem>>
    %cst_179 = arith.constant 0.000000e+00 : f32
    %316 = vector.broadcast %cst_179 : f32 to vector<32x256xf32>
    %317 = arith.cmpf oge, %314, %316 : vector<32x256xf32>
    %318 = vector.broadcast %315 : f32 to vector<32x256xf32>
    %319 = arith.mulf %314, %318 : vector<32x256xf32>
    %320 = arith.select %317, %314, %319 : vector<32x256xi1>, vector<32x256xf32>
    %c6_180 = arith.constant 6 : index
    %c0_181 = arith.constant 0 : index
    %c0_182 = arith.constant 0 : index
    %321 = vector.load %arg6[%c6_180, %c0_181, %c0_182] : memref<12x96x32xbf16, #tpu.memory_space<vmem>>, vector<1x96x32xbf16>
    %322 = vector.shape_cast %321 : vector<1x96x32xbf16> to vector<96x32xbf16>
    %c6_183 = arith.constant 6 : index
    %c0_184 = arith.constant 0 : index
    %c0_185 = arith.constant 0 : index
    %323 = vector.load %arg7[%c6_183, %c0_184, %c0_185] : memref<12x32x1xf32, #tpu.memory_space<vmem>>, vector<1x32x1xf32>
    %324 = vector.shape_cast %323 : vector<1x32x1xf32> to vector<32x1xf32>
    %325 = arith.truncf %320 : vector<32x256xf32> to vector<32x256xbf16>
    %cst_186 = arith.constant dense<0.000000e+00> : vector<96x256xf32>
    %326 = tpu.matmul %322, %325, %cst_186 {dimension_numbers = #tpu.dot_dimension_numbers<[1], [0], [0], [1], [0, 0, 1, 1], [], []>} : vector<96x32xbf16>, vector<32x256xbf16>, vector<96x256xf32> -> vector<96x256xf32>
    %327 = vector.extract_strided_slice %326 {offsets = [0, 0], sizes = [32, 256], strides = [1, 1]} : vector<96x256xf32> to vector<32x256xf32>
    %c1_i32_187 = arith.constant 1 : i32
    %328 = tpu.dynamic_rotate %327 by %c1_i32_187 dim 1 : vector<32x256xf32>, i32 -> vector<32x256xf32>
    %c0_188 = arith.constant 0 : index
    %c0_189 = arith.constant 0 : index
    %329 = vector.load %arg8[%c0_188, %c0_189] : memref<32x256xf32, #tpu.memory_space<vmem>>, vector<32x256xf32>
    %330 = arith.mulf %328, %329 : vector<32x256xf32>
    %331 = vector.extract_strided_slice %326 {offsets = [32, 0], sizes = [32, 256], strides = [1, 1]} : vector<96x256xf32> to vector<32x256xf32>
    %332 = arith.addf %330, %331 : vector<32x256xf32>
    %333 = vector.extract_strided_slice %326 {offsets = [64, 0], sizes = [32, 256], strides = [1, 1]} : vector<96x256xf32> to vector<32x256xf32>
    %c255_i32_190 = arith.constant 255 : i32
    %334 = tpu.dynamic_rotate %333 by %c255_i32_190 dim 1 : vector<32x256xf32>, i32 -> vector<32x256xf32>
    %c0_191 = arith.constant 0 : index
    %c0_192 = arith.constant 0 : index
    %335 = vector.load %arg9[%c0_191, %c0_192] : memref<32x256xf32, #tpu.memory_space<vmem>>, vector<32x256xf32>
    %336 = arith.mulf %334, %335 : vector<32x256xf32>
    %337 = arith.addf %332, %336 : vector<32x256xf32>
    %338 = vector.broadcast %324 : vector<32x1xf32> to vector<32x256xf32>
    %339 = arith.addf %337, %338 : vector<32x256xf32>
    %c11 = arith.constant 11 : index
    %340 = memref.load %arg10[%c11] : memref<16xf32, #tpu.memory_space<smem>>
    %cst_193 = arith.constant 0.000000e+00 : f32
    %341 = vector.broadcast %cst_193 : f32 to vector<32x256xf32>
    %342 = arith.cmpf oge, %339, %341 : vector<32x256xf32>
    %343 = vector.broadcast %340 : f32 to vector<32x256xf32>
    %344 = arith.mulf %339, %343 : vector<32x256xf32>
    %345 = arith.select %342, %339, %344 : vector<32x256xi1>, vector<32x256xf32>
    %c7_194 = arith.constant 7 : index
    %c0_195 = arith.constant 0 : index
    %c0_196 = arith.constant 0 : index
    %346 = vector.load %arg6[%c7_194, %c0_195, %c0_196] : memref<12x96x32xbf16, #tpu.memory_space<vmem>>, vector<1x96x32xbf16>
    %347 = vector.shape_cast %346 : vector<1x96x32xbf16> to vector<96x32xbf16>
    %348 = vector.extract_strided_slice %347 {offsets = [0, 0], sizes = [32, 32], strides = [1, 1]} : vector<96x32xbf16> to vector<32x32xbf16>
    %c7_197 = arith.constant 7 : index
    %c0_198 = arith.constant 0 : index
    %c0_199 = arith.constant 0 : index
    %349 = vector.load %arg7[%c7_197, %c0_198, %c0_199] : memref<12x32x1xf32, #tpu.memory_space<vmem>>, vector<1x32x1xf32>
    %350 = vector.shape_cast %349 : vector<1x32x1xf32> to vector<32x1xf32>
    %351 = vector.extract_strided_slice %350 {offsets = [0, 0], sizes = [8, 1], strides = [1, 1]} : vector<32x1xf32> to vector<8x1xf32>
    %352 = arith.truncf %345 : vector<32x256xf32> to vector<32x256xbf16>
    %cst_200 = arith.constant dense<0.000000e+00> : vector<32x256xf32>
    %353 = tpu.matmul %348, %352, %cst_200 {dimension_numbers = #tpu.dot_dimension_numbers<[1], [0], [0], [1], [0, 0, 1, 1], [], []>} : vector<32x32xbf16>, vector<32x256xbf16>, vector<32x256xf32> -> vector<32x256xf32>
    %354 = vector.extract_strided_slice %353 {offsets = [0, 0], sizes = [8, 256], strides = [1, 1]} : vector<32x256xf32> to vector<8x256xf32>
    %c1_i32_201 = arith.constant 1 : i32
    %355 = tpu.dynamic_rotate %354 by %c1_i32_201 dim 1 : vector<8x256xf32>, i32 -> vector<8x256xf32>
    %c0_202 = arith.constant 0 : index
    %c0_203 = arith.constant 0 : index
    %356 = vector.load %arg8[%c0_202, %c0_203] : memref<32x256xf32, #tpu.memory_space<vmem>>, vector<8x256xf32>
    %357 = arith.mulf %355, %356 : vector<8x256xf32>
    %358 = vector.extract_strided_slice %353 {offsets = [8, 0], sizes = [8, 256], strides = [1, 1]} : vector<32x256xf32> to vector<8x256xf32>
    %359 = arith.addf %357, %358 : vector<8x256xf32>
    %360 = vector.extract_strided_slice %353 {offsets = [16, 0], sizes = [8, 256], strides = [1, 1]} : vector<32x256xf32> to vector<8x256xf32>
    %c255_i32_204 = arith.constant 255 : i32
    %361 = tpu.dynamic_rotate %360 by %c255_i32_204 dim 1 : vector<8x256xf32>, i32 -> vector<8x256xf32>
    %c0_205 = arith.constant 0 : index
    %c0_206 = arith.constant 0 : index
    %362 = vector.load %arg9[%c0_205, %c0_206] : memref<32x256xf32, #tpu.memory_space<vmem>>, vector<8x256xf32>
    %363 = arith.mulf %361, %362 : vector<8x256xf32>
    %364 = arith.addf %359, %363 : vector<8x256xf32>
    %365 = vector.broadcast %351 : vector<8x1xf32> to vector<8x256xf32>
    %366 = arith.addf %364, %365 : vector<8x256xf32>
    %367 = arith.addf %188, %366 : vector<8x256xf32>
    %368 = vector.extract_strided_slice %367 {offsets = [1, 0], sizes = [1, 256], strides = [1, 1]} : vector<8x256xf32> to vector<1x256xf32>
    %c0_207 = arith.constant 0 : index
    %c0_208 = arith.constant 0 : index
    %369 = vector.load %arg2[%c0_207, %c0_208] : memref<256x256xf32, #tpu.memory_space<vmem>>, vector<256x256xf32>
    %cst_209 = arith.constant dense<0.000000e+00> : vector<1x256xf32>
    %370 = tpu.matmul %368, %369, %cst_209 {dimension_numbers = #tpu.dot_dimension_numbers<[1], [0], [0], [1], [0, 0, 1, 1], [], []>} : vector<1x256xf32>, vector<256x256xf32>, vector<1x256xf32> -> vector<1x256xf32>
    %371 = tpu.concatenate %265, %370, %2 in 0 : vector<8x256xf32>, vector<1x256xf32>, vector<7x256xf32> -> vector<16x256xf32>
    %c6_210 = arith.constant 6 : index
    %c0_211 = arith.constant 0 : index
    %c0_212 = arith.constant 0 : index
    %372 = vector.load %arg4[%c6_210, %c0_211, %c0_212] : memref<9x96x32xbf16, #tpu.memory_space<vmem>>, vector<1x96x32xbf16>
    %373 = vector.shape_cast %372 : vector<1x96x32xbf16> to vector<96x32xbf16>
    %374 = vector.extract_strided_slice %373 {offsets = [0, 0], sizes = [96, 16], strides = [1, 1]} : vector<96x32xbf16> to vector<96x16xbf16>
    %c6_213 = arith.constant 6 : index
    %c0_214 = arith.constant 0 : index
    %c0_215 = arith.constant 0 : index
    %375 = vector.load %arg5[%c6_213, %c0_214, %c0_215] : memref<9x32x1xf32, #tpu.memory_space<vmem>>, vector<1x32x1xf32>
    %376 = vector.shape_cast %375 : vector<1x32x1xf32> to vector<32x1xf32>
    %377 = arith.truncf %371 : vector<16x256xf32> to vector<16x256xbf16>
    %cst_216 = arith.constant dense<0.000000e+00> : vector<96x256xf32>
    %378 = tpu.matmul %374, %377, %cst_216 {dimension_numbers = #tpu.dot_dimension_numbers<[1], [0], [0], [1], [0, 0, 1, 1], [], []>} : vector<96x16xbf16>, vector<16x256xbf16>, vector<96x256xf32> -> vector<96x256xf32>
    %379 = vector.extract_strided_slice %378 {offsets = [0, 0], sizes = [32, 256], strides = [1, 1]} : vector<96x256xf32> to vector<32x256xf32>
    %c1_i32_217 = arith.constant 1 : i32
    %380 = tpu.dynamic_rotate %379 by %c1_i32_217 dim 1 : vector<32x256xf32>, i32 -> vector<32x256xf32>
    %c0_218 = arith.constant 0 : index
    %c0_219 = arith.constant 0 : index
    %381 = vector.load %arg8[%c0_218, %c0_219] : memref<32x256xf32, #tpu.memory_space<vmem>>, vector<32x256xf32>
    %382 = arith.mulf %380, %381 : vector<32x256xf32>
    %383 = vector.extract_strided_slice %378 {offsets = [32, 0], sizes = [32, 256], strides = [1, 1]} : vector<96x256xf32> to vector<32x256xf32>
    %384 = arith.addf %382, %383 : vector<32x256xf32>
    %385 = vector.extract_strided_slice %378 {offsets = [64, 0], sizes = [32, 256], strides = [1, 1]} : vector<96x256xf32> to vector<32x256xf32>
    %c255_i32_220 = arith.constant 255 : i32
    %386 = tpu.dynamic_rotate %385 by %c255_i32_220 dim 1 : vector<32x256xf32>, i32 -> vector<32x256xf32>
    %c0_221 = arith.constant 0 : index
    %c0_222 = arith.constant 0 : index
    %387 = vector.load %arg9[%c0_221, %c0_222] : memref<32x256xf32, #tpu.memory_space<vmem>>, vector<32x256xf32>
    %388 = arith.mulf %386, %387 : vector<32x256xf32>
    %389 = arith.addf %384, %388 : vector<32x256xf32>
    %390 = vector.broadcast %376 : vector<32x1xf32> to vector<32x256xf32>
    %391 = arith.addf %389, %390 : vector<32x256xf32>
    %c4_223 = arith.constant 4 : index
    %392 = memref.load %arg10[%c4_223] : memref<16xf32, #tpu.memory_space<smem>>
    %cst_224 = arith.constant 0.000000e+00 : f32
    %393 = vector.broadcast %cst_224 : f32 to vector<32x256xf32>
    %394 = arith.cmpf oge, %391, %393 : vector<32x256xf32>
    %395 = vector.broadcast %392 : f32 to vector<32x256xf32>
    %396 = arith.mulf %391, %395 : vector<32x256xf32>
    %397 = arith.select %394, %391, %396 : vector<32x256xi1>, vector<32x256xf32>
    %c7_225 = arith.constant 7 : index
    %c0_226 = arith.constant 0 : index
    %c0_227 = arith.constant 0 : index
    %398 = vector.load %arg4[%c7_225, %c0_226, %c0_227] : memref<9x96x32xbf16, #tpu.memory_space<vmem>>, vector<1x96x32xbf16>
    %399 = vector.shape_cast %398 : vector<1x96x32xbf16> to vector<96x32xbf16>
    %c7_228 = arith.constant 7 : index
    %c0_229 = arith.constant 0 : index
    %c0_230 = arith.constant 0 : index
    %400 = vector.load %arg5[%c7_228, %c0_229, %c0_230] : memref<9x32x1xf32, #tpu.memory_space<vmem>>, vector<1x32x1xf32>
    %401 = vector.shape_cast %400 : vector<1x32x1xf32> to vector<32x1xf32>
    %402 = arith.truncf %397 : vector<32x256xf32> to vector<32x256xbf16>
    %cst_231 = arith.constant dense<0.000000e+00> : vector<96x256xf32>
    %403 = tpu.matmul %399, %402, %cst_231 {dimension_numbers = #tpu.dot_dimension_numbers<[1], [0], [0], [1], [0, 0, 1, 1], [], []>} : vector<96x32xbf16>, vector<32x256xbf16>, vector<96x256xf32> -> vector<96x256xf32>
    %404 = vector.extract_strided_slice %403 {offsets = [0, 0], sizes = [32, 256], strides = [1, 1]} : vector<96x256xf32> to vector<32x256xf32>
    %c1_i32_232 = arith.constant 1 : i32
    %405 = tpu.dynamic_rotate %404 by %c1_i32_232 dim 1 : vector<32x256xf32>, i32 -> vector<32x256xf32>
    %c0_233 = arith.constant 0 : index
    %c0_234 = arith.constant 0 : index
    %406 = vector.load %arg8[%c0_233, %c0_234] : memref<32x256xf32, #tpu.memory_space<vmem>>, vector<32x256xf32>
    %407 = arith.mulf %405, %406 : vector<32x256xf32>
    %408 = vector.extract_strided_slice %403 {offsets = [32, 0], sizes = [32, 256], strides = [1, 1]} : vector<96x256xf32> to vector<32x256xf32>
    %409 = arith.addf %407, %408 : vector<32x256xf32>
    %410 = vector.extract_strided_slice %403 {offsets = [64, 0], sizes = [32, 256], strides = [1, 1]} : vector<96x256xf32> to vector<32x256xf32>
    %c255_i32_235 = arith.constant 255 : i32
    %411 = tpu.dynamic_rotate %410 by %c255_i32_235 dim 1 : vector<32x256xf32>, i32 -> vector<32x256xf32>
    %c0_236 = arith.constant 0 : index
    %c0_237 = arith.constant 0 : index
    %412 = vector.load %arg9[%c0_236, %c0_237] : memref<32x256xf32, #tpu.memory_space<vmem>>, vector<32x256xf32>
    %413 = arith.mulf %411, %412 : vector<32x256xf32>
    %414 = arith.addf %409, %413 : vector<32x256xf32>
    %415 = vector.broadcast %401 : vector<32x1xf32> to vector<32x256xf32>
    %416 = arith.addf %414, %415 : vector<32x256xf32>
    %c5_238 = arith.constant 5 : index
    %417 = memref.load %arg10[%c5_238] : memref<16xf32, #tpu.memory_space<smem>>
    %cst_239 = arith.constant 0.000000e+00 : f32
    %418 = vector.broadcast %cst_239 : f32 to vector<32x256xf32>
    %419 = arith.cmpf oge, %416, %418 : vector<32x256xf32>
    %420 = vector.broadcast %417 : f32 to vector<32x256xf32>
    %421 = arith.mulf %416, %420 : vector<32x256xf32>
    %422 = arith.select %419, %416, %421 : vector<32x256xi1>, vector<32x256xf32>
    %c8_240 = arith.constant 8 : index
    %c0_241 = arith.constant 0 : index
    %c0_242 = arith.constant 0 : index
    %423 = vector.load %arg4[%c8_240, %c0_241, %c0_242] : memref<9x96x32xbf16, #tpu.memory_space<vmem>>, vector<1x96x32xbf16>
    %424 = vector.shape_cast %423 : vector<1x96x32xbf16> to vector<96x32xbf16>
    %425 = vector.extract_strided_slice %424 {offsets = [0, 0], sizes = [32, 32], strides = [1, 1]} : vector<96x32xbf16> to vector<32x32xbf16>
    %c8_243 = arith.constant 8 : index
    %c0_244 = arith.constant 0 : index
    %c0_245 = arith.constant 0 : index
    %426 = vector.load %arg5[%c8_243, %c0_244, %c0_245] : memref<9x32x1xf32, #tpu.memory_space<vmem>>, vector<1x32x1xf32>
    %427 = vector.shape_cast %426 : vector<1x32x1xf32> to vector<32x1xf32>
    %428 = vector.extract_strided_slice %427 {offsets = [0, 0], sizes = [8, 1], strides = [1, 1]} : vector<32x1xf32> to vector<8x1xf32>
    %429 = arith.truncf %422 : vector<32x256xf32> to vector<32x256xbf16>
    %cst_246 = arith.constant dense<0.000000e+00> : vector<32x256xf32>
    %430 = tpu.matmul %425, %429, %cst_246 {dimension_numbers = #tpu.dot_dimension_numbers<[1], [0], [0], [1], [0, 0, 1, 1], [], []>} : vector<32x32xbf16>, vector<32x256xbf16>, vector<32x256xf32> -> vector<32x256xf32>
    %431 = vector.extract_strided_slice %430 {offsets = [0, 0], sizes = [8, 256], strides = [1, 1]} : vector<32x256xf32> to vector<8x256xf32>
    %c1_i32_247 = arith.constant 1 : i32
    %432 = tpu.dynamic_rotate %431 by %c1_i32_247 dim 1 : vector<8x256xf32>, i32 -> vector<8x256xf32>
    %c0_248 = arith.constant 0 : index
    %c0_249 = arith.constant 0 : index
    %433 = vector.load %arg8[%c0_248, %c0_249] : memref<32x256xf32, #tpu.memory_space<vmem>>, vector<8x256xf32>
    %434 = arith.mulf %432, %433 : vector<8x256xf32>
    %435 = vector.extract_strided_slice %430 {offsets = [8, 0], sizes = [8, 256], strides = [1, 1]} : vector<32x256xf32> to vector<8x256xf32>
    %436 = arith.addf %434, %435 : vector<8x256xf32>
    %437 = vector.extract_strided_slice %430 {offsets = [16, 0], sizes = [8, 256], strides = [1, 1]} : vector<32x256xf32> to vector<8x256xf32>
    %c255_i32_250 = arith.constant 255 : i32
    %438 = tpu.dynamic_rotate %437 by %c255_i32_250 dim 1 : vector<8x256xf32>, i32 -> vector<8x256xf32>
    %c0_251 = arith.constant 0 : index
    %c0_252 = arith.constant 0 : index
    %439 = vector.load %arg9[%c0_251, %c0_252] : memref<32x256xf32, #tpu.memory_space<vmem>>, vector<8x256xf32>
    %440 = arith.mulf %438, %439 : vector<8x256xf32>
    %441 = arith.addf %436, %440 : vector<8x256xf32>
    %442 = vector.broadcast %428 : vector<8x1xf32> to vector<8x256xf32>
    %443 = arith.addf %441, %442 : vector<8x256xf32>
    %444 = arith.addf %265, %443 : vector<8x256xf32>
    %445 = vector.extract_strided_slice %444 {offsets = [0, 0], sizes = [1, 256], strides = [1, 1]} : vector<8x256xf32> to vector<1x256xf32>
    %c0_253 = arith.constant 0 : index
    %c0_254 = arith.constant 0 : index
    %446 = vector.load %arg3[%c0_253, %c0_254] : memref<256x256xf32, #tpu.memory_space<vmem>>, vector<256x256xf32>
    %cst_255 = arith.constant dense<0.000000e+00> : vector<1x256xf32>
    %447 = tpu.matmul %445, %446, %cst_255 {dimension_numbers = #tpu.dot_dimension_numbers<[1], [0], [0], [1], [0, 0, 1, 1], [], []>} : vector<1x256xf32>, vector<256x256xf32>, vector<1x256xf32> -> vector<1x256xf32>
    %448 = tpu.concatenate %367, %447, %3 in 0 : vector<8x256xf32>, vector<1x256xf32>, vector<7x256xf32> -> vector<16x256xf32>
    %c8_256 = arith.constant 8 : index
    %c0_257 = arith.constant 0 : index
    %c0_258 = arith.constant 0 : index
    %449 = vector.load %arg6[%c8_256, %c0_257, %c0_258] : memref<12x96x32xbf16, #tpu.memory_space<vmem>>, vector<1x96x32xbf16>
    %450 = vector.shape_cast %449 : vector<1x96x32xbf16> to vector<96x32xbf16>
    %451 = vector.extract_strided_slice %450 {offsets = [0, 0], sizes = [96, 16], strides = [1, 1]} : vector<96x32xbf16> to vector<96x16xbf16>
    %c8_259 = arith.constant 8 : index
    %c0_260 = arith.constant 0 : index
    %c0_261 = arith.constant 0 : index
    %452 = vector.load %arg7[%c8_259, %c0_260, %c0_261] : memref<12x32x1xf32, #tpu.memory_space<vmem>>, vector<1x32x1xf32>
    %453 = vector.shape_cast %452 : vector<1x32x1xf32> to vector<32x1xf32>
    %454 = arith.truncf %448 : vector<16x256xf32> to vector<16x256xbf16>
    %cst_262 = arith.constant dense<0.000000e+00> : vector<96x256xf32>
    %455 = tpu.matmul %451, %454, %cst_262 {dimension_numbers = #tpu.dot_dimension_numbers<[1], [0], [0], [1], [0, 0, 1, 1], [], []>} : vector<96x16xbf16>, vector<16x256xbf16>, vector<96x256xf32> -> vector<96x256xf32>
    %456 = vector.extract_strided_slice %455 {offsets = [0, 0], sizes = [32, 256], strides = [1, 1]} : vector<96x256xf32> to vector<32x256xf32>
    %c1_i32_263 = arith.constant 1 : i32
    %457 = tpu.dynamic_rotate %456 by %c1_i32_263 dim 1 : vector<32x256xf32>, i32 -> vector<32x256xf32>
    %c0_264 = arith.constant 0 : index
    %c0_265 = arith.constant 0 : index
    %458 = vector.load %arg8[%c0_264, %c0_265] : memref<32x256xf32, #tpu.memory_space<vmem>>, vector<32x256xf32>
    %459 = arith.mulf %457, %458 : vector<32x256xf32>
    %460 = vector.extract_strided_slice %455 {offsets = [32, 0], sizes = [32, 256], strides = [1, 1]} : vector<96x256xf32> to vector<32x256xf32>
    %461 = arith.addf %459, %460 : vector<32x256xf32>
    %462 = vector.extract_strided_slice %455 {offsets = [64, 0], sizes = [32, 256], strides = [1, 1]} : vector<96x256xf32> to vector<32x256xf32>
    %c255_i32_266 = arith.constant 255 : i32
    %463 = tpu.dynamic_rotate %462 by %c255_i32_266 dim 1 : vector<32x256xf32>, i32 -> vector<32x256xf32>
    %c0_267 = arith.constant 0 : index
    %c0_268 = arith.constant 0 : index
    %464 = vector.load %arg9[%c0_267, %c0_268] : memref<32x256xf32, #tpu.memory_space<vmem>>, vector<32x256xf32>
    %465 = arith.mulf %463, %464 : vector<32x256xf32>
    %466 = arith.addf %461, %465 : vector<32x256xf32>
    %467 = vector.broadcast %453 : vector<32x1xf32> to vector<32x256xf32>
    %468 = arith.addf %466, %467 : vector<32x256xf32>
    %c12 = arith.constant 12 : index
    %469 = memref.load %arg10[%c12] : memref<16xf32, #tpu.memory_space<smem>>
    %cst_269 = arith.constant 0.000000e+00 : f32
    %470 = vector.broadcast %cst_269 : f32 to vector<32x256xf32>
    %471 = arith.cmpf oge, %468, %470 : vector<32x256xf32>
    %472 = vector.broadcast %469 : f32 to vector<32x256xf32>
    %473 = arith.mulf %468, %472 : vector<32x256xf32>
    %474 = arith.select %471, %468, %473 : vector<32x256xi1>, vector<32x256xf32>
    %c9_270 = arith.constant 9 : index
    %c0_271 = arith.constant 0 : index
    %c0_272 = arith.constant 0 : index
    %475 = vector.load %arg6[%c9_270, %c0_271, %c0_272] : memref<12x96x32xbf16, #tpu.memory_space<vmem>>, vector<1x96x32xbf16>
    %476 = vector.shape_cast %475 : vector<1x96x32xbf16> to vector<96x32xbf16>
    %c9_273 = arith.constant 9 : index
    %c0_274 = arith.constant 0 : index
    %c0_275 = arith.constant 0 : index
    %477 = vector.load %arg7[%c9_273, %c0_274, %c0_275] : memref<12x32x1xf32, #tpu.memory_space<vmem>>, vector<1x32x1xf32>
    %478 = vector.shape_cast %477 : vector<1x32x1xf32> to vector<32x1xf32>
    %479 = arith.truncf %474 : vector<32x256xf32> to vector<32x256xbf16>
    %cst_276 = arith.constant dense<0.000000e+00> : vector<96x256xf32>
    %480 = tpu.matmul %476, %479, %cst_276 {dimension_numbers = #tpu.dot_dimension_numbers<[1], [0], [0], [1], [0, 0, 1, 1], [], []>} : vector<96x32xbf16>, vector<32x256xbf16>, vector<96x256xf32> -> vector<96x256xf32>
    %481 = vector.extract_strided_slice %480 {offsets = [0, 0], sizes = [32, 256], strides = [1, 1]} : vector<96x256xf32> to vector<32x256xf32>
    %c1_i32_277 = arith.constant 1 : i32
    %482 = tpu.dynamic_rotate %481 by %c1_i32_277 dim 1 : vector<32x256xf32>, i32 -> vector<32x256xf32>
    %c0_278 = arith.constant 0 : index
    %c0_279 = arith.constant 0 : index
    %483 = vector.load %arg8[%c0_278, %c0_279] : memref<32x256xf32, #tpu.memory_space<vmem>>, vector<32x256xf32>
    %484 = arith.mulf %482, %483 : vector<32x256xf32>
    %485 = vector.extract_strided_slice %480 {offsets = [32, 0], sizes = [32, 256], strides = [1, 1]} : vector<96x256xf32> to vector<32x256xf32>
    %486 = arith.addf %484, %485 : vector<32x256xf32>
    %487 = vector.extract_strided_slice %480 {offsets = [64, 0], sizes = [32, 256], strides = [1, 1]} : vector<96x256xf32> to vector<32x256xf32>
    %c255_i32_280 = arith.constant 255 : i32
    %488 = tpu.dynamic_rotate %487 by %c255_i32_280 dim 1 : vector<32x256xf32>, i32 -> vector<32x256xf32>
    %c0_281 = arith.constant 0 : index
    %c0_282 = arith.constant 0 : index
    %489 = vector.load %arg9[%c0_281, %c0_282] : memref<32x256xf32, #tpu.memory_space<vmem>>, vector<32x256xf32>
    %490 = arith.mulf %488, %489 : vector<32x256xf32>
    %491 = arith.addf %486, %490 : vector<32x256xf32>
    %492 = vector.broadcast %478 : vector<32x1xf32> to vector<32x256xf32>
    %493 = arith.addf %491, %492 : vector<32x256xf32>
    %c13 = arith.constant 13 : index
    %494 = memref.load %arg10[%c13] : memref<16xf32, #tpu.memory_space<smem>>
    %cst_283 = arith.constant 0.000000e+00 : f32
    %495 = vector.broadcast %cst_283 : f32 to vector<32x256xf32>
    %496 = arith.cmpf oge, %493, %495 : vector<32x256xf32>
    %497 = vector.broadcast %494 : f32 to vector<32x256xf32>
    %498 = arith.mulf %493, %497 : vector<32x256xf32>
    %499 = arith.select %496, %493, %498 : vector<32x256xi1>, vector<32x256xf32>
    %c10_284 = arith.constant 10 : index
    %c0_285 = arith.constant 0 : index
    %c0_286 = arith.constant 0 : index
    %500 = vector.load %arg6[%c10_284, %c0_285, %c0_286] : memref<12x96x32xbf16, #tpu.memory_space<vmem>>, vector<1x96x32xbf16>
    %501 = vector.shape_cast %500 : vector<1x96x32xbf16> to vector<96x32xbf16>
    %c10_287 = arith.constant 10 : index
    %c0_288 = arith.constant 0 : index
    %c0_289 = arith.constant 0 : index
    %502 = vector.load %arg7[%c10_287, %c0_288, %c0_289] : memref<12x32x1xf32, #tpu.memory_space<vmem>>, vector<1x32x1xf32>
    %503 = vector.shape_cast %502 : vector<1x32x1xf32> to vector<32x1xf32>
    %504 = arith.truncf %499 : vector<32x256xf32> to vector<32x256xbf16>
    %cst_290 = arith.constant dense<0.000000e+00> : vector<96x256xf32>
    %505 = tpu.matmul %501, %504, %cst_290 {dimension_numbers = #tpu.dot_dimension_numbers<[1], [0], [0], [1], [0, 0, 1, 1], [], []>} : vector<96x32xbf16>, vector<32x256xbf16>, vector<96x256xf32> -> vector<96x256xf32>
    %506 = vector.extract_strided_slice %505 {offsets = [0, 0], sizes = [32, 256], strides = [1, 1]} : vector<96x256xf32> to vector<32x256xf32>
    %c1_i32_291 = arith.constant 1 : i32
    %507 = tpu.dynamic_rotate %506 by %c1_i32_291 dim 1 : vector<32x256xf32>, i32 -> vector<32x256xf32>
    %c0_292 = arith.constant 0 : index
    %c0_293 = arith.constant 0 : index
    %508 = vector.load %arg8[%c0_292, %c0_293] : memref<32x256xf32, #tpu.memory_space<vmem>>, vector<32x256xf32>
    %509 = arith.mulf %507, %508 : vector<32x256xf32>
    %510 = vector.extract_strided_slice %505 {offsets = [32, 0], sizes = [32, 256], strides = [1, 1]} : vector<96x256xf32> to vector<32x256xf32>
    %511 = arith.addf %509, %510 : vector<32x256xf32>
    %512 = vector.extract_strided_slice %505 {offsets = [64, 0], sizes = [32, 256], strides = [1, 1]} : vector<96x256xf32> to vector<32x256xf32>
    %c255_i32_294 = arith.constant 255 : i32
    %513 = tpu.dynamic_rotate %512 by %c255_i32_294 dim 1 : vector<32x256xf32>, i32 -> vector<32x256xf32>
    %c0_295 = arith.constant 0 : index
    %c0_296 = arith.constant 0 : index
    %514 = vector.load %arg9[%c0_295, %c0_296] : memref<32x256xf32, #tpu.memory_space<vmem>>, vector<32x256xf32>
    %515 = arith.mulf %513, %514 : vector<32x256xf32>
    %516 = arith.addf %511, %515 : vector<32x256xf32>
    %517 = vector.broadcast %503 : vector<32x1xf32> to vector<32x256xf32>
    %518 = arith.addf %516, %517 : vector<32x256xf32>
    %c14 = arith.constant 14 : index
    %519 = memref.load %arg10[%c14] : memref<16xf32, #tpu.memory_space<smem>>
    %cst_297 = arith.constant 0.000000e+00 : f32
    %520 = vector.broadcast %cst_297 : f32 to vector<32x256xf32>
    %521 = arith.cmpf oge, %518, %520 : vector<32x256xf32>
    %522 = vector.broadcast %519 : f32 to vector<32x256xf32>
    %523 = arith.mulf %518, %522 : vector<32x256xf32>
    %524 = arith.select %521, %518, %523 : vector<32x256xi1>, vector<32x256xf32>
    %c11_298 = arith.constant 11 : index
    %c0_299 = arith.constant 0 : index
    %c0_300 = arith.constant 0 : index
    %525 = vector.load %arg6[%c11_298, %c0_299, %c0_300] : memref<12x96x32xbf16, #tpu.memory_space<vmem>>, vector<1x96x32xbf16>
    %526 = vector.shape_cast %525 : vector<1x96x32xbf16> to vector<96x32xbf16>
    %527 = vector.extract_strided_slice %526 {offsets = [0, 0], sizes = [32, 32], strides = [1, 1]} : vector<96x32xbf16> to vector<32x32xbf16>
    %c11_301 = arith.constant 11 : index
    %c0_302 = arith.constant 0 : index
    %c0_303 = arith.constant 0 : index
    %528 = vector.load %arg7[%c11_301, %c0_302, %c0_303] : memref<12x32x1xf32, #tpu.memory_space<vmem>>, vector<1x32x1xf32>
    %529 = vector.shape_cast %528 : vector<1x32x1xf32> to vector<32x1xf32>
    %530 = vector.extract_strided_slice %529 {offsets = [0, 0], sizes = [8, 1], strides = [1, 1]} : vector<32x1xf32> to vector<8x1xf32>
    %531 = arith.truncf %524 : vector<32x256xf32> to vector<32x256xbf16>
    %cst_304 = arith.constant dense<0.000000e+00> : vector<32x256xf32>
    %532 = tpu.matmul %527, %531, %cst_304 {dimension_numbers = #tpu.dot_dimension_numbers<[1], [0], [0], [1], [0, 0, 1, 1], [], []>} : vector<32x32xbf16>, vector<32x256xbf16>, vector<32x256xf32> -> vector<32x256xf32>
    %533 = vector.extract_strided_slice %532 {offsets = [0, 0], sizes = [8, 256], strides = [1, 1]} : vector<32x256xf32> to vector<8x256xf32>
    %c1_i32_305 = arith.constant 1 : i32
    %534 = tpu.dynamic_rotate %533 by %c1_i32_305 dim 1 : vector<8x256xf32>, i32 -> vector<8x256xf32>
    %c0_306 = arith.constant 0 : index
    %c0_307 = arith.constant 0 : index
    %535 = vector.load %arg8[%c0_306, %c0_307] : memref<32x256xf32, #tpu.memory_space<vmem>>, vector<8x256xf32>
    %536 = arith.mulf %534, %535 : vector<8x256xf32>
    %537 = vector.extract_strided_slice %532 {offsets = [8, 0], sizes = [8, 256], strides = [1, 1]} : vector<32x256xf32> to vector<8x256xf32>
    %538 = arith.addf %536, %537 : vector<8x256xf32>
    %539 = vector.extract_strided_slice %532 {offsets = [16, 0], sizes = [8, 256], strides = [1, 1]} : vector<32x256xf32> to vector<8x256xf32>
    %c255_i32_308 = arith.constant 255 : i32
    %540 = tpu.dynamic_rotate %539 by %c255_i32_308 dim 1 : vector<8x256xf32>, i32 -> vector<8x256xf32>
    %c0_309 = arith.constant 0 : index
    %c0_310 = arith.constant 0 : index
    %541 = vector.load %arg9[%c0_309, %c0_310] : memref<32x256xf32, #tpu.memory_space<vmem>>, vector<8x256xf32>
    %542 = arith.mulf %540, %541 : vector<8x256xf32>
    %543 = arith.addf %538, %542 : vector<8x256xf32>
    %544 = vector.broadcast %530 : vector<8x1xf32> to vector<8x256xf32>
    %545 = arith.addf %543, %544 : vector<8x256xf32>
    %546 = arith.addf %367, %545 : vector<8x256xf32>
    %547 = vector.extract_strided_slice %546 {offsets = [0, 0], sizes = [1, 256], strides = [1, 1]} : vector<8x256xf32> to vector<1x256xf32>
    %c0_311 = arith.constant 0 : index
    %c0_312 = arith.constant 0 : index
    %548 = vector.load %arg11[%c0_311, %c0_312] : memref<1x256xf32, #tpu.memory_space<vmem>>, vector<1x256xf32>
    tpu.vector_store %arg11[%c0_311, %c0_312], %547 {strides = array<i32>} : memref<1x256xf32, #tpu.memory_space<vmem>>, vector<1x256xf32>,
    return
  }
}

</mosaic_0001>

<llo_original>
// kernel: lpd_forward.1
$region0: #{lpd_forward.1}
  #allocation0 [shape = 'u32[]', space=smem, size = 0x4, offset = 0x4, fixed_abs, tag = 'smem constant byte address 0x4 - core index']
  #allocation1 [shape = 'u32[144,128]{1,0:T(1,128)}', space=vmem, size = 0x12000, scoped, tag = 'internal scratch']
  %s0 = inlined_call_operand.vmem [shape: f32[1,256], index: 0, kind: input, shape index: {}]
  %s1 = inlined_call_operand.vmem [shape: f32[1,256], index: 1, kind: input, shape index: {}]
  %s2 = inlined_call_operand.vmem [shape: f32[256,256], index: 2, kind: input, shape index: {}]
  %s3 = inlined_call_operand.vmem [shape: f32[256,256], index: 3, kind: input, shape index: {}]
  %s4 = inlined_call_operand.vmem [shape: bf16[9,96,32], index: 4, kind: input, shape index: {}]
  %s5 = inlined_call_operand.vmem [shape: f32[9,32,1], index: 5, kind: input, shape index: {}]
  %s6 = inlined_call_operand.vmem [shape: bf16[12,96,32], index: 6, kind: input, shape index: {}]
  %s7 = inlined_call_operand.vmem [shape: f32[12,32,1], index: 7, kind: input, shape index: {}]
  %s8 = inlined_call_operand.vmem [shape: f32[32,256], index: 8, kind: input, shape index: {}]
  %s9 = inlined_call_operand.vmem [shape: f32[32,256], index: 9, kind: input, shape index: {}]
  %s10 = inlined_call_operand.vmem [shape: f32[16], index: 10, kind: input, shape index: {}]
  %s11 = inlined_call_operand.hbm [shape: f32[1,256], index: 11, kind: output, shape index: {}]
  %s12 = sld [smem:[#allocation0]]
  $region58: #{lpd_forward.1} parent=0
    _
  %s14 = ssub.s32 1, %s12
  %s15 = scalar_select 0, %s14, %s12
  $region1: #{lpd_forward.1} parent=0
    #allocation2 [shape = 'u8[512]{0}', space=smem, size = 0x200, scoped, tag = 'input window, operand 10, single buffered']
    #allocation3 [shape = 's32[1]{0}', space=sflag, size = 0x4, scoped, tag = 'scoped memory for lpd_forward.1']
    #allocation4 [shape = 's32[1]{0}', space=sflag, size = 0x4, scoped, tag = 'scoped memory for lpd_forward.1']
    #allocation5 [shape = 'u8[1024]{0}', space=vmem, size = 0x400, scoped, tag = 'output window, operand 0, single buffered']
    %16 = vsyncpa [#allocation4], 0
    %17 = vsyncpa [#allocation3], 0
    // Predicated region
    $region2: #{lpd_forward.1} parent=1 // pred_check
      _
    $region3: #{lpd_forward.1} parent=1 // pred_check_branch
      %19 = sbr.rel (0) target = $region5
    $region4: #{lpd_forward.1} parent=1 // pred_region
      _
    $region5: #{lpd_forward.1} parent=1 // pred_fallthru
      _
    // Predicated region
    $region6: #{lpd_forward.1} parent=1 // pred_check
      _
    $region7: #{lpd_forward.1} parent=1 // pred_check_branch
      %21 = sbr.rel (0) target = $region9
    $region8: #{lpd_forward.1} parent=1 // pred_region
      _
    $region9: #{lpd_forward.1} parent=1 // pred_fallthru
      _
    // Predicated region
    $region10: #{lpd_forward.1} parent=1 // pred_check
      _
    $region11: #{lpd_forward.1} parent=1 // pred_check_branch
      %23 = sbr.rel (0) target = $region13
    $region12: #{lpd_forward.1} parent=1 // pred_region
      _
    $region13: #{lpd_forward.1} parent=1 // pred_fallthru
      _
    // Predicated region
    $region14: #{lpd_forward.1} parent=1 // pred_check
      _
    $region15: #{lpd_forward.1} parent=1 // pred_check_branch
      %25 = sbr.rel (0) target = $region17
    $region16: #{lpd_forward.1} parent=1 // pred_region
      _
    $region17: #{lpd_forward.1} parent=1 // pred_fallthru
      _
    // Predicated region
    $region18: #{lpd_forward.1} parent=1 // pred_check
      _
    $region19: #{lpd_forward.1} parent=1 // pred_check_branch
      %27 = sbr.rel (0) target = $region21
    $region20: #{lpd_forward.1} parent=1 // pred_region
      _
    $region21: #{lpd_forward.1} parent=1 // pred_fallthru
      _
    // Predicated region
    $region22: #{lpd_forward.1} parent=1 // pred_check
      _
    $region23: #{lpd_forward.1} parent=1 // pred_check_branch
      %29 = sbr.rel (0) target = $region25
    $region24: #{lpd_forward.1} parent=1 // pred_region
      _
    $region25: #{lpd_forward.1} parent=1 // pred_fallthru
      _
    // Predicated region
    $region26: #{lpd_forward.1} parent=1 // pred_check
      _
    $region27: #{lpd_forward.1} parent=1 // pred_check_branch
      %31 = sbr.rel (0) target = $region29
    $region28: #{lpd_forward.1} parent=1 // pred_region
      _
    $region29: #{lpd_forward.1} parent=1 // pred_fallthru
      _
    // Predicated region
    $region30: #{lpd_forward.1} parent=1 // pred_check
      _
    $region31: #{lpd_forward.1} parent=1 // pred_check_branch
      %33 = sbr.rel (0) target = $region33
    $region32: #{lpd_forward.1} parent=1 // pred_region
      _
    $region33: #{lpd_forward.1} parent=1 // pred_fallthru
      _
    // Predicated region
    $region34: #{lpd_forward.1} parent=1 // pred_check
      _
    $region35: #{lpd_forward.1} parent=1 // pred_check_branch
      %35 = sbr.rel (0) target = $region37
    $region36: #{lpd_forward.1} parent=1 // pred_region
      _
    $region37: #{lpd_forward.1} parent=1 // pred_fallthru
      _
    // Predicated region
    $region38: #{lpd_forward.1} parent=1 // pred_check
      _
    $region39: #{lpd_forward.1} parent=1 // pred_check_branch
      %37 = sbr.rel (0) target = $region41
    $region40: #{lpd_forward.1} parent=1 // pred_region
      _
    $region41: #{lpd_forward.1} parent=1 // pred_fallthru
      _
    // Predicated region
    $region42: #{lpd_forward.1} parent=1 // pred_check
      _
    $region43: #{lpd_forward.1} parent=1 // pred_check_branch
      %39 = sbr.rel (0) target = $region45
    $region44: #{lpd_forward.1} parent=1 // pred_region
      %s41 = ssub.s32 16, 16
      %42 = vsyncadd [#allocation4], %s41
      %s44 = sshll.u32 %s10, 4
      %s45 = int_to_ptr.vmem [resolvable:$true] %s44
      %47 = dma.vmem_to_smem %s45, 16, [#allocation2], [#allocation4]
    $region45: #{lpd_forward.1} parent=1 // pred_fallthru
      _
    // Predicated region
    $region46: #{lpd_forward.1} parent=1 // pred_check
      _
    $region47: #{lpd_forward.1} parent=1 // pred_check_branch
      %49 = sbr.rel (0) target = $region49
    $region48: #{lpd_forward.1} parent=1 // pred_region
      %50 = dma.done [#allocation4], 16
    $region49: #{lpd_forward.1} parent=1 // pred_fallthru
      _
    %51 = sfence
    %v53 = vld [vmem:[%s1] sm:$0x3]
    %v55 = vlaneseq
    %v56 = vshrl.u32 %v55, 7
    %v57 = vsub.s32 0, %v56
    %v58 = vrot.slane %v53, %v57
    %v59 = vlaneseq
    %v60 = vshrl.u32 %v59, 7
    %v61 = vsub.s32 1, %v60
    %v62 = vrot.slane %v53, %v61
    %vm65 = vcmask 1040384
    %v66 = vsel %vm65, %v58, 0.0
    %v67 = vsel %vm65, %v62, 0.0
    %v68 = vld [vmem:[%s0] sm:$0x3]
    %v70 = vlaneseq
    %v71 = vshrl.u32 %v70, 7
    %v72 = vsub.s32 0, %v71
    %v73 = vrot.slane %v68, %v72
    %v74 = vlaneseq
    %v75 = vshrl.u32 %v74, 7
    %v76 = vsub.s32 1, %v75
    %v77 = vrot.slane %v68, %v76
    %vm80 = vcmask 1044480
    %v81 = vsel %vm80, %v73, 0.0
    %v82 = vsel %vm80, %v77, 0.0
    %v83 = vld [vmem:[%s2] sm:$0xff]
    %v84 = vld [vmem:[%s2 + $0x8] sm:$0xff]
    %v85 = vld [vmem:[%s2 + $0x10] sm:$0xff]
    %v86 = vld [vmem:[%s2 + $0x18] sm:$0xff]
    %v87 = vld [vmem:[%s2 + $0x20] sm:$0xff]
    %v88 = vld [vmem:[%s2 + $0x28] sm:$0xff]
    %v89 = vld [vmem:[%s2 + $0x30] sm:$0xff]
    %v90 = vld [vmem:[%s2 + $0x38] sm:$0xff]
    %v91 = vld [vmem:[%s2 + $0x40] sm:$0xff]
    %v92 = vld [vmem:[%s2 + $0x48] sm:$0xff]
    %v93 = vld [vmem:[%s2 + $0x50] sm:$0xff]
    %v94 = vld [vmem:[%s2 + $0x58] sm:$0xff]
    %v95 = vld [vmem:[%s2 + $0x60] sm:$0xff]
    %v96 = vld [vmem:[%s2 + $0x68] sm:$0xff]
    %v97 = vld [vmem:[%s2 + $0x70] sm:$0xff]
    %v98 = vld [vmem:[%s2 + $0x78] sm:$0xff]
    %v99 = vld [vmem:[%s2 + $0x80] sm:$0xff]
    %v100 = vld [vmem:[%s2 + $0x88] sm:$0xff]
    %v101 = vld [vmem:[%s2 + $0x90] sm:$0xff]
    %v102 = vld [vmem:[%s2 + $0x98] sm:$0xff]
    %v103 = vld [vmem:[%s2 + $0xa0] sm:$0xff]
    %v104 = vld [vmem:[%s2 + $0xa8] sm:$0xff]
    %v105 = vld [vmem:[%s2 + $0xb0] sm:$0xff]
    %v106 = vld [vmem:[%s2 + $0xb8] sm:$0xff]
    %v107 = vld [vmem:[%s2 + $0xc0] sm:$0xff]
    %v108 = vld [vmem:[%s2 + $0xc8] sm:$0xff]
    %v109 = vld [vmem:[%s2 + $0xd0] sm:$0xff]
    %v110 = vld [vmem:[%s2 + $0xd8] sm:$0xff]
    %v111 = vld [vmem:[%s2 + $0xe0] sm:$0xff]
    %v112 = vld [vmem:[%s2 + $0xe8] sm:$0xff]
    %v113 = vld [vmem:[%s2 + $0xf0] sm:$0xff]
    %v114 = vld [vmem:[%s2 + $0xf8] sm:$0xff]
    %v115 = vld [vmem:[%s2 + $0x100] sm:$0xff]
    %v116 = vld [vmem:[%s2 + $0x108] sm:$0xff]
    %v117 = vld [vmem:[%s2 + $0x110] sm:$0xff]
    %v118 = vld [vmem:[%s2 + $0x118] sm:$0xff]
    %v119 = vld [vmem:[%s2 + $0x120] sm:$0xff]
    %v120 = vld [vmem:[%s2 + $0x128] sm:$0xff]
    %v121 = vld [vmem:[%s2 + $0x130] sm:$0xff]
    %v122 = vld [vmem:[%s2 + $0x138] sm:$0xff]
    %v123 = vld [vmem:[%s2 + $0x140] sm:$0xff]
    %v124 = vld [vmem:[%s2 + $0x148] sm:$0xff]
    %v125 = vld [vmem:[%s2 + $0x150] sm:$0xff]
    %v126 = vld [vmem:[%s2 + $0x158] sm:$0xff]
    %v127 = vld [vmem:[%s2 + $0x160] sm:$0xff]
    %v128 = vld [vmem:[%s2 + $0x168] sm:$0xff]
    %v129 = vld [vmem:[%s2 + $0x170] sm:$0xff]
    %v130 = vld [vmem:[%s2 + $0x178] sm:$0xff]
    %v131 = vld [vmem:[%s2 + $0x180] sm:$0xff]
    %v132 = vld [vmem:[%s2 + $0x188] sm:$0xff]
    %v133 = vld [vmem:[%s2 + $0x190] sm:$0xff]
    %v134 = vld [vmem:[%s2 + $0x198] sm:$0xff]
    %v135 = vld [vmem:[%s2 + $0x1a0] sm:$0xff]
    %v136 = vld [vmem:[%s2 + $0x1a8] sm:$0xff]
    %v137 = vld [vmem:[%s2 + $0x1b0] sm:$0xff]
    %v138 = vld [vmem:[%s2 + $0x1b8] sm:$0xff]
    %v139 = vld [vmem:[%s2 + $0x1c0] sm:$0xff]
    %v140 = vld [vmem:[%s2 + $0x1c8] sm:$0xff]
    %v141 = vld [vmem:[%s2 + $0x1d0] sm:$0xff]
    %v142 = vld [vmem:[%s2 + $0x1d8] sm:$0xff]
    %v143 = vld [vmem:[%s2 + $0x1e0] sm:$0xff]
    %v144 = vld [vmem:[%s2 + $0x1e8] sm:$0xff]
    %v145 = vld [vmem:[%s2 + $0x1f0] sm:$0xff]
    %v146 = vld [vmem:[%s2 + $0x1f8] sm:$0xff]
    %v149 = vrot.slane %v81, 1
    %v150 = vrot.slane %v82, 1
    %153 = vmatprep.subr.mxu0 %v84
    %154 = vmatpush1.msra.mxu0 %v83
    %155 = vmatprep.subr.mxu0 %v86
    %156 = vmatpush1.msra.mxu0 %v85
    %157 = vmatprep.subr.mxu0 %v88
    %158 = vmatpush1.msra.mxu0 %v87
    %159 = vmatprep.subr.mxu0 %v90
    %160 = vmatpush1.msra.mxu0 %v89
    %161 = vmatprep.subr.mxu0 %v92
    %162 = vmatpush1.msra.mxu0 %v91
    %163 = vmatprep.subr.mxu0 %v94
    %164 = vmatpush1.msra.mxu0 %v93
    %165 = vmatprep.subr.mxu0 %v96
    %166 = vmatpush1.msra.mxu0 %v95
    %167 = vmatprep.subr.mxu0 %v98
    %168 = vmatpush1.msra.mxu0 %v97
    %169 = vmatprep.subr.mxu0 %v100
    %170 = vmatpush1.msra.mxu0 %v99
    %171 = vmatprep.subr.mxu0 %v102
    %172 = vmatpush1.msra.mxu0 %v101
    %173 = vmatprep.subr.mxu0 %v104
    %174 = vmatpush1.msra.mxu0 %v103
    %175 = vmatprep.subr.mxu0 %v106
    %176 = vmatpush1.msra.mxu0 %v105
    %177 = vmatprep.subr.mxu0 %v108
    %178 = vmatpush1.msra.mxu0 %v107
    %179 = vmatprep.subr.mxu0 %v110
    %180 = vmatpush1.msra.mxu0 %v109
    %181 = vmatprep.subr.mxu0 %v112
    %182 = vmatpush1.msra.mxu0 %v111
    %183 = vmatprep.subr.mxu0 %v114
    %184 = vmatpush1.msra.mxu0 %v113
    %185 = vmatprep.subr.mxu0 %v116
    %186 = vmatpush1.msra.mxu0 %v115
    %187 = vmatprep.subr.mxu0 %v118
    %188 = vmatpush1.msra.mxu0 %v117
    %189 = vmatprep.subr.mxu0 %v120
    %190 = vmatpush1.msra.mxu0 %v119
    %191 = vmatprep.subr.mxu0 %v122
    %192 = vmatpush1.msra.mxu0 %v121
    %193 = vmatprep.subr.mxu0 %v124
    %194 = vmatpush1.msra.mxu0 %v123
    %195 = vmatprep.subr.mxu0 %v126
    %196 = vmatpush1.msra.mxu0 %v125
    %197 = vmatprep.subr.mxu0 %v128
    %198 = vmatpush1.msra.mxu0 %v127
    %199 = vmatprep.subr.mxu0 %v130
    %200 = vmatpush1.msra.mxu0 %v129
    %201 = vmatprep.subr.mxu0 %v132
    %202 = vmatpush1.msra.mxu0 %v131
    %203 = vmatprep.subr.mxu0 %v134
    %204 = vmatpush1.msra.mxu0 %v133
    %205 = vmatprep.subr.mxu0 %v136
    %206 = vmatpush1.msra.mxu0 %v135
    %207 = vmatprep.subr.mxu0 %v138
    %208 = vmatpush1.msra.mxu0 %v137
    %209 = vmatprep.subr.mxu0 %v140
    %210 = vmatpush1.msra.mxu0 %v139
    %211 = vmatprep.subr.mxu0 %v142
    %212 = vmatpush1.msra.mxu0 %v141
    %213 = vmatprep.subr.mxu0 %v144
    %214 = vmatpush1.msra.mxu0 %v143
    %215 = vmatprep.subr.mxu0 %v146
    %216 = vmatpush1.msra.mxu0 %v145
    %217 = vmatprep.mubr.f32.mxu0 %v150
    %218 = vmatmul.mubr.f32.gmra.mrb[0].mxu0 %v149
    %v219 = vpop.f32.mrb[0].mxu0
    %v220 = vadd.f32 0.0, %v219
    %v221 = vpop.f32.mrb[0].mxu0
    %v222 = vadd.f32 0.0, %v221
    %223 = vdwg.mxu0
    %v226 = vrot.slane %v66, 7
    %v227 = vrot.slane %v67, 7
    %v230 = vsel %vm65, %v220, %v226
    %v231 = vsel %vm65, %v222, %v227
    %v232 = vld [vmem:[%s4] sm:$0xf]
    %v233 = vld [vmem:[%s4 + $0x4] sm:$0xf]
    %v234 = vld [vmem:[%s4 + $0x8] sm:$0xf]
    %v235 = vld [vmem:[%s4 + $0xc] sm:$0xf]
    %v236 = vld [vmem:[%s4 + $0x10] sm:$0xf]
    %v237 = vld [vmem:[%s4 + $0x14] sm:$0xf]
    %v238 = vld [vmem:[%s4 + $0x18] sm:$0xf]
    %v239 = vld [vmem:[%s4 + $0x1c] sm:$0xf]
    %v240 = vld [vmem:[%s4 + $0x20] sm:$0xf]
    %v241 = vld [vmem:[%s4 + $0x24] sm:$0xf]
    %v242 = vld [vmem:[%s4 + $0x28] sm:$0xf]
    %v243 = vld [vmem:[%s4 + $0x2c] sm:$0xf]
    %v244 = vld [vmem:[%s5] sm:$0xff]
    %v245 = vld [vmem:[%s5 + $0x8] sm:$0xff]
    %v246 = vld [vmem:[%s5 + $0x10] sm:$0xff]
    %v247 = vld [vmem:[%s5 + $0x18] sm:$0xff]
    %v248 = vpack.c.bf16 %v230, 0.0
    %v249 = vpack.c.bf16 %v231, 0.0
    %v262 = vunpack.c.l.b16 %v232
    %v263 = vunpack.c.l.b16 %v233
    %v264 = vunpack.c.l.b16 %v234
    %v265 = vunpack.c.l.b16 %v235
    %v266 = vunpack.c.l.b16 %v236
    %v267 = vunpack.c.l.b16 %v237
    %v268 = vunpack.c.l.b16 %v238
    %v269 = vunpack.c.l.b16 %v239
    %v270 = vunpack.c.l.b16 %v240
    %v271 = vunpack.c.l.b16 %v241
    %v272 = vunpack.c.l.b16 %v242
    %v273 = vunpack.c.l.b16 %v243
    %v274 = vpack.c.b16 %v263, %v262
    %v275 = vpack.c.b16 %v265, %v264
    %v276 = vpack.c.b16 %v267, %v266
    %v277 = vpack.c.b16 %v269, %v268
    %v278 = vpack.c.b16 %v271, %v270
    %v279 = vpack.c.b16 %v273, %v272
    %vm280 = vcmask 130048
    %v282 = vsel %vm280, %v274, 0
    %v285 = vsel %vm280, %v275, 0
    %v288 = vsel %vm280, %v276, 0
    %v291 = vsel %vm280, %v277, 0
    %v294 = vsel %vm280, %v278, 0
    %v297 = vsel %vm280, %v279, 0
    %299 = vmatprep.subr.bf16.mxu0 %v249
    %300 = vmatpush1.bf16.msra.mxu0 %v248
    %301 = vmatprep.subr.bf16.mxu0 0
    %302 = vmatpush1.bf16.msra.mxu0 0
    %303 = vmatprep.subr.bf16.mxu0 0
    %304 = vmatpush1.bf16.msra.mxu0 0
    %305 = vmatprep.subr.bf16.mxu0 0
    %306 = vmatpush1.bf16.msra.mxu0 0
    %307 = vmatprep.subr.bf16.mxu0 0
    %308 = vmatpush1.bf16.msra.mxu0 0
    %309 = vmatprep.subr.bf16.mxu0 0
    %310 = vmatpush1.bf16.msra.mxu0 0
    %311 = vmatprep.subr.bf16.mxu0 0
    %312 = vmatpush1.bf16.msra.mxu0 0
    %313 = vmatprep.subr.bf16.mxu0 0
    %314 = vmatpush1.bf16.msra.mxu0 0
    %315 = vmatprep.subr.bf16.mxu0 0
    %316 = vmatpush1.bf16.msra.mxu0 0
    %317 = vmatprep.subr.bf16.mxu0 0
    %318 = vmatpush1.bf16.msra.mxu0 0
    %319 = vmatprep.subr.bf16.mxu0 0
    %320 = vmatpush1.bf16.msra.mxu0 0
    %321 = vmatprep.subr.bf16.mxu0 0
    %322 = vmatpush1.bf16.msra.mxu0 0
    %323 = vmatprep.subr.bf16.mxu0 0
    %324 = vmatpush1.bf16.msra.mxu0 0
    %325 = vmatprep.subr.bf16.mxu0 0
    %326 = vmatpush1.bf16.msra.mxu0 0
    %327 = vmatprep.subr.bf16.mxu0 0
    %328 = vmatpush1.bf16.msra.mxu0 0
    %329 = vmatprep.subr.bf16.mxu0 0
    %330 = vmatpush1.bf16.msra.mxu0 0
    %331 = vmatprep.mubr.bf16.mxu0 0
    %332 = vmatmul.mubr.bf16.gmra.mrb[0].mxu0 %v282
    %v333 = vpop.f32.mrb[0].mxu0
    %v334 = vadd.f32 0.0, %v333
    %v335 = vpop.f32.mrb[0].mxu0
    %v336 = vadd.f32 0.0, %v335
    %v337 = vpop.f32.mrb[0].mxu0
    %v338 = vadd.f32 0.0, %v337
    %v339 = vpop.f32.mrb[0].mxu0
    %v340 = vadd.f32 0.0, %v339
    %341 = vmatprep.mubr.bf16.mxu0 0
    %342 = vmatmul.mubr.bf16.gmra.mrb[0].mxu0 %v285
    %v343 = vpop.f32.mrb[0].mxu0
    %v344 = vadd.f32 0.0, %v343
    %v345 = vpop.f32.mrb[0].mxu0
    %v346 = vadd.f32 0.0, %v345
    %v347 = vpop.f32.mrb[0].mxu0
    %v348 = vadd.f32 0.0, %v347
    %v349 = vpop.f32.mrb[0].mxu0
    %v350 = vadd.f32 0.0, %v349
    %351 = vmatprep.mubr.bf16.mxu0 0
    %352 = vmatmul.mubr.bf16.gmra.mrb[0].mxu0 %v288
    %v353 = vpop.f32.mrb[0].mxu0
    %v354 = vadd.f32 0.0, %v353
    %v355 = vpop.f32.mrb[0].mxu0
    %v356 = vadd.f32 0.0, %v355
    %v357 = vpop.f32.mrb[0].mxu0
    %v358 = vadd.f32 0.0, %v357
    %v359 = vpop.f32.mrb[0].mxu0
    %v360 = vadd.f32 0.0, %v359
    %361 = vmatprep.mubr.bf16.mxu0 0
    %362 = vmatmul.mubr.bf16.gmra.mrb[0].mxu0 %v291
    %v363 = vpop.f32.mrb[0].mxu0
    %v364 = vadd.f32 0.0, %v363
    %v365 = vpop.f32.mrb[0].mxu0
    %v366 = vadd.f32 0.0, %v365
    %v367 = vpop.f32.mrb[0].mxu0
    %v368 = vadd.f32 0.0, %v367
    %v369 = vpop.f32.mrb[0].mxu0
    %v370 = vadd.f32 0.0, %v369
    %371 = vmatprep.mubr.bf16.mxu0 0
    %372 = vmatmul.mubr.bf16.gmra.mrb[0].mxu0 %v294
    %v373 = vpop.f32.mrb[0].mxu0
    %v374 = vadd.f32 0.0, %v373
    %v375 = vpop.f32.mrb[0].mxu0
    %v376 = vadd.f32 0.0, %v375
    %v377 = vpop.f32.mrb[0].mxu0
    %v378 = vadd.f32 0.0, %v377
    %v379 = vpop.f32.mrb[0].mxu0
    %v380 = vadd.f32 0.0, %v379
    %381 = vmatprep.mubr.bf16.mxu0 0
    %382 = vmatmul.mubr.bf16.gmra.mrb[0].mxu0 %v297
    %v383 = vpop.f32.mrb[0].mxu0
    %v384 = vadd.f32 0.0, %v383
    %v385 = vpop.f32.mrb[0].mxu0
    %v386 = vadd.f32 0.0, %v385
    %v387 = vpop.f32.mrb[0].mxu0
    %v388 = vadd.f32 0.0, %v387
    %v389 = vpop.f32.mrb[0].mxu0
    %v390 = vadd.f32 0.0, %v389
    %391 = vdwg.mxu0
    %392 = vrot.lane.b32.xlu0 %v334, 1
    %v393 = vpop.permute.xlu0 %392
    %394 = vrot.lane.b32.xlu0 %v338, 1
    %v395 = vpop.permute.xlu0 %394
    %396 = vrot.lane.b32.xlu0 %v344, 1
    %v397 = vpop.permute.xlu0 %396
    %398 = vrot.lane.b32.xlu0 %v348, 1
    %v399 = vpop.permute.xlu0 %398
    %400 = vrot.lane.b32.xlu0 %v336, 1
    %v401 = vpop.permute.xlu0 %400
    %402 = vrot.lane.b32.xlu0 %v340, 1
    %v403 = vpop.permute.xlu0 %402
    %404 = vrot.lane.b32.xlu0 %v346, 1
    %v405 = vpop.permute.xlu0 %404
    %406 = vrot.lane.b32.xlu0 %v350, 1
    %v407 = vpop.permute.xlu0 %406
    %v408 = vlaneseq
    %v409 = vand.u32 %v408, 127
    %vm410 = vcmp.lt.s32.totalorder %v409, 1
    %v411 = vsel %vm410, %v393, %v401
    %v412 = vsel %vm410, %v395, %v403
    %v413 = vsel %vm410, %v397, %v405
    %v414 = vsel %vm410, %v399, %v407
    %v415 = vsel %vm410, %v401, %v393
    %v416 = vsel %vm410, %v403, %v395
    %v417 = vsel %vm410, %v405, %v397
    %v418 = vsel %vm410, %v407, %v399
    %v419 = vld [vmem:[%s8] sm:$0xff]
    %v420 = vld [vmem:[%s8 + $0x8] sm:$0xff]
    %v421 = vld [vmem:[%s8 + $0x10] sm:$0xff]
    %v422 = vld [vmem:[%s8 + $0x18] sm:$0xff]
    %v423 = vld [vmem:[%s8 + $0x20] sm:$0xff]
    %v424 = vld [vmem:[%s8 + $0x28] sm:$0xff]
    %v425 = vld [vmem:[%s8 + $0x30] sm:$0xff]
    %v426 = vld [vmem:[%s8 + $0x38] sm:$0xff]
    %v427 = vmul.f32 %v415, %v419
    %v428 = vmul.f32 %v411, %v420
    %v429 = vmul.f32 %v416, %v421
    %v430 = vmul.f32 %v412, %v422
    %v431 = vmul.f32 %v417, %v423
    %v432 = vmul.f32 %v413, %v424
    %v433 = vmul.f32 %v418, %v425
    %v434 = vmul.f32 %v414, %v426
    %v435 = vadd.f32 %v427, %v354
    %v436 = vadd.f32 %v428, %v356
    %v437 = vadd.f32 %v429, %v358
    %v438 = vadd.f32 %v430, %v360
    %v439 = vadd.f32 %v431, %v364
    %v440 = vadd.f32 %v432, %v366
    %v441 = vadd.f32 %v433, %v368
    %v442 = vadd.f32 %v434, %v370
    %443 = vrot.lane.b32.xlu0 %v374, 127
    %v444 = vpop.permute.xlu0 %443
    %445 = vrot.lane.b32.xlu0 %v378, 127
    %v446 = vpop.permute.xlu0 %445
    %447 = vrot.lane.b32.xlu0 %v384, 127
    %v448 = vpop.permute.xlu0 %447
    %449 = vrot.lane.b32.xlu0 %v388, 127
    %v450 = vpop.permute.xlu0 %449
    %451 = vrot.lane.b32.xlu0 %v376, 127
    %v452 = vpop.permute.xlu0 %451
    %453 = vrot.lane.b32.xlu0 %v380, 127
    %v454 = vpop.permute.xlu0 %453
    %455 = vrot.lane.b32.xlu0 %v386, 127
    %v456 = vpop.permute.xlu0 %455
    %457 = vrot.lane.b32.xlu0 %v390, 127
    %v458 = vpop.permute.xlu0 %457
    %vm459 = vcmp.lt.s32.totalorder %v409, 127
    %v460 = vsel %vm459, %v444, %v452
    %v461 = vsel %vm459, %v446, %v454
    %v462 = vsel %vm459, %v448, %v456
    %v463 = vsel %vm459, %v450, %v458
    %v464 = vsel %vm459, %v452, %v444
    %v465 = vsel %vm459, %v454, %v446
    %v466 = vsel %vm459, %v456, %v448
    %v467 = vsel %vm459, %v458, %v450
    %v468 = vld [vmem:[%s9] sm:$0xff]
    %v469 = vld [vmem:[%s9 + $0x8] sm:$0xff]
    %v470 = vld [vmem:[%s9 + $0x10] sm:$0xff]
    %v471 = vld [vmem:[%s9 + $0x18] sm:$0xff]
    %v472 = vld [vmem:[%s9 + $0x20] sm:$0xff]
    %v473 = vld [vmem:[%s9 + $0x28] sm:$0xff]
    %v474 = vld [vmem:[%s9 + $0x30] sm:$0xff]
    %v475 = vld [vmem:[%s9 + $0x38] sm:$0xff]
    %v476 = vmul.f32 %v460, %v468
    %v477 = vmul.f32 %v464, %v469
    %v478 = vmul.f32 %v461, %v470
    %v479 = vmul.f32 %v465, %v471
    %v480 = vmul.f32 %v462, %v472
    %v481 = vmul.f32 %v466, %v473
    %v482 = vmul.f32 %v463, %v474
    %v483 = vmul.f32 %v467, %v475
    %v484 = vadd.f32 %v435, %v476
    %v485 = vadd.f32 %v436, %v477
    %v486 = vadd.f32 %v437, %v478
    %v487 = vadd.f32 %v438, %v479
    %v488 = vadd.f32 %v439, %v480
    %v489 = vadd.f32 %v440, %v481
    %v490 = vadd.f32 %v441, %v482
    %v491 = vadd.f32 %v442, %v483
    %493 = vset.pattern.permute.xlu0 0
    %494 = vperm.xlu0 %493, %v244
    %v495 = vpop.permute.xlu0 %494
    %498 = vset.pattern.permute.xlu0 0
    %499 = vperm.xlu0 %498, %v245
    %v500 = vpop.permute.xlu0 %499
    %503 = vset.pattern.permute.xlu0 0
    %504 = vperm.xlu0 %503, %v246
    %v505 = vpop.permute.xlu0 %504
    %508 = vset.pattern.permute.xlu0 0
    %509 = vperm.xlu0 %508, %v247
    %v510 = vpop.permute.xlu0 %509
    %v512 = vadd.f32 %v484, %v495
    %v513 = vadd.f32 %v485, %v495
    %v514 = vadd.f32 %v486, %v500
    %v515 = vadd.f32 %v487, %v500
    %v516 = vadd.f32 %v488, %v505
    %v517 = vadd.f32 %v489, %v505
    %v518 = vadd.f32 %v490, %v510
    %v519 = vadd.f32 %v491, %v510
    %s520 = sld [smem:[#allocation2]]
    %vm521 = vcmp.ge.f32.partialorder %v512, 0.0
    %vm522 = vcmp.ge.f32.partialorder %v513, 0.0
    %vm523 = vcmp.ge.f32.partialorder %v514, 0.0
    %vm524 = vcmp.ge.f32.partialorder %v515, 0.0
    %vm525 = vcmp.ge.f32.partialorder %v516, 0.0
    %vm526 = vcmp.ge.f32.partialorder %v517, 0.0
    %vm527 = vcmp.ge.f32.partialorder %v518, 0.0
    %vm528 = vcmp.ge.f32.partialorder %v519, 0.0
    %v529 = vstv %s520
    %v530 = vmul.f32 %v512, %v529
    %v531 = vmul.f32 %v513, %v529
    %v532 = vmul.f32 %v514, %v529
    %v533 = vmul.f32 %v515, %v529
    %v534 = vmul.f32 %v516, %v529
    %v535 = vmul.f32 %v517, %v529
    %v536 = vmul.f32 %v518, %v529
    %v537 = vmul.f32 %v519, %v529
    %v538 = vsel %vm521, %v512, %v530
    %v539 = vsel %vm522, %v513, %v531
    %v540 = vsel %vm523, %v514, %v532
    %v541 = vsel %vm524, %v515, %v533
    %v542 = vsel %vm525, %v516, %v534
    %v543 = vsel %vm526, %v517, %v535
    %v544 = vsel %vm527, %v518, %v536
    %v545 = vsel %vm528, %v519, %v537
    %s546 = scalar_lea.vmem %s4, 48
    %v547 = vld [vmem:[%s546] sm:$0xf]
    %v548 = vld [vmem:[%s546 + $0x4] sm:$0xf]
    %v549 = vld [vmem:[%s546 + $0x8] sm:$0xf]
    %v550 = vld [vmem:[%s546 + $0xc] sm:$0xf]
    %v551 = vld [vmem:[%s546 + $0x10] sm:$0xf]
    %v552 = vld [vmem:[%s546 + $0x14] sm:$0xf]
    %v553 = vld [vmem:[%s546 + $0x18] sm:$0xf]
    %v554 = vld [vmem:[%s546 + $0x1c] sm:$0xf]
    %v555 = vld [vmem:[%s546 + $0x20] sm:$0xf]
    %v556 = vld [vmem:[%s546 + $0x24] sm:$0xf]
    %v557 = vld [vmem:[%s546 + $0x28] sm:$0xf]
    %v558 = vld [vmem:[%s546 + $0x2c] sm:$0xf]
    %s559 = scalar_lea.vmem %s5, 32
    %v560 = vld [vmem:[%s559] sm:$0xff]
    %v561 = vld [vmem:[%s559 + $0x8] sm:$0xff]
    %v562 = vld [vmem:[%s559 + $0x10] sm:$0xff]
    %v563 = vld [vmem:[%s559 + $0x18] sm:$0xff]
    %v564 = vpack.c.bf16 %v540, %v538
    %v565 = vpack.c.bf16 %v541, %v539
    %v566 = vpack.c.bf16 %v544, %v542
    %v567 = vpack.c.bf16 %v545, %v543
    %v580 = vunpack.c.l.b16 %v547
    %v581 = vunpack.c.l.b16 %v548
    %v582 = vunpack.c.l.b16 %v549
    %v583 = vunpack.c.l.b16 %v550
    %v584 = vunpack.c.l.b16 %v551
    %v585 = vunpack.c.l.b16 %v552
    %v586 = vunpack.c.l.b16 %v553
    %v587 = vunpack.c.l.b16 %v554
    %v588 = vunpack.c.l.b16 %v555
    %v589 = vunpack.c.l.b16 %v556
    %v590 = vunpack.c.l.b16 %v557
    %v591 = vunpack.c.l.b16 %v558
    %v592 = vpack.c.b16 %v581, %v580
    %v593 = vpack.c.b16 %v583, %v582
    %v594 = vpack.c.b16 %v585, %v584
    %v595 = vpack.c.b16 %v587, %v586
    %v596 = vpack.c.b16 %v589, %v588
    %v597 = vpack.c.b16 %v591, %v590
    %vm598 = vcmask 261120
    %v600 = vsel %vm598, %v592, 0
    %v603 = vsel %vm598, %v593, 0
    %v606 = vsel %vm598, %v594, 0
    %v609 = vsel %vm598, %v595, 0
    %v612 = vsel %vm598, %v596, 0
    %v615 = vsel %vm598, %v597, 0
    %617 = vmatprep.subr.bf16.mxu0 %v565
    %618 = vmatpush1.bf16.msra.mxu0 %v564
    %619 = vmatprep.subr.bf16.mxu0 %v567
    %620 = vmatpush1.bf16.msra.mxu0 %v566
    %621 = vmatprep.subr.bf16.mxu0 0
    %622 = vmatpush1.bf16.msra.mxu0 0
    %623 = vmatprep.subr.bf16.mxu0 0
    %624 = vmatpush1.bf16.msra.mxu0 0
    %625 = vmatprep.subr.bf16.mxu0 0
    %626 = vmatpush1.bf16.msra.mxu0 0
    %627 = vmatprep.subr.bf16.mxu0 0
    %628 = vmatpush1.bf16.msra.mxu0 0
    %629 = vmatprep.subr.bf16.mxu0 0
    %630 = vmatpush1.bf16.msra.mxu0 0
    %631 = vmatprep.subr.bf16.mxu0 0
    %632 = vmatpush1.bf16.msra.mxu0 0
    %633 = vmatprep.subr.bf16.mxu0 0
    %634 = vmatpush1.bf16.msra.mxu0 0
    %635 = vmatprep.subr.bf16.mxu0 0
    %636 = vmatpush1.bf16.msra.mxu0 0
    %637 = vmatprep.subr.bf16.mxu0 0
    %638 = vmatpush1.bf16.msra.mxu0 0
    %639 = vmatprep.subr.bf16.mxu0 0
    %640 = vmatpush1.bf16.msra.mxu0 0
    %641 = vmatprep.subr.bf16.mxu0 0
    %642 = vmatpush1.bf16.msra.mxu0 0
    %643 = vmatprep.subr.bf16.mxu0 0
    %644 = vmatpush1.bf16.msra.mxu0 0
    %645 = vmatprep.subr.bf16.mxu0 0
    %646 = vmatpush1.bf16.msra.mxu0 0
    %647 = vmatprep.subr.bf16.mxu0 0
    %648 = vmatpush1.bf16.msra.mxu0 0
    %649 = vmatprep.mubr.bf16.mxu0 0
    %650 = vmatmul.mubr.bf16.gmra.mrb[0].mxu0 %v600
    %v651 = vpop.f32.mrb[0].mxu0
    %v652 = vadd.f32 0.0, %v651
    %v653 = vpop.f32.mrb[0].mxu0
    %v654 = vadd.f32 0.0, %v653
    %v655 = vpop.f32.mrb[0].mxu0
    %v656 = vadd.f32 0.0, %v655
    %v657 = vpop.f32.mrb[0].mxu0
    %v658 = vadd.f32 0.0, %v657
    %659 = vmatprep.mubr.bf16.mxu0 0
    %660 = vmatmul.mubr.bf16.gmra.mrb[0].mxu0 %v603
    %v661 = vpop.f32.mrb[0].mxu0
    %v662 = vadd.f32 0.0, %v661
    %v663 = vpop.f32.mrb[0].mxu0
    %v664 = vadd.f32 0.0, %v663
    %v665 = vpop.f32.mrb[0].mxu0
    %v666 = vadd.f32 0.0, %v665
    %v667 = vpop.f32.mrb[0].mxu0
    %v668 = vadd.f32 0.0, %v667
    %669 = vmatprep.mubr.bf16.mxu0 0
    %670 = vmatmul.mubr.bf16.gmra.mrb[0].mxu0 %v606
    %v671 = vpop.f32.mrb[0].mxu0
    %v672 = vadd.f32 0.0, %v671
    %v673 = vpop.f32.mrb[0].mxu0
    %v674 = vadd.f32 0.0, %v673
    %v675 = vpop.f32.mrb[0].mxu0
    %v676 = vadd.f32 0.0, %v675
    %v677 = vpop.f32.mrb[0].mxu0
    %v678 = vadd.f32 0.0, %v677
    %679 = vmatprep.mubr.bf16.mxu0 0
    %680 = vmatmul.mubr.bf16.gmra.mrb[0].mxu0 %v609
    %v681 = vpop.f32.mrb[0].mxu0
    %v682 = vadd.f32 0.0, %v681
    %v683 = vpop.f32.mrb[0].mxu0
    %v684 = vadd.f32 0.0, %v683
    %v685 = vpop.f32.mrb[0].mxu0
    %v686 = vadd.f32 0.0, %v685
    %v687 = vpop.f32.mrb[0].mxu0
    %v688 = vadd.f32 0.0, %v687
    %689 = vmatprep.mubr.bf16.mxu0 0
    %690 = vmatmul.mubr.bf16.gmra.mrb[0].mxu0 %v612
    %v691 = vpop.f32.mrb[0].mxu0
    %v692 = vadd.f32 0.0, %v691
    %v693 = vpop.f32.mrb[0].mxu0
    %v694 = vadd.f32 0.0, %v693
    %v695 = vpop.f32.mrb[0].mxu0
    %v696 = vadd.f32 0.0, %v695
    %v697 = vpop.f32.mrb[0].mxu0
    %v698 = vadd.f32 0.0, %v697
    %699 = vmatprep.mubr.bf16.mxu0 0
    %700 = vmatmul.mubr.bf16.gmra.mrb[0].mxu0 %v615
    %v701 = vpop.f32.mrb[0].mxu0
    %v702 = vadd.f32 0.0, %v701
    %v703 = vpop.f32.mrb[0].mxu0
    %v704 = vadd.f32 0.0, %v703
    %v705 = vpop.f32.mrb[0].mxu0
    %v706 = vadd.f32 0.0, %v705
    %v707 = vpop.f32.mrb[0].mxu0
    %v708 = vadd.f32 0.0, %v707
    %709 = vdwg.mxu0
    %710 = vrot.lane.b32.xlu0 %v652, 1
    %v711 = vpop.permute.xlu0 %710
    %712 = vrot.lane.b32.xlu0 %v656, 1
    %v713 = vpop.permute.xlu0 %712
    %714 = vrot.lane.b32.xlu0 %v662, 1
    %v715 = vpop.permute.xlu0 %714
    %716 = vrot.lane.b32.xlu0 %v666, 1
    %v717 = vpop.permute.xlu0 %716
    %718 = vrot.lane.b32.xlu0 %v654, 1
    %v719 = vpop.permute.xlu0 %718
    %720 = vrot.lane.b32.xlu0 %v658, 1
    %v721 = vpop.permute.xlu0 %720
    %722 = vrot.lane.b32.xlu0 %v664, 1
    %v723 = vpop.permute.xlu0 %722
    %724 = vrot.lane.b32.xlu0 %v668, 1
    %v725 = vpop.permute.xlu0 %724
    %v726 = vsel %vm410, %v711, %v719
    %v727 = vsel %vm410, %v713, %v721
    %v728 = vsel %vm410, %v715, %v723
    %v729 = vsel %vm410, %v717, %v725
    %v730 = vsel %vm410, %v719, %v711
    %v731 = vsel %vm410, %v721, %v713
    %v732 = vsel %vm410, %v723, %v715
    %v733 = vsel %vm410, %v725, %v717
    %v734 = vmul.f32 %v730, %v419
    %v735 = vmul.f32 %v726, %v420
    %v736 = vmul.f32 %v731, %v421
    %v737 = vmul.f32 %v727, %v422
    %v738 = vmul.f32 %v732, %v423
    %v739 = vmul.f32 %v728, %v424
    %v740 = vmul.f32 %v733, %v425
    %v741 = vmul.f32 %v729, %v426
    %v742 = vadd.f32 %v734, %v672
    %v743 = vadd.f32 %v735, %v674
    %v744 = vadd.f32 %v736, %v676
    %v745 = vadd.f32 %v737, %v678
    %v746 = vadd.f32 %v738, %v682
    %v747 = vadd.f32 %v739, %v684
    %v748 = vadd.f32 %v740, %v686
    %v749 = vadd.f32 %v741, %v688
    %750 = vrot.lane.b32.xlu0 %v692, 127
    %v751 = vpop.permute.xlu0 %750
    %752 = vrot.lane.b32.xlu0 %v696, 127
    %v753 = vpop.permute.xlu0 %752
    %754 = vrot.lane.b32.xlu0 %v702, 127
    %v755 = vpop.permute.xlu0 %754
    %756 = vrot.lane.b32.xlu0 %v706, 127
    %v757 = vpop.permute.xlu0 %756
    %758 = vrot.lane.b32.xlu0 %v694, 127
    %v759 = vpop.permute.xlu0 %758
    %760 = vrot.lane.b32.xlu0 %v698, 127
    %v761 = vpop.permute.xlu0 %760
    %762 = vrot.lane.b32.xlu0 %v704, 127
    %v763 = vpop.permute.xlu0 %762
    %764 = vrot.lane.b32.xlu0 %v708, 127
    %v765 = vpop.permute.xlu0 %764
    %v766 = vsel %vm459, %v751, %v759
    %v767 = vsel %vm459, %v753, %v761
    %v768 = vsel %vm459, %v755, %v763
    %v769 = vsel %vm459, %v757, %v765
    %v770 = vsel %vm459, %v759, %v751
    %v771 = vsel %vm459, %v761, %v753
    %v772 = vsel %vm459, %v763, %v755
    %v773 = vsel %vm459, %v765, %v757
    %v774 = vmul.f32 %v766, %v468
    %v775 = vmul.f32 %v770, %v469
    %v776 = vmul.f32 %v767, %v470
    %v777 = vmul.f32 %v771, %v471
    %v778 = vmul.f32 %v768, %v472
    %v779 = vmul.f32 %v772, %v473
    %v780 = vmul.f32 %v769, %v474
    %v781 = vmul.f32 %v773, %v475
    %v782 = vadd.f32 %v742, %v774
    %v783 = vadd.f32 %v743, %v775
    %v784 = vadd.f32 %v744, %v776
    %v785 = vadd.f32 %v745, %v777
    %v786 = vadd.f32 %v746, %v778
    %v787 = vadd.f32 %v747, %v779
    %v788 = vadd.f32 %v748, %v780
    %v789 = vadd.f32 %v749, %v781
    %791 = vset.pattern.permute.xlu0 0
    %792 = vperm.xlu0 %791, %v560
    %v793 = vpop.permute.xlu0 %792
    %796 = vset.pattern.permute.xlu0 0
    %797 = vperm.xlu0 %796, %v561
    %v798 = vpop.permute.xlu0 %797
    %801 = vset.pattern.permute.xlu0 0
    %802 = vperm.xlu0 %801, %v562
    %v803 = vpop.permute.xlu0 %802
    %806 = vset.pattern.permute.xlu0 0
    %807 = vperm.xlu0 %806, %v563
    %v808 = vpop.permute.xlu0 %807
    %v810 = vadd.f32 %v782, %v793
    %v811 = vadd.f32 %v783, %v793
    %v812 = vadd.f32 %v784, %v798
    %v813 = vadd.f32 %v785, %v798
    %v814 = vadd.f32 %v786, %v803
    %v815 = vadd.f32 %v787, %v803
    %v816 = vadd.f32 %v788, %v808
    %v817 = vadd.f32 %v789, %v808
    %s818 = sld [smem:[#allocation2 + $0x1]]
    %vm819 = vcmp.ge.f32.partialorder %v810, 0.0
    %vm820 = vcmp.ge.f32.partialorder %v811, 0.0
    %vm821 = vcmp.ge.f32.partialorder %v812, 0.0
    %vm822 = vcmp.ge.f32.partialorder %v813, 0.0
    %vm823 = vcmp.ge.f32.partialorder %v814, 0.0
    %vm824 = vcmp.ge.f32.partialorder %v815, 0.0
    %vm825 = vcmp.ge.f32.partialorder %v816, 0.0
    %vm826 = vcmp.ge.f32.partialorder %v817, 0.0
    %v827 = vstv %s818
    %v828 = vmul.f32 %v810, %v827
    %v829 = vmul.f32 %v811, %v827
    %v830 = vmul.f32 %v812, %v827
    %v831 = vmul.f32 %v813, %v827
    %v832 = vmul.f32 %v814, %v827
    %v833 = vmul.f32 %v815, %v827
    %v834 = vmul.f32 %v816, %v827
    %v835 = vmul.f32 %v817, %v827
    %v836 = vsel %vm819, %v810, %v828
    %v837 = vsel %vm820, %v811, %v829
    %v838 = vsel %vm821, %v812, %v830
    %v839 = vsel %vm822, %v813, %v831
    %v840 = vsel %vm823, %v814, %v832
    %v841 = vsel %vm824, %v815, %v833
    %v842 = vsel %vm825, %v816, %v834
    %v843 = vsel %vm826, %v817, %v835
    %s844 = scalar_lea.vmem %s4, 96
    %v845 = vld [vmem:[%s844] sm:$0xf]
    %v846 = vld [vmem:[%s844 + $0x4] sm:$0xf]
    %v847 = vld [vmem:[%s844 + $0x8] sm:$0xf]
    %v848 = vld [vmem:[%s844 + $0xc] sm:$0xf]
    %s849 = scalar_lea.vmem %s5, 64
    %v850 = vld [vmem:[%s849] sm:$0xff]
    %v851 = vpack.c.bf16 %v838, %v836
    %v852 = vpack.c.bf16 %v839, %v837
    %v853 = vpack.c.bf16 %v842, %v840
    %v854 = vpack.c.bf16 %v843, %v841
    %v859 = vunpack.c.l.b16 %v845
    %v860 = vunpack.c.l.b16 %v846
    %v861 = vunpack.c.l.b16 %v847
    %v862 = vunpack.c.l.b16 %v848
    %v863 = vpack.c.b16 %v860, %v859
    %v864 = vpack.c.b16 %v862, %v861
    %v866 = vsel %vm598, %v863, 0
    %v869 = vsel %vm598, %v864, 0
    %871 = vmatprep.subr.bf16.mxu0 %v852
    %872 = vmatpush1.bf16.msra.mxu0 %v851
    %873 = vmatprep.subr.bf16.mxu0 %v854
    %874 = vmatpush1.bf16.msra.mxu0 %v853
    %875 = vmatprep.subr.bf16.mxu0 0
    %876 = vmatpush1.bf16.msra.mxu0 0
    %877 = vmatprep.subr.bf16.mxu0 0
    %878 = vmatpush1.bf16.msra.mxu0 0
    %879 = vmatprep.subr.bf16.mxu0 0
    %880 = vmatpush1.bf16.msra.mxu0 0
    %881 = vmatprep.subr.bf16.mxu0 0
    %882 = vmatpush1.bf16.msra.mxu0 0
    %883 = vmatprep.subr.bf16.mxu0 0
    %884 = vmatpush1.bf16.msra.mxu0 0
    %885 = vmatprep.subr.bf16.mxu0 0
    %886 = vmatpush1.bf16.msra.mxu0 0
    %887 = vmatprep.subr.bf16.mxu0 0
    %888 = vmatpush1.bf16.msra.mxu0 0
    %889 = vmatprep.subr.bf16.mxu0 0
    %890 = vmatpush1.bf16.msra.mxu0 0
    %891 = vmatprep.subr.bf16.mxu0 0
    %892 = vmatpush1.bf16.msra.mxu0 0
    %893 = vmatprep.subr.bf16.mxu0 0
    %894 = vmatpush1.bf16.msra.mxu0 0
    %895 = vmatprep.subr.bf16.mxu0 0
    %896 = vmatpush1.bf16.msra.mxu0 0
    %897 = vmatprep.subr.bf16.mxu0 0
    %898 = vmatpush1.bf16.msra.mxu0 0
    %899 = vmatprep.subr.bf16.mxu0 0
    %900 = vmatpush1.bf16.msra.mxu0 0
    %901 = vmatprep.subr.bf16.mxu0 0
    %902 = vmatpush1.bf16.msra.mxu0 0
    %903 = vmatprep.mubr.bf16.mxu0 0
    %904 = vmatmul.mubr.bf16.gmra.mrb[0].mxu0 %v866
    %v905 = vpop.f32.mrb[0].mxu0
    %v906 = vadd.f32 0.0, %v905
    %v907 = vpop.f32.mrb[0].mxu0
    %v908 = vadd.f32 0.0, %v907
    %v909 = vpop.f32.mrb[0].mxu0
    %v910 = vadd.f32 0.0, %v909
    %v911 = vpop.f32.mrb[0].mxu0
    %v912 = vadd.f32 0.0, %v911
    %913 = vmatprep.mubr.bf16.mxu0 0
    %914 = vmatmul.mubr.bf16.gmra.mrb[0].mxu0 %v869
    %v915 = vpop.f32.mrb[0].mxu0
    %v916 = vadd.f32 0.0, %v915
    %v917 = vpop.f32.mrb[0].mxu0
    %v918 = vadd.f32 0.0, %v917
    %v919 = vpop.f32.mrb[0].mxu0
    %v920 = vpop.f32.mrb[0].mxu0
    %921 = vdwg.mxu0
    %922 = vrot.lane.b32.xlu0 %v906, 1
    %v923 = vpop.permute.xlu0 %922
    %924 = vrot.lane.b32.xlu0 %v908, 1
    %v925 = vpop.permute.xlu0 %924
    %v926 = vsel %vm410, %v923, %v925
    %v927 = vsel %vm410, %v925, %v923
    %v928 = vld [vmem:[%s8] sm:$0xff]
    %v929 = vld [vmem:[%s8 + $0x8] sm:$0xff]
    %v930 = vmul.f32 %v927, %v928
    %v931 = vmul.f32 %v926, %v929
    %v932 = vadd.f32 %v930, %v910
    %v933 = vadd.f32 %v931, %v912
    %934 = vrot.lane.b32.xlu0 %v916, 127
    %v935 = vpop.permute.xlu0 %934
    %936 = vrot.lane.b32.xlu0 %v918, 127
    %v937 = vpop.permute.xlu0 %936
    %v938 = vsel %vm459, %v935, %v937
    %v939 = vsel %vm459, %v937, %v935
    %v940 = vld [vmem:[%s9] sm:$0xff]
    %v941 = vld [vmem:[%s9 + $0x8] sm:$0xff]
    %v942 = vmul.f32 %v938, %v940
    %v943 = vmul.f32 %v939, %v941
    %v944 = vadd.f32 %v932, %v942
    %v945 = vadd.f32 %v933, %v943
    %947 = vset.pattern.permute.xlu0 0
    %948 = vperm.xlu0 %947, %v850
    %v949 = vpop.permute.xlu0 %948
    %v951 = vadd.f32 %v944, %v949
    %v952 = vadd.f32 %v945, %v949
    %v953 = vadd.f32 %v951, 0.0
    %v954 = vadd.f32 %v952, 0.0
    %v955 = vld [vmem:[%s3] sm:$0xff]
    %v956 = vld [vmem:[%s3 + $0x8] sm:$0xff]
    %v957 = vld [vmem:[%s3 + $0x10] sm:$0xff]
    %v958 = vld [vmem:[%s3 + $0x18] sm:$0xff]
    %v959 = vld [vmem:[%s3 + $0x20] sm:$0xff]
    %v960 = vld [vmem:[%s3 + $0x28] sm:$0xff]
    %v961 = vld [vmem:[%s3 + $0x30] sm:$0xff]
    %v962 = vld [vmem:[%s3 + $0x38] sm:$0xff]
    %v963 = vld [vmem:[%s3 + $0x40] sm:$0xff]
    %v964 = vld [vmem:[%s3 + $0x48] sm:$0xff]
    %v965 = vld [vmem:[%s3 + $0x50] sm:$0xff]
    %v966 = vld [vmem:[%s3 + $0x58] sm:$0xff]
    %v967 = vld [vmem:[%s3 + $0x60] sm:$0xff]
    %v968 = vld [vmem:[%s3 + $0x68] sm:$0xff]
    %v969 = vld [vmem:[%s3 + $0x70] sm:$0xff]
    %v970 = vld [vmem:[%s3 + $0x78] sm:$0xff]
    %v971 = vld [vmem:[%s3 + $0x80] sm:$0xff]
    %v972 = vld [vmem:[%s3 + $0x88] sm:$0xff]
    %v973 = vld [vmem:[%s3 + $0x90] sm:$0xff]
    %v974 = vld [vmem:[%s3 + $0x98] sm:$0xff]
    %v975 = vld [vmem:[%s3 + $0xa0] sm:$0xff]
    %v976 = vld [vmem:[%s3 + $0xa8] sm:$0xff]
    %v977 = vld [vmem:[%s3 + $0xb0] sm:$0xff]
    %v978 = vld [vmem:[%s3 + $0xb8] sm:$0xff]
    %v979 = vld [vmem:[%s3 + $0xc0] sm:$0xff]
    %v980 = vld [vmem:[%s3 + $0xc8] sm:$0xff]
    %v981 = vld [vmem:[%s3 + $0xd0] sm:$0xff]
    %v982 = vld [vmem:[%s3 + $0xd8] sm:$0xff]
    %v983 = vld [vmem:[%s3 + $0xe0] sm:$0xff]
    %v984 = vld [vmem:[%s3 + $0xe8] sm:$0xff]
    %v985 = vld [vmem:[%s3 + $0xf0] sm:$0xff]
    %v986 = vld [vmem:[%s3 + $0xf8] sm:$0xff]
    %v987 = vld [vmem:[%s3 + $0x100] sm:$0xff]
    %v988 = vld [vmem:[%s3 + $0x108] sm:$0xff]
    %v989 = vld [vmem:[%s3 + $0x110] sm:$0xff]
    %v990 = vld [vmem:[%s3 + $0x118] sm:$0xff]
    %v991 = vld [vmem:[%s3 + $0x120] sm:$0xff]
    %v992 = vld [vmem:[%s3 + $0x128] sm:$0xff]
    %v993 = vld [vmem:[%s3 + $0x130] sm:$0xff]
    %v994 = vld [vmem:[%s3 + $0x138] sm:$0xff]
    %v995 = vld [vmem:[%s3 + $0x140] sm:$0xff]
    %v996 = vld [vmem:[%s3 + $0x148] sm:$0xff]
    %v997 = vld [vmem:[%s3 + $0x150] sm:$0xff]
    %v998 = vld [vmem:[%s3 + $0x158] sm:$0xff]
    %v999 = vld [vmem:[%s3 + $0x160] sm:$0xff]
    %v1000 = vld [vmem:[%s3 + $0x168] sm:$0xff]
    %v1001 = vld [vmem:[%s3 + $0x170] sm:$0xff]
    %v1002 = vld [vmem:[%s3 + $0x178] sm:$0xff]
    %v1003 = vld [vmem:[%s3 + $0x180] sm:$0xff]
    %v1004 = vld [vmem:[%s3 + $0x188] sm:$0xff]
    %v1005 = vld [vmem:[%s3 + $0x190] sm:$0xff]
    %v1006 = vld [vmem:[%s3 + $0x198] sm:$0xff]
    %v1007 = vld [vmem:[%s3 + $0x1a0] sm:$0xff]
    %v1008 = vld [vmem:[%s3 + $0x1a8] sm:$0xff]
    %v1009 = vld [vmem:[%s3 + $0x1b0] sm:$0xff]
    %v1010 = vld [vmem:[%s3 + $0x1b8] sm:$0xff]
    %v1011 = vld [vmem:[%s3 + $0x1c0] sm:$0xff]
    %v1012 = vld [vmem:[%s3 + $0x1c8] sm:$0xff]
    %v1013 = vld [vmem:[%s3 + $0x1d0] sm:$0xff]
    %v1014 = vld [vmem:[%s3 + $0x1d8] sm:$0xff]
    %v1015 = vld [vmem:[%s3 + $0x1e0] sm:$0xff]
    %v1016 = vld [vmem:[%s3 + $0x1e8] sm:$0xff]
    %v1017 = vld [vmem:[%s3 + $0x1f0] sm:$0xff]
    %v1018 = vld [vmem:[%s3 + $0x1f8] sm:$0xff]
    %1019 = vmatprep.subr.mxu0 %v956
    %1020 = vmatpush1.msra.mxu0 %v955
    %1021 = vmatprep.subr.mxu0 %v958
    %1022 = vmatpush1.msra.mxu0 %v957
    %1023 = vmatprep.subr.mxu0 %v960
    %1024 = vmatpush1.msra.mxu0 %v959
    %1025 = vmatprep.subr.mxu0 %v962
    %1026 = vmatpush1.msra.mxu0 %v961
    %1027 = vmatprep.subr.mxu0 %v964
    %1028 = vmatpush1.msra.mxu0 %v963
    %1029 = vmatprep.subr.mxu0 %v966
    %1030 = vmatpush1.msra.mxu0 %v965
    %1031 = vmatprep.subr.mxu0 %v968
    %1032 = vmatpush1.msra.mxu0 %v967
    %1033 = vmatprep.subr.mxu0 %v970
    %1034 = vmatpush1.msra.mxu0 %v969
    %1035 = vmatprep.subr.mxu0 %v972
    %1036 = vmatpush1.msra.mxu0 %v971
    %1037 = vmatprep.subr.mxu0 %v974
    %1038 = vmatpush1.msra.mxu0 %v973
    %1039 = vmatprep.subr.mxu0 %v976
    %1040 = vmatpush1.msra.mxu0 %v975
    %1041 = vmatprep.subr.mxu0 %v978
    %1042 = vmatpush1.msra.mxu0 %v977
    %1043 = vmatprep.subr.mxu0 %v980
    %1044 = vmatpush1.msra.mxu0 %v979
    %1045 = vmatprep.subr.mxu0 %v982
    %1046 = vmatpush1.msra.mxu0 %v981
    %1047 = vmatprep.subr.mxu0 %v984
    %1048 = vmatpush1.msra.mxu0 %v983
    %1049 = vmatprep.subr.mxu0 %v986
    %1050 = vmatpush1.msra.mxu0 %v985
    %1051 = vmatprep.subr.mxu0 %v988
    %1052 = vmatpush1.msra.mxu0 %v987
    %1053 = vmatprep.subr.mxu0 %v990
    %1054 = vmatpush1.msra.mxu0 %v989
    %1055 = vmatprep.subr.mxu0 %v992
    %1056 = vmatpush1.msra.mxu0 %v991
    %1057 = vmatprep.subr.mxu0 %v994
    %1058 = vmatpush1.msra.mxu0 %v993
    %1059 = vmatprep.subr.mxu0 %v996
    %1060 = vmatpush1.msra.mxu0 %v995
    %1061 = vmatprep.subr.mxu0 %v998
    %1062 = vmatpush1.msra.mxu0 %v997
    %1063 = vmatprep.subr.mxu0 %v1000
    %1064 = vmatpush1.msra.mxu0 %v999
    %1065 = vmatprep.subr.mxu0 %v1002
    %1066 = vmatpush1.msra.mxu0 %v1001
    %1067 = vmatprep.subr.mxu0 %v1004
    %1068 = vmatpush1.msra.mxu0 %v1003
    %1069 = vmatprep.subr.mxu0 %v1006
    %1070 = vmatpush1.msra.mxu0 %v1005
    %1071 = vmatprep.subr.mxu0 %v1008
    %1072 = vmatpush1.msra.mxu0 %v1007
    %1073 = vmatprep.subr.mxu0 %v1010
    %1074 = vmatpush1.msra.mxu0 %v1009
    %1075 = vmatprep.subr.mxu0 %v1012
    %1076 = vmatpush1.msra.mxu0 %v1011
    %1077 = vmatprep.subr.mxu0 %v1014
    %1078 = vmatpush1.msra.mxu0 %v1013
    %1079 = vmatprep.subr.mxu0 %v1016
    %1080 = vmatpush1.msra.mxu0 %v1015
    %1081 = vmatprep.subr.mxu0 %v1018
    %1082 = vmatpush1.msra.mxu0 %v1017
    %1083 = vmatprep.mubr.f32.mxu0 %v954
    %1084 = vmatmul.mubr.f32.gmra.mrb[0].mxu0 %v953
    %v1085 = vpop.f32.mrb[0].mxu0
    %v1086 = vadd.f32 0.0, %v1085
    %v1087 = vpop.f32.mrb[0].mxu0
    %v1088 = vadd.f32 0.0, %v1087
    %1089 = vdwg.mxu0
    %v1090 = vsel %vm65, %v1086, 0.0
    %v1091 = vsel %vm65, %v1088, 0.0
    %v1092 = vld [vmem:[%s6] sm:$0xf]
    %v1093 = vld [vmem:[%s6 + $0x4] sm:$0xf]
    %v1094 = vld [vmem:[%s6 + $0x8] sm:$0xf]
    %v1095 = vld [vmem:[%s6 + $0xc] sm:$0xf]
    %v1096 = vld [vmem:[%s6 + $0x10] sm:$0xf]
    %v1097 = vld [vmem:[%s6 + $0x14] sm:$0xf]
    %v1098 = vld [vmem:[%s6 + $0x18] sm:$0xf]
    %v1099 = vld [vmem:[%s6 + $0x1c] sm:$0xf]
    %v1100 = vld [vmem:[%s6 + $0x20] sm:$0xf]
    %v1101 = vld [vmem:[%s6 + $0x24] sm:$0xf]
    %v1102 = vld [vmem:[%s6 + $0x28] sm:$0xf]
    %v1103 = vld [vmem:[%s6 + $0x2c] sm:$0xf]
    %v1104 = vld [vmem:[%s7] sm:$0xff]
    %v1105 = vld [vmem:[%s7 + $0x8] sm:$0xff]
    %v1106 = vld [vmem:[%s7 + $0x10] sm:$0xff]
    %v1107 = vld [vmem:[%s7 + $0x18] sm:$0xff]
    %v1108 = vpack.c.bf16 %v1090, %v81
    %v1109 = vpack.c.bf16 %v1091, %v82
    %v1122 = vunpack.c.l.b16 %v1092
    %v1123 = vunpack.c.l.b16 %v1093
    %v1124 = vunpack.c.l.b16 %v1094
    %v1125 = vunpack.c.l.b16 %v1095
    %v1126 = vunpack.c.l.b16 %v1096
    %v1127 = vunpack.c.l.b16 %v1097
    %v1128 = vunpack.c.l.b16 %v1098
    %v1129 = vunpack.c.l.b16 %v1099
    %v1130 = vunpack.c.l.b16 %v1100
    %v1131 = vunpack.c.l.b16 %v1101
    %v1132 = vunpack.c.l.b16 %v1102
    %v1133 = vunpack.c.l.b16 %v1103
    %v1134 = vpack.c.b16 %v1123, %v1122
    %v1135 = vpack.c.b16 %v1125, %v1124
    %v1136 = vpack.c.b16 %v1127, %v1126
    %v1137 = vpack.c.b16 %v1129, %v1128
    %v1138 = vpack.c.b16 %v1131, %v1130
    %v1139 = vpack.c.b16 %v1133, %v1132
    %v1141 = vsel %vm280, %v1134, 0
    %v1144 = vsel %vm280, %v1135, 0
    %v1147 = vsel %vm280, %v1136, 0
    %v1150 = vsel %vm280, %v1137, 0
    %v1153 = vsel %vm280, %v1138, 0
    %v1156 = vsel %vm280, %v1139, 0
    %1158 = vmatprep.subr.bf16.mxu0 %v1109
    %1159 = vmatpush1.bf16.msra.mxu0 %v1108
    %1160 = vmatprep.subr.bf16.mxu0 0
    %1161 = vmatpush1.bf16.msra.mxu0 0
    %1162 = vmatprep.subr.bf16.mxu0 0
    %1163 = vmatpush1.bf16.msra.mxu0 0
    %1164 = vmatprep.subr.bf16.mxu0 0
    %1165 = vmatpush1.bf16.msra.mxu0 0
    %1166 = vmatprep.subr.bf16.mxu0 0
    %1167 = vmatpush1.bf16.msra.mxu0 0
    %1168 = vmatprep.subr.bf16.mxu0 0
    %1169 = vmatpush1.bf16.msra.mxu0 0
    %1170 = vmatprep.subr.bf16.mxu0 0
    %1171 = vmatpush1.bf16.msra.mxu0 0
    %1172 = vmatprep.subr.bf16.mxu0 0
    %1173 = vmatpush1.bf16.msra.mxu0 0
    %1174 = vmatprep.subr.bf16.mxu0 0
    %1175 = vmatpush1.bf16.msra.mxu0 0
    %1176 = vmatprep.subr.bf16.mxu0 0
    %1177 = vmatpush1.bf16.msra.mxu0 0
    %1178 = vmatprep.subr.bf16.mxu0 0
    %1179 = vmatpush1.bf16.msra.mxu0 0
    %1180 = vmatprep.subr.bf16.mxu0 0
    %1181 = vmatpush1.bf16.msra.mxu0 0
    %1182 = vmatprep.subr.bf16.mxu0 0
    %1183 = vmatpush1.bf16.msra.mxu0 0
    %1184 = vmatprep.subr.bf16.mxu0 0
    %1185 = vmatpush1.bf16.msra.mxu0 0
    %1186 = vmatprep.subr.bf16.mxu0 0
    %1187 = vmatpush1.bf16.msra.mxu0 0
    %1188 = vmatprep.subr.bf16.mxu0 0
    %1189 = vmatpush1.bf16.msra.mxu0 0
    %1190 = vmatprep.mubr.bf16.mxu0 0
    %1191 = vmatmul.mubr.bf16.gmra.mrb[0].mxu0 %v1141
    %v1192 = vpop.f32.mrb[0].mxu0
    %v1193 = vadd.f32 0.0, %v1192
    %v1194 = vpop.f32.mrb[0].mxu0
    %v1195 = vadd.f32 0.0, %v1194
    %v1196 = vpop.f32.mrb[0].mxu0
    %v1197 = vadd.f32 0.0, %v1196
    %v1198 = vpop.f32.mrb[0].mxu0
    %v1199 = vadd.f32 0.0, %v1198
    %1200 = vmatprep.mubr.bf16.mxu0 0
    %1201 = vmatmul.mubr.bf16.gmra.mrb[0].mxu0 %v1144
    %v1202 = vpop.f32.mrb[0].mxu0
    %v1203 = vadd.f32 0.0, %v1202
    %v1204 = vpop.f32.mrb[0].mxu0
    %v1205 = vadd.f32 0.0, %v1204
    %v1206 = vpop.f32.mrb[0].mxu0
    %v1207 = vadd.f32 0.0, %v1206
    %v1208 = vpop.f32.mrb[0].mxu0
    %v1209 = vadd.f32 0.0, %v1208
    %1210 = vmatprep.mubr.bf16.mxu0 0
    %1211 = vmatmul.mubr.bf16.gmra.mrb[0].mxu0 %v1147
    %v1212 = vpop.f32.mrb[0].mxu0
    %v1213 = vadd.f32 0.0, %v1212
    %v1214 = vpop.f32.mrb[0].mxu0
    %v1215 = vadd.f32 0.0, %v1214
    %v1216 = vpop.f32.mrb[0].mxu0
    %v1217 = vadd.f32 0.0, %v1216
    %v1218 = vpop.f32.mrb[0].mxu0
    %v1219 = vadd.f32 0.0, %v1218
    %1220 = vmatprep.mubr.bf16.mxu0 0
    %1221 = vmatmul.mubr.bf16.gmra.mrb[0].mxu0 %v1150
    %v1222 = vpop.f32.mrb[0].mxu0
    %v1223 = vadd.f32 0.0, %v1222
    %v1224 = vpop.f32.mrb[0].mxu0
    %v1225 = vadd.f32 0.0, %v1224
    %v1226 = vpop.f32.mrb[0].mxu0
    %v1227 = vadd.f32 0.0, %v1226
    %v1228 = vpop.f32.mrb[0].mxu0
    %v1229 = vadd.f32 0.0, %v1228
    %1230 = vmatprep.mubr.bf16.mxu0 0
    %1231 = vmatmul.mubr.bf16.gmra.mrb[0].mxu0 %v1153
    %v1232 = vpop.f32.mrb[0].mxu0
    %v1233 = vadd.f32 0.0, %v1232
    %v1234 = vpop.f32.mrb[0].mxu0
    %v1235 = vadd.f32 0.0, %v1234
    %v1236 = vpop.f32.mrb[0].mxu0
    %v1237 = vadd.f32 0.0, %v1236
    %v1238 = vpop.f32.mrb[0].mxu0
    %v1239 = vadd.f32 0.0, %v1238
    %1240 = vmatprep.mubr.bf16.mxu0 0
    %1241 = vmatmul.mubr.bf16.gmra.mrb[0].mxu0 %v1156
    %v1242 = vpop.f32.mrb[0].mxu0
    %v1243 = vadd.f32 0.0, %v1242
    %v1244 = vpop.f32.mrb[0].mxu0
    %v1245 = vadd.f32 0.0, %v1244
    %v1246 = vpop.f32.mrb[0].mxu0
    %v1247 = vadd.f32 0.0, %v1246
    %v1248 = vpop.f32.mrb[0].mxu0
    %v1249 = vadd.f32 0.0, %v1248
    %1250 = vdwg.mxu0
    %1251 = vrot.lane.b32.xlu0 %v1193, 1
    %v1252 = vpop.permute.xlu0 %1251
    %1253 = vrot.lane.b32.xlu0 %v1197, 1
    %v1254 = vpop.permute.xlu0 %1253
    %1255 = vrot.lane.b32.xlu0 %v1203, 1
    %v1256 = vpop.permute.xlu0 %1255
    %1257 = vrot.lane.b32.xlu0 %v1207, 1
    %v1258 = vpop.permute.xlu0 %1257
    %1259 = vrot.lane.b32.xlu0 %v1195, 1
    %v1260 = vpop.permute.xlu0 %1259
    %1261 = vrot.lane.b32.xlu0 %v1199, 1
    %v1262 = vpop.permute.xlu0 %1261
    %1263 = vrot.lane.b32.xlu0 %v1205, 1
    %v1264 = vpop.permute.xlu0 %1263
    %1265 = vrot.lane.b32.xlu0 %v1209, 1
    %v1266 = vpop.permute.xlu0 %1265
    %v1267 = vsel %vm410, %v1252, %v1260
    %v1268 = vsel %vm410, %v1254, %v1262
    %v1269 = vsel %vm410, %v1256, %v1264
    %v1270 = vsel %vm410, %v1258, %v1266
    %v1271 = vsel %vm410, %v1260, %v1252
    %v1272 = vsel %vm410, %v1262, %v1254
    %v1273 = vsel %vm410, %v1264, %v1256
    %v1274 = vsel %vm410, %v1266, %v1258
    %v1275 = vmul.f32 %v1271, %v419
    %v1276 = vmul.f32 %v1267, %v420
    %v1277 = vmul.f32 %v1272, %v421
    %v1278 = vmul.f32 %v1268, %v422
    %v1279 = vmul.f32 %v1273, %v423
    %v1280 = vmul.f32 %v1269, %v424
    %v1281 = vmul.f32 %v1274, %v425
    %v1282 = vmul.f32 %v1270, %v426
    %v1283 = vadd.f32 %v1275, %v1213
    %v1284 = vadd.f32 %v1276, %v1215
    %v1285 = vadd.f32 %v1277, %v1217
    %v1286 = vadd.f32 %v1278, %v1219
    %v1287 = vadd.f32 %v1279, %v1223
    %v1288 = vadd.f32 %v1280, %v1225
    %v1289 = vadd.f32 %v1281, %v1227
    %v1290 = vadd.f32 %v1282, %v1229
    %1291 = vrot.lane.b32.xlu0 %v1233, 127
    %v1292 = vpop.permute.xlu0 %1291
    %1293 = vrot.lane.b32.xlu0 %v1237, 127
    %v1294 = vpop.permute.xlu0 %1293
    %1295 = vrot.lane.b32.xlu0 %v1243, 127
    %v1296 = vpop.permute.xlu0 %1295
    %1297 = vrot.lane.b32.xlu0 %v1247, 127
    %v1298 = vpop.permute.xlu0 %1297
    %1299 = vrot.lane.b32.xlu0 %v1235, 127
    %v1300 = vpop.permute.xlu0 %1299
    %1301 = vrot.lane.b32.xlu0 %v1239, 127
    %v1302 = vpop.permute.xlu0 %1301
    %1303 = vrot.lane.b32.xlu0 %v1245, 127
    %v1304 = vpop.permute.xlu0 %1303
    %1305 = vrot.lane.b32.xlu0 %v1249, 127
    %v1306 = vpop.permute.xlu0 %1305
    %v1307 = vsel %vm459, %v1292, %v1300
    %v1308 = vsel %vm459, %v1294, %v1302
    %v1309 = vsel %vm459, %v1296, %v1304
    %v1310 = vsel %vm459, %v1298, %v1306
    %v1311 = vsel %vm459, %v1300, %v1292
    %v1312 = vsel %vm459, %v1302, %v1294
    %v1313 = vsel %vm459, %v1304, %v1296
    %v1314 = vsel %vm459, %v1306, %v1298
    %v1315 = vmul.f32 %v1307, %v468
    %v1316 = vmul.f32 %v1311, %v469
    %v1317 = vmul.f32 %v1308, %v470
    %v1318 = vmul.f32 %v1312, %v471
    %v1319 = vmul.f32 %v1309, %v472
    %v1320 = vmul.f32 %v1313, %v473
    %v1321 = vmul.f32 %v1310, %v474
    %v1322 = vmul.f32 %v1314, %v475
    %v1323 = vadd.f32 %v1283, %v1315
    %v1324 = vadd.f32 %v1284, %v1316
    %v1325 = vadd.f32 %v1285, %v1317
    %v1326 = vadd.f32 %v1286, %v1318
    %v1327 = vadd.f32 %v1287, %v1319
    %v1328 = vadd.f32 %v1288, %v1320
    %v1329 = vadd.f32 %v1289, %v1321
    %v1330 = vadd.f32 %v1290, %v1322
    %1332 = vset.pattern.permute.xlu0 0
    %1333 = vperm.xlu0 %1332, %v1104
    %v1334 = vpop.permute.xlu0 %1333
    %1337 = vset.pattern.permute.xlu0 0
    %1338 = vperm.xlu0 %1337, %v1105
    %v1339 = vpop.permute.xlu0 %1338
    %1342 = vset.pattern.permute.xlu0 0
    %1343 = vperm.xlu0 %1342, %v1106
    %v1344 = vpop.permute.xlu0 %1343
    %1347 = vset.pattern.permute.xlu0 0
    %1348 = vperm.xlu0 %1347, %v1107
    %v1349 = vpop.permute.xlu0 %1348
    %v1351 = vadd.f32 %v1323, %v1334
    %v1352 = vadd.f32 %v1324, %v1334
    %v1353 = vadd.f32 %v1325, %v1339
    %v1354 = vadd.f32 %v1326, %v1339
    %v1355 = vadd.f32 %v1327, %v1344
    %v1356 = vadd.f32 %v1328, %v1344
    %v1357 = vadd.f32 %v1329, %v1349
    %v1358 = vadd.f32 %v1330, %v1349
    %s1359 = sld [smem:[#allocation2 + $0x6]]
    %vm1360 = vcmp.ge.f32.partialorder %v1351, 0.0
    %vm1361 = vcmp.ge.f32.partialorder %v1352, 0.0
    %vm1362 = vcmp.ge.f32.partialorder %v1353, 0.0
    %vm1363 = vcmp.ge.f32.partialorder %v1354, 0.0
    %vm1364 = vcmp.ge.f32.partialorder %v1355, 0.0
    %vm1365 = vcmp.ge.f32.partialorder %v1356, 0.0
    %vm1366 = vcmp.ge.f32.partialorder %v1357, 0.0
    %vm1367 = vcmp.ge.f32.partialorder %v1358, 0.0
    %v1368 = vstv %s1359
    %v1369 = vmul.f32 %v1351, %v1368
    %v1370 = vmul.f32 %v1352, %v1368
    %v1371 = vmul.f32 %v1353, %v1368
    %v1372 = vmul.f32 %v1354, %v1368
    %v1373 = vmul.f32 %v1355, %v1368
    %v1374 = vmul.f32 %v1356, %v1368
    %v1375 = vmul.f32 %v1357, %v1368
    %v1376 = vmul.f32 %v1358, %v1368
    %v1377 = vsel %vm1360, %v1351, %v1369
    %v1378 = vsel %vm1361, %v1352, %v1370
    %v1379 = vsel %vm1362, %v1353, %v1371
    %v1380 = vsel %vm1363, %v1354, %v1372
    %v1381 = vsel %vm1364, %v1355, %v1373
    %v1382 = vsel %vm1365, %v1356, %v1374
    %v1383 = vsel %vm1366, %v1357, %v1375
    %v1384 = vsel %vm1367, %v1358, %v1376
    %s1385 = scalar_lea.vmem %s6, 48
    %v1386 = vld [vmem:[%s1385] sm:$0xf]
    %v1387 = vld [vmem:[%s1385 + $0x4] sm:$0xf]
    %v1388 = vld [vmem:[%s1385 + $0x8] sm:$0xf]
    %v1389 = vld [vmem:[%s1385 + $0xc] sm:$0xf]
    %v1390 = vld [vmem:[%s1385 + $0x10] sm:$0xf]
    %v1391 = vld [vmem:[%s1385 + $0x14] sm:$0xf]
    %v1392 = vld [vmem:[%s1385 + $0x18] sm:$0xf]
    %v1393 = vld [vmem:[%s1385 + $0x1c] sm:$0xf]
    %v1394 = vld [vmem:[%s1385 + $0x20] sm:$0xf]
    %v1395 = vld [vmem:[%s1385 + $0x24] sm:$0xf]
    %v1396 = vld [vmem:[%s1385 + $0x28] sm:$0xf]
    %v1397 = vld [vmem:[%s1385 + $0x2c] sm:$0xf]
    %s1398 = scalar_lea.vmem %s7, 32
    %v1399 = vld [vmem:[%s1398] sm:$0xff]
    %v1400 = vld [vmem:[%s1398 + $0x8] sm:$0xff]
    %v1401 = vld [vmem:[%s1398 + $0x10] sm:$0xff]
    %v1402 = vld [vmem:[%s1398 + $0x18] sm:$0xff]
    %v1403 = vpack.c.bf16 %v1379, %v1377
    %v1404 = vpack.c.bf16 %v1380, %v1378
    %v1405 = vpack.c.bf16 %v1383, %v1381
    %v1406 = vpack.c.bf16 %v1384, %v1382
    %v1419 = vunpack.c.l.b16 %v1386
    %v1420 = vunpack.c.l.b16 %v1387
    %v1421 = vunpack.c.l.b16 %v1388
    %v1422 = vunpack.c.l.b16 %v1389
    %v1423 = vunpack.c.l.b16 %v1390
    %v1424 = vunpack.c.l.b16 %v1391
    %v1425 = vunpack.c.l.b16 %v1392
    %v1426 = vunpack.c.l.b16 %v1393
    %v1427 = vunpack.c.l.b16 %v1394
    %v1428 = vunpack.c.l.b16 %v1395
    %v1429 = vunpack.c.l.b16 %v1396
    %v1430 = vunpack.c.l.b16 %v1397
    %v1431 = vpack.c.b16 %v1420, %v1419
    %v1432 = vpack.c.b16 %v1422, %v1421
    %v1433 = vpack.c.b16 %v1424, %v1423
    %v1434 = vpack.c.b16 %v1426, %v1425
    %v1435 = vpack.c.b16 %v1428, %v1427
    %v1436 = vpack.c.b16 %v1430, %v1429
    %v1438 = vsel %vm598, %v1431, 0
    %v1441 = vsel %vm598, %v1432, 0
    %v1444 = vsel %vm598, %v1433, 0
    %v1447 = vsel %vm598, %v1434, 0
    %v1450 = vsel %vm598, %v1435, 0
    %v1453 = vsel %vm598, %v1436, 0
    %1455 = vmatprep.subr.bf16.mxu0 %v1404
    %1456 = vmatpush1.bf16.msra.mxu0 %v1403
    %1457 = vmatprep.subr.bf16.mxu0 %v1406
    %1458 = vmatpush1.bf16.msra.mxu0 %v1405
    %1459 = vmatprep.subr.bf16.mxu0 0
    %1460 = vmatpush1.bf16.msra.mxu0 0
    %1461 = vmatprep.subr.bf16.mxu0 0
    %1462 = vmatpush1.bf16.msra.mxu0 0
    %1463 = vmatprep.subr.bf16.mxu0 0
    %1464 = vmatpush1.bf16.msra.mxu0 0
    %1465 = vmatprep.subr.bf16.mxu0 0
    %1466 = vmatpush1.bf16.msra.mxu0 0
    %1467 = vmatprep.subr.bf16.mxu0 0
    %1468 = vmatpush1.bf16.msra.mxu0 0
    %1469 = vmatprep.subr.bf16.mxu0 0
    %1470 = vmatpush1.bf16.msra.mxu0 0
    %1471 = vmatprep.subr.bf16.mxu0 0
    %1472 = vmatpush1.bf16.msra.mxu0 0
    %1473 = vmatprep.subr.bf16.mxu0 0
    %1474 = vmatpush1.bf16.msra.mxu0 0
    %1475 = vmatprep.subr.bf16.mxu0 0
    %1476 = vmatpush1.bf16.msra.mxu0 0
    %1477 = vmatprep.subr.bf16.mxu0 0
    %1478 = vmatpush1.bf16.msra.mxu0 0
    %1479 = vmatprep.subr.bf16.mxu0 0
    %1480 = vmatpush1.bf16.msra.mxu0 0
    %1481 = vmatprep.subr.bf16.mxu0 0
    %1482 = vmatpush1.bf16.msra.mxu0 0
    %1483 = vmatprep.subr.bf16.mxu0 0
    %1484 = vmatpush1.bf16.msra.mxu0 0
    %1485 = vmatprep.subr.bf16.mxu0 0
    %1486 = vmatpush1.bf16.msra.mxu0 0
    %1487 = vmatprep.mubr.bf16.mxu0 0
    %1488 = vmatmul.mubr.bf16.gmra.mrb[0].mxu0 %v1438
    %v1489 = vpop.f32.mrb[0].mxu0
    %v1490 = vadd.f32 0.0, %v1489
    %v1491 = vpop.f32.mrb[0].mxu0
    %v1492 = vadd.f32 0.0, %v1491
    %v1493 = vpop.f32.mrb[0].mxu0
    %v1494 = vadd.f32 0.0, %v1493
    %v1495 = vpop.f32.mrb[0].mxu0
    %v1496 = vadd.f32 0.0, %v1495
    %1497 = vmatprep.mubr.bf16.mxu0 0
    %1498 = vmatmul.mubr.bf16.gmra.mrb[0].mxu0 %v1441
    %v1499 = vpop.f32.mrb[0].mxu0
    %v1500 = vadd.f32 0.0, %v1499
    %v1501 = vpop.f32.mrb[0].mxu0
    %v1502 = vadd.f32 0.0, %v1501
    %v1503 = vpop.f32.mrb[0].mxu0
    %v1504 = vadd.f32 0.0, %v1503
    %v1505 = vpop.f32.mrb[0].mxu0
    %v1506 = vadd.f32 0.0, %v1505
    %1507 = vmatprep.mubr.bf16.mxu0 0
    %1508 = vmatmul.mubr.bf16.gmra.mrb[0].mxu0 %v1444
    %v1509 = vpop.f32.mrb[0].mxu0
    %v1510 = vadd.f32 0.0, %v1509
    %v1511 = vpop.f32.mrb[0].mxu0
    %v1512 = vadd.f32 0.0, %v1511
    %v1513 = vpop.f32.mrb[0].mxu0
    %v1514 = vadd.f32 0.0, %v1513
    %v1515 = vpop.f32.mrb[0].mxu0
    %v1516 = vadd.f32 0.0, %v1515
    %1517 = vmatprep.mubr.bf16.mxu0 0
    %1518 = vmatmul.mubr.bf16.gmra.mrb[0].mxu0 %v1447
    %v1519 = vpop.f32.mrb[0].mxu0
    %v1520 = vadd.f32 0.0, %v1519
    %v1521 = vpop.f32.mrb[0].mxu0
    %v1522 = vadd.f32 0.0, %v1521
    %v1523 = vpop.f32.mrb[0].mxu0
    %v1524 = vadd.f32 0.0, %v1523
    %v1525 = vpop.f32.mrb[0].mxu0
    %v1526 = vadd.f32 0.0, %v1525
    %1527 = vmatprep.mubr.bf16.mxu0 0
    %1528 = vmatmul.mubr.bf16.gmra.mrb[0].mxu0 %v1450
    %v1529 = vpop.f32.mrb[0].mxu0
    %v1530 = vadd.f32 0.0, %v1529
    %v1531 = vpop.f32.mrb[0].mxu0
    %v1532 = vadd.f32 0.0, %v1531
    %v1533 = vpop.f32.mrb[0].mxu0
    %v1534 = vadd.f32 0.0, %v1533
    %v1535 = vpop.f32.mrb[0].mxu0
    %v1536 = vadd.f32 0.0, %v1535
    %1537 = vmatprep.mubr.bf16.mxu0 0
    %1538 = vmatmul.mubr.bf16.gmra.mrb[0].mxu0 %v1453
    %v1539 = vpop.f32.mrb[0].mxu0
    %v1540 = vadd.f32 0.0, %v1539
    %v1541 = vpop.f32.mrb[0].mxu0
    %v1542 = vadd.f32 0.0, %v1541
    %v1543 = vpop.f32.mrb[0].mxu0
    %v1544 = vadd.f32 0.0, %v1543
    %v1545 = vpop.f32.mrb[0].mxu0
    %v1546 = vadd.f32 0.0, %v1545
    %1547 = vdwg.mxu0
    %1548 = vrot.lane.b32.xlu0 %v1490, 1
    %v1549 = vpop.permute.xlu0 %1548
    %1550 = vrot.lane.b32.xlu0 %v1494, 1
    %v1551 = vpop.permute.xlu0 %1550
    %1552 = vrot.lane.b32.xlu0 %v1500, 1
    %v1553 = vpop.permute.xlu0 %1552
    %1554 = vrot.lane.b32.xlu0 %v1504, 1
    %v1555 = vpop.permute.xlu0 %1554
    %1556 = vrot.lane.b32.xlu0 %v1492, 1
    %v1557 = vpop.permute.xlu0 %1556
    %1558 = vrot.lane.b32.xlu0 %v1496, 1
    %v1559 = vpop.permute.xlu0 %1558
    %1560 = vrot.lane.b32.xlu0 %v1502, 1
    %v1561 = vpop.permute.xlu0 %1560
    %1562 = vrot.lane.b32.xlu0 %v1506, 1
    %v1563 = vpop.permute.xlu0 %1562
    %v1564 = vsel %vm410, %v1549, %v1557
    %v1565 = vsel %vm410, %v1551, %v1559
    %v1566 = vsel %vm410, %v1553, %v1561
    %v1567 = vsel %vm410, %v1555, %v1563
    %v1568 = vsel %vm410, %v1557, %v1549
    %v1569 = vsel %vm410, %v1559, %v1551
    %v1570 = vsel %vm410, %v1561, %v1553
    %v1571 = vsel %vm410, %v1563, %v1555
    %v1572 = vmul.f32 %v1568, %v419
    %v1573 = vmul.f32 %v1564, %v420
    %v1574 = vmul.f32 %v1569, %v421
    %v1575 = vmul.f32 %v1565, %v422
    %v1576 = vmul.f32 %v1570, %v423
    %v1577 = vmul.f32 %v1566, %v424
    %v1578 = vmul.f32 %v1571, %v425
    %v1579 = vmul.f32 %v1567, %v426
    %v1580 = vadd.f32 %v1572, %v1510
    %v1581 = vadd.f32 %v1573, %v1512
    %v1582 = vadd.f32 %v1574, %v1514
    %v1583 = vadd.f32 %v1575, %v1516
    %v1584 = vadd.f32 %v1576, %v1520
    %v1585 = vadd.f32 %v1577, %v1522
    %v1586 = vadd.f32 %v1578, %v1524
    %v1587 = vadd.f32 %v1579, %v1526
    %1588 = vrot.lane.b32.xlu0 %v1530, 127
    %v1589 = vpop.permute.xlu0 %1588
    %1590 = vrot.lane.b32.xlu0 %v1534, 127
    %v1591 = vpop.permute.xlu0 %1590
    %1592 = vrot.lane.b32.xlu0 %v1540, 127
    %v1593 = vpop.permute.xlu0 %1592
    %1594 = vrot.lane.b32.xlu0 %v1544, 127
    %v1595 = vpop.permute.xlu0 %1594
    %1596 = vrot.lane.b32.xlu0 %v1532, 127
    %v1597 = vpop.permute.xlu0 %1596
    %1598 = vrot.lane.b32.xlu0 %v1536, 127
    %v1599 = vpop.permute.xlu0 %1598
    %1600 = vrot.lane.b32.xlu0 %v1542, 127
    %v1601 = vpop.permute.xlu0 %1600
    %1602 = vrot.lane.b32.xlu0 %v1546, 127
    %v1603 = vpop.permute.xlu0 %1602
    %v1604 = vsel %vm459, %v1589, %v1597
    %v1605 = vsel %vm459, %v1591, %v1599
    %v1606 = vsel %vm459, %v1593, %v1601
    %v1607 = vsel %vm459, %v1595, %v1603
    %v1608 = vsel %vm459, %v1597, %v1589
    %v1609 = vsel %vm459, %v1599, %v1591
    %v1610 = vsel %vm459, %v1601, %v1593
    %v1611 = vsel %vm459, %v1603, %v1595
    %v1612 = vmul.f32 %v1604, %v468
    %v1613 = vmul.f32 %v1608, %v469
    %v1614 = vmul.f32 %v1605, %v470
    %v1615 = vmul.f32 %v1609, %v471
    %v1616 = vmul.f32 %v1606, %v472
    %v1617 = vmul.f32 %v1610, %v473
    %v1618 = vmul.f32 %v1607, %v474
    %v1619 = vmul.f32 %v1611, %v475
    %v1620 = vadd.f32 %v1580, %v1612
    %v1621 = vadd.f32 %v1581, %v1613
    %v1622 = vadd.f32 %v1582, %v1614
    %v1623 = vadd.f32 %v1583, %v1615
    %v1624 = vadd.f32 %v1584, %v1616
    %v1625 = vadd.f32 %v1585, %v1617
    %v1626 = vadd.f32 %v1586, %v1618
    %v1627 = vadd.f32 %v1587, %v1619
    %1629 = vset.pattern.permute.xlu0 0
    %1630 = vperm.xlu0 %1629, %v1399
    %v1631 = vpop.permute.xlu0 %1630
    %1634 = vset.pattern.permute.xlu0 0
    %1635 = vperm.xlu0 %1634, %v1400
    %v1636 = vpop.permute.xlu0 %1635
    %1639 = vset.pattern.permute.xlu0 0
    %1640 = vperm.xlu0 %1639, %v1401
    %v1641 = vpop.permute.xlu0 %1640
    %1644 = vset.pattern.permute.xlu0 0
    %1645 = vperm.xlu0 %1644, %v1402
    %v1646 = vpop.permute.xlu0 %1645
    %v1648 = vadd.f32 %v1620, %v1631
    %v1649 = vadd.f32 %v1621, %v1631
    %v1650 = vadd.f32 %v1622, %v1636
    %v1651 = vadd.f32 %v1623, %v1636
    %v1652 = vadd.f32 %v1624, %v1641
    %v1653 = vadd.f32 %v1625, %v1641
    %v1654 = vadd.f32 %v1626, %v1646
    %v1655 = vadd.f32 %v1627, %v1646
    %s1656 = sld [smem:[#allocation2 + $0x7]]
    %vm1657 = vcmp.ge.f32.partialorder %v1648, 0.0
    %vm1658 = vcmp.ge.f32.partialorder %v1649, 0.0
    %vm1659 = vcmp.ge.f32.partialorder %v1650, 0.0
    %vm1660 = vcmp.ge.f32.partialorder %v1651, 0.0
    %vm1661 = vcmp.ge.f32.partialorder %v1652, 0.0
    %vm1662 = vcmp.ge.f32.partialorder %v1653, 0.0
    %vm1663 = vcmp.ge.f32.partialorder %v1654, 0.0
    %vm1664 = vcmp.ge.f32.partialorder %v1655, 0.0
    %v1665 = vstv %s1656
    %v1666 = vmul.f32 %v1648, %v1665
    %v1667 = vmul.f32 %v1649, %v1665
    %v1668 = vmul.f32 %v1650, %v1665
    %v1669 = vmul.f32 %v1651, %v1665
    %v1670 = vmul.f32 %v1652, %v1665
    %v1671 = vmul.f32 %v1653, %v1665
    %v1672 = vmul.f32 %v1654, %v1665
    %v1673 = vmul.f32 %v1655, %v1665
    %v1674 = vsel %vm1657, %v1648, %v1666
    %v1675 = vsel %vm1658, %v1649, %v1667
    %v1676 = vsel %vm1659, %v1650, %v1668
    %v1677 = vsel %vm1660, %v1651, %v1669
    %v1678 = vsel %vm1661, %v1652, %v1670
    %v1679 = vsel %vm1662, %v1653, %v1671
    %v1680 = vsel %vm1663, %v1654, %v1672
    %v1681 = vsel %vm1664, %v1655, %v1673
    %s1682 = scalar_lea.vmem %s6, 96
    %v1683 = vld [vmem:[%s1682] sm:$0xf]
    %v1684 = vld [vmem:[%s1682 + $0x4] sm:$0xf]
    %v1685 = vld [vmem:[%s1682 + $0x8] sm:$0xf]
    %v1686 = vld [vmem:[%s1682 + $0xc] sm:$0xf]
    %v1687 = vld [vmem:[%s1682 + $0x10] sm:$0xf]
    %v1688 = vld [vmem:[%s1682 + $0x14] sm:$0xf]
    %v1689 = vld [vmem:[%s1682 + $0x18] sm:$0xf]
    %v1690 = vld [vmem:[%s1682 + $0x1c] sm:$0xf]
    %v1691 = vld [vmem:[%s1682 + $0x20] sm:$0xf]
    %v1692 = vld [vmem:[%s1682 + $0x24] sm:$0xf]
    %v1693 = vld [vmem:[%s1682 + $0x28] sm:$0xf]
    %v1694 = vld [vmem:[%s1682 + $0x2c] sm:$0xf]
    %s1695 = scalar_lea.vmem %s7, 64
    %v1696 = vld [vmem:[%s1695] sm:$0xff]
    %v1697 = vld [vmem:[%s1695 + $0x8] sm:$0xff]
    %v1698 = vld [vmem:[%s1695 + $0x10] sm:$0xff]
    %v1699 = vld [vmem:[%s1695 + $0x18] sm:$0xff]
    %v1700 = vpack.c.bf16 %v1676, %v1674
    %v1701 = vpack.c.bf16 %v1677, %v1675
    %v1702 = vpack.c.bf16 %v1680, %v1678
    %v1703 = vpack.c.bf16 %v1681, %v1679
    %v1716 = vunpack.c.l.b16 %v1683
    %v1717 = vunpack.c.l.b16 %v1684
    %v1718 = vunpack.c.l.b16 %v1685
    %v1719 = vunpack.c.l.b16 %v1686
    %v1720 = vunpack.c.l.b16 %v1687
    %v1721 = vunpack.c.l.b16 %v1688
    %v1722 = vunpack.c.l.b16 %v1689
    %v1723 = vunpack.c.l.b16 %v1690
    %v1724 = vunpack.c.l.b16 %v1691
    %v1725 = vunpack.c.l.b16 %v1692
    %v1726 = vunpack.c.l.b16 %v1693
    %v1727 = vunpack.c.l.b16 %v1694
    %v1728 = vpack.c.b16 %v1717, %v1716
    %v1729 = vpack.c.b16 %v1719, %v1718
    %v1730 = vpack.c.b16 %v1721, %v1720
    %v1731 = vpack.c.b16 %v1723, %v1722
    %v1732 = vpack.c.b16 %v1725, %v1724
    %v1733 = vpack.c.b16 %v1727, %v1726
    %v1735 = vsel %vm598, %v1728, 0
    %v1738 = vsel %vm598, %v1729, 0
    %v1741 = vsel %vm598, %v1730, 0
    %v1744 = vsel %vm598, %v1731, 0
    %v1747 = vsel %vm598, %v1732, 0
    %v1750 = vsel %vm598, %v1733, 0
    %1752 = vmatprep.subr.bf16.mxu0 %v1701
    %1753 = vmatpush1.bf16.msra.mxu0 %v1700
    %1754 = vmatprep.subr.bf16.mxu0 %v1703
    %1755 = vmatpush1.bf16.msra.mxu0 %v1702
    %1756 = vmatprep.subr.bf16.mxu0 0
    %1757 = vmatpush1.bf16.msra.mxu0 0
    %1758 = vmatprep.subr.bf16.mxu0 0
    %1759 = vmatpush1.bf16.msra.mxu0 0
    %1760 = vmatprep.subr.bf16.mxu0 0
    %1761 = vmatpush1.bf16.msra.mxu0 0
    %1762 = vmatprep.subr.bf16.mxu0 0
    %1763 = vmatpush1.bf16.msra.mxu0 0
    %1764 = vmatprep.subr.bf16.mxu0 0
    %1765 = vmatpush1.bf16.msra.mxu0 0
    %1766 = vmatprep.subr.bf16.mxu0 0
    %1767 = vmatpush1.bf16.msra.mxu0 0
    %1768 = vmatprep.subr.bf16.mxu0 0
    %1769 = vmatpush1.bf16.msra.mxu0 0
    %1770 = vmatprep.subr.bf16.mxu0 0
    %1771 = vmatpush1.bf16.msra.mxu0 0
    %1772 = vmatprep.subr.bf16.mxu0 0
    %1773 = vmatpush1.bf16.msra.mxu0 0
    %1774 = vmatprep.subr.bf16.mxu0 0
    %1775 = vmatpush1.bf16.msra.mxu0 0
    %1776 = vmatprep.subr.bf16.mxu0 0
    %1777 = vmatpush1.bf16.msra.mxu0 0
    %1778 = vmatprep.subr.bf16.mxu0 0
    %1779 = vmatpush1.bf16.msra.mxu0 0
    %1780 = vmatprep.subr.bf16.mxu0 0
    %1781 = vmatpush1.bf16.msra.mxu0 0
    %1782 = vmatprep.subr.bf16.mxu0 0
    %1783 = vmatpush1.bf16.msra.mxu0 0
    %1784 = vmatprep.mubr.bf16.mxu0 0
    %1785 = vmatmul.mubr.bf16.gmra.mrb[0].mxu0 %v1735
    %v1786 = vpop.f32.mrb[0].mxu0
    %v1787 = vadd.f32 0.0, %v1786
    %v1788 = vpop.f32.mrb[0].mxu0
    %v1789 = vadd.f32 0.0, %v1788
    %v1790 = vpop.f32.mrb[0].mxu0
    %v1791 = vadd.f32 0.0, %v1790
    %v1792 = vpop.f32.mrb[0].mxu0
    %v1793 = vadd.f32 0.0, %v1792
    %1794 = vmatprep.mubr.bf16.mxu0 0
    %1795 = vmatmul.mubr.bf16.gmra.mrb[0].mxu0 %v1738
    %v1796 = vpop.f32.mrb[0].mxu0
    %v1797 = vadd.f32 0.0, %v1796
    %v1798 = vpop.f32.mrb[0].mxu0
    %v1799 = vadd.f32 0.0, %v1798
    %v1800 = vpop.f32.mrb[0].mxu0
    %v1801 = vadd.f32 0.0, %v1800
    %v1802 = vpop.f32.mrb[0].mxu0
    %v1803 = vadd.f32 0.0, %v1802
    %1804 = vmatprep.mubr.bf16.mxu0 0
    %1805 = vmatmul.mubr.bf16.gmra.mrb[0].mxu0 %v1741
    %v1806 = vpop.f32.mrb[0].mxu0
    %v1807 = vadd.f32 0.0, %v1806
    %v1808 = vpop.f32.mrb[0].mxu0
    %v1809 = vadd.f32 0.0, %v1808
    %v1810 = vpop.f32.mrb[0].mxu0
    %v1811 = vadd.f32 0.0, %v1810
    %v1812 = vpop.f32.mrb[0].mxu0
    %v1813 = vadd.f32 0.0, %v1812
    %1814 = vmatprep.mubr.bf16.mxu0 0
    %1815 = vmatmul.mubr.bf16.gmra.mrb[0].mxu0 %v1744
    %v1816 = vpop.f32.mrb[0].mxu0
    %v1817 = vadd.f32 0.0, %v1816
    %v1818 = vpop.f32.mrb[0].mxu0
    %v1819 = vadd.f32 0.0, %v1818
    %v1820 = vpop.f32.mrb[0].mxu0
    %v1821 = vadd.f32 0.0, %v1820
    %v1822 = vpop.f32.mrb[0].mxu0
    %v1823 = vadd.f32 0.0, %v1822
    %1824 = vmatprep.mubr.bf16.mxu0 0
    %1825 = vmatmul.mubr.bf16.gmra.mrb[0].mxu0 %v1747
    %v1826 = vpop.f32.mrb[0].mxu0
    %v1827 = vadd.f32 0.0, %v1826
    %v1828 = vpop.f32.mrb[0].mxu0
    %v1829 = vadd.f32 0.0, %v1828
    %v1830 = vpop.f32.mrb[0].mxu0
    %v1831 = vadd.f32 0.0, %v1830
    %v1832 = vpop.f32.mrb[0].mxu0
    %v1833 = vadd.f32 0.0, %v1832
    %1834 = vmatprep.mubr.bf16.mxu0 0
    %1835 = vmatmul.mubr.bf16.gmra.mrb[0].mxu0 %v1750
    %v1836 = vpop.f32.mrb[0].mxu0
    %v1837 = vadd.f32 0.0, %v1836
    %v1838 = vpop.f32.mrb[0].mxu0
    %v1839 = vadd.f32 0.0, %v1838
    %v1840 = vpop.f32.mrb[0].mxu0
    %v1841 = vadd.f32 0.0, %v1840
    %v1842 = vpop.f32.mrb[0].mxu0
    %v1843 = vadd.f32 0.0, %v1842
    %1844 = vdwg.mxu0
    %1845 = vrot.lane.b32.xlu0 %v1787, 1
    %v1846 = vpop.permute.xlu0 %1845
    %1847 = vrot.lane.b32.xlu0 %v1791, 1
    %v1848 = vpop.permute.xlu0 %1847
    %1849 = vrot.lane.b32.xlu0 %v1797, 1
    %v1850 = vpop.permute.xlu0 %1849
    %1851 = vrot.lane.b32.xlu0 %v1801, 1
    %v1852 = vpop.permute.xlu0 %1851
    %1853 = vrot.lane.b32.xlu0 %v1789, 1
    %v1854 = vpop.permute.xlu0 %1853
    %1855 = vrot.lane.b32.xlu0 %v1793, 1
    %v1856 = vpop.permute.xlu0 %1855
    %1857 = vrot.lane.b32.xlu0 %v1799, 1
    %v1858 = vpop.permute.xlu0 %1857
    %1859 = vrot.lane.b32.xlu0 %v1803, 1
    %v1860 = vpop.permute.xlu0 %1859
    %v1861 = vsel %vm410, %v1846, %v1854
    %v1862 = vsel %vm410, %v1848, %v1856
    %v1863 = vsel %vm410, %v1850, %v1858
    %v1864 = vsel %vm410, %v1852, %v1860
    %v1865 = vsel %vm410, %v1854, %v1846
    %v1866 = vsel %vm410, %v1856, %v1848
    %v1867 = vsel %vm410, %v1858, %v1850
    %v1868 = vsel %vm410, %v1860, %v1852
    %v1869 = vmul.f32 %v1865, %v419
    %v1870 = vmul.f32 %v1861, %v420
    %v1871 = vmul.f32 %v1866, %v421
    %v1872 = vmul.f32 %v1862, %v422
    %v1873 = vmul.f32 %v1867, %v423
    %v1874 = vmul.f32 %v1863, %v424
    %v1875 = vmul.f32 %v1868, %v425
    %v1876 = vmul.f32 %v1864, %v426
    %v1877 = vadd.f32 %v1869, %v1807
    %v1878 = vadd.f32 %v1870, %v1809
    %v1879 = vadd.f32 %v1871, %v1811
    %v1880 = vadd.f32 %v1872, %v1813
    %v1881 = vadd.f32 %v1873, %v1817
    %v1882 = vadd.f32 %v1874, %v1819
    %v1883 = vadd.f32 %v1875, %v1821
    %v1884 = vadd.f32 %v1876, %v1823
    %1885 = vrot.lane.b32.xlu0 %v1827, 127
    %v1886 = vpop.permute.xlu0 %1885
    %1887 = vrot.lane.b32.xlu0 %v1831, 127
    %v1888 = vpop.permute.xlu0 %1887
    %1889 = vrot.lane.b32.xlu0 %v1837, 127
    %v1890 = vpop.permute.xlu0 %1889
    %1891 = vrot.lane.b32.xlu0 %v1841, 127
    %v1892 = vpop.permute.xlu0 %1891
    %1893 = vrot.lane.b32.xlu0 %v1829, 127
    %v1894 = vpop.permute.xlu0 %1893
    %1895 = vrot.lane.b32.xlu0 %v1833, 127
    %v1896 = vpop.permute.xlu0 %1895
    %1897 = vrot.lane.b32.xlu0 %v1839, 127
    %v1898 = vpop.permute.xlu0 %1897
    %1899 = vrot.lane.b32.xlu0 %v1843, 127
    %v1900 = vpop.permute.xlu0 %1899
    %v1901 = vsel %vm459, %v1886, %v1894
    %v1902 = vsel %vm459, %v1888, %v1896
    %v1903 = vsel %vm459, %v1890, %v1898
    %v1904 = vsel %vm459, %v1892, %v1900
    %v1905 = vsel %vm459, %v1894, %v1886
    %v1906 = vsel %vm459, %v1896, %v1888
    %v1907 = vsel %vm459, %v1898, %v1890
    %v1908 = vsel %vm459, %v1900, %v1892
    %v1909 = vmul.f32 %v1901, %v468
    %v1910 = vmul.f32 %v1905, %v469
    %v1911 = vmul.f32 %v1902, %v470
    %v1912 = vmul.f32 %v1906, %v471
    %v1913 = vmul.f32 %v1903, %v472
    %v1914 = vmul.f32 %v1907, %v473
    %v1915 = vmul.f32 %v1904, %v474
    %v1916 = vmul.f32 %v1908, %v475
    %v1917 = vadd.f32 %v1877, %v1909
    %v1918 = vadd.f32 %v1878, %v1910
    %v1919 = vadd.f32 %v1879, %v1911
    %v1920 = vadd.f32 %v1880, %v1912
    %v1921 = vadd.f32 %v1881, %v1913
    %v1922 = vadd.f32 %v1882, %v1914
    %v1923 = vadd.f32 %v1883, %v1915
    %v1924 = vadd.f32 %v1884, %v1916
    %1926 = vset.pattern.permute.xlu0 0
    %1927 = vperm.xlu0 %1926, %v1696
    %v1928 = vpop.permute.xlu0 %1927
    %1931 = vset.pattern.permute.xlu0 0
    %1932 = vperm.xlu0 %1931, %v1697
    %v1933 = vpop.permute.xlu0 %1932
    %1936 = vset.pattern.permute.xlu0 0
    %1937 = vperm.xlu0 %1936, %v1698
    %v1938 = vpop.permute.xlu0 %1937
    %1941 = vset.pattern.permute.xlu0 0
    %1942 = vperm.xlu0 %1941, %v1699
    %v1943 = vpop.permute.xlu0 %1942
    %v1945 = vadd.f32 %v1917, %v1928
    %v1946 = vadd.f32 %v1918, %v1928
    %v1947 = vadd.f32 %v1919, %v1933
    %v1948 = vadd.f32 %v1920, %v1933
    %v1949 = vadd.f32 %v1921, %v1938
    %v1950 = vadd.f32 %v1922, %v1938
    %v1951 = vadd.f32 %v1923, %v1943
    %v1952 = vadd.f32 %v1924, %v1943
    %s1953 = sld [smem:[#allocation2 + $0x8]]
    %vm1954 = vcmp.ge.f32.partialorder %v1945, 0.0
    %vm1955 = vcmp.ge.f32.partialorder %v1946, 0.0
    %vm1956 = vcmp.ge.f32.partialorder %v1947, 0.0
    %vm1957 = vcmp.ge.f32.partialorder %v1948, 0.0
    %vm1958 = vcmp.ge.f32.partialorder %v1949, 0.0
    %vm1959 = vcmp.ge.f32.partialorder %v1950, 0.0
    %vm1960 = vcmp.ge.f32.partialorder %v1951, 0.0
    %vm1961 = vcmp.ge.f32.partialorder %v1952, 0.0
    %v1962 = vstv %s1953
    %v1963 = vmul.f32 %v1945, %v1962
    %v1964 = vmul.f32 %v1946, %v1962
    %v1965 = vmul.f32 %v1947, %v1962
    %v1966 = vmul.f32 %v1948, %v1962
    %v1967 = vmul.f32 %v1949, %v1962
    %v1968 = vmul.f32 %v1950, %v1962
    %v1969 = vmul.f32 %v1951, %v1962
    %v1970 = vmul.f32 %v1952, %v1962
    %v1971 = vsel %vm1954, %v1945, %v1963
    %v1972 = vsel %vm1955, %v1946, %v1964
    %v1973 = vsel %vm1956, %v1947, %v1965
    %v1974 = vsel %vm1957, %v1948, %v1966
    %v1975 = vsel %vm1958, %v1949, %v1967
    %v1976 = vsel %vm1959, %v1950, %v1968
    %v1977 = vsel %vm1960, %v1951, %v1969
    %v1978 = vsel %vm1961, %v1952, %v1970
    %s1979 = scalar_lea.vmem %s6, 144
    %v1980 = vld [vmem:[%s1979] sm:$0xf]
    %v1981 = vld [vmem:[%s1979 + $0x4] sm:$0xf]
    %v1982 = vld [vmem:[%s1979 + $0x8] sm:$0xf]
    %v1983 = vld [vmem:[%s1979 + $0xc] sm:$0xf]
    %s1984 = scalar_lea.vmem %s7, 96
    %v1985 = vld [vmem:[%s1984] sm:$0xff]
    %v1986 = vpack.c.bf16 %v1973, %v1971
    %v1987 = vpack.c.bf16 %v1974, %v1972
    %v1988 = vpack.c.bf16 %v1977, %v1975
    %v1989 = vpack.c.bf16 %v1978, %v1976
    %v1994 = vunpack.c.l.b16 %v1980
    %v1995 = vunpack.c.l.b16 %v1981
    %v1996 = vunpack.c.l.b16 %v1982
    %v1997 = vunpack.c.l.b16 %v1983
    %v1998 = vpack.c.b16 %v1995, %v1994
    %v1999 = vpack.c.b16 %v1997, %v1996
    %v2001 = vsel %vm598, %v1998, 0
    %v2004 = vsel %vm598, %v1999, 0
    %2006 = vmatprep.subr.bf16.mxu0 %v1987
    %2007 = vmatpush1.bf16.msra.mxu0 %v1986
    %2008 = vmatprep.subr.bf16.mxu0 %v1989
    %2009 = vmatpush1.bf16.msra.mxu0 %v1988
    %2010 = vmatprep.subr.bf16.mxu0 0
    %2011 = vmatpush1.bf16.msra.mxu0 0
    %2012 = vmatprep.subr.bf16.mxu0 0
    %2013 = vmatpush1.bf16.msra.mxu0 0
    %2014 = vmatprep.subr.bf16.mxu0 0
    %2015 = vmatpush1.bf16.msra.mxu0 0
    %2016 = vmatprep.subr.bf16.mxu0 0
    %2017 = vmatpush1.bf16.msra.mxu0 0
    %2018 = vmatprep.subr.bf16.mxu0 0
    %2019 = vmatpush1.bf16.msra.mxu0 0
    %2020 = vmatprep.subr.bf16.mxu0 0
    %2021 = vmatpush1.bf16.msra.mxu0 0
    %2022 = vmatprep.subr.bf16.mxu0 0
    %2023 = vmatpush1.bf16.msra.mxu0 0
    %2024 = vmatprep.subr.bf16.mxu0 0
    %2025 = vmatpush1.bf16.msra.mxu0 0
    %2026 = vmatprep.subr.bf16.mxu0 0
    %2027 = vmatpush1.bf16.msra.mxu0 0
    %2028 = vmatprep.subr.bf16.mxu0 0
    %2029 = vmatpush1.bf16.msra.mxu0 0
    %2030 = vmatprep.subr.bf16.mxu0 0
    %2031 = vmatpush1.bf16.msra.mxu0 0
    %2032 = vmatprep.subr.bf16.mxu0 0
    %2033 = vmatpush1.bf16.msra.mxu0 0
    %2034 = vmatprep.subr.bf16.mxu0 0
    %2035 = vmatpush1.bf16.msra.mxu0 0
    %2036 = vmatprep.subr.bf16.mxu0 0
    %2037 = vmatpush1.bf16.msra.mxu0 0
    %2038 = vmatprep.mubr.bf16.mxu0 0
    %2039 = vmatmul.mubr.bf16.gmra.mrb[0].mxu0 %v2001
    %v2040 = vpop.f32.mrb[0].mxu0
    %v2041 = vadd.f32 0.0, %v2040
    %v2042 = vpop.f32.mrb[0].mxu0
    %v2043 = vadd.f32 0.0, %v2042
    %v2044 = vpop.f32.mrb[0].mxu0
    %v2045 = vadd.f32 0.0, %v2044
    %v2046 = vpop.f32.mrb[0].mxu0
    %v2047 = vadd.f32 0.0, %v2046
    %2048 = vmatprep.mubr.bf16.mxu0 0
    %2049 = vmatmul.mubr.bf16.gmra.mrb[0].mxu0 %v2004
    %v2050 = vpop.f32.mrb[0].mxu0
    %v2051 = vadd.f32 0.0, %v2050
    %v2052 = vpop.f32.mrb[0].mxu0
    %v2053 = vadd.f32 0.0, %v2052
    %v2054 = vpop.f32.mrb[0].mxu0
    %v2055 = vpop.f32.mrb[0].mxu0
    %2056 = vdwg.mxu0
    %2057 = vrot.lane.b32.xlu0 %v2041, 1
    %v2058 = vpop.permute.xlu0 %2057
    %2059 = vrot.lane.b32.xlu0 %v2043, 1
    %v2060 = vpop.permute.xlu0 %2059
    %v2061 = vsel %vm410, %v2058, %v2060
    %v2062 = vsel %vm410, %v2060, %v2058
    %v2063 = vmul.f32 %v2062, %v928
    %v2064 = vmul.f32 %v2061, %v929
    %v2065 = vadd.f32 %v2063, %v2045
    %v2066 = vadd.f32 %v2064, %v2047
    %2067 = vrot.lane.b32.xlu0 %v2051, 127
    %v2068 = vpop.permute.xlu0 %2067
    %2069 = vrot.lane.b32.xlu0 %v2053, 127
    %v2070 = vpop.permute.xlu0 %2069
    %v2071 = vsel %vm459, %v2068, %v2070
    %v2072 = vsel %vm459, %v2070, %v2068
    %v2073 = vmul.f32 %v2071, %v940
    %v2074 = vmul.f32 %v2072, %v941
    %v2075 = vadd.f32 %v2065, %v2073
    %v2076 = vadd.f32 %v2066, %v2074
    %2078 = vset.pattern.permute.xlu0 0
    %2079 = vperm.xlu0 %2078, %v1985
    %v2080 = vpop.permute.xlu0 %2079
    %v2082 = vadd.f32 %v2075, %v2080
    %v2083 = vadd.f32 %v2076, %v2080
    %v2084 = vadd.f32 %v81, %v2082
    %v2085 = vadd.f32 %v82, %v2083
    %v2088 = vrot.slane %v2084, 1
    %v2089 = vrot.slane %v2085, 1
    %2092 = vmatprep.subr.mxu0 %v84
    %2093 = vmatpush1.msra.mxu0 %v83
    %2094 = vmatprep.subr.mxu0 %v86
    %2095 = vmatpush1.msra.mxu0 %v85
    %2096 = vmatprep.subr.mxu0 %v88
    %2097 = vmatpush1.msra.mxu0 %v87
    %2098 = vmatprep.subr.mxu0 %v90
    %2099 = vmatpush1.msra.mxu0 %v89
    %2100 = vmatprep.subr.mxu0 %v92
    %2101 = vmatpush1.msra.mxu0 %v91
    %2102 = vmatprep.subr.mxu0 %v94
    %2103 = vmatpush1.msra.mxu0 %v93
    %2104 = vmatprep.subr.mxu0 %v96
    %2105 = vmatpush1.msra.mxu0 %v95
    %2106 = vmatprep.subr.mxu0 %v98
    %2107 = vmatpush1.msra.mxu0 %v97
    %2108 = vmatprep.subr.mxu0 %v100
    %2109 = vmatpush1.msra.mxu0 %v99
    %2110 = vmatprep.subr.mxu0 %v102
    %2111 = vmatpush1.msra.mxu0 %v101
    %2112 = vmatprep.subr.mxu0 %v104
    %2113 = vmatpush1.msra.mxu0 %v103
    %2114 = vmatprep.subr.mxu0 %v106
    %2115 = vmatpush1.msra.mxu0 %v105
    %2116 = vmatprep.subr.mxu0 %v108
    %2117 = vmatpush1.msra.mxu0 %v107
    %2118 = vmatprep.subr.mxu0 %v110
    %2119 = vmatpush1.msra.mxu0 %v109
    %2120 = vmatprep.subr.mxu0 %v112
    %2121 = vmatpush1.msra.mxu0 %v111
    %2122 = vmatprep.subr.mxu0 %v114
    %2123 = vmatpush1.msra.mxu0 %v113
    %2124 = vmatprep.subr.mxu0 %v116
    %2125 = vmatpush1.msra.mxu0 %v115
    %2126 = vmatprep.subr.mxu0 %v118
    %2127 = vmatpush1.msra.mxu0 %v117
    %2128 = vmatprep.subr.mxu0 %v120
    %2129 = vmatpush1.msra.mxu0 %v119
    %2130 = vmatprep.subr.mxu0 %v122
    %2131 = vmatpush1.msra.mxu0 %v121
    %2132 = vmatprep.subr.mxu0 %v124
    %2133 = vmatpush1.msra.mxu0 %v123
    %2134 = vmatprep.subr.mxu0 %v126
    %2135 = vmatpush1.msra.mxu0 %v125
    %2136 = vmatprep.subr.mxu0 %v128
    %2137 = vmatpush1.msra.mxu0 %v127
    %2138 = vmatprep.subr.mxu0 %v130
    %2139 = vmatpush1.msra.mxu0 %v129
    %2140 = vmatprep.subr.mxu0 %v132
    %2141 = vmatpush1.msra.mxu0 %v131
    %2142 = vmatprep.subr.mxu0 %v134
    %2143 = vmatpush1.msra.mxu0 %v133
    %2144 = vmatprep.subr.mxu0 %v136
    %2145 = vmatpush1.msra.mxu0 %v135
    %2146 = vmatprep.subr.mxu0 %v138
    %2147 = vmatpush1.msra.mxu0 %v137
    %2148 = vmatprep.subr.mxu0 %v140
    %2149 = vmatpush1.msra.mxu0 %v139
    %2150 = vmatprep.subr.mxu0 %v142
    %2151 = vmatpush1.msra.mxu0 %v141
    %2152 = vmatprep.subr.mxu0 %v144
    %2153 = vmatpush1.msra.mxu0 %v143
    %2154 = vmatprep.subr.mxu0 %v146
    %2155 = vmatpush1.msra.mxu0 %v145
    %2156 = vmatprep.mubr.f32.mxu0 %v2089
    %2157 = vmatmul.mubr.f32.gmra.mrb[0].mxu0 %v2088
    %v2158 = vpop.f32.mrb[0].mxu0
    %v2159 = vadd.f32 0.0, %v2158
    %v2160 = vpop.f32.mrb[0].mxu0
    %v2161 = vadd.f32 0.0, %v2160
    %2162 = vdwg.mxu0
    %v2163 = vsel %vm65, %v2159, %v226
    %v2164 = vsel %vm65, %v2161, %v227
    %s2165 = scalar_lea.vmem %s4, 144
    %v2166 = vld [vmem:[%s2165] sm:$0xf]
    %v2167 = vld [vmem:[%s2165 + $0x4] sm:$0xf]
    %v2168 = vld [vmem:[%s2165 + $0x8] sm:$0xf]
    %v2169 = vld [vmem:[%s2165 + $0xc] sm:$0xf]
    %v2170 = vld [vmem:[%s2165 + $0x10] sm:$0xf]
    %v2171 = vld [vmem:[%s2165 + $0x14] sm:$0xf]
    %v2172 = vld [vmem:[%s2165 + $0x18] sm:$0xf]
    %v2173 = vld [vmem:[%s2165 + $0x1c] sm:$0xf]
    %v2174 = vld [vmem:[%s2165 + $0x20] sm:$0xf]
    %v2175 = vld [vmem:[%s2165 + $0x24] sm:$0xf]
    %v2176 = vld [vmem:[%s2165 + $0x28] sm:$0xf]
    %v2177 = vld [vmem:[%s2165 + $0x2c] sm:$0xf]
    %s2178 = scalar_lea.vmem %s5, 96
    %v2179 = vld [vmem:[%s2178] sm:$0xff]
    %v2180 = vld [vmem:[%s2178 + $0x8] sm:$0xff]
    %v2181 = vld [vmem:[%s2178 + $0x10] sm:$0xff]
    %v2182 = vld [vmem:[%s2178 + $0x18] sm:$0xff]
    %v2183 = vpack.c.bf16 %v2163, %v953
    %v2184 = vpack.c.bf16 %v2164, %v954
    %v2197 = vunpack.c.l.b16 %v2166
    %v2198 = vunpack.c.l.b16 %v2167
    %v2199 = vunpack.c.l.b16 %v2168
    %v2200 = vunpack.c.l.b16 %v2169
    %v2201 = vunpack.c.l.b16 %v2170
    %v2202 = vunpack.c.l.b16 %v2171
    %v2203 = vunpack.c.l.b16 %v2172
    %v2204 = vunpack.c.l.b16 %v2173
    %v2205 = vunpack.c.l.b16 %v2174
    %v2206 = vunpack.c.l.b16 %v2175
    %v2207 = vunpack.c.l.b16 %v2176
    %v2208 = vunpack.c.l.b16 %v2177
    %v2209 = vpack.c.b16 %v2198, %v2197
    %v2210 = vpack.c.b16 %v2200, %v2199
    %v2211 = vpack.c.b16 %v2202, %v2201
    %v2212 = vpack.c.b16 %v2204, %v2203
    %v2213 = vpack.c.b16 %v2206, %v2205
    %v2214 = vpack.c.b16 %v2208, %v2207
    %v2216 = vsel %vm280, %v2209, 0
    %v2219 = vsel %vm280, %v2210, 0
    %v2222 = vsel %vm280, %v2211, 0
    %v2225 = vsel %vm280, %v2212, 0
    %v2228 = vsel %vm280, %v2213, 0
    %v2231 = vsel %vm280, %v2214, 0
    %2233 = vmatprep.subr.bf16.mxu0 %v2184
    %2234 = vmatpush1.bf16.msra.mxu0 %v2183
    %2235 = vmatprep.subr.bf16.mxu0 0
    %2236 = vmatpush1.bf16.msra.mxu0 0
    %2237 = vmatprep.subr.bf16.mxu0 0
    %2238 = vmatpush1.bf16.msra.mxu0 0
    %2239 = vmatprep.subr.bf16.mxu0 0
    %2240 = vmatpush1.bf16.msra.mxu0 0
    %2241 = vmatprep.subr.bf16.mxu0 0
    %2242 = vmatpush1.bf16.msra.mxu0 0
    %2243 = vmatprep.subr.bf16.mxu0 0
    %2244 = vmatpush1.bf16.msra.mxu0 0
    %2245 = vmatprep.subr.bf16.mxu0 0
    %2246 = vmatpush1.bf16.msra.mxu0 0
    %2247 = vmatprep.subr.bf16.mxu0 0
    %2248 = vmatpush1.bf16.msra.mxu0 0
    %2249 = vmatprep.subr.bf16.mxu0 0
    %2250 = vmatpush1.bf16.msra.mxu0 0
    %2251 = vmatprep.subr.bf16.mxu0 0
    %2252 = vmatpush1.bf16.msra.mxu0 0
    %2253 = vmatprep.subr.bf16.mxu0 0
    %2254 = vmatpush1.bf16.msra.mxu0 0
    %2255 = vmatprep.subr.bf16.mxu0 0
    %2256 = vmatpush1.bf16.msra.mxu0 0
    %2257 = vmatprep.subr.bf16.mxu0 0
    %2258 = vmatpush1.bf16.msra.mxu0 0
    %2259 = vmatprep.subr.bf16.mxu0 0
    %2260 = vmatpush1.bf16.msra.mxu0 0
    %2261 = vmatprep.subr.bf16.mxu0 0
    %2262 = vmatpush1.bf16.msra.mxu0 0
    %2263 = vmatprep.subr.bf16.mxu0 0
    %2264 = vmatpush1.bf16.msra.mxu0 0
    %2265 = vmatprep.mubr.bf16.mxu0 0
    %2266 = vmatmul.mubr.bf16.gmra.mrb[0].mxu0 %v2216
    %v2267 = vpop.f32.mrb[0].mxu0
    %v2268 = vadd.f32 0.0, %v2267
    %v2269 = vpop.f32.mrb[0].mxu0
    %v2270 = vadd.f32 0.0, %v2269
    %v2271 = vpop.f32.mrb[0].mxu0
    %v2272 = vadd.f32 0.0, %v2271
    %v2273 = vpop.f32.mrb[0].mxu0
    %v2274 = vadd.f32 0.0, %v2273
    %2275 = vmatprep.mubr.bf16.mxu0 0
    %2276 = vmatmul.mubr.bf16.gmra.mrb[0].mxu0 %v2219
    %v2277 = vpop.f32.mrb[0].mxu0
    %v2278 = vadd.f32 0.0, %v2277
    %v2279 = vpop.f32.mrb[0].mxu0
    %v2280 = vadd.f32 0.0, %v2279
    %v2281 = vpop.f32.mrb[0].mxu0
    %v2282 = vadd.f32 0.0, %v2281
    %v2283 = vpop.f32.mrb[0].mxu0
    %v2284 = vadd.f32 0.0, %v2283
    %2285 = vmatprep.mubr.bf16.mxu0 0
    %2286 = vmatmul.mubr.bf16.gmra.mrb[0].mxu0 %v2222
    %v2287 = vpop.f32.mrb[0].mxu0
    %v2288 = vadd.f32 0.0, %v2287
    %v2289 = vpop.f32.mrb[0].mxu0
    %v2290 = vadd.f32 0.0, %v2289
    %v2291 = vpop.f32.mrb[0].mxu0
    %v2292 = vadd.f32 0.0, %v2291
    %v2293 = vpop.f32.mrb[0].mxu0
    %v2294 = vadd.f32 0.0, %v2293
    %2295 = vmatprep.mubr.bf16.mxu0 0
    %2296 = vmatmul.mubr.bf16.gmra.mrb[0].mxu0 %v2225
    %v2297 = vpop.f32.mrb[0].mxu0
    %v2298 = vadd.f32 0.0, %v2297
    %v2299 = vpop.f32.mrb[0].mxu0
    %v2300 = vadd.f32 0.0, %v2299
    %v2301 = vpop.f32.mrb[0].mxu0
    %v2302 = vadd.f32 0.0, %v2301
    %v2303 = vpop.f32.mrb[0].mxu0
    %v2304 = vadd.f32 0.0, %v2303
    %2305 = vmatprep.mubr.bf16.mxu0 0
    %2306 = vmatmul.mubr.bf16.gmra.mrb[0].mxu0 %v2228
    %v2307 = vpop.f32.mrb[0].mxu0
    %v2308 = vadd.f32 0.0, %v2307
    %v2309 = vpop.f32.mrb[0].mxu0
    %v2310 = vadd.f32 0.0, %v2309
    %v2311 = vpop.f32.mrb[0].mxu0
    %v2312 = vadd.f32 0.0, %v2311
    %v2313 = vpop.f32.mrb[0].mxu0
    %v2314 = vadd.f32 0.0, %v2313
    %2315 = vmatprep.mubr.bf16.mxu0 0
    %2316 = vmatmul.mubr.bf16.gmra.mrb[0].mxu0 %v2231
    %v2317 = vpop.f32.mrb[0].mxu0
    %v2318 = vadd.f32 0.0, %v2317
    %v2319 = vpop.f32.mrb[0].mxu0
    %v2320 = vadd.f32 0.0, %v2319
    %v2321 = vpop.f32.mrb[0].mxu0
    %v2322 = vadd.f32 0.0, %v2321
    %v2323 = vpop.f32.mrb[0].mxu0
    %v2324 = vadd.f32 0.0, %v2323
    %2325 = vdwg.mxu0
    %2326 = vrot.lane.b32.xlu0 %v2268, 1
    %v2327 = vpop.permute.xlu0 %2326
    %2328 = vrot.lane.b32.xlu0 %v2272, 1
    %v2329 = vpop.permute.xlu0 %2328
    %2330 = vrot.lane.b32.xlu0 %v2278, 1
    %v2331 = vpop.permute.xlu0 %2330
    %2332 = vrot.lane.b32.xlu0 %v2282, 1
    %v2333 = vpop.permute.xlu0 %2332
    %2334 = vrot.lane.b32.xlu0 %v2270, 1
    %v2335 = vpop.permute.xlu0 %2334
    %2336 = vrot.lane.b32.xlu0 %v2274, 1
    %v2337 = vpop.permute.xlu0 %2336
    %2338 = vrot.lane.b32.xlu0 %v2280, 1
    %v2339 = vpop.permute.xlu0 %2338
    %2340 = vrot.lane.b32.xlu0 %v2284, 1
    %v2341 = vpop.permute.xlu0 %2340
    %v2342 = vsel %vm410, %v2327, %v2335
    %v2343 = vsel %vm410, %v2329, %v2337
    %v2344 = vsel %vm410, %v2331, %v2339
    %v2345 = vsel %vm410, %v2333, %v2341
    %v2346 = vsel %vm410, %v2335, %v2327
    %v2347 = vsel %vm410, %v2337, %v2329
    %v2348 = vsel %vm410, %v2339, %v2331
    %v2349 = vsel %vm410, %v2341, %v2333
    %v2350 = vmul.f32 %v2346, %v419
    %v2351 = vmul.f32 %v2342, %v420
    %v2352 = vmul.f32 %v2347, %v421
    %v2353 = vmul.f32 %v2343, %v422
    %v2354 = vmul.f32 %v2348, %v423
    %v2355 = vmul.f32 %v2344, %v424
    %v2356 = vmul.f32 %v2349, %v425
    %v2357 = vmul.f32 %v2345, %v426
    %v2358 = vadd.f32 %v2350, %v2288
    %v2359 = vadd.f32 %v2351, %v2290
    %v2360 = vadd.f32 %v2352, %v2292
    %v2361 = vadd.f32 %v2353, %v2294
    %v2362 = vadd.f32 %v2354, %v2298
    %v2363 = vadd.f32 %v2355, %v2300
    %v2364 = vadd.f32 %v2356, %v2302
    %v2365 = vadd.f32 %v2357, %v2304
    %2366 = vrot.lane.b32.xlu0 %v2308, 127
    %v2367 = vpop.permute.xlu0 %2366
    %2368 = vrot.lane.b32.xlu0 %v2312, 127
    %v2369 = vpop.permute.xlu0 %2368
    %2370 = vrot.lane.b32.xlu0 %v2318, 127
    %v2371 = vpop.permute.xlu0 %2370
    %2372 = vrot.lane.b32.xlu0 %v2322, 127
    %v2373 = vpop.permute.xlu0 %2372
    %2374 = vrot.lane.b32.xlu0 %v2310, 127
    %v2375 = vpop.permute.xlu0 %2374
    %2376 = vrot.lane.b32.xlu0 %v2314, 127
    %v2377 = vpop.permute.xlu0 %2376
    %2378 = vrot.lane.b32.xlu0 %v2320, 127
    %v2379 = vpop.permute.xlu0 %2378
    %2380 = vrot.lane.b32.xlu0 %v2324, 127
    %v2381 = vpop.permute.xlu0 %2380
    %v2382 = vsel %vm459, %v2367, %v2375
    %v2383 = vsel %vm459, %v2369, %v2377
    %v2384 = vsel %vm459, %v2371, %v2379
    %v2385 = vsel %vm459, %v2373, %v2381
    %v2386 = vsel %vm459, %v2375, %v2367
    %v2387 = vsel %vm459, %v2377, %v2369
    %v2388 = vsel %vm459, %v2379, %v2371
    %v2389 = vsel %vm459, %v2381, %v2373
    %v2390 = vmul.f32 %v2382, %v468
    %v2391 = vmul.f32 %v2386, %v469
    %v2392 = vmul.f32 %v2383, %v470
    %v2393 = vmul.f32 %v2387, %v471
    %v2394 = vmul.f32 %v2384, %v472
    %v2395 = vmul.f32 %v2388, %v473
    %v2396 = vmul.f32 %v2385, %v474
    %v2397 = vmul.f32 %v2389, %v475
    %v2398 = vadd.f32 %v2358, %v2390
    %v2399 = vadd.f32 %v2359, %v2391
    %v2400 = vadd.f32 %v2360, %v2392
    %v2401 = vadd.f32 %v2361, %v2393
    %v2402 = vadd.f32 %v2362, %v2394
    %v2403 = vadd.f32 %v2363, %v2395
    %v2404 = vadd.f32 %v2364, %v2396
    %v2405 = vadd.f32 %v2365, %v2397
    %2407 = vset.pattern.permute.xlu0 0
    %2408 = vperm.xlu0 %2407, %v2179
    %v2409 = vpop.permute.xlu0 %2408
    %2412 = vset.pattern.permute.xlu0 0
    %2413 = vperm.xlu0 %2412, %v2180
    %v2414 = vpop.permute.xlu0 %2413
    %2417 = vset.pattern.permute.xlu0 0
    %2418 = vperm.xlu0 %2417, %v2181
    %v2419 = vpop.permute.xlu0 %2418
    %2422 = vset.pattern.permute.xlu0 0
    %2423 = vperm.xlu0 %2422, %v2182
    %v2424 = vpop.permute.xlu0 %2423
    %v2426 = vadd.f32 %v2398, %v2409
    %v2427 = vadd.f32 %v2399, %v2409
    %v2428 = vadd.f32 %v2400, %v2414
    %v2429 = vadd.f32 %v2401, %v2414
    %v2430 = vadd.f32 %v2402, %v2419
    %v2431 = vadd.f32 %v2403, %v2419
    %v2432 = vadd.f32 %v2404, %v2424
    %v2433 = vadd.f32 %v2405, %v2424
    %s2434 = sld [smem:[#allocation2 + $0x2]]
    %vm2435 = vcmp.ge.f32.partialorder %v2426, 0.0
    %vm2436 = vcmp.ge.f32.partialorder %v2427, 0.0
    %vm2437 = vcmp.ge.f32.partialorder %v2428, 0.0
    %vm2438 = vcmp.ge.f32.partialorder %v2429, 0.0
    %vm2439 = vcmp.ge.f32.partialorder %v2430, 0.0
    %vm2440 = vcmp.ge.f32.partialorder %v2431, 0.0
    %vm2441 = vcmp.ge.f32.partialorder %v2432, 0.0
    %vm2442 = vcmp.ge.f32.partialorder %v2433, 0.0
    %v2443 = vstv %s2434
    %v2444 = vmul.f32 %v2426, %v2443
    %v2445 = vmul.f32 %v2427, %v2443
    %v2446 = vmul.f32 %v2428, %v2443
    %v2447 = vmul.f32 %v2429, %v2443
    %v2448 = vmul.f32 %v2430, %v2443
    %v2449 = vmul.f32 %v2431, %v2443
    %v2450 = vmul.f32 %v2432, %v2443
    %v2451 = vmul.f32 %v2433, %v2443
    %v2452 = vsel %vm2435, %v2426, %v2444
    %v2453 = vsel %vm2436, %v2427, %v2445
    %v2454 = vsel %vm2437, %v2428, %v2446
    %v2455 = vsel %vm2438, %v2429, %v2447
    %v2456 = vsel %vm2439, %v2430, %v2448
    %v2457 = vsel %vm2440, %v2431, %v2449
    %v2458 = vsel %vm2441, %v2432, %v2450
    %v2459 = vsel %vm2442, %v2433, %v2451
    %s2460 = scalar_lea.vmem %s4, 192
    %v2461 = vld [vmem:[%s2460] sm:$0xf]
    %v2462 = vld [vmem:[%s2460 + $0x4] sm:$0xf]
    %v2463 = vld [vmem:[%s2460 + $0x8] sm:$0xf]
    %v2464 = vld [vmem:[%s2460 + $0xc] sm:$0xf]
    %v2465 = vld [vmem:[%s2460 + $0x10] sm:$0xf]
    %v2466 = vld [vmem:[%s2460 + $0x14] sm:$0xf]
    %v2467 = vld [vmem:[%s2460 + $0x18] sm:$0xf]
    %v2468 = vld [vmem:[%s2460 + $0x1c] sm:$0xf]
    %v2469 = vld [vmem:[%s2460 + $0x20] sm:$0xf]
    %v2470 = vld [vmem:[%s2460 + $0x24] sm:$0xf]
    %v2471 = vld [vmem:[%s2460 + $0x28] sm:$0xf]
    %v2472 = vld [vmem:[%s2460 + $0x2c] sm:$0xf]
    %s2473 = scalar_lea.vmem %s5, 128
    %v2474 = vld [vmem:[%s2473] sm:$0xff]
    %v2475 = vld [vmem:[%s2473 + $0x8] sm:$0xff]
    %v2476 = vld [vmem:[%s2473 + $0x10] sm:$0xff]
    %v2477 = vld [vmem:[%s2473 + $0x18] sm:$0xff]
    %v2478 = vpack.c.bf16 %v2454, %v2452
    %v2479 = vpack.c.bf16 %v2455, %v2453
    %v2480 = vpack.c.bf16 %v2458, %v2456
    %v2481 = vpack.c.bf16 %v2459, %v2457
    %v2494 = vunpack.c.l.b16 %v2461
    %v2495 = vunpack.c.l.b16 %v2462
    %v2496 = vunpack.c.l.b16 %v2463
    %v2497 = vunpack.c.l.b16 %v2464
    %v2498 = vunpack.c.l.b16 %v2465
    %v2499 = vunpack.c.l.b16 %v2466
    %v2500 = vunpack.c.l.b16 %v2467
    %v2501 = vunpack.c.l.b16 %v2468
    %v2502 = vunpack.c.l.b16 %v2469
    %v2503 = vunpack.c.l.b16 %v2470
    %v2504 = vunpack.c.l.b16 %v2471
    %v2505 = vunpack.c.l.b16 %v2472
    %v2506 = vpack.c.b16 %v2495, %v2494
    %v2507 = vpack.c.b16 %v2497, %v2496
    %v2508 = vpack.c.b16 %v2499, %v2498
    %v2509 = vpack.c.b16 %v2501, %v2500
    %v2510 = vpack.c.b16 %v2503, %v2502
    %v2511 = vpack.c.b16 %v2505, %v2504
    %v2513 = vsel %vm598, %v2506, 0
    %v2516 = vsel %vm598, %v2507, 0
    %v2519 = vsel %vm598, %v2508, 0
    %v2522 = vsel %vm598, %v2509, 0
    %v2525 = vsel %vm598, %v2510, 0
    %v2528 = vsel %vm598, %v2511, 0
    %2530 = vmatprep.subr.bf16.mxu0 %v2479
    %2531 = vmatpush1.bf16.msra.mxu0 %v2478
    %2532 = vmatprep.subr.bf16.mxu0 %v2481
    %2533 = vmatpush1.bf16.msra.mxu0 %v2480
    %2534 = vmatprep.subr.bf16.mxu0 0
    %2535 = vmatpush1.bf16.msra.mxu0 0
    %2536 = vmatprep.subr.bf16.mxu0 0
    %2537 = vmatpush1.bf16.msra.mxu0 0
    %2538 = vmatprep.subr.bf16.mxu0 0
    %2539 = vmatpush1.bf16.msra.mxu0 0
    %2540 = vmatprep.subr.bf16.mxu0 0
    %2541 = vmatpush1.bf16.msra.mxu0 0
    %2542 = vmatprep.subr.bf16.mxu0 0
    %2543 = vmatpush1.bf16.msra.mxu0 0
    %2544 = vmatprep.subr.bf16.mxu0 0
    %2545 = vmatpush1.bf16.msra.mxu0 0
    %2546 = vmatprep.subr.bf16.mxu0 0
    %2547 = vmatpush1.bf16.msra.mxu0 0
    %2548 = vmatprep.subr.bf16.mxu0 0
    %2549 = vmatpush1.bf16.msra.mxu0 0
    %2550 = vmatprep.subr.bf16.mxu0 0
    %2551 = vmatpush1.bf16.msra.mxu0 0
    %2552 = vmatprep.subr.bf16.mxu0 0
    %2553 = vmatpush1.bf16.msra.mxu0 0
    %2554 = vmatprep.subr.bf16.mxu0 0
    %2555 = vmatpush1.bf16.msra.mxu0 0
    %2556 = vmatprep.subr.bf16.mxu0 0
    %2557 = vmatpush1.bf16.msra.mxu0 0
    %2558 = vmatprep.subr.bf16.mxu0 0
    %2559 = vmatpush1.bf16.msra.mxu0 0
    %2560 = vmatprep.subr.bf16.mxu0 0
    %2561 = vmatpush1.bf16.msra.mxu0 0
    %2562 = vmatprep.mubr.bf16.mxu0 0
    %2563 = vmatmul.mubr.bf16.gmra.mrb[0].mxu0 %v2513
    %v2564 = vpop.f32.mrb[0].mxu0
    %v2565 = vadd.f32 0.0, %v2564
    %v2566 = vpop.f32.mrb[0].mxu0
    %v2567 = vadd.f32 0.0, %v2566
    %v2568 = vpop.f32.mrb[0].mxu0
    %v2569 = vadd.f32 0.0, %v2568
    %v2570 = vpop.f32.mrb[0].mxu0
    %v2571 = vadd.f32 0.0, %v2570
    %2572 = vmatprep.mubr.bf16.mxu0 0
    %2573 = vmatmul.mubr.bf16.gmra.mrb[0].mxu0 %v2516
    %v2574 = vpop.f32.mrb[0].mxu0
    %v2575 = vadd.f32 0.0, %v2574
    %v2576 = vpop.f32.mrb[0].mxu0
    %v2577 = vadd.f32 0.0, %v2576
    %v2578 = vpop.f32.mrb[0].mxu0
    %v2579 = vadd.f32 0.0, %v2578
    %v2580 = vpop.f32.mrb[0].mxu0
    %v2581 = vadd.f32 0.0, %v2580
    %2582 = vmatprep.mubr.bf16.mxu0 0
    %2583 = vmatmul.mubr.bf16.gmra.mrb[0].mxu0 %v2519
    %v2584 = vpop.f32.mrb[0].mxu0
    %v2585 = vadd.f32 0.0, %v2584
    %v2586 = vpop.f32.mrb[0].mxu0
    %v2587 = vadd.f32 0.0, %v2586
    %v2588 = vpop.f32.mrb[0].mxu0
    %v2589 = vadd.f32 0.0, %v2588
    %v2590 = vpop.f32.mrb[0].mxu0
    %v2591 = vadd.f32 0.0, %v2590
    %2592 = vmatprep.mubr.bf16.mxu0 0
    %2593 = vmatmul.mubr.bf16.gmra.mrb[0].mxu0 %v2522
    %v2594 = vpop.f32.mrb[0].mxu0
    %v2595 = vadd.f32 0.0, %v2594
    %v2596 = vpop.f32.mrb[0].mxu0
    %v2597 = vadd.f32 0.0, %v2596
    %v2598 = vpop.f32.mrb[0].mxu0
    %v2599 = vadd.f32 0.0, %v2598
    %v2600 = vpop.f32.mrb[0].mxu0
    %v2601 = vadd.f32 0.0, %v2600
    %2602 = vmatprep.mubr.bf16.mxu0 0
    %2603 = vmatmul.mubr.bf16.gmra.mrb[0].mxu0 %v2525
    %v2604 = vpop.f32.mrb[0].mxu0
    %v2605 = vadd.f32 0.0, %v2604
    %v2606 = vpop.f32.mrb[0].mxu0
    %v2607 = vadd.f32 0.0, %v2606
    %v2608 = vpop.f32.mrb[0].mxu0
    %v2609 = vadd.f32 0.0, %v2608
    %v2610 = vpop.f32.mrb[0].mxu0
    %v2611 = vadd.f32 0.0, %v2610
    %2612 = vmatprep.mubr.bf16.mxu0 0
    %2613 = vmatmul.mubr.bf16.gmra.mrb[0].mxu0 %v2528
    %v2614 = vpop.f32.mrb[0].mxu0
    %v2615 = vadd.f32 0.0, %v2614
    %v2616 = vpop.f32.mrb[0].mxu0
    %v2617 = vadd.f32 0.0, %v2616
    %v2618 = vpop.f32.mrb[0].mxu0
    %v2619 = vadd.f32 0.0, %v2618
    %v2620 = vpop.f32.mrb[0].mxu0
    %v2621 = vadd.f32 0.0, %v2620
    %2622 = vdwg.mxu0
    %2623 = vrot.lane.b32.xlu0 %v2565, 1
    %v2624 = vpop.permute.xlu0 %2623
    %2625 = vrot.lane.b32.xlu0 %v2569, 1
    %v2626 = vpop.permute.xlu0 %2625
    %2627 = vrot.lane.b32.xlu0 %v2575, 1
    %v2628 = vpop.permute.xlu0 %2627
    %2629 = vrot.lane.b32.xlu0 %v2579, 1
    %v2630 = vpop.permute.xlu0 %2629
    %2631 = vrot.lane.b32.xlu0 %v2567, 1
    %v2632 = vpop.permute.xlu0 %2631
    %2633 = vrot.lane.b32.xlu0 %v2571, 1
    %v2634 = vpop.permute.xlu0 %2633
    %2635 = vrot.lane.b32.xlu0 %v2577, 1
    %v2636 = vpop.permute.xlu0 %2635
    %2637 = vrot.lane.b32.xlu0 %v2581, 1
    %v2638 = vpop.permute.xlu0 %2637
    %v2639 = vsel %vm410, %v2624, %v2632
    %v2640 = vsel %vm410, %v2626, %v2634
    %v2641 = vsel %vm410, %v2628, %v2636
    %v2642 = vsel %vm410, %v2630, %v2638
    %v2643 = vsel %vm410, %v2632, %v2624
    %v2644 = vsel %vm410, %v2634, %v2626
    %v2645 = vsel %vm410, %v2636, %v2628
    %v2646 = vsel %vm410, %v2638, %v2630
    %v2647 = vmul.f32 %v2643, %v419
    %v2648 = vmul.f32 %v2639, %v420
    %v2649 = vmul.f32 %v2644, %v421
    %v2650 = vmul.f32 %v2640, %v422
    %v2651 = vmul.f32 %v2645, %v423
    %v2652 = vmul.f32 %v2641, %v424
    %v2653 = vmul.f32 %v2646, %v425
    %v2654 = vmul.f32 %v2642, %v426
    %v2655 = vadd.f32 %v2647, %v2585
    %v2656 = vadd.f32 %v2648, %v2587
    %v2657 = vadd.f32 %v2649, %v2589
    %v2658 = vadd.f32 %v2650, %v2591
    %v2659 = vadd.f32 %v2651, %v2595
    %v2660 = vadd.f32 %v2652, %v2597
    %v2661 = vadd.f32 %v2653, %v2599
    %v2662 = vadd.f32 %v2654, %v2601
    %2663 = vrot.lane.b32.xlu0 %v2605, 127
    %v2664 = vpop.permute.xlu0 %2663
    %2665 = vrot.lane.b32.xlu0 %v2609, 127
    %v2666 = vpop.permute.xlu0 %2665
    %2667 = vrot.lane.b32.xlu0 %v2615, 127
    %v2668 = vpop.permute.xlu0 %2667
    %2669 = vrot.lane.b32.xlu0 %v2619, 127
    %v2670 = vpop.permute.xlu0 %2669
    %2671 = vrot.lane.b32.xlu0 %v2607, 127
    %v2672 = vpop.permute.xlu0 %2671
    %2673 = vrot.lane.b32.xlu0 %v2611, 127
    %v2674 = vpop.permute.xlu0 %2673
    %2675 = vrot.lane.b32.xlu0 %v2617, 127
    %v2676 = vpop.permute.xlu0 %2675
    %2677 = vrot.lane.b32.xlu0 %v2621, 127
    %v2678 = vpop.permute.xlu0 %2677
    %v2679 = vsel %vm459, %v2664, %v2672
    %v2680 = vsel %vm459, %v2666, %v2674
    %v2681 = vsel %vm459, %v2668, %v2676
    %v2682 = vsel %vm459, %v2670, %v2678
    %v2683 = vsel %vm459, %v2672, %v2664
    %v2684 = vsel %vm459, %v2674, %v2666
    %v2685 = vsel %vm459, %v2676, %v2668
    %v2686 = vsel %vm459, %v2678, %v2670
    %v2687 = vmul.f32 %v2679, %v468
    %v2688 = vmul.f32 %v2683, %v469
    %v2689 = vmul.f32 %v2680, %v470
    %v2690 = vmul.f32 %v2684, %v471
    %v2691 = vmul.f32 %v2681, %v472
    %v2692 = vmul.f32 %v2685, %v473
    %v2693 = vmul.f32 %v2682, %v474
    %v2694 = vmul.f32 %v2686, %v475
    %v2695 = vadd.f32 %v2655, %v2687
    %v2696 = vadd.f32 %v2656, %v2688
    %v2697 = vadd.f32 %v2657, %v2689
    %v2698 = vadd.f32 %v2658, %v2690
    %v2699 = vadd.f32 %v2659, %v2691
    %v2700 = vadd.f32 %v2660, %v2692
    %v2701 = vadd.f32 %v2661, %v2693
    %v2702 = vadd.f32 %v2662, %v2694
    %2704 = vset.pattern.permute.xlu0 0
    %2705 = vperm.xlu0 %2704, %v2474
    %v2706 = vpop.permute.xlu0 %2705
    %2709 = vset.pattern.permute.xlu0 0
    %2710 = vperm.xlu0 %2709, %v2475
    %v2711 = vpop.permute.xlu0 %2710
    %2714 = vset.pattern.permute.xlu0 0
    %2715 = vperm.xlu0 %2714, %v2476
    %v2716 = vpop.permute.xlu0 %2715
    %2719 = vset.pattern.permute.xlu0 0
    %2720 = vperm.xlu0 %2719, %v2477
    %v2721 = vpop.permute.xlu0 %2720
    %v2723 = vadd.f32 %v2695, %v2706
    %v2724 = vadd.f32 %v2696, %v2706
    %v2725 = vadd.f32 %v2697, %v2711
    %v2726 = vadd.f32 %v2698, %v2711
    %v2727 = vadd.f32 %v2699, %v2716
    %v2728 = vadd.f32 %v2700, %v2716
    %v2729 = vadd.f32 %v2701, %v2721
    %v2730 = vadd.f32 %v2702, %v2721
    %s2731 = sld [smem:[#allocation2 + $0x3]]
    %vm2732 = vcmp.ge.f32.partialorder %v2723, 0.0
    %vm2733 = vcmp.ge.f32.partialorder %v2724, 0.0
    %vm2734 = vcmp.ge.f32.partialorder %v2725, 0.0
    %vm2735 = vcmp.ge.f32.partialorder %v2726, 0.0
    %vm2736 = vcmp.ge.f32.partialorder %v2727, 0.0
    %vm2737 = vcmp.ge.f32.partialorder %v2728, 0.0
    %vm2738 = vcmp.ge.f32.partialorder %v2729, 0.0
    %vm2739 = vcmp.ge.f32.partialorder %v2730, 0.0
    %v2740 = vstv %s2731
    %v2741 = vmul.f32 %v2723, %v2740
    %v2742 = vmul.f32 %v2724, %v2740
    %v2743 = vmul.f32 %v2725, %v2740
    %v2744 = vmul.f32 %v2726, %v2740
    %v2745 = vmul.f32 %v2727, %v2740
    %v2746 = vmul.f32 %v2728, %v2740
    %v2747 = vmul.f32 %v2729, %v2740
    %v2748 = vmul.f32 %v2730, %v2740
    %v2749 = vsel %vm2732, %v2723, %v2741
    %v2750 = vsel %vm2733, %v2724, %v2742
    %v2751 = vsel %vm2734, %v2725, %v2743
    %v2752 = vsel %vm2735, %v2726, %v2744
    %v2753 = vsel %vm2736, %v2727, %v2745
    %v2754 = vsel %vm2737, %v2728, %v2746
    %v2755 = vsel %vm2738, %v2729, %v2747
    %v2756 = vsel %vm2739, %v2730, %v2748
    %s2757 = scalar_lea.vmem %s4, 240
    %v2758 = vld [vmem:[%s2757] sm:$0xf]
    %v2759 = vld [vmem:[%s2757 + $0x4] sm:$0xf]
    %v2760 = vld [vmem:[%s2757 + $0x8] sm:$0xf]
    %v2761 = vld [vmem:[%s2757 + $0xc] sm:$0xf]
    %s2762 = scalar_lea.vmem %s5, 160
    %v2763 = vld [vmem:[%s2762] sm:$0xff]
    %v2764 = vpack.c.bf16 %v2751, %v2749
    %v2765 = vpack.c.bf16 %v2752, %v2750
    %v2766 = vpack.c.bf16 %v2755, %v2753
    %v2767 = vpack.c.bf16 %v2756, %v2754
    %v2772 = vunpack.c.l.b16 %v2758
    %v2773 = vunpack.c.l.b16 %v2759
    %v2774 = vunpack.c.l.b16 %v2760
    %v2775 = vunpack.c.l.b16 %v2761
    %v2776 = vpack.c.b16 %v2773, %v2772
    %v2777 = vpack.c.b16 %v2775, %v2774
    %v2779 = vsel %vm598, %v2776, 0
    %v2782 = vsel %vm598, %v2777, 0
    %2784 = vmatprep.subr.bf16.mxu0 %v2765
    %2785 = vmatpush1.bf16.msra.mxu0 %v2764
    %2786 = vmatprep.subr.bf16.mxu0 %v2767
    %2787 = vmatpush1.bf16.msra.mxu0 %v2766
    %2788 = vmatprep.subr.bf16.mxu0 0
    %2789 = vmatpush1.bf16.msra.mxu0 0
    %2790 = vmatprep.subr.bf16.mxu0 0
    %2791 = vmatpush1.bf16.msra.mxu0 0
    %2792 = vmatprep.subr.bf16.mxu0 0
    %2793 = vmatpush1.bf16.msra.mxu0 0
    %2794 = vmatprep.subr.bf16.mxu0 0
    %2795 = vmatpush1.bf16.msra.mxu0 0
    %2796 = vmatprep.subr.bf16.mxu0 0
    %2797 = vmatpush1.bf16.msra.mxu0 0
    %2798 = vmatprep.subr.bf16.mxu0 0
    %2799 = vmatpush1.bf16.msra.mxu0 0
    %2800 = vmatprep.subr.bf16.mxu0 0
    %2801 = vmatpush1.bf16.msra.mxu0 0
    %2802 = vmatprep.subr.bf16.mxu0 0
    %2803 = vmatpush1.bf16.msra.mxu0 0
    %2804 = vmatprep.subr.bf16.mxu0 0
    %2805 = vmatpush1.bf16.msra.mxu0 0
    %2806 = vmatprep.subr.bf16.mxu0 0
    %2807 = vmatpush1.bf16.msra.mxu0 0
    %2808 = vmatprep.subr.bf16.mxu0 0
    %2809 = vmatpush1.bf16.msra.mxu0 0
    %2810 = vmatprep.subr.bf16.mxu0 0
    %2811 = vmatpush1.bf16.msra.mxu0 0
    %2812 = vmatprep.subr.bf16.mxu0 0
    %2813 = vmatpush1.bf16.msra.mxu0 0
    %2814 = vmatprep.subr.bf16.mxu0 0
    %2815 = vmatpush1.bf16.msra.mxu0 0
    %2816 = vmatprep.mubr.bf16.mxu0 0
    %2817 = vmatmul.mubr.bf16.gmra.mrb[0].mxu0 %v2779
    %v2818 = vpop.f32.mrb[0].mxu0
    %v2819 = vadd.f32 0.0, %v2818
    %v2820 = vpop.f32.mrb[0].mxu0
    %v2821 = vadd.f32 0.0, %v2820
    %v2822 = vpop.f32.mrb[0].mxu0
    %v2823 = vadd.f32 0.0, %v2822
    %v2824 = vpop.f32.mrb[0].mxu0
    %v2825 = vadd.f32 0.0, %v2824
    %2826 = vmatprep.mubr.bf16.mxu0 0
    %2827 = vmatmul.mubr.bf16.gmra.mrb[0].mxu0 %v2782
    %v2828 = vpop.f32.mrb[0].mxu0
    %v2829 = vadd.f32 0.0, %v2828
    %v2830 = vpop.f32.mrb[0].mxu0
    %v2831 = vadd.f32 0.0, %v2830
    %v2832 = vpop.f32.mrb[0].mxu0
    %v2833 = vpop.f32.mrb[0].mxu0
    %2834 = vdwg.mxu0
    %2835 = vrot.lane.b32.xlu0 %v2819, 1
    %v2836 = vpop.permute.xlu0 %2835
    %2837 = vrot.lane.b32.xlu0 %v2821, 1
    %v2838 = vpop.permute.xlu0 %2837
    %v2839 = vsel %vm410, %v2836, %v2838
    %v2840 = vsel %vm410, %v2838, %v2836
    %v2841 = vmul.f32 %v2840, %v928
    %v2842 = vmul.f32 %v2839, %v929
    %v2843 = vadd.f32 %v2841, %v2823
    %v2844 = vadd.f32 %v2842, %v2825
    %2845 = vrot.lane.b32.xlu0 %v2829, 127
    %v2846 = vpop.permute.xlu0 %2845
    %2847 = vrot.lane.b32.xlu0 %v2831, 127
    %v2848 = vpop.permute.xlu0 %2847
    %v2849 = vsel %vm459, %v2846, %v2848
    %v2850 = vsel %vm459, %v2848, %v2846
    %v2851 = vmul.f32 %v2849, %v940
    %v2852 = vmul.f32 %v2850, %v941
    %v2853 = vadd.f32 %v2843, %v2851
    %v2854 = vadd.f32 %v2844, %v2852
    %2856 = vset.pattern.permute.xlu0 0
    %2857 = vperm.xlu0 %2856, %v2763
    %v2858 = vpop.permute.xlu0 %2857
    %v2860 = vadd.f32 %v2853, %v2858
    %v2861 = vadd.f32 %v2854, %v2858
    %v2862 = vadd.f32 %v953, %v2860
    %v2863 = vadd.f32 %v954, %v2861
    %2864 = vmatprep.subr.mxu0 %v956
    %2865 = vmatpush1.msra.mxu0 %v955
    %2866 = vmatprep.subr.mxu0 %v958
    %2867 = vmatpush1.msra.mxu0 %v957
    %2868 = vmatprep.subr.mxu0 %v960
    %2869 = vmatpush1.msra.mxu0 %v959
    %2870 = vmatprep.subr.mxu0 %v962
    %2871 = vmatpush1.msra.mxu0 %v961
    %2872 = vmatprep.subr.mxu0 %v964
    %2873 = vmatpush1.msra.mxu0 %v963
    %2874 = vmatprep.subr.mxu0 %v966
    %2875 = vmatpush1.msra.mxu0 %v965
    %2876 = vmatprep.subr.mxu0 %v968
    %2877 = vmatpush1.msra.mxu0 %v967
    %2878 = vmatprep.subr.mxu0 %v970
    %2879 = vmatpush1.msra.mxu0 %v969
    %2880 = vmatprep.subr.mxu0 %v972
    %2881 = vmatpush1.msra.mxu0 %v971
    %2882 = vmatprep.subr.mxu0 %v974
    %2883 = vmatpush1.msra.mxu0 %v973
    %2884 = vmatprep.subr.mxu0 %v976
    %2885 = vmatpush1.msra.mxu0 %v975
    %2886 = vmatprep.subr.mxu0 %v978
    %2887 = vmatpush1.msra.mxu0 %v977
    %2888 = vmatprep.subr.mxu0 %v980
    %2889 = vmatpush1.msra.mxu0 %v979
    %2890 = vmatprep.subr.mxu0 %v982
    %2891 = vmatpush1.msra.mxu0 %v981
    %2892 = vmatprep.subr.mxu0 %v984
    %2893 = vmatpush1.msra.mxu0 %v983
    %2894 = vmatprep.subr.mxu0 %v986
    %2895 = vmatpush1.msra.mxu0 %v985
    %2896 = vmatprep.subr.mxu0 %v988
    %2897 = vmatpush1.msra.mxu0 %v987
    %2898 = vmatprep.subr.mxu0 %v990
    %2899 = vmatpush1.msra.mxu0 %v989
    %2900 = vmatprep.subr.mxu0 %v992
    %2901 = vmatpush1.msra.mxu0 %v991
    %2902 = vmatprep.subr.mxu0 %v994
    %2903 = vmatpush1.msra.mxu0 %v993
    %2904 = vmatprep.subr.mxu0 %v996
    %2905 = vmatpush1.msra.mxu0 %v995
    %2906 = vmatprep.subr.mxu0 %v998
    %2907 = vmatpush1.msra.mxu0 %v997
    %2908 = vmatprep.subr.mxu0 %v1000
    %2909 = vmatpush1.msra.mxu0 %v999
    %2910 = vmatprep.subr.mxu0 %v1002
    %2911 = vmatpush1.msra.mxu0 %v1001
    %2912 = vmatprep.subr.mxu0 %v1004
    %2913 = vmatpush1.msra.mxu0 %v1003
    %2914 = vmatprep.subr.mxu0 %v1006
    %2915 = vmatpush1.msra.mxu0 %v1005
    %2916 = vmatprep.subr.mxu0 %v1008
    %2917 = vmatpush1.msra.mxu0 %v1007
    %2918 = vmatprep.subr.mxu0 %v1010
    %2919 = vmatpush1.msra.mxu0 %v1009
    %2920 = vmatprep.subr.mxu0 %v1012
    %2921 = vmatpush1.msra.mxu0 %v1011
    %2922 = vmatprep.subr.mxu0 %v1014
    %2923 = vmatpush1.msra.mxu0 %v1013
    %2924 = vmatprep.subr.mxu0 %v1016
    %2925 = vmatpush1.msra.mxu0 %v1015
    %2926 = vmatprep.subr.mxu0 %v1018
    %2927 = vmatpush1.msra.mxu0 %v1017
    %2928 = vmatprep.mubr.f32.mxu0 %v2863
    %2929 = vmatmul.mubr.f32.gmra.mrb[0].mxu0 %v2862
    %v2930 = vpop.f32.mrb[0].mxu0
    %v2931 = vadd.f32 0.0, %v2930
    %v2932 = vpop.f32.mrb[0].mxu0
    %v2933 = vadd.f32 0.0, %v2932
    %2934 = vdwg.mxu0
    %v2935 = vsel %vm65, %v2931, 0.0
    %v2936 = vsel %vm65, %v2933, 0.0
    %s2937 = scalar_lea.vmem %s6, 192
    %v2938 = vld [vmem:[%s2937] sm:$0xf]
    %v2939 = vld [vmem:[%s2937 + $0x4] sm:$0xf]
    %v2940 = vld [vmem:[%s2937 + $0x8] sm:$0xf]
    %v2941 = vld [vmem:[%s2937 + $0xc] sm:$0xf]
    %v2942 = vld [vmem:[%s2937 + $0x10] sm:$0xf]
    %v2943 = vld [vmem:[%s2937 + $0x14] sm:$0xf]
    %v2944 = vld [vmem:[%s2937 + $0x18] sm:$0xf]
    %v2945 = vld [vmem:[%s2937 + $0x1c] sm:$0xf]
    %v2946 = vld [vmem:[%s2937 + $0x20] sm:$0xf]
    %v2947 = vld [vmem:[%s2937 + $0x24] sm:$0xf]
    %v2948 = vld [vmem:[%s2937 + $0x28] sm:$0xf]
    %v2949 = vld [vmem:[%s2937 + $0x2c] sm:$0xf]
    %s2950 = scalar_lea.vmem %s7, 128
    %v2951 = vld [vmem:[%s2950] sm:$0xff]
    %v2952 = vld [vmem:[%s2950 + $0x8] sm:$0xff]
    %v2953 = vld [vmem:[%s2950 + $0x10] sm:$0xff]
    %v2954 = vld [vmem:[%s2950 + $0x18] sm:$0xff]
    %v2955 = vpack.c.bf16 %v2935, %v2084
    %v2956 = vpack.c.bf16 %v2936, %v2085
    %v2969 = vunpack.c.l.b16 %v2938
    %v2970 = vunpack.c.l.b16 %v2939
    %v2971 = vunpack.c.l.b16 %v2940
    %v2972 = vunpack.c.l.b16 %v2941
    %v2973 = vunpack.c.l.b16 %v2942
    %v2974 = vunpack.c.l.b16 %v2943
    %v2975 = vunpack.c.l.b16 %v2944
    %v2976 = vunpack.c.l.b16 %v2945
    %v2977 = vunpack.c.l.b16 %v2946
    %v2978 = vunpack.c.l.b16 %v2947
    %v2979 = vunpack.c.l.b16 %v2948
    %v2980 = vunpack.c.l.b16 %v2949
    %v2981 = vpack.c.b16 %v2970, %v2969
    %v2982 = vpack.c.b16 %v2972, %v2971
    %v2983 = vpack.c.b16 %v2974, %v2973
    %v2984 = vpack.c.b16 %v2976, %v2975
    %v2985 = vpack.c.b16 %v2978, %v2977
    %v2986 = vpack.c.b16 %v2980, %v2979
    %v2988 = vsel %vm280, %v2981, 0
    %v2991 = vsel %vm280, %v2982, 0
    %v2994 = vsel %vm280, %v2983, 0
    %v2997 = vsel %vm280, %v2984, 0
    %v3000 = vsel %vm280, %v2985, 0
    %v3003 = vsel %vm280, %v2986, 0
    %3005 = vmatprep.subr.bf16.mxu0 %v2956
    %3006 = vmatpush1.bf16.msra.mxu0 %v2955
    %3007 = vmatprep.subr.bf16.mxu0 0
    %3008 = vmatpush1.bf16.msra.mxu0 0
    %3009 = vmatprep.subr.bf16.mxu0 0
    %3010 = vmatpush1.bf16.msra.mxu0 0
    %3011 = vmatprep.subr.bf16.mxu0 0
    %3012 = vmatpush1.bf16.msra.mxu0 0
    %3013 = vmatprep.subr.bf16.mxu0 0
    %3014 = vmatpush1.bf16.msra.mxu0 0
    %3015 = vmatprep.subr.bf16.mxu0 0
    %3016 = vmatpush1.bf16.msra.mxu0 0
    %3017 = vmatprep.subr.bf16.mxu0 0
    %3018 = vmatpush1.bf16.msra.mxu0 0
    %3019 = vmatprep.subr.bf16.mxu0 0
    %3020 = vmatpush1.bf16.msra.mxu0 0
    %3021 = vmatprep.subr.bf16.mxu0 0
    %3022 = vmatpush1.bf16.msra.mxu0 0
    %3023 = vmatprep.subr.bf16.mxu0 0
    %3024 = vmatpush1.bf16.msra.mxu0 0
    %3025 = vmatprep.subr.bf16.mxu0 0
    %3026 = vmatpush1.bf16.msra.mxu0 0
    %3027 = vmatprep.subr.bf16.mxu0 0
    %3028 = vmatpush1.bf16.msra.mxu0 0
    %3029 = vmatprep.subr.bf16.mxu0 0
    %3030 = vmatpush1.bf16.msra.mxu0 0
    %3031 = vmatprep.subr.bf16.mxu0 0
    %3032 = vmatpush1.bf16.msra.mxu0 0
    %3033 = vmatprep.subr.bf16.mxu0 0
    %3034 = vmatpush1.bf16.msra.mxu0 0
    %3035 = vmatprep.subr.bf16.mxu0 0
    %3036 = vmatpush1.bf16.msra.mxu0 0
    %3037 = vmatprep.mubr.bf16.mxu0 0
    %3038 = vmatmul.mubr.bf16.gmra.mrb[0].mxu0 %v2988
    %v3039 = vpop.f32.mrb[0].mxu0
    %v3040 = vadd.f32 0.0, %v3039
    %v3041 = vpop.f32.mrb[0].mxu0
    %v3042 = vadd.f32 0.0, %v3041
    %v3043 = vpop.f32.mrb[0].mxu0
    %v3044 = vadd.f32 0.0, %v3043
    %v3045 = vpop.f32.mrb[0].mxu0
    %v3046 = vadd.f32 0.0, %v3045
    %3047 = vmatprep.mubr.bf16.mxu0 0
    %3048 = vmatmul.mubr.bf16.gmra.mrb[0].mxu0 %v2991
    %v3049 = vpop.f32.mrb[0].mxu0
    %v3050 = vadd.f32 0.0, %v3049
    %v3051 = vpop.f32.mrb[0].mxu0
    %v3052 = vadd.f32 0.0, %v3051
    %v3053 = vpop.f32.mrb[0].mxu0
    %v3054 = vadd.f32 0.0, %v3053
    %v3055 = vpop.f32.mrb[0].mxu0
    %v3056 = vadd.f32 0.0, %v3055
    %3057 = vmatprep.mubr.bf16.mxu0 0
    %3058 = vmatmul.mubr.bf16.gmra.mrb[0].mxu0 %v2994
    %v3059 = vpop.f32.mrb[0].mxu0
    %v3060 = vadd.f32 0.0, %v3059
    %v3061 = vpop.f32.mrb[0].mxu0
    %v3062 = vadd.f32 0.0, %v3061
    %v3063 = vpop.f32.mrb[0].mxu0
    %v3064 = vadd.f32 0.0, %v3063
    %v3065 = vpop.f32.mrb[0].mxu0
    %v3066 = vadd.f32 0.0, %v3065
    %3067 = vmatprep.mubr.bf16.mxu0 0
    %3068 = vmatmul.mubr.bf16.gmra.mrb[0].mxu0 %v2997
    %v3069 = vpop.f32.mrb[0].mxu0
    %v3070 = vadd.f32 0.0, %v3069
    %v3071 = vpop.f32.mrb[0].mxu0
    %v3072 = vadd.f32 0.0, %v3071
    %v3073 = vpop.f32.mrb[0].mxu0
    %v3074 = vadd.f32 0.0, %v3073
    %v3075 = vpop.f32.mrb[0].mxu0
    %v3076 = vadd.f32 0.0, %v3075
    %3077 = vmatprep.mubr.bf16.mxu0 0
    %3078 = vmatmul.mubr.bf16.gmra.mrb[0].mxu0 %v3000
    %v3079 = vpop.f32.mrb[0].mxu0
    %v3080 = vadd.f32 0.0, %v3079
    %v3081 = vpop.f32.mrb[0].mxu0
    %v3082 = vadd.f32 0.0, %v3081
    %v3083 = vpop.f32.mrb[0].mxu0
    %v3084 = vadd.f32 0.0, %v3083
    %v3085 = vpop.f32.mrb[0].mxu0
    %v3086 = vadd.f32 0.0, %v3085
    %3087 = vmatprep.mubr.bf16.mxu0 0
    %3088 = vmatmul.mubr.bf16.gmra.mrb[0].mxu0 %v3003
    %v3089 = vpop.f32.mrb[0].mxu0
    %v3090 = vadd.f32 0.0, %v3089
    %v3091 = vpop.f32.mrb[0].mxu0
    %v3092 = vadd.f32 0.0, %v3091
    %v3093 = vpop.f32.mrb[0].mxu0
    %v3094 = vadd.f32 0.0, %v3093
    %v3095 = vpop.f32.mrb[0].mxu0
    %v3096 = vadd.f32 0.0, %v3095
    %3097 = vdwg.mxu0
    %3098 = vrot.lane.b32.xlu0 %v3040, 1
    %v3099 = vpop.permute.xlu0 %3098
    %3100 = vrot.lane.b32.xlu0 %v3044, 1
    %v3101 = vpop.permute.xlu0 %3100
    %3102 = vrot.lane.b32.xlu0 %v3050, 1
    %v3103 = vpop.permute.xlu0 %3102
    %3104 = vrot.lane.b32.xlu0 %v3054, 1
    %v3105 = vpop.permute.xlu0 %3104
    %3106 = vrot.lane.b32.xlu0 %v3042, 1
    %v3107 = vpop.permute.xlu0 %3106
    %3108 = vrot.lane.b32.xlu0 %v3046, 1
    %v3109 = vpop.permute.xlu0 %3108
    %3110 = vrot.lane.b32.xlu0 %v3052, 1
    %v3111 = vpop.permute.xlu0 %3110
    %3112 = vrot.lane.b32.xlu0 %v3056, 1
    %v3113 = vpop.permute.xlu0 %3112
    %v3114 = vsel %vm410, %v3099, %v3107
    %v3115 = vsel %vm410, %v3101, %v3109
    %v3116 = vsel %vm410, %v3103, %v3111
    %v3117 = vsel %vm410, %v3105, %v3113
    %v3118 = vsel %vm410, %v3107, %v3099
    %v3119 = vsel %vm410, %v3109, %v3101
    %v3120 = vsel %vm410, %v3111, %v3103
    %v3121 = vsel %vm410, %v3113, %v3105
    %v3122 = vmul.f32 %v3118, %v419
    %v3123 = vmul.f32 %v3114, %v420
    %v3124 = vmul.f32 %v3119, %v421
    %v3125 = vmul.f32 %v3115, %v422
    %v3126 = vmul.f32 %v3120, %v423
    %v3127 = vmul.f32 %v3116, %v424
    %v3128 = vmul.f32 %v3121, %v425
    %v3129 = vmul.f32 %v3117, %v426
    %v3130 = vadd.f32 %v3122, %v3060
    %v3131 = vadd.f32 %v3123, %v3062
    %v3132 = vadd.f32 %v3124, %v3064
    %v3133 = vadd.f32 %v3125, %v3066
    %v3134 = vadd.f32 %v3126, %v3070
    %v3135 = vadd.f32 %v3127, %v3072
    %v3136 = vadd.f32 %v3128, %v3074
    %v3137 = vadd.f32 %v3129, %v3076
    %3138 = vrot.lane.b32.xlu0 %v3080, 127
    %v3139 = vpop.permute.xlu0 %3138
    %3140 = vrot.lane.b32.xlu0 %v3084, 127
    %v3141 = vpop.permute.xlu0 %3140
    %3142 = vrot.lane.b32.xlu0 %v3090, 127
    %v3143 = vpop.permute.xlu0 %3142
    %3144 = vrot.lane.b32.xlu0 %v3094, 127
    %v3145 = vpop.permute.xlu0 %3144
    %3146 = vrot.lane.b32.xlu0 %v3082, 127
    %v3147 = vpop.permute.xlu0 %3146
    %3148 = vrot.lane.b32.xlu0 %v3086, 127
    %v3149 = vpop.permute.xlu0 %3148
    %3150 = vrot.lane.b32.xlu0 %v3092, 127
    %v3151 = vpop.permute.xlu0 %3150
    %3152 = vrot.lane.b32.xlu0 %v3096, 127
    %v3153 = vpop.permute.xlu0 %3152
    %v3154 = vsel %vm459, %v3139, %v3147
    %v3155 = vsel %vm459, %v3141, %v3149
    %v3156 = vsel %vm459, %v3143, %v3151
    %v3157 = vsel %vm459, %v3145, %v3153
    %v3158 = vsel %vm459, %v3147, %v3139
    %v3159 = vsel %vm459, %v3149, %v3141
    %v3160 = vsel %vm459, %v3151, %v3143
    %v3161 = vsel %vm459, %v3153, %v3145
    %v3162 = vmul.f32 %v3154, %v468
    %v3163 = vmul.f32 %v3158, %v469
    %v3164 = vmul.f32 %v3155, %v470
    %v3165 = vmul.f32 %v3159, %v471
    %v3166 = vmul.f32 %v3156, %v472
    %v3167 = vmul.f32 %v3160, %v473
    %v3168 = vmul.f32 %v3157, %v474
    %v3169 = vmul.f32 %v3161, %v475
    %v3170 = vadd.f32 %v3130, %v3162
    %v3171 = vadd.f32 %v3131, %v3163
    %v3172 = vadd.f32 %v3132, %v3164
    %v3173 = vadd.f32 %v3133, %v3165
    %v3174 = vadd.f32 %v3134, %v3166
    %v3175 = vadd.f32 %v3135, %v3167
    %v3176 = vadd.f32 %v3136, %v3168
    %v3177 = vadd.f32 %v3137, %v3169
    %3179 = vset.pattern.permute.xlu0 0
    %3180 = vperm.xlu0 %3179, %v2951
    %v3181 = vpop.permute.xlu0 %3180
    %3184 = vset.pattern.permute.xlu0 0
    %3185 = vperm.xlu0 %3184, %v2952
    %v3186 = vpop.permute.xlu0 %3185
    %3189 = vset.pattern.permute.xlu0 0
    %3190 = vperm.xlu0 %3189, %v2953
    %v3191 = vpop.permute.xlu0 %3190
    %3194 = vset.pattern.permute.xlu0 0
    %3195 = vperm.xlu0 %3194, %v2954
    %v3196 = vpop.permute.xlu0 %3195
    %v3198 = vadd.f32 %v3170, %v3181
    %v3199 = vadd.f32 %v3171, %v3181
    %v3200 = vadd.f32 %v3172, %v3186
    %v3201 = vadd.f32 %v3173, %v3186
    %v3202 = vadd.f32 %v3174, %v3191
    %v3203 = vadd.f32 %v3175, %v3191
    %v3204 = vadd.f32 %v3176, %v3196
    %v3205 = vadd.f32 %v3177, %v3196
    %s3206 = sld [smem:[#allocation2 + $0x9]]
    %vm3207 = vcmp.ge.f32.partialorder %v3198, 0.0
    %vm3208 = vcmp.ge.f32.partialorder %v3199, 0.0
    %vm3209 = vcmp.ge.f32.partialorder %v3200, 0.0
    %vm3210 = vcmp.ge.f32.partialorder %v3201, 0.0
    %vm3211 = vcmp.ge.f32.partialorder %v3202, 0.0
    %vm3212 = vcmp.ge.f32.partialorder %v3203, 0.0
    %vm3213 = vcmp.ge.f32.partialorder %v3204, 0.0
    %vm3214 = vcmp.ge.f32.partialorder %v3205, 0.0
    %v3215 = vstv %s3206
    %v3216 = vmul.f32 %v3198, %v3215
    %v3217 = vmul.f32 %v3199, %v3215
    %v3218 = vmul.f32 %v3200, %v3215
    %v3219 = vmul.f32 %v3201, %v3215
    %v3220 = vmul.f32 %v3202, %v3215
    %v3221 = vmul.f32 %v3203, %v3215
    %v3222 = vmul.f32 %v3204, %v3215
    %v3223 = vmul.f32 %v3205, %v3215
    %v3224 = vsel %vm3207, %v3198, %v3216
    %v3225 = vsel %vm3208, %v3199, %v3217
    %v3226 = vsel %vm3209, %v3200, %v3218
    %v3227 = vsel %vm3210, %v3201, %v3219
    %v3228 = vsel %vm3211, %v3202, %v3220
    %v3229 = vsel %vm3212, %v3203, %v3221
    %v3230 = vsel %vm3213, %v3204, %v3222
    %v3231 = vsel %vm3214, %v3205, %v3223
    %s3232 = scalar_lea.vmem %s6, 240
    %v3233 = vld [vmem:[%s3232] sm:$0xf]
    %v3234 = vld [vmem:[%s3232 + $0x4] sm:$0xf]
    %v3235 = vld [vmem:[%s3232 + $0x8] sm:$0xf]
    %v3236 = vld [vmem:[%s3232 + $0xc] sm:$0xf]
    %v3237 = vld [vmem:[%s3232 + $0x10] sm:$0xf]
    %v3238 = vld [vmem:[%s3232 + $0x14] sm:$0xf]
    %v3239 = vld [vmem:[%s3232 + $0x18] sm:$0xf]
    %v3240 = vld [vmem:[%s3232 + $0x1c] sm:$0xf]
    %v3241 = vld [vmem:[%s3232 + $0x20] sm:$0xf]
    %v3242 = vld [vmem:[%s3232 + $0x24] sm:$0xf]
    %v3243 = vld [vmem:[%s3232 + $0x28] sm:$0xf]
    %v3244 = vld [vmem:[%s3232 + $0x2c] sm:$0xf]
    %s3245 = scalar_lea.vmem %s7, 160
    %v3246 = vld [vmem:[%s3245] sm:$0xff]
    %v3247 = vld [vmem:[%s3245 + $0x8] sm:$0xff]
    %v3248 = vld [vmem:[%s3245 + $0x10] sm:$0xff]
    %v3249 = vld [vmem:[%s3245 + $0x18] sm:$0xff]
    %v3250 = vpack.c.bf16 %v3226, %v3224
    %v3251 = vpack.c.bf16 %v3227, %v3225
    %v3252 = vpack.c.bf16 %v3230, %v3228
    %v3253 = vpack.c.bf16 %v3231, %v3229
    %v3266 = vunpack.c.l.b16 %v3233
    %v3267 = vunpack.c.l.b16 %v3234
    %v3268 = vunpack.c.l.b16 %v3235
    %v3269 = vunpack.c.l.b16 %v3236
    %v3270 = vunpack.c.l.b16 %v3237
    %v3271 = vunpack.c.l.b16 %v3238
    %v3272 = vunpack.c.l.b16 %v3239
    %v3273 = vunpack.c.l.b16 %v3240
    %v3274 = vunpack.c.l.b16 %v3241
    %v3275 = vunpack.c.l.b16 %v3242
    %v3276 = vunpack.c.l.b16 %v3243
    %v3277 = vunpack.c.l.b16 %v3244
    %v3278 = vpack.c.b16 %v3267, %v3266
    %v3279 = vpack.c.b16 %v3269, %v3268
    %v3280 = vpack.c.b16 %v3271, %v3270
    %v3281 = vpack.c.b16 %v3273, %v3272
    %v3282 = vpack.c.b16 %v3275, %v3274
    %v3283 = vpack.c.b16 %v3277, %v3276
    %v3285 = vsel %vm598, %v3278, 0
    %v3288 = vsel %vm598, %v3279, 0
    %v3291 = vsel %vm598, %v3280, 0
    %v3294 = vsel %vm598, %v3281, 0
    %v3297 = vsel %vm598, %v3282, 0
    %v3300 = vsel %vm598, %v3283, 0
    %3302 = vmatprep.subr.bf16.mxu0 %v3251
    %3303 = vmatpush1.bf16.msra.mxu0 %v3250
    %3304 = vmatprep.subr.bf16.mxu0 %v3253
    %3305 = vmatpush1.bf16.msra.mxu0 %v3252
    %3306 = vmatprep.subr.bf16.mxu0 0
    %3307 = vmatpush1.bf16.msra.mxu0 0
    %3308 = vmatprep.subr.bf16.mxu0 0
    %3309 = vmatpush1.bf16.msra.mxu0 0
    %3310 = vmatprep.subr.bf16.mxu0 0
    %3311 = vmatpush1.bf16.msra.mxu0 0
    %3312 = vmatprep.subr.bf16.mxu0 0
    %3313 = vmatpush1.bf16.msra.mxu0 0
    %3314 = vmatprep.subr.bf16.mxu0 0
    %3315 = vmatpush1.bf16.msra.mxu0 0
    %3316 = vmatprep.subr.bf16.mxu0 0
    %3317 = vmatpush1.bf16.msra.mxu0 0
    %3318 = vmatprep.subr.bf16.mxu0 0
    %3319 = vmatpush1.bf16.msra.mxu0 0
    %3320 = vmatprep.subr.bf16.mxu0 0
    %3321 = vmatpush1.bf16.msra.mxu0 0
    %3322 = vmatprep.subr.bf16.mxu0 0
    %3323 = vmatpush1.bf16.msra.mxu0 0
    %3324 = vmatprep.subr.bf16.mxu0 0
    %3325 = vmatpush1.bf16.msra.mxu0 0
    %3326 = vmatprep.subr.bf16.mxu0 0
    %3327 = vmatpush1.bf16.msra.mxu0 0
    %3328 = vmatprep.subr.bf16.mxu0 0
    %3329 = vmatpush1.bf16.msra.mxu0 0
    %3330 = vmatprep.subr.bf16.mxu0 0
    %3331 = vmatpush1.bf16.msra.mxu0 0
    %3332 = vmatprep.subr.bf16.mxu0 0
    %3333 = vmatpush1.bf16.msra.mxu0 0
    %3334 = vmatprep.mubr.bf16.mxu0 0
    %3335 = vmatmul.mubr.bf16.gmra.mrb[0].mxu0 %v3285
    %v3336 = vpop.f32.mrb[0].mxu0
    %v3337 = vadd.f32 0.0, %v3336
    %v3338 = vpop.f32.mrb[0].mxu0
    %v3339 = vadd.f32 0.0, %v3338
    %v3340 = vpop.f32.mrb[0].mxu0
    %v3341 = vadd.f32 0.0, %v3340
    %v3342 = vpop.f32.mrb[0].mxu0
    %v3343 = vadd.f32 0.0, %v3342
    %3344 = vmatprep.mubr.bf16.mxu0 0
    %3345 = vmatmul.mubr.bf16.gmra.mrb[0].mxu0 %v3288
    %v3346 = vpop.f32.mrb[0].mxu0
    %v3347 = vadd.f32 0.0, %v3346
    %v3348 = vpop.f32.mrb[0].mxu0
    %v3349 = vadd.f32 0.0, %v3348
    %v3350 = vpop.f32.mrb[0].mxu0
    %v3351 = vadd.f32 0.0, %v3350
    %v3352 = vpop.f32.mrb[0].mxu0
    %v3353 = vadd.f32 0.0, %v3352
    %3354 = vmatprep.mubr.bf16.mxu0 0
    %3355 = vmatmul.mubr.bf16.gmra.mrb[0].mxu0 %v3291
    %v3356 = vpop.f32.mrb[0].mxu0
    %v3357 = vadd.f32 0.0, %v3356
    %v3358 = vpop.f32.mrb[0].mxu0
    %v3359 = vadd.f32 0.0, %v3358
    %v3360 = vpop.f32.mrb[0].mxu0
    %v3361 = vadd.f32 0.0, %v3360
    %v3362 = vpop.f32.mrb[0].mxu0
    %v3363 = vadd.f32 0.0, %v3362
    %3364 = vmatprep.mubr.bf16.mxu0 0
    %3365 = vmatmul.mubr.bf16.gmra.mrb[0].mxu0 %v3294
    %v3366 = vpop.f32.mrb[0].mxu0
    %v3367 = vadd.f32 0.0, %v3366
    %v3368 = vpop.f32.mrb[0].mxu0
    %v3369 = vadd.f32 0.0, %v3368
    %v3370 = vpop.f32.mrb[0].mxu0
    %v3371 = vadd.f32 0.0, %v3370
    %v3372 = vpop.f32.mrb[0].mxu0
    %v3373 = vadd.f32 0.0, %v3372
    %3374 = vmatprep.mubr.bf16.mxu0 0
    %3375 = vmatmul.mubr.bf16.gmra.mrb[0].mxu0 %v3297
    %v3376 = vpop.f32.mrb[0].mxu0
    %v3377 = vadd.f32 0.0, %v3376
    %v3378 = vpop.f32.mrb[0].mxu0
    %v3379 = vadd.f32 0.0, %v3378
    %v3380 = vpop.f32.mrb[0].mxu0
    %v3381 = vadd.f32 0.0, %v3380
    %v3382 = vpop.f32.mrb[0].mxu0
    %v3383 = vadd.f32 0.0, %v3382
    %3384 = vmatprep.mubr.bf16.mxu0 0
    %3385 = vmatmul.mubr.bf16.gmra.mrb[0].mxu0 %v3300
    %v3386 = vpop.f32.mrb[0].mxu0
    %v3387 = vadd.f32 0.0, %v3386
    %v3388 = vpop.f32.mrb[0].mxu0
    %v3389 = vadd.f32 0.0, %v3388
    %v3390 = vpop.f32.mrb[0].mxu0
    %v3391 = vadd.f32 0.0, %v3390
    %v3392 = vpop.f32.mrb[0].mxu0
    %v3393 = vadd.f32 0.0, %v3392
    %3394 = vdwg.mxu0
    %3395 = vrot.lane.b32.xlu0 %v3337, 1
    %v3396 = vpop.permute.xlu0 %3395
    %3397 = vrot.lane.b32.xlu0 %v3341, 1
    %v3398 = vpop.permute.xlu0 %3397
    %3399 = vrot.lane.b32.xlu0 %v3347, 1
    %v3400 = vpop.permute.xlu0 %3399
    %3401 = vrot.lane.b32.xlu0 %v3351, 1
    %v3402 = vpop.permute.xlu0 %3401
    %3403 = vrot.lane.b32.xlu0 %v3339, 1
    %v3404 = vpop.permute.xlu0 %3403
    %3405 = vrot.lane.b32.xlu0 %v3343, 1
    %v3406 = vpop.permute.xlu0 %3405
    %3407 = vrot.lane.b32.xlu0 %v3349, 1
    %v3408 = vpop.permute.xlu0 %3407
    %3409 = vrot.lane.b32.xlu0 %v3353, 1
    %v3410 = vpop.permute.xlu0 %3409
    %v3411 = vsel %vm410, %v3396, %v3404
    %v3412 = vsel %vm410, %v3398, %v3406
    %v3413 = vsel %vm410, %v3400, %v3408
    %v3414 = vsel %vm410, %v3402, %v3410
    %v3415 = vsel %vm410, %v3404, %v3396
    %v3416 = vsel %vm410, %v3406, %v3398
    %v3417 = vsel %vm410, %v3408, %v3400
    %v3418 = vsel %vm410, %v3410, %v3402
    %v3419 = vmul.f32 %v3415, %v419
    %v3420 = vmul.f32 %v3411, %v420
    %v3421 = vmul.f32 %v3416, %v421
    %v3422 = vmul.f32 %v3412, %v422
    %v3423 = vmul.f32 %v3417, %v423
    %v3424 = vmul.f32 %v3413, %v424
    %v3425 = vmul.f32 %v3418, %v425
    %v3426 = vmul.f32 %v3414, %v426
    %v3427 = vadd.f32 %v3419, %v3357
    %v3428 = vadd.f32 %v3420, %v3359
    %v3429 = vadd.f32 %v3421, %v3361
    %v3430 = vadd.f32 %v3422, %v3363
    %v3431 = vadd.f32 %v3423, %v3367
    %v3432 = vadd.f32 %v3424, %v3369
    %v3433 = vadd.f32 %v3425, %v3371
    %v3434 = vadd.f32 %v3426, %v3373
    %3435 = vrot.lane.b32.xlu0 %v3377, 127
    %v3436 = vpop.permute.xlu0 %3435
    %3437 = vrot.lane.b32.xlu0 %v3381, 127
    %v3438 = vpop.permute.xlu0 %3437
    %3439 = vrot.lane.b32.xlu0 %v3387, 127
    %v3440 = vpop.permute.xlu0 %3439
    %3441 = vrot.lane.b32.xlu0 %v3391, 127
    %v3442 = vpop.permute.xlu0 %3441
    %3443 = vrot.lane.b32.xlu0 %v3379, 127
    %v3444 = vpop.permute.xlu0 %3443
    %3445 = vrot.lane.b32.xlu0 %v3383, 127
    %v3446 = vpop.permute.xlu0 %3445
    %3447 = vrot.lane.b32.xlu0 %v3389, 127
    %v3448 = vpop.permute.xlu0 %3447
    %3449 = vrot.lane.b32.xlu0 %v3393, 127
    %v3450 = vpop.permute.xlu0 %3449
    %v3451 = vsel %vm459, %v3436, %v3444
    %v3452 = vsel %vm459, %v3438, %v3446
    %v3453 = vsel %vm459, %v3440, %v3448
    %v3454 = vsel %vm459, %v3442, %v3450
    %v3455 = vsel %vm459, %v3444, %v3436
    %v3456 = vsel %vm459, %v3446, %v3438
    %v3457 = vsel %vm459, %v3448, %v3440
    %v3458 = vsel %vm459, %v3450, %v3442
    %v3459 = vmul.f32 %v3451, %v468
    %v3460 = vmul.f32 %v3455, %v469
    %v3461 = vmul.f32 %v3452, %v470
    %v3462 = vmul.f32 %v3456, %v471
    %v3463 = vmul.f32 %v3453, %v472
    %v3464 = vmul.f32 %v3457, %v473
    %v3465 = vmul.f32 %v3454, %v474
    %v3466 = vmul.f32 %v3458, %v475
    %v3467 = vadd.f32 %v3427, %v3459
    %v3468 = vadd.f32 %v3428, %v3460
    %v3469 = vadd.f32 %v3429, %v3461
    %v3470 = vadd.f32 %v3430, %v3462
    %v3471 = vadd.f32 %v3431, %v3463
    %v3472 = vadd.f32 %v3432, %v3464
    %v3473 = vadd.f32 %v3433, %v3465
    %v3474 = vadd.f32 %v3434, %v3466
    %3476 = vset.pattern.permute.xlu0 0
    %3477 = vperm.xlu0 %3476, %v3246
    %v3478 = vpop.permute.xlu0 %3477
    %3481 = vset.pattern.permute.xlu0 0
    %3482 = vperm.xlu0 %3481, %v3247
    %v3483 = vpop.permute.xlu0 %3482
    %3486 = vset.pattern.permute.xlu0 0
    %3487 = vperm.xlu0 %3486, %v3248
    %v3488 = vpop.permute.xlu0 %3487
    %3491 = vset.pattern.permute.xlu0 0
    %3492 = vperm.xlu0 %3491, %v3249
    %v3493 = vpop.permute.xlu0 %3492
    %v3495 = vadd.f32 %v3467, %v3478
    %v3496 = vadd.f32 %v3468, %v3478
    %v3497 = vadd.f32 %v3469, %v3483
    %v3498 = vadd.f32 %v3470, %v3483
    %v3499 = vadd.f32 %v3471, %v3488
    %v3500 = vadd.f32 %v3472, %v3488
    %v3501 = vadd.f32 %v3473, %v3493
    %v3502 = vadd.f32 %v3474, %v3493
    %s3503 = sld [smem:[#allocation2 + $0xa]]
    %vm3504 = vcmp.ge.f32.partialorder %v3495, 0.0
    %vm3505 = vcmp.ge.f32.partialorder %v3496, 0.0
    %vm3506 = vcmp.ge.f32.partialorder %v3497, 0.0
    %vm3507 = vcmp.ge.f32.partialorder %v3498, 0.0
    %vm3508 = vcmp.ge.f32.partialorder %v3499, 0.0
    %vm3509 = vcmp.ge.f32.partialorder %v3500, 0.0
    %vm3510 = vcmp.ge.f32.partialorder %v3501, 0.0
    %vm3511 = vcmp.ge.f32.partialorder %v3502, 0.0
    %v3512 = vstv %s3503
    %v3513 = vmul.f32 %v3495, %v3512
    %v3514 = vmul.f32 %v3496, %v3512
    %v3515 = vmul.f32 %v3497, %v3512
    %v3516 = vmul.f32 %v3498, %v3512
    %v3517 = vmul.f32 %v3499, %v3512
    %v3518 = vmul.f32 %v3500, %v3512
    %v3519 = vmul.f32 %v3501, %v3512
    %v3520 = vmul.f32 %v3502, %v3512
    %v3521 = vsel %vm3504, %v3495, %v3513
    %v3522 = vsel %vm3505, %v3496, %v3514
    %v3523 = vsel %vm3506, %v3497, %v3515
    %v3524 = vsel %vm3507, %v3498, %v3516
    %v3525 = vsel %vm3508, %v3499, %v3517
    %v3526 = vsel %vm3509, %v3500, %v3518
    %v3527 = vsel %vm3510, %v3501, %v3519
    %v3528 = vsel %vm3511, %v3502, %v3520
    %s3529 = scalar_lea.vmem %s6, 288
    %v3530 = vld [vmem:[%s3529] sm:$0xf]
    %v3531 = vld [vmem:[%s3529 + $0x4] sm:$0xf]
    %v3532 = vld [vmem:[%s3529 + $0x8] sm:$0xf]
    %v3533 = vld [vmem:[%s3529 + $0xc] sm:$0xf]
    %v3534 = vld [vmem:[%s3529 + $0x10] sm:$0xf]
    %v3535 = vld [vmem:[%s3529 + $0x14] sm:$0xf]
    %v3536 = vld [vmem:[%s3529 + $0x18] sm:$0xf]
    %v3537 = vld [vmem:[%s3529 + $0x1c] sm:$0xf]
    %v3538 = vld [vmem:[%s3529 + $0x20] sm:$0xf]
    %v3539 = vld [vmem:[%s3529 + $0x24] sm:$0xf]
    %v3540 = vld [vmem:[%s3529 + $0x28] sm:$0xf]
    %v3541 = vld [vmem:[%s3529 + $0x2c] sm:$0xf]
    %s3542 = scalar_lea.vmem %s7, 192
    %v3543 = vld [vmem:[%s3542] sm:$0xff]
    %v3544 = vld [vmem:[%s3542 + $0x8] sm:$0xff]
    %v3545 = vld [vmem:[%s3542 + $0x10] sm:$0xff]
    %v3546 = vld [vmem:[%s3542 + $0x18] sm:$0xff]
    %v3547 = vpack.c.bf16 %v3523, %v3521
    %v3548 = vpack.c.bf16 %v3524, %v3522
    %v3549 = vpack.c.bf16 %v3527, %v3525
    %v3550 = vpack.c.bf16 %v3528, %v3526
    %v3563 = vunpack.c.l.b16 %v3530
    %v3564 = vunpack.c.l.b16 %v3531
    %v3565 = vunpack.c.l.b16 %v3532
    %v3566 = vunpack.c.l.b16 %v3533
    %v3567 = vunpack.c.l.b16 %v3534
    %v3568 = vunpack.c.l.b16 %v3535
    %v3569 = vunpack.c.l.b16 %v3536
    %v3570 = vunpack.c.l.b16 %v3537
    %v3571 = vunpack.c.l.b16 %v3538
    %v3572 = vunpack.c.l.b16 %v3539
    %v3573 = vunpack.c.l.b16 %v3540
    %v3574 = vunpack.c.l.b16 %v3541
    %v3575 = vpack.c.b16 %v3564, %v3563
    %v3576 = vpack.c.b16 %v3566, %v3565
    %v3577 = vpack.c.b16 %v3568, %v3567
    %v3578 = vpack.c.b16 %v3570, %v3569
    %v3579 = vpack.c.b16 %v3572, %v3571
    %v3580 = vpack.c.b16 %v3574, %v3573
    %v3582 = vsel %vm598, %v3575, 0
    %v3585 = vsel %vm598, %v3576, 0
    %v3588 = vsel %vm598, %v3577, 0
    %v3591 = vsel %vm598, %v3578, 0
    %v3594 = vsel %vm598, %v3579, 0
    %v3597 = vsel %vm598, %v3580, 0
    %3599 = vmatprep.subr.bf16.mxu0 %v3548
    %3600 = vmatpush1.bf16.msra.mxu0 %v3547
    %3601 = vmatprep.subr.bf16.mxu0 %v3550
    %3602 = vmatpush1.bf16.msra.mxu0 %v3549
    %3603 = vmatprep.subr.bf16.mxu0 0
    %3604 = vmatpush1.bf16.msra.mxu0 0
    %3605 = vmatprep.subr.bf16.mxu0 0
    %3606 = vmatpush1.bf16.msra.mxu0 0
    %3607 = vmatprep.subr.bf16.mxu0 0
    %3608 = vmatpush1.bf16.msra.mxu0 0
    %3609 = vmatprep.subr.bf16.mxu0 0
    %3610 = vmatpush1.bf16.msra.mxu0 0
    %3611 = vmatprep.subr.bf16.mxu0 0
    %3612 = vmatpush1.bf16.msra.mxu0 0
    %3613 = vmatprep.subr.bf16.mxu0 0
    %3614 = vmatpush1.bf16.msra.mxu0 0
    %3615 = vmatprep.subr.bf16.mxu0 0
    %3616 = vmatpush1.bf16.msra.mxu0 0
    %3617 = vmatprep.subr.bf16.mxu0 0
    %3618 = vmatpush1.bf16.msra.mxu0 0
    %3619 = vmatprep.subr.bf16.mxu0 0
    %3620 = vmatpush1.bf16.msra.mxu0 0
    %3621 = vmatprep.subr.bf16.mxu0 0
    %3622 = vmatpush1.bf16.msra.mxu0 0
    %3623 = vmatprep.subr.bf16.mxu0 0
    %3624 = vmatpush1.bf16.msra.mxu0 0
    %3625 = vmatprep.subr.bf16.mxu0 0
    %3626 = vmatpush1.bf16.msra.mxu0 0
    %3627 = vmatprep.subr.bf16.mxu0 0
    %3628 = vmatpush1.bf16.msra.mxu0 0
    %3629 = vmatprep.subr.bf16.mxu0 0
    %3630 = vmatpush1.bf16.msra.mxu0 0
    %3631 = vmatprep.mubr.bf16.mxu0 0
    %3632 = vmatmul.mubr.bf16.gmra.mrb[0].mxu0 %v3582
    %v3633 = vpop.f32.mrb[0].mxu0
    %v3634 = vadd.f32 0.0, %v3633
    %v3635 = vpop.f32.mrb[0].mxu0
    %v3636 = vadd.f32 0.0, %v3635
    %v3637 = vpop.f32.mrb[0].mxu0
    %v3638 = vadd.f32 0.0, %v3637
    %v3639 = vpop.f32.mrb[0].mxu0
    %v3640 = vadd.f32 0.0, %v3639
    %3641 = vmatprep.mubr.bf16.mxu0 0
    %3642 = vmatmul.mubr.bf16.gmra.mrb[0].mxu0 %v3585
    %v3643 = vpop.f32.mrb[0].mxu0
    %v3644 = vadd.f32 0.0, %v3643
    %v3645 = vpop.f32.mrb[0].mxu0
    %v3646 = vadd.f32 0.0, %v3645
    %v3647 = vpop.f32.mrb[0].mxu0
    %v3648 = vadd.f32 0.0, %v3647
    %v3649 = vpop.f32.mrb[0].mxu0
    %v3650 = vadd.f32 0.0, %v3649
    %3651 = vmatprep.mubr.bf16.mxu0 0
    %3652 = vmatmul.mubr.bf16.gmra.mrb[0].mxu0 %v3588
    %v3653 = vpop.f32.mrb[0].mxu0
    %v3654 = vadd.f32 0.0, %v3653
    %v3655 = vpop.f32.mrb[0].mxu0
    %v3656 = vadd.f32 0.0, %v3655
    %v3657 = vpop.f32.mrb[0].mxu0
    %v3658 = vadd.f32 0.0, %v3657
    %v3659 = vpop.f32.mrb[0].mxu0
    %v3660 = vadd.f32 0.0, %v3659
    %3661 = vmatprep.mubr.bf16.mxu0 0
    %3662 = vmatmul.mubr.bf16.gmra.mrb[0].mxu0 %v3591
    %v3663 = vpop.f32.mrb[0].mxu0
    %v3664 = vadd.f32 0.0, %v3663
    %v3665 = vpop.f32.mrb[0].mxu0
    %v3666 = vadd.f32 0.0, %v3665
    %v3667 = vpop.f32.mrb[0].mxu0
    %v3668 = vadd.f32 0.0, %v3667
    %v3669 = vpop.f32.mrb[0].mxu0
    %v3670 = vadd.f32 0.0, %v3669
    %3671 = vmatprep.mubr.bf16.mxu0 0
    %3672 = vmatmul.mubr.bf16.gmra.mrb[0].mxu0 %v3594
    %v3673 = vpop.f32.mrb[0].mxu0
    %v3674 = vadd.f32 0.0, %v3673
    %v3675 = vpop.f32.mrb[0].mxu0
    %v3676 = vadd.f32 0.0, %v3675
    %v3677 = vpop.f32.mrb[0].mxu0
    %v3678 = vadd.f32 0.0, %v3677
    %v3679 = vpop.f32.mrb[0].mxu0
    %v3680 = vadd.f32 0.0, %v3679
    %3681 = vmatprep.mubr.bf16.mxu0 0
    %3682 = vmatmul.mubr.bf16.gmra.mrb[0].mxu0 %v3597
    %v3683 = vpop.f32.mrb[0].mxu0
    %v3684 = vadd.f32 0.0, %v3683
    %v3685 = vpop.f32.mrb[0].mxu0
    %v3686 = vadd.f32 0.0, %v3685
    %v3687 = vpop.f32.mrb[0].mxu0
    %v3688 = vadd.f32 0.0, %v3687
    %v3689 = vpop.f32.mrb[0].mxu0
    %v3690 = vadd.f32 0.0, %v3689
    %3691 = vdwg.mxu0
    %3692 = vrot.lane.b32.xlu0 %v3634, 1
    %v3693 = vpop.permute.xlu0 %3692
    %3694 = vrot.lane.b32.xlu0 %v3638, 1
    %v3695 = vpop.permute.xlu0 %3694
    %3696 = vrot.lane.b32.xlu0 %v3644, 1
    %v3697 = vpop.permute.xlu0 %3696
    %3698 = vrot.lane.b32.xlu0 %v3648, 1
    %v3699 = vpop.permute.xlu0 %3698
    %3700 = vrot.lane.b32.xlu0 %v3636, 1
    %v3701 = vpop.permute.xlu0 %3700
    %3702 = vrot.lane.b32.xlu0 %v3640, 1
    %v3703 = vpop.permute.xlu0 %3702
    %3704 = vrot.lane.b32.xlu0 %v3646, 1
    %v3705 = vpop.permute.xlu0 %3704
    %3706 = vrot.lane.b32.xlu0 %v3650, 1
    %v3707 = vpop.permute.xlu0 %3706
    %v3708 = vsel %vm410, %v3693, %v3701
    %v3709 = vsel %vm410, %v3695, %v3703
    %v3710 = vsel %vm410, %v3697, %v3705
    %v3711 = vsel %vm410, %v3699, %v3707
    %v3712 = vsel %vm410, %v3701, %v3693
    %v3713 = vsel %vm410, %v3703, %v3695
    %v3714 = vsel %vm410, %v3705, %v3697
    %v3715 = vsel %vm410, %v3707, %v3699
    %v3716 = vmul.f32 %v3712, %v419
    %v3717 = vmul.f32 %v3708, %v420
    %v3718 = vmul.f32 %v3713, %v421
    %v3719 = vmul.f32 %v3709, %v422
    %v3720 = vmul.f32 %v3714, %v423
    %v3721 = vmul.f32 %v3710, %v424
    %v3722 = vmul.f32 %v3715, %v425
    %v3723 = vmul.f32 %v3711, %v426
    %v3724 = vadd.f32 %v3716, %v3654
    %v3725 = vadd.f32 %v3717, %v3656
    %v3726 = vadd.f32 %v3718, %v3658
    %v3727 = vadd.f32 %v3719, %v3660
    %v3728 = vadd.f32 %v3720, %v3664
    %v3729 = vadd.f32 %v3721, %v3666
    %v3730 = vadd.f32 %v3722, %v3668
    %v3731 = vadd.f32 %v3723, %v3670
    %3732 = vrot.lane.b32.xlu0 %v3674, 127
    %v3733 = vpop.permute.xlu0 %3732
    %3734 = vrot.lane.b32.xlu0 %v3678, 127
    %v3735 = vpop.permute.xlu0 %3734
    %3736 = vrot.lane.b32.xlu0 %v3684, 127
    %v3737 = vpop.permute.xlu0 %3736
    %3738 = vrot.lane.b32.xlu0 %v3688, 127
    %v3739 = vpop.permute.xlu0 %3738
    %3740 = vrot.lane.b32.xlu0 %v3676, 127
    %v3741 = vpop.permute.xlu0 %3740
    %3742 = vrot.lane.b32.xlu0 %v3680, 127
    %v3743 = vpop.permute.xlu0 %3742
    %3744 = vrot.lane.b32.xlu0 %v3686, 127
    %v3745 = vpop.permute.xlu0 %3744
    %3746 = vrot.lane.b32.xlu0 %v3690, 127
    %v3747 = vpop.permute.xlu0 %3746
    %v3748 = vsel %vm459, %v3733, %v3741
    %v3749 = vsel %vm459, %v3735, %v3743
    %v3750 = vsel %vm459, %v3737, %v3745
    %v3751 = vsel %vm459, %v3739, %v3747
    %v3752 = vsel %vm459, %v3741, %v3733
    %v3753 = vsel %vm459, %v3743, %v3735
    %v3754 = vsel %vm459, %v3745, %v3737
    %v3755 = vsel %vm459, %v3747, %v3739
    %v3756 = vmul.f32 %v3748, %v468
    %v3757 = vmul.f32 %v3752, %v469
    %v3758 = vmul.f32 %v3749, %v470
    %v3759 = vmul.f32 %v3753, %v471
    %v3760 = vmul.f32 %v3750, %v472
    %v3761 = vmul.f32 %v3754, %v473
    %v3762 = vmul.f32 %v3751, %v474
    %v3763 = vmul.f32 %v3755, %v475
    %v3764 = vadd.f32 %v3724, %v3756
    %v3765 = vadd.f32 %v3725, %v3757
    %v3766 = vadd.f32 %v3726, %v3758
    %v3767 = vadd.f32 %v3727, %v3759
    %v3768 = vadd.f32 %v3728, %v3760
    %v3769 = vadd.f32 %v3729, %v3761
    %v3770 = vadd.f32 %v3730, %v3762
    %v3771 = vadd.f32 %v3731, %v3763
    %3773 = vset.pattern.permute.xlu0 0
    %3774 = vperm.xlu0 %3773, %v3543
    %v3775 = vpop.permute.xlu0 %3774
    %3778 = vset.pattern.permute.xlu0 0
    %3779 = vperm.xlu0 %3778, %v3544
    %v3780 = vpop.permute.xlu0 %3779
    %3783 = vset.pattern.permute.xlu0 0
    %3784 = vperm.xlu0 %3783, %v3545
    %v3785 = vpop.permute.xlu0 %3784
    %3788 = vset.pattern.permute.xlu0 0
    %3789 = vperm.xlu0 %3788, %v3546
    %v3790 = vpop.permute.xlu0 %3789
    %v3792 = vadd.f32 %v3764, %v3775
    %v3793 = vadd.f32 %v3765, %v3775
    %v3794 = vadd.f32 %v3766, %v3780
    %v3795 = vadd.f32 %v3767, %v3780
    %v3796 = vadd.f32 %v3768, %v3785
    %v3797 = vadd.f32 %v3769, %v3785
    %v3798 = vadd.f32 %v3770, %v3790
    %v3799 = vadd.f32 %v3771, %v3790
    %s3800 = sld [smem:[#allocation2 + $0xb]]
    %vm3801 = vcmp.ge.f32.partialorder %v3792, 0.0
    %vm3802 = vcmp.ge.f32.partialorder %v3793, 0.0
    %vm3803 = vcmp.ge.f32.partialorder %v3794, 0.0
    %vm3804 = vcmp.ge.f32.partialorder %v3795, 0.0
    %vm3805 = vcmp.ge.f32.partialorder %v3796, 0.0
    %vm3806 = vcmp.ge.f32.partialorder %v3797, 0.0
    %vm3807 = vcmp.ge.f32.partialorder %v3798, 0.0
    %vm3808 = vcmp.ge.f32.partialorder %v3799, 0.0
    %v3809 = vstv %s3800
    %v3810 = vmul.f32 %v3792, %v3809
    %v3811 = vmul.f32 %v3793, %v3809
    %v3812 = vmul.f32 %v3794, %v3809
    %v3813 = vmul.f32 %v3795, %v3809
    %v3814 = vmul.f32 %v3796, %v3809
    %v3815 = vmul.f32 %v3797, %v3809
    %v3816 = vmul.f32 %v3798, %v3809
    %v3817 = vmul.f32 %v3799, %v3809
    %v3818 = vsel %vm3801, %v3792, %v3810
    %v3819 = vsel %vm3802, %v3793, %v3811
    %v3820 = vsel %vm3803, %v3794, %v3812
    %v3821 = vsel %vm3804, %v3795, %v3813
    %v3822 = vsel %vm3805, %v3796, %v3814
    %v3823 = vsel %vm3806, %v3797, %v3815
    %v3824 = vsel %vm3807, %v3798, %v3816
    %v3825 = vsel %vm3808, %v3799, %v3817
    %s3826 = scalar_lea.vmem %s6, 336
    %v3827 = vld [vmem:[%s3826] sm:$0xf]
    %v3828 = vld [vmem:[%s3826 + $0x4] sm:$0xf]
    %v3829 = vld [vmem:[%s3826 + $0x8] sm:$0xf]
    %v3830 = vld [vmem:[%s3826 + $0xc] sm:$0xf]
    %s3831 = scalar_lea.vmem %s7, 224
    %v3832 = vld [vmem:[%s3831] sm:$0xff]
    %v3833 = vpack.c.bf16 %v3820, %v3818
    %v3834 = vpack.c.bf16 %v3821, %v3819
    %v3835 = vpack.c.bf16 %v3824, %v3822
    %v3836 = vpack.c.bf16 %v3825, %v3823
    %v3841 = vunpack.c.l.b16 %v3827
    %v3842 = vunpack.c.l.b16 %v3828
    %v3843 = vunpack.c.l.b16 %v3829
    %v3844 = vunpack.c.l.b16 %v3830
    %v3845 = vpack.c.b16 %v3842, %v3841
    %v3846 = vpack.c.b16 %v3844, %v3843
    %v3848 = vsel %vm598, %v3845, 0
    %v3851 = vsel %vm598, %v3846, 0
    %3853 = vmatprep.subr.bf16.mxu0 %v3834
    %3854 = vmatpush1.bf16.msra.mxu0 %v3833
    %3855 = vmatprep.subr.bf16.mxu0 %v3836
    %3856 = vmatpush1.bf16.msra.mxu0 %v3835
    %3857 = vmatprep.subr.bf16.mxu0 0
    %3858 = vmatpush1.bf16.msra.mxu0 0
    %3859 = vmatprep.subr.bf16.mxu0 0
    %3860 = vmatpush1.bf16.msra.mxu0 0
    %3861 = vmatprep.subr.bf16.mxu0 0
    %3862 = vmatpush1.bf16.msra.mxu0 0
    %3863 = vmatprep.subr.bf16.mxu0 0
    %3864 = vmatpush1.bf16.msra.mxu0 0
    %3865 = vmatprep.subr.bf16.mxu0 0
    %3866 = vmatpush1.bf16.msra.mxu0 0
    %3867 = vmatprep.subr.bf16.mxu0 0
    %3868 = vmatpush1.bf16.msra.mxu0 0
    %3869 = vmatprep.subr.bf16.mxu0 0
    %3870 = vmatpush1.bf16.msra.mxu0 0
    %3871 = vmatprep.subr.bf16.mxu0 0
    %3872 = vmatpush1.bf16.msra.mxu0 0
    %3873 = vmatprep.subr.bf16.mxu0 0
    %3874 = vmatpush1.bf16.msra.mxu0 0
    %3875 = vmatprep.subr.bf16.mxu0 0
    %3876 = vmatpush1.bf16.msra.mxu0 0
    %3877 = vmatprep.subr.bf16.mxu0 0
    %3878 = vmatpush1.bf16.msra.mxu0 0
    %3879 = vmatprep.subr.bf16.mxu0 0
    %3880 = vmatpush1.bf16.msra.mxu0 0
    %3881 = vmatprep.subr.bf16.mxu0 0
    %3882 = vmatpush1.bf16.msra.mxu0 0
    %3883 = vmatprep.subr.bf16.mxu0 0
    %3884 = vmatpush1.bf16.msra.mxu0 0
    %3885 = vmatprep.mubr.bf16.mxu0 0
    %3886 = vmatmul.mubr.bf16.gmra.mrb[0].mxu0 %v3848
    %v3887 = vpop.f32.mrb[0].mxu0
    %v3888 = vadd.f32 0.0, %v3887
    %v3889 = vpop.f32.mrb[0].mxu0
    %v3890 = vadd.f32 0.0, %v3889
    %v3891 = vpop.f32.mrb[0].mxu0
    %v3892 = vadd.f32 0.0, %v3891
    %v3893 = vpop.f32.mrb[0].mxu0
    %v3894 = vadd.f32 0.0, %v3893
    %3895 = vmatprep.mubr.bf16.mxu0 0
    %3896 = vmatmul.mubr.bf16.gmra.mrb[0].mxu0 %v3851
    %v3897 = vpop.f32.mrb[0].mxu0
    %v3898 = vadd.f32 0.0, %v3897
    %v3899 = vpop.f32.mrb[0].mxu0
    %v3900 = vadd.f32 0.0, %v3899
    %v3901 = vpop.f32.mrb[0].mxu0
    %v3902 = vpop.f32.mrb[0].mxu0
    %3903 = vdwg.mxu0
    %3904 = vrot.lane.b32.xlu0 %v3888, 1
    %v3905 = vpop.permute.xlu0 %3904
    %3906 = vrot.lane.b32.xlu0 %v3890, 1
    %v3907 = vpop.permute.xlu0 %3906
    %v3908 = vsel %vm410, %v3905, %v3907
    %v3909 = vsel %vm410, %v3907, %v3905
    %v3910 = vmul.f32 %v3909, %v928
    %v3911 = vmul.f32 %v3908, %v929
    %v3912 = vadd.f32 %v3910, %v3892
    %v3913 = vadd.f32 %v3911, %v3894
    %3914 = vrot.lane.b32.xlu0 %v3898, 127
    %v3915 = vpop.permute.xlu0 %3914
    %3916 = vrot.lane.b32.xlu0 %v3900, 127
    %v3917 = vpop.permute.xlu0 %3916
    %v3918 = vsel %vm459, %v3915, %v3917
    %v3919 = vsel %vm459, %v3917, %v3915
    %v3920 = vmul.f32 %v3918, %v940
    %v3921 = vmul.f32 %v3919, %v941
    %v3922 = vadd.f32 %v3912, %v3920
    %v3923 = vadd.f32 %v3913, %v3921
    %3925 = vset.pattern.permute.xlu0 0
    %3926 = vperm.xlu0 %3925, %v3832
    %v3927 = vpop.permute.xlu0 %3926
    %v3929 = vadd.f32 %v3922, %v3927
    %v3930 = vadd.f32 %v3923, %v3927
    %v3931 = vadd.f32 %v2084, %v3929
    %v3932 = vadd.f32 %v2085, %v3930
    %v3935 = vrot.slane %v3931, 1
    %v3936 = vrot.slane %v3932, 1
    %3939 = vmatprep.subr.mxu0 %v84
    %3940 = vmatpush1.msra.mxu0 %v83
    %3941 = vmatprep.subr.mxu0 %v86
    %3942 = vmatpush1.msra.mxu0 %v85
    %3943 = vmatprep.subr.mxu0 %v88
    %3944 = vmatpush1.msra.mxu0 %v87
    %3945 = vmatprep.subr.mxu0 %v90
    %3946 = vmatpush1.msra.mxu0 %v89
    %3947 = vmatprep.subr.mxu0 %v92
    %3948 = vmatpush1.msra.mxu0 %v91
    %3949 = vmatprep.subr.mxu0 %v94
    %3950 = vmatpush1.msra.mxu0 %v93
    %3951 = vmatprep.subr.mxu0 %v96
    %3952 = vmatpush1.msra.mxu0 %v95
    %3953 = vmatprep.subr.mxu0 %v98
    %3954 = vmatpush1.msra.mxu0 %v97
    %3955 = vmatprep.subr.mxu0 %v100
    %3956 = vmatpush1.msra.mxu0 %v99
    %3957 = vmatprep.subr.mxu0 %v102
    %3958 = vmatpush1.msra.mxu0 %v101
    %3959 = vmatprep.subr.mxu0 %v104
    %3960 = vmatpush1.msra.mxu0 %v103
    %3961 = vmatprep.subr.mxu0 %v106
    %3962 = vmatpush1.msra.mxu0 %v105
    %3963 = vmatprep.subr.mxu0 %v108
    %3964 = vmatpush1.msra.mxu0 %v107
    %3965 = vmatprep.subr.mxu0 %v110
    %3966 = vmatpush1.msra.mxu0 %v109
    %3967 = vmatprep.subr.mxu0 %v112
    %3968 = vmatpush1.msra.mxu0 %v111
    %3969 = vmatprep.subr.mxu0 %v114
    %3970 = vmatpush1.msra.mxu0 %v113
    %3971 = vmatprep.subr.mxu0 %v116
    %3972 = vmatpush1.msra.mxu0 %v115
    %3973 = vmatprep.subr.mxu0 %v118
    %3974 = vmatpush1.msra.mxu0 %v117
    %3975 = vmatprep.subr.mxu0 %v120
    %3976 = vmatpush1.msra.mxu0 %v119
    %3977 = vmatprep.subr.mxu0 %v122
    %3978 = vmatpush1.msra.mxu0 %v121
    %3979 = vmatprep.subr.mxu0 %v124
    %3980 = vmatpush1.msra.mxu0 %v123
    %3981 = vmatprep.subr.mxu0 %v126
    %3982 = vmatpush1.msra.mxu0 %v125
    %3983 = vmatprep.subr.mxu0 %v128
    %3984 = vmatpush1.msra.mxu0 %v127
    %3985 = vmatprep.subr.mxu0 %v130
    %3986 = vmatpush1.msra.mxu0 %v129
    %3987 = vmatprep.subr.mxu0 %v132
    %3988 = vmatpush1.msra.mxu0 %v131
    %3989 = vmatprep.subr.mxu0 %v134
    %3990 = vmatpush1.msra.mxu0 %v133
    %3991 = vmatprep.subr.mxu0 %v136
    %3992 = vmatpush1.msra.mxu0 %v135
    %3993 = vmatprep.subr.mxu0 %v138
    %3994 = vmatpush1.msra.mxu0 %v137
    %3995 = vmatprep.subr.mxu0 %v140
    %3996 = vmatpush1.msra.mxu0 %v139
    %3997 = vmatprep.subr.mxu0 %v142
    %3998 = vmatpush1.msra.mxu0 %v141
    %3999 = vmatprep.subr.mxu0 %v144
    %4000 = vmatpush1.msra.mxu0 %v143
    %4001 = vmatprep.subr.mxu0 %v146
    %4002 = vmatpush1.msra.mxu0 %v145
    %4003 = vmatprep.mubr.f32.mxu0 %v3936
    %4004 = vmatmul.mubr.f32.gmra.mrb[0].mxu0 %v3935
    %v4005 = vpop.f32.mrb[0].mxu0
    %v4006 = vadd.f32 0.0, %v4005
    %v4007 = vpop.f32.mrb[0].mxu0
    %v4008 = vadd.f32 0.0, %v4007
    %4009 = vdwg.mxu0
    %v4010 = vsel %vm65, %v4006, %v226
    %v4011 = vsel %vm65, %v4008, %v227
    %s4012 = scalar_lea.vmem %s4, 288
    %v4013 = vld [vmem:[%s4012] sm:$0xf]
    %v4014 = vld [vmem:[%s4012 + $0x4] sm:$0xf]
    %v4015 = vld [vmem:[%s4012 + $0x8] sm:$0xf]
    %v4016 = vld [vmem:[%s4012 + $0xc] sm:$0xf]
    %v4017 = vld [vmem:[%s4012 + $0x10] sm:$0xf]
    %v4018 = vld [vmem:[%s4012 + $0x14] sm:$0xf]
    %v4019 = vld [vmem:[%s4012 + $0x18] sm:$0xf]
    %v4020 = vld [vmem:[%s4012 + $0x1c] sm:$0xf]
    %v4021 = vld [vmem:[%s4012 + $0x20] sm:$0xf]
    %v4022 = vld [vmem:[%s4012 + $0x24] sm:$0xf]
    %v4023 = vld [vmem:[%s4012 + $0x28] sm:$0xf]
    %v4024 = vld [vmem:[%s4012 + $0x2c] sm:$0xf]
    %s4025 = scalar_lea.vmem %s5, 192
    %v4026 = vld [vmem:[%s4025] sm:$0xff]
    %v4027 = vld [vmem:[%s4025 + $0x8] sm:$0xff]
    %v4028 = vld [vmem:[%s4025 + $0x10] sm:$0xff]
    %v4029 = vld [vmem:[%s4025 + $0x18] sm:$0xff]
    %v4030 = vpack.c.bf16 %v4010, %v2862
    %v4031 = vpack.c.bf16 %v4011, %v2863
    %v4044 = vunpack.c.l.b16 %v4013
    %v4045 = vunpack.c.l.b16 %v4014
    %v4046 = vunpack.c.l.b16 %v4015
    %v4047 = vunpack.c.l.b16 %v4016
    %v4048 = vunpack.c.l.b16 %v4017
    %v4049 = vunpack.c.l.b16 %v4018
    %v4050 = vunpack.c.l.b16 %v4019
    %v4051 = vunpack.c.l.b16 %v4020
    %v4052 = vunpack.c.l.b16 %v4021
    %v4053 = vunpack.c.l.b16 %v4022
    %v4054 = vunpack.c.l.b16 %v4023
    %v4055 = vunpack.c.l.b16 %v4024
    %v4056 = vpack.c.b16 %v4045, %v4044
    %v4057 = vpack.c.b16 %v4047, %v4046
    %v4058 = vpack.c.b16 %v4049, %v4048
    %v4059 = vpack.c.b16 %v4051, %v4050
    %v4060 = vpack.c.b16 %v4053, %v4052
    %v4061 = vpack.c.b16 %v4055, %v4054
    %v4063 = vsel %vm280, %v4056, 0
    %v4066 = vsel %vm280, %v4057, 0
    %v4069 = vsel %vm280, %v4058, 0
    %v4072 = vsel %vm280, %v4059, 0
    %v4075 = vsel %vm280, %v4060, 0
    %v4078 = vsel %vm280, %v4061, 0
    %4080 = vmatprep.subr.bf16.mxu0 %v4031
    %4081 = vmatpush1.bf16.msra.mxu0 %v4030
    %4082 = vmatprep.subr.bf16.mxu0 0
    %4083 = vmatpush1.bf16.msra.mxu0 0
    %4084 = vmatprep.subr.bf16.mxu0 0
    %4085 = vmatpush1.bf16.msra.mxu0 0
    %4086 = vmatprep.subr.bf16.mxu0 0
    %4087 = vmatpush1.bf16.msra.mxu0 0
    %4088 = vmatprep.subr.bf16.mxu0 0
    %4089 = vmatpush1.bf16.msra.mxu0 0
    %4090 = vmatprep.subr.bf16.mxu0 0
    %4091 = vmatpush1.bf16.msra.mxu0 0
    %4092 = vmatprep.subr.bf16.mxu0 0
    %4093 = vmatpush1.bf16.msra.mxu0 0
    %4094 = vmatprep.subr.bf16.mxu0 0
    %4095 = vmatpush1.bf16.msra.mxu0 0
    %4096 = vmatprep.subr.bf16.mxu0 0
    %4097 = vmatpush1.bf16.msra.mxu0 0
    %4098 = vmatprep.subr.bf16.mxu0 0
    %4099 = vmatpush1.bf16.msra.mxu0 0
    %4100 = vmatprep.subr.bf16.mxu0 0
    %4101 = vmatpush1.bf16.msra.mxu0 0
    %4102 = vmatprep.subr.bf16.mxu0 0
    %4103 = vmatpush1.bf16.msra.mxu0 0
    %4104 = vmatprep.subr.bf16.mxu0 0
    %4105 = vmatpush1.bf16.msra.mxu0 0
    %4106 = vmatprep.subr.bf16.mxu0 0
    %4107 = vmatpush1.bf16.msra.mxu0 0
    %4108 = vmatprep.subr.bf16.mxu0 0
    %4109 = vmatpush1.bf16.msra.mxu0 0
    %4110 = vmatprep.subr.bf16.mxu0 0
    %4111 = vmatpush1.bf16.msra.mxu0 0
    %4112 = vmatprep.mubr.bf16.mxu0 0
    %4113 = vmatmul.mubr.bf16.gmra.mrb[0].mxu0 %v4063
    %v4114 = vpop.f32.mrb[0].mxu0
    %v4115 = vadd.f32 0.0, %v4114
    %v4116 = vpop.f32.mrb[0].mxu0
    %v4117 = vadd.f32 0.0, %v4116
    %v4118 = vpop.f32.mrb[0].mxu0
    %v4119 = vadd.f32 0.0, %v4118
    %v4120 = vpop.f32.mrb[0].mxu0
    %v4121 = vadd.f32 0.0, %v4120
    %4122 = vmatprep.mubr.bf16.mxu0 0
    %4123 = vmatmul.mubr.bf16.gmra.mrb[0].mxu0 %v4066
    %v4124 = vpop.f32.mrb[0].mxu0
    %v4125 = vadd.f32 0.0, %v4124
    %v4126 = vpop.f32.mrb[0].mxu0
    %v4127 = vadd.f32 0.0, %v4126
    %v4128 = vpop.f32.mrb[0].mxu0
    %v4129 = vadd.f32 0.0, %v4128
    %v4130 = vpop.f32.mrb[0].mxu0
    %v4131 = vadd.f32 0.0, %v4130
    %4132 = vmatprep.mubr.bf16.mxu0 0
    %4133 = vmatmul.mubr.bf16.gmra.mrb[0].mxu0 %v4069
    %v4134 = vpop.f32.mrb[0].mxu0
    %v4135 = vadd.f32 0.0, %v4134
    %v4136 = vpop.f32.mrb[0].mxu0
    %v4137 = vadd.f32 0.0, %v4136
    %v4138 = vpop.f32.mrb[0].mxu0
    %v4139 = vadd.f32 0.0, %v4138
    %v4140 = vpop.f32.mrb[0].mxu0
    %v4141 = vadd.f32 0.0, %v4140
    %4142 = vmatprep.mubr.bf16.mxu0 0
    %4143 = vmatmul.mubr.bf16.gmra.mrb[0].mxu0 %v4072
    %v4144 = vpop.f32.mrb[0].mxu0
    %v4145 = vadd.f32 0.0, %v4144
    %v4146 = vpop.f32.mrb[0].mxu0
    %v4147 = vadd.f32 0.0, %v4146
    %v4148 = vpop.f32.mrb[0].mxu0
    %v4149 = vadd.f32 0.0, %v4148
    %v4150 = vpop.f32.mrb[0].mxu0
    %v4151 = vadd.f32 0.0, %v4150
    %4152 = vmatprep.mubr.bf16.mxu0 0
    %4153 = vmatmul.mubr.bf16.gmra.mrb[0].mxu0 %v4075
    %v4154 = vpop.f32.mrb[0].mxu0
    %v4155 = vadd.f32 0.0, %v4154
    %v4156 = vpop.f32.mrb[0].mxu0
    %v4157 = vadd.f32 0.0, %v4156
    %v4158 = vpop.f32.mrb[0].mxu0
    %v4159 = vadd.f32 0.0, %v4158
    %v4160 = vpop.f32.mrb[0].mxu0
    %v4161 = vadd.f32 0.0, %v4160
    %4162 = vmatprep.mubr.bf16.mxu0 0
    %4163 = vmatmul.mubr.bf16.gmra.mrb[0].mxu0 %v4078
    %v4164 = vpop.f32.mrb[0].mxu0
    %v4165 = vadd.f32 0.0, %v4164
    %v4166 = vpop.f32.mrb[0].mxu0
    %v4167 = vadd.f32 0.0, %v4166
    %v4168 = vpop.f32.mrb[0].mxu0
    %v4169 = vadd.f32 0.0, %v4168
    %v4170 = vpop.f32.mrb[0].mxu0
    %v4171 = vadd.f32 0.0, %v4170
    %4172 = vdwg.mxu0
    %4173 = vrot.lane.b32.xlu0 %v4115, 1
    %v4174 = vpop.permute.xlu0 %4173
    %4175 = vrot.lane.b32.xlu0 %v4119, 1
    %v4176 = vpop.permute.xlu0 %4175
    %4177 = vrot.lane.b32.xlu0 %v4125, 1
    %v4178 = vpop.permute.xlu0 %4177
    %4179 = vrot.lane.b32.xlu0 %v4129, 1
    %v4180 = vpop.permute.xlu0 %4179
    %4181 = vrot.lane.b32.xlu0 %v4117, 1
    %v4182 = vpop.permute.xlu0 %4181
    %4183 = vrot.lane.b32.xlu0 %v4121, 1
    %v4184 = vpop.permute.xlu0 %4183
    %4185 = vrot.lane.b32.xlu0 %v4127, 1
    %v4186 = vpop.permute.xlu0 %4185
    %4187 = vrot.lane.b32.xlu0 %v4131, 1
    %v4188 = vpop.permute.xlu0 %4187
    %v4189 = vsel %vm410, %v4174, %v4182
    %v4190 = vsel %vm410, %v4176, %v4184
    %v4191 = vsel %vm410, %v4178, %v4186
    %v4192 = vsel %vm410, %v4180, %v4188
    %v4193 = vsel %vm410, %v4182, %v4174
    %v4194 = vsel %vm410, %v4184, %v4176
    %v4195 = vsel %vm410, %v4186, %v4178
    %v4196 = vsel %vm410, %v4188, %v4180
    %v4197 = vmul.f32 %v4193, %v419
    %v4198 = vmul.f32 %v4189, %v420
    %v4199 = vmul.f32 %v4194, %v421
    %v4200 = vmul.f32 %v4190, %v422
    %v4201 = vmul.f32 %v4195, %v423
    %v4202 = vmul.f32 %v4191, %v424
    %v4203 = vmul.f32 %v4196, %v425
    %v4204 = vmul.f32 %v4192, %v426
    %v4205 = vadd.f32 %v4197, %v4135
    %v4206 = vadd.f32 %v4198, %v4137
    %v4207 = vadd.f32 %v4199, %v4139
    %v4208 = vadd.f32 %v4200, %v4141
    %v4209 = vadd.f32 %v4201, %v4145
    %v4210 = vadd.f32 %v4202, %v4147
    %v4211 = vadd.f32 %v4203, %v4149
    %v4212 = vadd.f32 %v4204, %v4151
    %4213 = vrot.lane.b32.xlu0 %v4155, 127
    %v4214 = vpop.permute.xlu0 %4213
    %4215 = vrot.lane.b32.xlu0 %v4159, 127
    %v4216 = vpop.permute.xlu0 %4215
    %4217 = vrot.lane.b32.xlu0 %v4165, 127
    %v4218 = vpop.permute.xlu0 %4217
    %4219 = vrot.lane.b32.xlu0 %v4169, 127
    %v4220 = vpop.permute.xlu0 %4219
    %4221 = vrot.lane.b32.xlu0 %v4157, 127
    %v4222 = vpop.permute.xlu0 %4221
    %4223 = vrot.lane.b32.xlu0 %v4161, 127
    %v4224 = vpop.permute.xlu0 %4223
    %4225 = vrot.lane.b32.xlu0 %v4167, 127
    %v4226 = vpop.permute.xlu0 %4225
    %4227 = vrot.lane.b32.xlu0 %v4171, 127
    %v4228 = vpop.permute.xlu0 %4227
    %v4229 = vsel %vm459, %v4214, %v4222
    %v4230 = vsel %vm459, %v4216, %v4224
    %v4231 = vsel %vm459, %v4218, %v4226
    %v4232 = vsel %vm459, %v4220, %v4228
    %v4233 = vsel %vm459, %v4222, %v4214
    %v4234 = vsel %vm459, %v4224, %v4216
    %v4235 = vsel %vm459, %v4226, %v4218
    %v4236 = vsel %vm459, %v4228, %v4220
    %v4237 = vmul.f32 %v4229, %v468
    %v4238 = vmul.f32 %v4233, %v469
    %v4239 = vmul.f32 %v4230, %v470
    %v4240 = vmul.f32 %v4234, %v471
    %v4241 = vmul.f32 %v4231, %v472
    %v4242 = vmul.f32 %v4235, %v473
    %v4243 = vmul.f32 %v4232, %v474
    %v4244 = vmul.f32 %v4236, %v475
    %v4245 = vadd.f32 %v4205, %v4237
    %v4246 = vadd.f32 %v4206, %v4238
    %v4247 = vadd.f32 %v4207, %v4239
    %v4248 = vadd.f32 %v4208, %v4240
    %v4249 = vadd.f32 %v4209, %v4241
    %v4250 = vadd.f32 %v4210, %v4242
    %v4251 = vadd.f32 %v4211, %v4243
    %v4252 = vadd.f32 %v4212, %v4244
    %4254 = vset.pattern.permute.xlu0 0
    %4255 = vperm.xlu0 %4254, %v4026
    %v4256 = vpop.permute.xlu0 %4255
    %4259 = vset.pattern.permute.xlu0 0
    %4260 = vperm.xlu0 %4259, %v4027
    %v4261 = vpop.permute.xlu0 %4260
    %4264 = vset.pattern.permute.xlu0 0
    %4265 = vperm.xlu0 %4264, %v4028
    %v4266 = vpop.permute.xlu0 %4265
    %4269 = vset.pattern.permute.xlu0 0
    %4270 = vperm.xlu0 %4269, %v4029
    %v4271 = vpop.permute.xlu0 %4270
    %v4273 = vadd.f32 %v4245, %v4256
    %v4274 = vadd.f32 %v4246, %v4256
    %v4275 = vadd.f32 %v4247, %v4261
    %v4276 = vadd.f32 %v4248, %v4261
    %v4277 = vadd.f32 %v4249, %v4266
    %v4278 = vadd.f32 %v4250, %v4266
    %v4279 = vadd.f32 %v4251, %v4271
    %v4280 = vadd.f32 %v4252, %v4271
    %s4281 = sld [smem:[#allocation2 + $0x4]]
    %vm4282 = vcmp.ge.f32.partialorder %v4273, 0.0
    %vm4283 = vcmp.ge.f32.partialorder %v4274, 0.0
    %vm4284 = vcmp.ge.f32.partialorder %v4275, 0.0
    %vm4285 = vcmp.ge.f32.partialorder %v4276, 0.0
    %vm4286 = vcmp.ge.f32.partialorder %v4277, 0.0
    %vm4287 = vcmp.ge.f32.partialorder %v4278, 0.0
    %vm4288 = vcmp.ge.f32.partialorder %v4279, 0.0
    %vm4289 = vcmp.ge.f32.partialorder %v4280, 0.0
    %v4290 = vstv %s4281
    %v4291 = vmul.f32 %v4273, %v4290
    %v4292 = vmul.f32 %v4274, %v4290
    %v4293 = vmul.f32 %v4275, %v4290
    %v4294 = vmul.f32 %v4276, %v4290
    %v4295 = vmul.f32 %v4277, %v4290
    %v4296 = vmul.f32 %v4278, %v4290
    %v4297 = vmul.f32 %v4279, %v4290
    %v4298 = vmul.f32 %v4280, %v4290
    %v4299 = vsel %vm4282, %v4273, %v4291
    %v4300 = vsel %vm4283, %v4274, %v4292
    %v4301 = vsel %vm4284, %v4275, %v4293
    %v4302 = vsel %vm4285, %v4276, %v4294
    %v4303 = vsel %vm4286, %v4277, %v4295
    %v4304 = vsel %vm4287, %v4278, %v4296
    %v4305 = vsel %vm4288, %v4279, %v4297
    %v4306 = vsel %vm4289, %v4280, %v4298
    %s4307 = scalar_lea.vmem %s4, 336
    %v4308 = vld [vmem:[%s4307] sm:$0xf]
    %v4309 = vld [vmem:[%s4307 + $0x4] sm:$0xf]
    %v4310 = vld [vmem:[%s4307 + $0x8] sm:$0xf]
    %v4311 = vld [vmem:[%s4307 + $0xc] sm:$0xf]
    %v4312 = vld [vmem:[%s4307 + $0x10] sm:$0xf]
    %v4313 = vld [vmem:[%s4307 + $0x14] sm:$0xf]
    %v4314 = vld [vmem:[%s4307 + $0x18] sm:$0xf]
    %v4315 = vld [vmem:[%s4307 + $0x1c] sm:$0xf]
    %v4316 = vld [vmem:[%s4307 + $0x20] sm:$0xf]
    %v4317 = vld [vmem:[%s4307 + $0x24] sm:$0xf]
    %v4318 = vld [vmem:[%s4307 + $0x28] sm:$0xf]
    %v4319 = vld [vmem:[%s4307 + $0x2c] sm:$0xf]
    %s4320 = scalar_lea.vmem %s5, 224
    %v4321 = vld [vmem:[%s4320] sm:$0xff]
    %v4322 = vld [vmem:[%s4320 + $0x8] sm:$0xff]
    %v4323 = vld [vmem:[%s4320 + $0x10] sm:$0xff]
    %v4324 = vld [vmem:[%s4320 + $0x18] sm:$0xff]
    %v4325 = vpack.c.bf16 %v4301, %v4299
    %v4326 = vpack.c.bf16 %v4302, %v4300
    %v4327 = vpack.c.bf16 %v4305, %v4303
    %v4328 = vpack.c.bf16 %v4306, %v4304
    %v4341 = vunpack.c.l.b16 %v4308
    %v4342 = vunpack.c.l.b16 %v4309
    %v4343 = vunpack.c.l.b16 %v4310
    %v4344 = vunpack.c.l.b16 %v4311
    %v4345 = vunpack.c.l.b16 %v4312
    %v4346 = vunpack.c.l.b16 %v4313
    %v4347 = vunpack.c.l.b16 %v4314
    %v4348 = vunpack.c.l.b16 %v4315
    %v4349 = vunpack.c.l.b16 %v4316
    %v4350 = vunpack.c.l.b16 %v4317
    %v4351 = vunpack.c.l.b16 %v4318
    %v4352 = vunpack.c.l.b16 %v4319
    %v4353 = vpack.c.b16 %v4342, %v4341
    %v4354 = vpack.c.b16 %v4344, %v4343
    %v4355 = vpack.c.b16 %v4346, %v4345
    %v4356 = vpack.c.b16 %v4348, %v4347
    %v4357 = vpack.c.b16 %v4350, %v4349
    %v4358 = vpack.c.b16 %v4352, %v4351
    %v4360 = vsel %vm598, %v4353, 0
    %v4363 = vsel %vm598, %v4354, 0
    %v4366 = vsel %vm598, %v4355, 0
    %v4369 = vsel %vm598, %v4356, 0
    %v4372 = vsel %vm598, %v4357, 0
    %v4375 = vsel %vm598, %v4358, 0
    %4377 = vmatprep.subr.bf16.mxu0 %v4326
    %4378 = vmatpush1.bf16.msra.mxu0 %v4325
    %4379 = vmatprep.subr.bf16.mxu0 %v4328
    %4380 = vmatpush1.bf16.msra.mxu0 %v4327
    %4381 = vmatprep.subr.bf16.mxu0 0
    %4382 = vmatpush1.bf16.msra.mxu0 0
    %4383 = vmatprep.subr.bf16.mxu0 0
    %4384 = vmatpush1.bf16.msra.mxu0 0
    %4385 = vmatprep.subr.bf16.mxu0 0
    %4386 = vmatpush1.bf16.msra.mxu0 0
    %4387 = vmatprep.subr.bf16.mxu0 0
    %4388 = vmatpush1.bf16.msra.mxu0 0
    %4389 = vmatprep.subr.bf16.mxu0 0
    %4390 = vmatpush1.bf16.msra.mxu0 0
    %4391 = vmatprep.subr.bf16.mxu0 0
    %4392 = vmatpush1.bf16.msra.mxu0 0
    %4393 = vmatprep.subr.bf16.mxu0 0
    %4394 = vmatpush1.bf16.msra.mxu0 0
    %4395 = vmatprep.subr.bf16.mxu0 0
    %4396 = vmatpush1.bf16.msra.mxu0 0
    %4397 = vmatprep.subr.bf16.mxu0 0
    %4398 = vmatpush1.bf16.msra.mxu0 0
    %4399 = vmatprep.subr.bf16.mxu0 0
    %4400 = vmatpush1.bf16.msra.mxu0 0
    %4401 = vmatprep.subr.bf16.mxu0 0
    %4402 = vmatpush1.bf16.msra.mxu0 0
    %4403 = vmatprep.subr.bf16.mxu0 0
    %4404 = vmatpush1.bf16.msra.mxu0 0
    %4405 = vmatprep.subr.bf16.mxu0 0
    %4406 = vmatpush1.bf16.msra.mxu0 0
    %4407 = vmatprep.subr.bf16.mxu0 0
    %4408 = vmatpush1.bf16.msra.mxu0 0
    %4409 = vmatprep.mubr.bf16.mxu0 0
    %4410 = vmatmul.mubr.bf16.gmra.mrb[0].mxu0 %v4360
    %v4411 = vpop.f32.mrb[0].mxu0
    %v4412 = vadd.f32 0.0, %v4411
    %v4413 = vpop.f32.mrb[0].mxu0
    %v4414 = vadd.f32 0.0, %v4413
    %v4415 = vpop.f32.mrb[0].mxu0
    %v4416 = vadd.f32 0.0, %v4415
    %v4417 = vpop.f32.mrb[0].mxu0
    %v4418 = vadd.f32 0.0, %v4417
    %4419 = vmatprep.mubr.bf16.mxu0 0
    %4420 = vmatmul.mubr.bf16.gmra.mrb[0].mxu0 %v4363
    %v4421 = vpop.f32.mrb[0].mxu0
    %v4422 = vadd.f32 0.0, %v4421
    %v4423 = vpop.f32.mrb[0].mxu0
    %v4424 = vadd.f32 0.0, %v4423
    %v4425 = vpop.f32.mrb[0].mxu0
    %v4426 = vadd.f32 0.0, %v4425
    %v4427 = vpop.f32.mrb[0].mxu0
    %v4428 = vadd.f32 0.0, %v4427
    %4429 = vmatprep.mubr.bf16.mxu0 0
    %4430 = vmatmul.mubr.bf16.gmra.mrb[0].mxu0 %v4366
    %v4431 = vpop.f32.mrb[0].mxu0
    %v4432 = vadd.f32 0.0, %v4431
    %v4433 = vpop.f32.mrb[0].mxu0
    %v4434 = vadd.f32 0.0, %v4433
    %v4435 = vpop.f32.mrb[0].mxu0
    %v4436 = vadd.f32 0.0, %v4435
    %v4437 = vpop.f32.mrb[0].mxu0
    %v4438 = vadd.f32 0.0, %v4437
    %4439 = vmatprep.mubr.bf16.mxu0 0
    %4440 = vmatmul.mubr.bf16.gmra.mrb[0].mxu0 %v4369
    %v4441 = vpop.f32.mrb[0].mxu0
    %v4442 = vadd.f32 0.0, %v4441
    %v4443 = vpop.f32.mrb[0].mxu0
    %v4444 = vadd.f32 0.0, %v4443
    %v4445 = vpop.f32.mrb[0].mxu0
    %v4446 = vadd.f32 0.0, %v4445
    %v4447 = vpop.f32.mrb[0].mxu0
    %v4448 = vadd.f32 0.0, %v4447
    %4449 = vmatprep.mubr.bf16.mxu0 0
    %4450 = vmatmul.mubr.bf16.gmra.mrb[0].mxu0 %v4372
    %v4451 = vpop.f32.mrb[0].mxu0
    %v4452 = vadd.f32 0.0, %v4451
    %v4453 = vpop.f32.mrb[0].mxu0
    %v4454 = vadd.f32 0.0, %v4453
    %v4455 = vpop.f32.mrb[0].mxu0
    %v4456 = vadd.f32 0.0, %v4455
    %v4457 = vpop.f32.mrb[0].mxu0
    %v4458 = vadd.f32 0.0, %v4457
    %4459 = vmatprep.mubr.bf16.mxu0 0
    %4460 = vmatmul.mubr.bf16.gmra.mrb[0].mxu0 %v4375
    %v4461 = vpop.f32.mrb[0].mxu0
    %v4462 = vadd.f32 0.0, %v4461
    %v4463 = vpop.f32.mrb[0].mxu0
    %v4464 = vadd.f32 0.0, %v4463
    %v4465 = vpop.f32.mrb[0].mxu0
    %v4466 = vadd.f32 0.0, %v4465
    %v4467 = vpop.f32.mrb[0].mxu0
    %v4468 = vadd.f32 0.0, %v4467
    %4469 = vdwg.mxu0
    %4470 = vrot.lane.b32.xlu0 %v4412, 1
    %v4471 = vpop.permute.xlu0 %4470
    %4472 = vrot.lane.b32.xlu0 %v4416, 1
    %v4473 = vpop.permute.xlu0 %4472
    %4474 = vrot.lane.b32.xlu0 %v4422, 1
    %v4475 = vpop.permute.xlu0 %4474
    %4476 = vrot.lane.b32.xlu0 %v4426, 1
    %v4477 = vpop.permute.xlu0 %4476
    %4478 = vrot.lane.b32.xlu0 %v4414, 1
    %v4479 = vpop.permute.xlu0 %4478
    %4480 = vrot.lane.b32.xlu0 %v4418, 1
    %v4481 = vpop.permute.xlu0 %4480
    %4482 = vrot.lane.b32.xlu0 %v4424, 1
    %v4483 = vpop.permute.xlu0 %4482
    %4484 = vrot.lane.b32.xlu0 %v4428, 1
    %v4485 = vpop.permute.xlu0 %4484
    %v4486 = vsel %vm410, %v4471, %v4479
    %v4487 = vsel %vm410, %v4473, %v4481
    %v4488 = vsel %vm410, %v4475, %v4483
    %v4489 = vsel %vm410, %v4477, %v4485
    %v4490 = vsel %vm410, %v4479, %v4471
    %v4491 = vsel %vm410, %v4481, %v4473
    %v4492 = vsel %vm410, %v4483, %v4475
    %v4493 = vsel %vm410, %v4485, %v4477
    %v4494 = vmul.f32 %v4490, %v419
    %v4495 = vmul.f32 %v4486, %v420
    %v4496 = vmul.f32 %v4491, %v421
    %v4497 = vmul.f32 %v4487, %v422
    %v4498 = vmul.f32 %v4492, %v423
    %v4499 = vmul.f32 %v4488, %v424
    %v4500 = vmul.f32 %v4493, %v425
    %v4501 = vmul.f32 %v4489, %v426
    %v4502 = vadd.f32 %v4494, %v4432
    %v4503 = vadd.f32 %v4495, %v4434
    %v4504 = vadd.f32 %v4496, %v4436
    %v4505 = vadd.f32 %v4497, %v4438
    %v4506 = vadd.f32 %v4498, %v4442
    %v4507 = vadd.f32 %v4499, %v4444
    %v4508 = vadd.f32 %v4500, %v4446
    %v4509 = vadd.f32 %v4501, %v4448
    %4510 = vrot.lane.b32.xlu0 %v4452, 127
    %v4511 = vpop.permute.xlu0 %4510
    %4512 = vrot.lane.b32.xlu0 %v4456, 127
    %v4513 = vpop.permute.xlu0 %4512
    %4514 = vrot.lane.b32.xlu0 %v4462, 127
    %v4515 = vpop.permute.xlu0 %4514
    %4516 = vrot.lane.b32.xlu0 %v4466, 127
    %v4517 = vpop.permute.xlu0 %4516
    %4518 = vrot.lane.b32.xlu0 %v4454, 127
    %v4519 = vpop.permute.xlu0 %4518
    %4520 = vrot.lane.b32.xlu0 %v4458, 127
    %v4521 = vpop.permute.xlu0 %4520
    %4522 = vrot.lane.b32.xlu0 %v4464, 127
    %v4523 = vpop.permute.xlu0 %4522
    %4524 = vrot.lane.b32.xlu0 %v4468, 127
    %v4525 = vpop.permute.xlu0 %4524
    %v4526 = vsel %vm459, %v4511, %v4519
    %v4527 = vsel %vm459, %v4513, %v4521
    %v4528 = vsel %vm459, %v4515, %v4523
    %v4529 = vsel %vm459, %v4517, %v4525
    %v4530 = vsel %vm459, %v4519, %v4511
    %v4531 = vsel %vm459, %v4521, %v4513
    %v4532 = vsel %vm459, %v4523, %v4515
    %v4533 = vsel %vm459, %v4525, %v4517
    %v4534 = vmul.f32 %v4526, %v468
    %v4535 = vmul.f32 %v4530, %v469
    %v4536 = vmul.f32 %v4527, %v470
    %v4537 = vmul.f32 %v4531, %v471
    %v4538 = vmul.f32 %v4528, %v472
    %v4539 = vmul.f32 %v4532, %v473
    %v4540 = vmul.f32 %v4529, %v474
    %v4541 = vmul.f32 %v4533, %v475
    %v4542 = vadd.f32 %v4502, %v4534
    %v4543 = vadd.f32 %v4503, %v4535
    %v4544 = vadd.f32 %v4504, %v4536
    %v4545 = vadd.f32 %v4505, %v4537
    %v4546 = vadd.f32 %v4506, %v4538
    %v4547 = vadd.f32 %v4507, %v4539
    %v4548 = vadd.f32 %v4508, %v4540
    %v4549 = vadd.f32 %v4509, %v4541
    %4551 = vset.pattern.permute.xlu0 0
    %4552 = vperm.xlu0 %4551, %v4321
    %v4553 = vpop.permute.xlu0 %4552
    %4556 = vset.pattern.permute.xlu0 0
    %4557 = vperm.xlu0 %4556, %v4322
    %v4558 = vpop.permute.xlu0 %4557
    %4561 = vset.pattern.permute.xlu0 0
    %4562 = vperm.xlu0 %4561, %v4323
    %v4563 = vpop.permute.xlu0 %4562
    %4566 = vset.pattern.permute.xlu0 0
    %4567 = vperm.xlu0 %4566, %v4324
    %v4568 = vpop.permute.xlu0 %4567
    %v4570 = vadd.f32 %v4542, %v4553
    %v4571 = vadd.f32 %v4543, %v4553
    %v4572 = vadd.f32 %v4544, %v4558
    %v4573 = vadd.f32 %v4545, %v4558
    %v4574 = vadd.f32 %v4546, %v4563
    %v4575 = vadd.f32 %v4547, %v4563
    %v4576 = vadd.f32 %v4548, %v4568
    %v4577 = vadd.f32 %v4549, %v4568
    %s4578 = sld [smem:[#allocation2 + $0x5]]
    %vm4579 = vcmp.ge.f32.partialorder %v4570, 0.0
    %vm4580 = vcmp.ge.f32.partialorder %v4571, 0.0
    %vm4581 = vcmp.ge.f32.partialorder %v4572, 0.0
    %vm4582 = vcmp.ge.f32.partialorder %v4573, 0.0
    %vm4583 = vcmp.ge.f32.partialorder %v4574, 0.0
    %vm4584 = vcmp.ge.f32.partialorder %v4575, 0.0
    %vm4585 = vcmp.ge.f32.partialorder %v4576, 0.0
    %vm4586 = vcmp.ge.f32.partialorder %v4577, 0.0
    %v4587 = vstv %s4578
    %v4588 = vmul.f32 %v4570, %v4587
    %v4589 = vmul.f32 %v4571, %v4587
    %v4590 = vmul.f32 %v4572, %v4587
    %v4591 = vmul.f32 %v4573, %v4587
    %v4592 = vmul.f32 %v4574, %v4587
    %v4593 = vmul.f32 %v4575, %v4587
    %v4594 = vmul.f32 %v4576, %v4587
    %v4595 = vmul.f32 %v4577, %v4587
    %v4596 = vsel %vm4579, %v4570, %v4588
    %v4597 = vsel %vm4580, %v4571, %v4589
    %v4598 = vsel %vm4581, %v4572, %v4590
    %v4599 = vsel %vm4582, %v4573, %v4591
    %v4600 = vsel %vm4583, %v4574, %v4592
    %v4601 = vsel %vm4584, %v4575, %v4593
    %v4602 = vsel %vm4585, %v4576, %v4594
    %v4603 = vsel %vm4586, %v4577, %v4595
    %s4604 = scalar_lea.vmem %s4, 384
    %v4605 = vld [vmem:[%s4604] sm:$0xf]
    %v4606 = vld [vmem:[%s4604 + $0x4] sm:$0xf]
    %v4607 = vld [vmem:[%s4604 + $0x8] sm:$0xf]
    %v4608 = vld [vmem:[%s4604 + $0xc] sm:$0xf]
    %s4609 = scalar_lea.vmem %s5, 256
    %v4610 = vld [vmem:[%s4609] sm:$0xff]
    %v4611 = vpack.c.bf16 %v4598, %v4596
    %v4612 = vpack.c.bf16 %v4599, %v4597
    %v4613 = vpack.c.bf16 %v4602, %v4600
    %v4614 = vpack.c.bf16 %v4603, %v4601
    %v4619 = vunpack.c.l.b16 %v4605
    %v4620 = vunpack.c.l.b16 %v4606
    %v4621 = vunpack.c.l.b16 %v4607
    %v4622 = vunpack.c.l.b16 %v4608
    %v4623 = vpack.c.b16 %v4620, %v4619
    %v4624 = vpack.c.b16 %v4622, %v4621
    %v4626 = vsel %vm598, %v4623, 0
    %v4629 = vsel %vm598, %v4624, 0
    %4631 = vmatprep.subr.bf16.mxu0 %v4612
    %4632 = vmatpush1.bf16.msra.mxu0 %v4611
    %4633 = vmatprep.subr.bf16.mxu0 %v4614
    %4634 = vmatpush1.bf16.msra.mxu0 %v4613
    %4635 = vmatprep.subr.bf16.mxu0 0
    %4636 = vmatpush1.bf16.msra.mxu0 0
    %4637 = vmatprep.subr.bf16.mxu0 0
    %4638 = vmatpush1.bf16.msra.mxu0 0
    %4639 = vmatprep.subr.bf16.mxu0 0
    %4640 = vmatpush1.bf16.msra.mxu0 0
    %4641 = vmatprep.subr.bf16.mxu0 0
    %4642 = vmatpush1.bf16.msra.mxu0 0
    %4643 = vmatprep.subr.bf16.mxu0 0
    %4644 = vmatpush1.bf16.msra.mxu0 0
    %4645 = vmatprep.subr.bf16.mxu0 0
    %4646 = vmatpush1.bf16.msra.mxu0 0
    %4647 = vmatprep.subr.bf16.mxu0 0
    %4648 = vmatpush1.bf16.msra.mxu0 0
    %4649 = vmatprep.subr.bf16.mxu0 0
    %4650 = vmatpush1.bf16.msra.mxu0 0
    %4651 = vmatprep.subr.bf16.mxu0 0
    %4652 = vmatpush1.bf16.msra.mxu0 0
    %4653 = vmatprep.subr.bf16.mxu0 0
    %4654 = vmatpush1.bf16.msra.mxu0 0
    %4655 = vmatprep.subr.bf16.mxu0 0
    %4656 = vmatpush1.bf16.msra.mxu0 0
    %4657 = vmatprep.subr.bf16.mxu0 0
    %4658 = vmatpush1.bf16.msra.mxu0 0
    %4659 = vmatprep.subr.bf16.mxu0 0
    %4660 = vmatpush1.bf16.msra.mxu0 0
    %4661 = vmatprep.subr.bf16.mxu0 0
    %4662 = vmatpush1.bf16.msra.mxu0 0
    %4663 = vmatprep.mubr.bf16.mxu0 0
    %4664 = vmatmul.mubr.bf16.gmra.mrb[0].mxu0 %v4626
    %v4665 = vpop.f32.mrb[0].mxu0
    %v4666 = vadd.f32 0.0, %v4665
    %v4667 = vpop.f32.mrb[0].mxu0
    %v4668 = vadd.f32 0.0, %v4667
    %v4669 = vpop.f32.mrb[0].mxu0
    %v4670 = vadd.f32 0.0, %v4669
    %v4671 = vpop.f32.mrb[0].mxu0
    %v4672 = vadd.f32 0.0, %v4671
    %4673 = vmatprep.mubr.bf16.mxu0 0
    %4674 = vmatmul.mubr.bf16.gmra.mrb[0].mxu0 %v4629
    %v4675 = vpop.f32.mrb[0].mxu0
    %v4676 = vadd.f32 0.0, %v4675
    %v4677 = vpop.f32.mrb[0].mxu0
    %v4678 = vadd.f32 0.0, %v4677
    %v4679 = vpop.f32.mrb[0].mxu0
    %v4680 = vpop.f32.mrb[0].mxu0
    %4681 = vdwg.mxu0
    %4682 = vrot.lane.b32.xlu0 %v4666, 1
    %v4683 = vpop.permute.xlu0 %4682
    %4684 = vrot.lane.b32.xlu0 %v4668, 1
    %v4685 = vpop.permute.xlu0 %4684
    %v4686 = vsel %vm410, %v4683, %v4685
    %v4687 = vsel %vm410, %v4685, %v4683
    %v4688 = vmul.f32 %v4687, %v928
    %v4689 = vmul.f32 %v4686, %v929
    %v4690 = vadd.f32 %v4688, %v4670
    %v4691 = vadd.f32 %v4689, %v4672
    %4692 = vrot.lane.b32.xlu0 %v4676, 127
    %v4693 = vpop.permute.xlu0 %4692
    %4694 = vrot.lane.b32.xlu0 %v4678, 127
    %v4695 = vpop.permute.xlu0 %4694
    %v4696 = vsel %vm459, %v4693, %v4695
    %v4697 = vsel %vm459, %v4695, %v4693
    %v4698 = vmul.f32 %v4696, %v940
    %v4699 = vmul.f32 %v4697, %v941
    %v4700 = vadd.f32 %v4690, %v4698
    %v4701 = vadd.f32 %v4691, %v4699
    %4703 = vset.pattern.permute.xlu0 0
    %4704 = vperm.xlu0 %4703, %v4610
    %v4705 = vpop.permute.xlu0 %4704
    %v4707 = vadd.f32 %v4700, %v4705
    %v4708 = vadd.f32 %v4701, %v4705
    %v4709 = vadd.f32 %v2862, %v4707
    %v4710 = vadd.f32 %v2863, %v4708
    %4711 = vmatprep.subr.mxu0 %v956
    %4712 = vmatpush1.msra.mxu0 %v955
    %4713 = vmatprep.subr.mxu0 %v958
    %4714 = vmatpush1.msra.mxu0 %v957
    %4715 = vmatprep.subr.mxu0 %v960
    %4716 = vmatpush1.msra.mxu0 %v959
    %4717 = vmatprep.subr.mxu0 %v962
    %4718 = vmatpush1.msra.mxu0 %v961
    %4719 = vmatprep.subr.mxu0 %v964
    %4720 = vmatpush1.msra.mxu0 %v963
    %4721 = vmatprep.subr.mxu0 %v966
    %4722 = vmatpush1.msra.mxu0 %v965
    %4723 = vmatprep.subr.mxu0 %v968
    %4724 = vmatpush1.msra.mxu0 %v967
    %4725 = vmatprep.subr.mxu0 %v970
    %4726 = vmatpush1.msra.mxu0 %v969
    %4727 = vmatprep.subr.mxu0 %v972
    %4728 = vmatpush1.msra.mxu0 %v971
    %4729 = vmatprep.subr.mxu0 %v974
    %4730 = vmatpush1.msra.mxu0 %v973
    %4731 = vmatprep.subr.mxu0 %v976
    %4732 = vmatpush1.msra.mxu0 %v975
    %4733 = vmatprep.subr.mxu0 %v978
    %4734 = vmatpush1.msra.mxu0 %v977
    %4735 = vmatprep.subr.mxu0 %v980
    %4736 = vmatpush1.msra.mxu0 %v979
    %4737 = vmatprep.subr.mxu0 %v982
    %4738 = vmatpush1.msra.mxu0 %v981
    %4739 = vmatprep.subr.mxu0 %v984
    %4740 = vmatpush1.msra.mxu0 %v983
    %4741 = vmatprep.subr.mxu0 %v986
    %4742 = vmatpush1.msra.mxu0 %v985
    %4743 = vmatprep.subr.mxu0 %v988
    %4744 = vmatpush1.msra.mxu0 %v987
    %4745 = vmatprep.subr.mxu0 %v990
    %4746 = vmatpush1.msra.mxu0 %v989
    %4747 = vmatprep.subr.mxu0 %v992
    %4748 = vmatpush1.msra.mxu0 %v991
    %4749 = vmatprep.subr.mxu0 %v994
    %4750 = vmatpush1.msra.mxu0 %v993
    %4751 = vmatprep.subr.mxu0 %v996
    %4752 = vmatpush1.msra.mxu0 %v995
    %4753 = vmatprep.subr.mxu0 %v998
    %4754 = vmatpush1.msra.mxu0 %v997
    %4755 = vmatprep.subr.mxu0 %v1000
    %4756 = vmatpush1.msra.mxu0 %v999
    %4757 = vmatprep.subr.mxu0 %v1002
    %4758 = vmatpush1.msra.mxu0 %v1001
    %4759 = vmatprep.subr.mxu0 %v1004
    %4760 = vmatpush1.msra.mxu0 %v1003
    %4761 = vmatprep.subr.mxu0 %v1006
    %4762 = vmatpush1.msra.mxu0 %v1005
    %4763 = vmatprep.subr.mxu0 %v1008
    %4764 = vmatpush1.msra.mxu0 %v1007
    %4765 = vmatprep.subr.mxu0 %v1010
    %4766 = vmatpush1.msra.mxu0 %v1009
    %4767 = vmatprep.subr.mxu0 %v1012
    %4768 = vmatpush1.msra.mxu0 %v1011
    %4769 = vmatprep.subr.mxu0 %v1014
    %4770 = vmatpush1.msra.mxu0 %v1013
    %4771 = vmatprep.subr.mxu0 %v1016
    %4772 = vmatpush1.msra.mxu0 %v1015
    %4773 = vmatprep.subr.mxu0 %v1018
    %4774 = vmatpush1.msra.mxu0 %v1017
    %4775 = vmatprep.mubr.f32.mxu0 %v4710
    %4776 = vmatmul.mubr.f32.gmra.mrb[0].mxu0 %v4709
    %v4777 = vpop.f32.mrb[0].mxu0
    %v4778 = vadd.f32 0.0, %v4777
    %v4779 = vpop.f32.mrb[0].mxu0
    %v4780 = vadd.f32 0.0, %v4779
    %4781 = vdwg.mxu0
    %v4782 = vsel %vm65, %v4778, 0.0
    %v4783 = vsel %vm65, %v4780, 0.0
    %s4784 = scalar_lea.vmem %s6, 384
    %v4785 = vld [vmem:[%s4784] sm:$0xf]
    %v4786 = vld [vmem:[%s4784 + $0x4] sm:$0xf]
    %v4787 = vld [vmem:[%s4784 + $0x8] sm:$0xf]
    %v4788 = vld [vmem:[%s4784 + $0xc] sm:$0xf]
    %v4789 = vld [vmem:[%s4784 + $0x10] sm:$0xf]
    %v4790 = vld [vmem:[%s4784 + $0x14] sm:$0xf]
    %v4791 = vld [vmem:[%s4784 + $0x18] sm:$0xf]
    %v4792 = vld [vmem:[%s4784 + $0x1c] sm:$0xf]
    %v4793 = vld [vmem:[%s4784 + $0x20] sm:$0xf]
    %v4794 = vld [vmem:[%s4784 + $0x24] sm:$0xf]
    %v4795 = vld [vmem:[%s4784 + $0x28] sm:$0xf]
    %v4796 = vld [vmem:[%s4784 + $0x2c] sm:$0xf]
    %s4797 = scalar_lea.vmem %s7, 256
    %v4798 = vld [vmem:[%s4797] sm:$0xff]
    %v4799 = vld [vmem:[%s4797 + $0x8] sm:$0xff]
    %v4800 = vld [vmem:[%s4797 + $0x10] sm:$0xff]
    %v4801 = vld [vmem:[%s4797 + $0x18] sm:$0xff]
    %v4802 = vpack.c.bf16 %v4782, %v3931
    %v4803 = vpack.c.bf16 %v4783, %v3932
    %v4816 = vunpack.c.l.b16 %v4785
    %v4817 = vunpack.c.l.b16 %v4786
    %v4818 = vunpack.c.l.b16 %v4787
    %v4819 = vunpack.c.l.b16 %v4788
    %v4820 = vunpack.c.l.b16 %v4789
    %v4821 = vunpack.c.l.b16 %v4790
    %v4822 = vunpack.c.l.b16 %v4791
    %v4823 = vunpack.c.l.b16 %v4792
    %v4824 = vunpack.c.l.b16 %v4793
    %v4825 = vunpack.c.l.b16 %v4794
    %v4826 = vunpack.c.l.b16 %v4795
    %v4827 = vunpack.c.l.b16 %v4796
    %v4828 = vpack.c.b16 %v4817, %v4816
    %v4829 = vpack.c.b16 %v4819, %v4818
    %v4830 = vpack.c.b16 %v4821, %v4820
    %v4831 = vpack.c.b16 %v4823, %v4822
    %v4832 = vpack.c.b16 %v4825, %v4824
    %v4833 = vpack.c.b16 %v4827, %v4826
    %v4835 = vsel %vm280, %v4828, 0
    %v4838 = vsel %vm280, %v4829, 0
    %v4841 = vsel %vm280, %v4830, 0
    %v4844 = vsel %vm280, %v4831, 0
    %v4847 = vsel %vm280, %v4832, 0
    %v4850 = vsel %vm280, %v4833, 0
    %4852 = vmatprep.subr.bf16.mxu0 %v4803
    %4853 = vmatpush1.bf16.msra.mxu0 %v4802
    %4854 = vmatprep.subr.bf16.mxu0 0
    %4855 = vmatpush1.bf16.msra.mxu0 0
    %4856 = vmatprep.subr.bf16.mxu0 0
    %4857 = vmatpush1.bf16.msra.mxu0 0
    %4858 = vmatprep.subr.bf16.mxu0 0
    %4859 = vmatpush1.bf16.msra.mxu0 0
    %4860 = vmatprep.subr.bf16.mxu0 0
    %4861 = vmatpush1.bf16.msra.mxu0 0
    %4862 = vmatprep.subr.bf16.mxu0 0
    %4863 = vmatpush1.bf16.msra.mxu0 0
    %4864 = vmatprep.subr.bf16.mxu0 0
    %4865 = vmatpush1.bf16.msra.mxu0 0
    %4866 = vmatprep.subr.bf16.mxu0 0
    %4867 = vmatpush1.bf16.msra.mxu0 0
    %4868 = vmatprep.subr.bf16.mxu0 0
    %4869 = vmatpush1.bf16.msra.mxu0 0
    %4870 = vmatprep.subr.bf16.mxu0 0
    %4871 = vmatpush1.bf16.msra.mxu0 0
    %4872 = vmatprep.subr.bf16.mxu0 0
    %4873 = vmatpush1.bf16.msra.mxu0 0
    %4874 = vmatprep.subr.bf16.mxu0 0
    %4875 = vmatpush1.bf16.msra.mxu0 0
    %4876 = vmatprep.subr.bf16.mxu0 0
    %4877 = vmatpush1.bf16.msra.mxu0 0
    %4878 = vmatprep.subr.bf16.mxu0 0
    %4879 = vmatpush1.bf16.msra.mxu0 0
    %4880 = vmatprep.subr.bf16.mxu0 0
    %4881 = vmatpush1.bf16.msra.mxu0 0
    %4882 = vmatprep.subr.bf16.mxu0 0
    %4883 = vmatpush1.bf16.msra.mxu0 0
    %4884 = vmatprep.mubr.bf16.mxu0 0
    %4885 = vmatmul.mubr.bf16.gmra.mrb[0].mxu0 %v4835
    %v4886 = vpop.f32.mrb[0].mxu0
    %v4887 = vadd.f32 0.0, %v4886
    %v4888 = vpop.f32.mrb[0].mxu0
    %v4889 = vadd.f32 0.0, %v4888
    %v4890 = vpop.f32.mrb[0].mxu0
    %v4891 = vadd.f32 0.0, %v4890
    %v4892 = vpop.f32.mrb[0].mxu0
    %v4893 = vadd.f32 0.0, %v4892
    %4894 = vmatprep.mubr.bf16.mxu0 0
    %4895 = vmatmul.mubr.bf16.gmra.mrb[0].mxu0 %v4838
    %v4896 = vpop.f32.mrb[0].mxu0
    %v4897 = vadd.f32 0.0, %v4896
    %v4898 = vpop.f32.mrb[0].mxu0
    %v4899 = vadd.f32 0.0, %v4898
    %v4900 = vpop.f32.mrb[0].mxu0
    %v4901 = vadd.f32 0.0, %v4900
    %v4902 = vpop.f32.mrb[0].mxu0
    %v4903 = vadd.f32 0.0, %v4902
    %4904 = vmatprep.mubr.bf16.mxu0 0
    %4905 = vmatmul.mubr.bf16.gmra.mrb[0].mxu0 %v4841
    %v4906 = vpop.f32.mrb[0].mxu0
    %v4907 = vadd.f32 0.0, %v4906
    %v4908 = vpop.f32.mrb[0].mxu0
    %v4909 = vadd.f32 0.0, %v4908
    %v4910 = vpop.f32.mrb[0].mxu0
    %v4911 = vadd.f32 0.0, %v4910
    %v4912 = vpop.f32.mrb[0].mxu0
    %v4913 = vadd.f32 0.0, %v4912
    %4914 = vmatprep.mubr.bf16.mxu0 0
    %4915 = vmatmul.mubr.bf16.gmra.mrb[0].mxu0 %v4844
    %v4916 = vpop.f32.mrb[0].mxu0
    %v4917 = vadd.f32 0.0, %v4916
    %v4918 = vpop.f32.mrb[0].mxu0
    %v4919 = vadd.f32 0.0, %v4918
    %v4920 = vpop.f32.mrb[0].mxu0
    %v4921 = vadd.f32 0.0, %v4920
    %v4922 = vpop.f32.mrb[0].mxu0
    %v4923 = vadd.f32 0.0, %v4922
    %4924 = vmatprep.mubr.bf16.mxu0 0
    %4925 = vmatmul.mubr.bf16.gmra.mrb[0].mxu0 %v4847
    %v4926 = vpop.f32.mrb[0].mxu0
    %v4927 = vadd.f32 0.0, %v4926
    %v4928 = vpop.f32.mrb[0].mxu0
    %v4929 = vadd.f32 0.0, %v4928
    %v4930 = vpop.f32.mrb[0].mxu0
    %v4931 = vadd.f32 0.0, %v4930
    %v4932 = vpop.f32.mrb[0].mxu0
    %v4933 = vadd.f32 0.0, %v4932
    %4934 = vmatprep.mubr.bf16.mxu0 0
    %4935 = vmatmul.mubr.bf16.gmra.mrb[0].mxu0 %v4850
    %v4936 = vpop.f32.mrb[0].mxu0
    %v4937 = vadd.f32 0.0, %v4936
    %v4938 = vpop.f32.mrb[0].mxu0
    %v4939 = vadd.f32 0.0, %v4938
    %v4940 = vpop.f32.mrb[0].mxu0
    %v4941 = vadd.f32 0.0, %v4940
    %v4942 = vpop.f32.mrb[0].mxu0
    %v4943 = vadd.f32 0.0, %v4942
    %4944 = vdwg.mxu0
    %4945 = vrot.lane.b32.xlu0 %v4887, 1
    %v4946 = vpop.permute.xlu0 %4945
    %4947 = vrot.lane.b32.xlu0 %v4891, 1
    %v4948 = vpop.permute.xlu0 %4947
    %4949 = vrot.lane.b32.xlu0 %v4897, 1
    %v4950 = vpop.permute.xlu0 %4949
    %4951 = vrot.lane.b32.xlu0 %v4901, 1
    %v4952 = vpop.permute.xlu0 %4951
    %4953 = vrot.lane.b32.xlu0 %v4889, 1
    %v4954 = vpop.permute.xlu0 %4953
    %4955 = vrot.lane.b32.xlu0 %v4893, 1
    %v4956 = vpop.permute.xlu0 %4955
    %4957 = vrot.lane.b32.xlu0 %v4899, 1
    %v4958 = vpop.permute.xlu0 %4957
    %4959 = vrot.lane.b32.xlu0 %v4903, 1
    %v4960 = vpop.permute.xlu0 %4959
    %v4961 = vsel %vm410, %v4946, %v4954
    %v4962 = vsel %vm410, %v4948, %v4956
    %v4963 = vsel %vm410, %v4950, %v4958
    %v4964 = vsel %vm410, %v4952, %v4960
    %v4965 = vsel %vm410, %v4954, %v4946
    %v4966 = vsel %vm410, %v4956, %v4948
    %v4967 = vsel %vm410, %v4958, %v4950
    %v4968 = vsel %vm410, %v4960, %v4952
    %v4969 = vmul.f32 %v4965, %v419
    %v4970 = vmul.f32 %v4961, %v420
    %v4971 = vmul.f32 %v4966, %v421
    %v4972 = vmul.f32 %v4962, %v422
    %v4973 = vmul.f32 %v4967, %v423
    %v4974 = vmul.f32 %v4963, %v424
    %v4975 = vmul.f32 %v4968, %v425
    %v4976 = vmul.f32 %v4964, %v426
    %v4977 = vadd.f32 %v4969, %v4907
    %v4978 = vadd.f32 %v4970, %v4909
    %v4979 = vadd.f32 %v4971, %v4911
    %v4980 = vadd.f32 %v4972, %v4913
    %v4981 = vadd.f32 %v4973, %v4917
    %v4982 = vadd.f32 %v4974, %v4919
    %v4983 = vadd.f32 %v4975, %v4921
    %v4984 = vadd.f32 %v4976, %v4923
    %4985 = vrot.lane.b32.xlu0 %v4927, 127
    %v4986 = vpop.permute.xlu0 %4985
    %4987 = vrot.lane.b32.xlu0 %v4931, 127
    %v4988 = vpop.permute.xlu0 %4987
    %4989 = vrot.lane.b32.xlu0 %v4937, 127
    %v4990 = vpop.permute.xlu0 %4989
    %4991 = vrot.lane.b32.xlu0 %v4941, 127
    %v4992 = vpop.permute.xlu0 %4991
    %4993 = vrot.lane.b32.xlu0 %v4929, 127
    %v4994 = vpop.permute.xlu0 %4993
    %4995 = vrot.lane.b32.xlu0 %v4933, 127
    %v4996 = vpop.permute.xlu0 %4995
    %4997 = vrot.lane.b32.xlu0 %v4939, 127
    %v4998 = vpop.permute.xlu0 %4997
    %4999 = vrot.lane.b32.xlu0 %v4943, 127
    %v5000 = vpop.permute.xlu0 %4999
    %v5001 = vsel %vm459, %v4986, %v4994
    %v5002 = vsel %vm459, %v4988, %v4996
    %v5003 = vsel %vm459, %v4990, %v4998
    %v5004 = vsel %vm459, %v4992, %v5000
    %v5005 = vsel %vm459, %v4994, %v4986
    %v5006 = vsel %vm459, %v4996, %v4988
    %v5007 = vsel %vm459, %v4998, %v4990
    %v5008 = vsel %vm459, %v5000, %v4992
    %v5009 = vmul.f32 %v5001, %v468
    %v5010 = vmul.f32 %v5005, %v469
    %v5011 = vmul.f32 %v5002, %v470
    %v5012 = vmul.f32 %v5006, %v471
    %v5013 = vmul.f32 %v5003, %v472
    %v5014 = vmul.f32 %v5007, %v473
    %v5015 = vmul.f32 %v5004, %v474
    %v5016 = vmul.f32 %v5008, %v475
    %v5017 = vadd.f32 %v4977, %v5009
    %v5018 = vadd.f32 %v4978, %v5010
    %v5019 = vadd.f32 %v4979, %v5011
    %v5020 = vadd.f32 %v4980, %v5012
    %v5021 = vadd.f32 %v4981, %v5013
    %v5022 = vadd.f32 %v4982, %v5014
    %v5023 = vadd.f32 %v4983, %v5015
    %v5024 = vadd.f32 %v4984, %v5016
    %5026 = vset.pattern.permute.xlu0 0
    %5027 = vperm.xlu0 %5026, %v4798
    %v5028 = vpop.permute.xlu0 %5027
    %5031 = vset.pattern.permute.xlu0 0
    %5032 = vperm.xlu0 %5031, %v4799
    %v5033 = vpop.permute.xlu0 %5032
    %5036 = vset.pattern.permute.xlu0 0
    %5037 = vperm.xlu0 %5036, %v4800
    %v5038 = vpop.permute.xlu0 %5037
    %5041 = vset.pattern.permute.xlu0 0
    %5042 = vperm.xlu0 %5041, %v4801
    %v5043 = vpop.permute.xlu0 %5042
    %v5045 = vadd.f32 %v5017, %v5028
    %v5046 = vadd.f32 %v5018, %v5028
    %v5047 = vadd.f32 %v5019, %v5033
    %v5048 = vadd.f32 %v5020, %v5033
    %v5049 = vadd.f32 %v5021, %v5038
    %v5050 = vadd.f32 %v5022, %v5038
    %v5051 = vadd.f32 %v5023, %v5043
    %v5052 = vadd.f32 %v5024, %v5043
    %s5053 = sld [smem:[#allocation2 + $0xc]]
    %vm5054 = vcmp.ge.f32.partialorder %v5045, 0.0
    %vm5055 = vcmp.ge.f32.partialorder %v5046, 0.0
    %vm5056 = vcmp.ge.f32.partialorder %v5047, 0.0
    %vm5057 = vcmp.ge.f32.partialorder %v5048, 0.0
    %vm5058 = vcmp.ge.f32.partialorder %v5049, 0.0
    %vm5059 = vcmp.ge.f32.partialorder %v5050, 0.0
    %vm5060 = vcmp.ge.f32.partialorder %v5051, 0.0
    %vm5061 = vcmp.ge.f32.partialorder %v5052, 0.0
    %v5062 = vstv %s5053
    %v5063 = vmul.f32 %v5045, %v5062
    %v5064 = vmul.f32 %v5046, %v5062
    %v5065 = vmul.f32 %v5047, %v5062
    %v5066 = vmul.f32 %v5048, %v5062
    %v5067 = vmul.f32 %v5049, %v5062
    %v5068 = vmul.f32 %v5050, %v5062
    %v5069 = vmul.f32 %v5051, %v5062
    %v5070 = vmul.f32 %v5052, %v5062
    %v5071 = vsel %vm5054, %v5045, %v5063
    %v5072 = vsel %vm5055, %v5046, %v5064
    %v5073 = vsel %vm5056, %v5047, %v5065
    %v5074 = vsel %vm5057, %v5048, %v5066
    %v5075 = vsel %vm5058, %v5049, %v5067
    %v5076 = vsel %vm5059, %v5050, %v5068
    %v5077 = vsel %vm5060, %v5051, %v5069
    %v5078 = vsel %vm5061, %v5052, %v5070
    %s5079 = scalar_lea.vmem %s6, 432
    %v5080 = vld [vmem:[%s5079] sm:$0xf]
    %v5081 = vld [vmem:[%s5079 + $0x4] sm:$0xf]
    %v5082 = vld [vmem:[%s5079 + $0x8] sm:$0xf]
    %v5083 = vld [vmem:[%s5079 + $0xc] sm:$0xf]
    %v5084 = vld [vmem:[%s5079 + $0x10] sm:$0xf]
    %v5085 = vld [vmem:[%s5079 + $0x14] sm:$0xf]
    %v5086 = vld [vmem:[%s5079 + $0x18] sm:$0xf]
    %v5087 = vld [vmem:[%s5079 + $0x1c] sm:$0xf]
    %v5088 = vld [vmem:[%s5079 + $0x20] sm:$0xf]
    %v5089 = vld [vmem:[%s5079 + $0x24] sm:$0xf]
    %v5090 = vld [vmem:[%s5079 + $0x28] sm:$0xf]
    %v5091 = vld [vmem:[%s5079 + $0x2c] sm:$0xf]
    %s5092 = scalar_lea.vmem %s7, 288
    %v5093 = vld [vmem:[%s5092] sm:$0xff]
    %v5094 = vld [vmem:[%s5092 + $0x8] sm:$0xff]
    %v5095 = vld [vmem:[%s5092 + $0x10] sm:$0xff]
    %v5096 = vld [vmem:[%s5092 + $0x18] sm:$0xff]
    %v5097 = vpack.c.bf16 %v5073, %v5071
    %v5098 = vpack.c.bf16 %v5074, %v5072
    %v5099 = vpack.c.bf16 %v5077, %v5075
    %v5100 = vpack.c.bf16 %v5078, %v5076
    %v5113 = vunpack.c.l.b16 %v5080
    %v5114 = vunpack.c.l.b16 %v5081
    %v5115 = vunpack.c.l.b16 %v5082
    %v5116 = vunpack.c.l.b16 %v5083
    %v5117 = vunpack.c.l.b16 %v5084
    %v5118 = vunpack.c.l.b16 %v5085
    %v5119 = vunpack.c.l.b16 %v5086
    %v5120 = vunpack.c.l.b16 %v5087
    %v5121 = vunpack.c.l.b16 %v5088
    %v5122 = vunpack.c.l.b16 %v5089
    %v5123 = vunpack.c.l.b16 %v5090
    %v5124 = vunpack.c.l.b16 %v5091
    %v5125 = vpack.c.b16 %v5114, %v5113
    %v5126 = vpack.c.b16 %v5116, %v5115
    %v5127 = vpack.c.b16 %v5118, %v5117
    %v5128 = vpack.c.b16 %v5120, %v5119
    %v5129 = vpack.c.b16 %v5122, %v5121
    %v5130 = vpack.c.b16 %v5124, %v5123
    %v5132 = vsel %vm598, %v5125, 0
    %v5135 = vsel %vm598, %v5126, 0
    %v5138 = vsel %vm598, %v5127, 0
    %v5141 = vsel %vm598, %v5128, 0
    %v5144 = vsel %vm598, %v5129, 0
    %v5147 = vsel %vm598, %v5130, 0
    %5149 = vmatprep.subr.bf16.mxu0 %v5098
    %5150 = vmatpush1.bf16.msra.mxu0 %v5097
    %5151 = vmatprep.subr.bf16.mxu0 %v5100
    %5152 = vmatpush1.bf16.msra.mxu0 %v5099
    %5153 = vmatprep.subr.bf16.mxu0 0
    %5154 = vmatpush1.bf16.msra.mxu0 0
    %5155 = vmatprep.subr.bf16.mxu0 0
    %5156 = vmatpush1.bf16.msra.mxu0 0
    %5157 = vmatprep.subr.bf16.mxu0 0
    %5158 = vmatpush1.bf16.msra.mxu0 0
    %5159 = vmatprep.subr.bf16.mxu0 0
    %5160 = vmatpush1.bf16.msra.mxu0 0
    %5161 = vmatprep.subr.bf16.mxu0 0
    %5162 = vmatpush1.bf16.msra.mxu0 0
    %5163 = vmatprep.subr.bf16.mxu0 0
    %5164 = vmatpush1.bf16.msra.mxu0 0
    %5165 = vmatprep.subr.bf16.mxu0 0
    %5166 = vmatpush1.bf16.msra.mxu0 0
    %5167 = vmatprep.subr.bf16.mxu0 0
    %5168 = vmatpush1.bf16.msra.mxu0 0
    %5169 = vmatprep.subr.bf16.mxu0 0
    %5170 = vmatpush1.bf16.msra.mxu0 0
    %5171 = vmatprep.subr.bf16.mxu0 0
    %5172 = vmatpush1.bf16.msra.mxu0 0
    %5173 = vmatprep.subr.bf16.mxu0 0
    %5174 = vmatpush1.bf16.msra.mxu0 0
    %5175 = vmatprep.subr.bf16.mxu0 0
    %5176 = vmatpush1.bf16.msra.mxu0 0
    %5177 = vmatprep.subr.bf16.mxu0 0
    %5178 = vmatpush1.bf16.msra.mxu0 0
    %5179 = vmatprep.subr.bf16.mxu0 0
    %5180 = vmatpush1.bf16.msra.mxu0 0
    %5181 = vmatprep.mubr.bf16.mxu0 0
    %5182 = vmatmul.mubr.bf16.gmra.mrb[0].mxu0 %v5132
    %v5183 = vpop.f32.mrb[0].mxu0
    %v5184 = vadd.f32 0.0, %v5183
    %v5185 = vpop.f32.mrb[0].mxu0
    %v5186 = vadd.f32 0.0, %v5185
    %v5187 = vpop.f32.mrb[0].mxu0
    %v5188 = vadd.f32 0.0, %v5187
    %v5189 = vpop.f32.mrb[0].mxu0
    %v5190 = vadd.f32 0.0, %v5189
    %5191 = vmatprep.mubr.bf16.mxu0 0
    %5192 = vmatmul.mubr.bf16.gmra.mrb[0].mxu0 %v5135
    %v5193 = vpop.f32.mrb[0].mxu0
    %v5194 = vadd.f32 0.0, %v5193
    %v5195 = vpop.f32.mrb[0].mxu0
    %v5196 = vadd.f32 0.0, %v5195
    %v5197 = vpop.f32.mrb[0].mxu0
    %v5198 = vadd.f32 0.0, %v5197
    %v5199 = vpop.f32.mrb[0].mxu0
    %v5200 = vadd.f32 0.0, %v5199
    %5201 = vmatprep.mubr.bf16.mxu0 0
    %5202 = vmatmul.mubr.bf16.gmra.mrb[0].mxu0 %v5138
    %v5203 = vpop.f32.mrb[0].mxu0
    %v5204 = vadd.f32 0.0, %v5203
    %v5205 = vpop.f32.mrb[0].mxu0
    %v5206 = vadd.f32 0.0, %v5205
    %v5207 = vpop.f32.mrb[0].mxu0
    %v5208 = vadd.f32 0.0, %v5207
    %v5209 = vpop.f32.mrb[0].mxu0
    %v5210 = vadd.f32 0.0, %v5209
    %5211 = vmatprep.mubr.bf16.mxu0 0
    %5212 = vmatmul.mubr.bf16.gmra.mrb[0].mxu0 %v5141
    %v5213 = vpop.f32.mrb[0].mxu0
    %v5214 = vadd.f32 0.0, %v5213
    %v5215 = vpop.f32.mrb[0].mxu0
    %v5216 = vadd.f32 0.0, %v5215
    %v5217 = vpop.f32.mrb[0].mxu0
    %v5218 = vadd.f32 0.0, %v5217
    %v5219 = vpop.f32.mrb[0].mxu0
    %v5220 = vadd.f32 0.0, %v5219
    %5221 = vmatprep.mubr.bf16.mxu0 0
    %5222 = vmatmul.mubr.bf16.gmra.mrb[0].mxu0 %v5144
    %v5223 = vpop.f32.mrb[0].mxu0
    %v5224 = vadd.f32 0.0, %v5223
    %v5225 = vpop.f32.mrb[0].mxu0
    %v5226 = vadd.f32 0.0, %v5225
    %v5227 = vpop.f32.mrb[0].mxu0
    %v5228 = vadd.f32 0.0, %v5227
    %v5229 = vpop.f32.mrb[0].mxu0
    %v5230 = vadd.f32 0.0, %v5229
    %5231 = vmatprep.mubr.bf16.mxu0 0
    %5232 = vmatmul.mubr.bf16.gmra.mrb[0].mxu0 %v5147
    %v5233 = vpop.f32.mrb[0].mxu0
    %v5234 = vadd.f32 0.0, %v5233
    %v5235 = vpop.f32.mrb[0].mxu0
    %v5236 = vadd.f32 0.0, %v5235
    %v5237 = vpop.f32.mrb[0].mxu0
    %v5238 = vadd.f32 0.0, %v5237
    %v5239 = vpop.f32.mrb[0].mxu0
    %v5240 = vadd.f32 0.0, %v5239
    %5241 = vdwg.mxu0
    %5242 = vrot.lane.b32.xlu0 %v5184, 1
    %v5243 = vpop.permute.xlu0 %5242
    %5244 = vrot.lane.b32.xlu0 %v5188, 1
    %v5245 = vpop.permute.xlu0 %5244
    %5246 = vrot.lane.b32.xlu0 %v5194, 1
    %v5247 = vpop.permute.xlu0 %5246
    %5248 = vrot.lane.b32.xlu0 %v5198, 1
    %v5249 = vpop.permute.xlu0 %5248
    %5250 = vrot.lane.b32.xlu0 %v5186, 1
    %v5251 = vpop.permute.xlu0 %5250
    %5252 = vrot.lane.b32.xlu0 %v5190, 1
    %v5253 = vpop.permute.xlu0 %5252
    %5254 = vrot.lane.b32.xlu0 %v5196, 1
    %v5255 = vpop.permute.xlu0 %5254
    %5256 = vrot.lane.b32.xlu0 %v5200, 1
    %v5257 = vpop.permute.xlu0 %5256
    %v5258 = vsel %vm410, %v5243, %v5251
    %v5259 = vsel %vm410, %v5245, %v5253
    %v5260 = vsel %vm410, %v5247, %v5255
    %v5261 = vsel %vm410, %v5249, %v5257
    %v5262 = vsel %vm410, %v5251, %v5243
    %v5263 = vsel %vm410, %v5253, %v5245
    %v5264 = vsel %vm410, %v5255, %v5247
    %v5265 = vsel %vm410, %v5257, %v5249
    %v5266 = vmul.f32 %v5262, %v419
    %v5267 = vmul.f32 %v5258, %v420
    %v5268 = vmul.f32 %v5263, %v421
    %v5269 = vmul.f32 %v5259, %v422
    %v5270 = vmul.f32 %v5264, %v423
    %v5271 = vmul.f32 %v5260, %v424
    %v5272 = vmul.f32 %v5265, %v425
    %v5273 = vmul.f32 %v5261, %v426
    %v5274 = vadd.f32 %v5266, %v5204
    %v5275 = vadd.f32 %v5267, %v5206
    %v5276 = vadd.f32 %v5268, %v5208
    %v5277 = vadd.f32 %v5269, %v5210
    %v5278 = vadd.f32 %v5270, %v5214
    %v5279 = vadd.f32 %v5271, %v5216
    %v5280 = vadd.f32 %v5272, %v5218
    %v5281 = vadd.f32 %v5273, %v5220
    %5282 = vrot.lane.b32.xlu0 %v5224, 127
    %v5283 = vpop.permute.xlu0 %5282
    %5284 = vrot.lane.b32.xlu0 %v5228, 127
    %v5285 = vpop.permute.xlu0 %5284
    %5286 = vrot.lane.b32.xlu0 %v5234, 127
    %v5287 = vpop.permute.xlu0 %5286
    %5288 = vrot.lane.b32.xlu0 %v5238, 127
    %v5289 = vpop.permute.xlu0 %5288
    %5290 = vrot.lane.b32.xlu0 %v5226, 127
    %v5291 = vpop.permute.xlu0 %5290
    %5292 = vrot.lane.b32.xlu0 %v5230, 127
    %v5293 = vpop.permute.xlu0 %5292
    %5294 = vrot.lane.b32.xlu0 %v5236, 127
    %v5295 = vpop.permute.xlu0 %5294
    %5296 = vrot.lane.b32.xlu0 %v5240, 127
    %v5297 = vpop.permute.xlu0 %5296
    %v5298 = vsel %vm459, %v5283, %v5291
    %v5299 = vsel %vm459, %v5285, %v5293
    %v5300 = vsel %vm459, %v5287, %v5295
    %v5301 = vsel %vm459, %v5289, %v5297
    %v5302 = vsel %vm459, %v5291, %v5283
    %v5303 = vsel %vm459, %v5293, %v5285
    %v5304 = vsel %vm459, %v5295, %v5287
    %v5305 = vsel %vm459, %v5297, %v5289
    %v5306 = vmul.f32 %v5298, %v468
    %v5307 = vmul.f32 %v5302, %v469
    %v5308 = vmul.f32 %v5299, %v470
    %v5309 = vmul.f32 %v5303, %v471
    %v5310 = vmul.f32 %v5300, %v472
    %v5311 = vmul.f32 %v5304, %v473
    %v5312 = vmul.f32 %v5301, %v474
    %v5313 = vmul.f32 %v5305, %v475
    %v5314 = vadd.f32 %v5274, %v5306
    %v5315 = vadd.f32 %v5275, %v5307
    %v5316 = vadd.f32 %v5276, %v5308
    %v5317 = vadd.f32 %v5277, %v5309
    %v5318 = vadd.f32 %v5278, %v5310
    %v5319 = vadd.f32 %v5279, %v5311
    %v5320 = vadd.f32 %v5280, %v5312
    %v5321 = vadd.f32 %v5281, %v5313
    %5323 = vset.pattern.permute.xlu0 0
    %5324 = vperm.xlu0 %5323, %v5093
    %v5325 = vpop.permute.xlu0 %5324
    %5328 = vset.pattern.permute.xlu0 0
    %5329 = vperm.xlu0 %5328, %v5094
    %v5330 = vpop.permute.xlu0 %5329
    %5333 = vset.pattern.permute.xlu0 0
    %5334 = vperm.xlu0 %5333, %v5095
    %v5335 = vpop.permute.xlu0 %5334
    %5338 = vset.pattern.permute.xlu0 0
    %5339 = vperm.xlu0 %5338, %v5096
    %v5340 = vpop.permute.xlu0 %5339
    %v5342 = vadd.f32 %v5314, %v5325
    %v5343 = vadd.f32 %v5315, %v5325
    %v5344 = vadd.f32 %v5316, %v5330
    %v5345 = vadd.f32 %v5317, %v5330
    %v5346 = vadd.f32 %v5318, %v5335
    %v5347 = vadd.f32 %v5319, %v5335
    %v5348 = vadd.f32 %v5320, %v5340
    %v5349 = vadd.f32 %v5321, %v5340
    %s5350 = sld [smem:[#allocation2 + $0xd]]
    %vm5351 = vcmp.ge.f32.partialorder %v5342, 0.0
    %vm5352 = vcmp.ge.f32.partialorder %v5343, 0.0
    %vm5353 = vcmp.ge.f32.partialorder %v5344, 0.0
    %vm5354 = vcmp.ge.f32.partialorder %v5345, 0.0
    %vm5355 = vcmp.ge.f32.partialorder %v5346, 0.0
    %vm5356 = vcmp.ge.f32.partialorder %v5347, 0.0
    %vm5357 = vcmp.ge.f32.partialorder %v5348, 0.0
    %vm5358 = vcmp.ge.f32.partialorder %v5349, 0.0
    %v5359 = vstv %s5350
    %v5360 = vmul.f32 %v5342, %v5359
    %v5361 = vmul.f32 %v5343, %v5359
    %v5362 = vmul.f32 %v5344, %v5359
    %v5363 = vmul.f32 %v5345, %v5359
    %v5364 = vmul.f32 %v5346, %v5359
    %v5365 = vmul.f32 %v5347, %v5359
    %v5366 = vmul.f32 %v5348, %v5359
    %v5367 = vmul.f32 %v5349, %v5359
    %v5368 = vsel %vm5351, %v5342, %v5360
    %v5369 = vsel %vm5352, %v5343, %v5361
    %v5370 = vsel %vm5353, %v5344, %v5362
    %v5371 = vsel %vm5354, %v5345, %v5363
    %v5372 = vsel %vm5355, %v5346, %v5364
    %v5373 = vsel %vm5356, %v5347, %v5365
    %v5374 = vsel %vm5357, %v5348, %v5366
    %v5375 = vsel %vm5358, %v5349, %v5367
    %s5376 = scalar_lea.vmem %s6, 480
    %v5377 = vld [vmem:[%s5376] sm:$0xf]
    %v5378 = vld [vmem:[%s5376 + $0x4] sm:$0xf]
    %v5379 = vld [vmem:[%s5376 + $0x8] sm:$0xf]
    %v5380 = vld [vmem:[%s5376 + $0xc] sm:$0xf]
    %v5381 = vld [vmem:[%s5376 + $0x10] sm:$0xf]
    %v5382 = vld [vmem:[%s5376 + $0x14] sm:$0xf]
    %v5383 = vld [vmem:[%s5376 + $0x18] sm:$0xf]
    %v5384 = vld [vmem:[%s5376 + $0x1c] sm:$0xf]
    %v5385 = vld [vmem:[%s5376 + $0x20] sm:$0xf]
    %v5386 = vld [vmem:[%s5376 + $0x24] sm:$0xf]
    %v5387 = vld [vmem:[%s5376 + $0x28] sm:$0xf]
    %v5388 = vld [vmem:[%s5376 + $0x2c] sm:$0xf]
    %s5389 = scalar_lea.vmem %s7, 320
    %v5390 = vld [vmem:[%s5389] sm:$0xff]
    %v5391 = vld [vmem:[%s5389 + $0x8] sm:$0xff]
    %v5392 = vld [vmem:[%s5389 + $0x10] sm:$0xff]
    %v5393 = vld [vmem:[%s5389 + $0x18] sm:$0xff]
    %v5394 = vpack.c.bf16 %v5370, %v5368
    %v5395 = vpack.c.bf16 %v5371, %v5369
    %v5396 = vpack.c.bf16 %v5374, %v5372
    %v5397 = vpack.c.bf16 %v5375, %v5373
    %v5410 = vunpack.c.l.b16 %v5377
    %v5411 = vunpack.c.l.b16 %v5378
    %v5412 = vunpack.c.l.b16 %v5379
    %v5413 = vunpack.c.l.b16 %v5380
    %v5414 = vunpack.c.l.b16 %v5381
    %v5415 = vunpack.c.l.b16 %v5382
    %v5416 = vunpack.c.l.b16 %v5383
    %v5417 = vunpack.c.l.b16 %v5384
    %v5418 = vunpack.c.l.b16 %v5385
    %v5419 = vunpack.c.l.b16 %v5386
    %v5420 = vunpack.c.l.b16 %v5387
    %v5421 = vunpack.c.l.b16 %v5388
    %v5422 = vpack.c.b16 %v5411, %v5410
    %v5423 = vpack.c.b16 %v5413, %v5412
    %v5424 = vpack.c.b16 %v5415, %v5414
    %v5425 = vpack.c.b16 %v5417, %v5416
    %v5426 = vpack.c.b16 %v5419, %v5418
    %v5427 = vpack.c.b16 %v5421, %v5420
    %v5429 = vsel %vm598, %v5422, 0
    %v5432 = vsel %vm598, %v5423, 0
    %v5435 = vsel %vm598, %v5424, 0
    %v5438 = vsel %vm598, %v5425, 0
    %v5441 = vsel %vm598, %v5426, 0
    %v5444 = vsel %vm598, %v5427, 0
    %5446 = vmatprep.subr.bf16.mxu0 %v5395
    %5447 = vmatpush1.bf16.msra.mxu0 %v5394
    %5448 = vmatprep.subr.bf16.mxu0 %v5397
    %5449 = vmatpush1.bf16.msra.mxu0 %v5396
    %5450 = vmatprep.subr.bf16.mxu0 0
    %5451 = vmatpush1.bf16.msra.mxu0 0
    %5452 = vmatprep.subr.bf16.mxu0 0
    %5453 = vmatpush1.bf16.msra.mxu0 0
    %5454 = vmatprep.subr.bf16.mxu0 0
    %5455 = vmatpush1.bf16.msra.mxu0 0
    %5456 = vmatprep.subr.bf16.mxu0 0
    %5457 = vmatpush1.bf16.msra.mxu0 0
    %5458 = vmatprep.subr.bf16.mxu0 0
    %5459 = vmatpush1.bf16.msra.mxu0 0
    %5460 = vmatprep.subr.bf16.mxu0 0
    %5461 = vmatpush1.bf16.msra.mxu0 0
    %5462 = vmatprep.subr.bf16.mxu0 0
    %5463 = vmatpush1.bf16.msra.mxu0 0
    %5464 = vmatprep.subr.bf16.mxu0 0
    %5465 = vmatpush1.bf16.msra.mxu0 0
    %5466 = vmatprep.subr.bf16.mxu0 0
    %5467 = vmatpush1.bf16.msra.mxu0 0
    %5468 = vmatprep.subr.bf16.mxu0 0
    %5469 = vmatpush1.bf16.msra.mxu0 0
    %5470 = vmatprep.subr.bf16.mxu0 0
    %5471 = vmatpush1.bf16.msra.mxu0 0
    %5472 = vmatprep.subr.bf16.mxu0 0
    %5473 = vmatpush1.bf16.msra.mxu0 0
    %5474 = vmatprep.subr.bf16.mxu0 0
    %5475 = vmatpush1.bf16.msra.mxu0 0
    %5476 = vmatprep.subr.bf16.mxu0 0
    %5477 = vmatpush1.bf16.msra.mxu0 0
    %5478 = vmatprep.mubr.bf16.mxu0 0
    %5479 = vmatmul.mubr.bf16.gmra.mrb[0].mxu0 %v5429
    %v5480 = vpop.f32.mrb[0].mxu0
    %v5481 = vadd.f32 0.0, %v5480
    %v5482 = vpop.f32.mrb[0].mxu0
    %v5483 = vadd.f32 0.0, %v5482
    %v5484 = vpop.f32.mrb[0].mxu0
    %v5485 = vadd.f32 0.0, %v5484
    %v5486 = vpop.f32.mrb[0].mxu0
    %v5487 = vadd.f32 0.0, %v5486
    %5488 = vmatprep.mubr.bf16.mxu0 0
    %5489 = vmatmul.mubr.bf16.gmra.mrb[0].mxu0 %v5432
    %v5490 = vpop.f32.mrb[0].mxu0
    %v5491 = vadd.f32 0.0, %v5490
    %v5492 = vpop.f32.mrb[0].mxu0
    %v5493 = vadd.f32 0.0, %v5492
    %v5494 = vpop.f32.mrb[0].mxu0
    %v5495 = vadd.f32 0.0, %v5494
    %v5496 = vpop.f32.mrb[0].mxu0
    %v5497 = vadd.f32 0.0, %v5496
    %5498 = vmatprep.mubr.bf16.mxu0 0
    %5499 = vmatmul.mubr.bf16.gmra.mrb[0].mxu0 %v5435
    %v5500 = vpop.f32.mrb[0].mxu0
    %v5501 = vadd.f32 0.0, %v5500
    %v5502 = vpop.f32.mrb[0].mxu0
    %v5503 = vadd.f32 0.0, %v5502
    %v5504 = vpop.f32.mrb[0].mxu0
    %v5505 = vadd.f32 0.0, %v5504
    %v5506 = vpop.f32.mrb[0].mxu0
    %v5507 = vadd.f32 0.0, %v5506
    %5508 = vmatprep.mubr.bf16.mxu0 0
    %5509 = vmatmul.mubr.bf16.gmra.mrb[0].mxu0 %v5438
    %v5510 = vpop.f32.mrb[0].mxu0
    %v5511 = vadd.f32 0.0, %v5510
    %v5512 = vpop.f32.mrb[0].mxu0
    %v5513 = vadd.f32 0.0, %v5512
    %v5514 = vpop.f32.mrb[0].mxu0
    %v5515 = vadd.f32 0.0, %v5514
    %v5516 = vpop.f32.mrb[0].mxu0
    %v5517 = vadd.f32 0.0, %v5516
    %5518 = vmatprep.mubr.bf16.mxu0 0
    %5519 = vmatmul.mubr.bf16.gmra.mrb[0].mxu0 %v5441
    %v5520 = vpop.f32.mrb[0].mxu0
    %v5521 = vadd.f32 0.0, %v5520
    %v5522 = vpop.f32.mrb[0].mxu0
    %v5523 = vadd.f32 0.0, %v5522
    %v5524 = vpop.f32.mrb[0].mxu0
    %v5525 = vadd.f32 0.0, %v5524
    %v5526 = vpop.f32.mrb[0].mxu0
    %v5527 = vadd.f32 0.0, %v5526
    %5528 = vmatprep.mubr.bf16.mxu0 0
    %5529 = vmatmul.mubr.bf16.gmra.mrb[0].mxu0 %v5444
    %v5530 = vpop.f32.mrb[0].mxu0
    %v5531 = vadd.f32 0.0, %v5530
    %v5532 = vpop.f32.mrb[0].mxu0
    %v5533 = vadd.f32 0.0, %v5532
    %v5534 = vpop.f32.mrb[0].mxu0
    %v5535 = vadd.f32 0.0, %v5534
    %v5536 = vpop.f32.mrb[0].mxu0
    %v5537 = vadd.f32 0.0, %v5536
    %5538 = vdwg.mxu0
    %5539 = vrot.lane.b32.xlu0 %v5481, 1
    %v5540 = vpop.permute.xlu0 %5539
    %5541 = vrot.lane.b32.xlu0 %v5485, 1
    %v5542 = vpop.permute.xlu0 %5541
    %5543 = vrot.lane.b32.xlu0 %v5491, 1
    %v5544 = vpop.permute.xlu0 %5543
    %5545 = vrot.lane.b32.xlu0 %v5495, 1
    %v5546 = vpop.permute.xlu0 %5545
    %5547 = vrot.lane.b32.xlu0 %v5483, 1
    %v5548 = vpop.permute.xlu0 %5547
    %5549 = vrot.lane.b32.xlu0 %v5487, 1
    %v5550 = vpop.permute.xlu0 %5549
    %5551 = vrot.lane.b32.xlu0 %v5493, 1
    %v5552 = vpop.permute.xlu0 %5551
    %5553 = vrot.lane.b32.xlu0 %v5497, 1
    %v5554 = vpop.permute.xlu0 %5553
    %v5555 = vsel %vm410, %v5540, %v5548
    %v5556 = vsel %vm410, %v5542, %v5550
    %v5557 = vsel %vm410, %v5544, %v5552
    %v5558 = vsel %vm410, %v5546, %v5554
    %v5559 = vsel %vm410, %v5548, %v5540
    %v5560 = vsel %vm410, %v5550, %v5542
    %v5561 = vsel %vm410, %v5552, %v5544
    %v5562 = vsel %vm410, %v5554, %v5546
    %v5563 = vmul.f32 %v5559, %v419
    %v5564 = vmul.f32 %v5555, %v420
    %v5565 = vmul.f32 %v5560, %v421
    %v5566 = vmul.f32 %v5556, %v422
    %v5567 = vmul.f32 %v5561, %v423
    %v5568 = vmul.f32 %v5557, %v424
    %v5569 = vmul.f32 %v5562, %v425
    %v5570 = vmul.f32 %v5558, %v426
    %v5571 = vadd.f32 %v5563, %v5501
    %v5572 = vadd.f32 %v5564, %v5503
    %v5573 = vadd.f32 %v5565, %v5505
    %v5574 = vadd.f32 %v5566, %v5507
    %v5575 = vadd.f32 %v5567, %v5511
    %v5576 = vadd.f32 %v5568, %v5513
    %v5577 = vadd.f32 %v5569, %v5515
    %v5578 = vadd.f32 %v5570, %v5517
    %5579 = vrot.lane.b32.xlu0 %v5521, 127
    %v5580 = vpop.permute.xlu0 %5579
    %5581 = vrot.lane.b32.xlu0 %v5525, 127
    %v5582 = vpop.permute.xlu0 %5581
    %5583 = vrot.lane.b32.xlu0 %v5531, 127
    %v5584 = vpop.permute.xlu0 %5583
    %5585 = vrot.lane.b32.xlu0 %v5535, 127
    %v5586 = vpop.permute.xlu0 %5585
    %5587 = vrot.lane.b32.xlu0 %v5523, 127
    %v5588 = vpop.permute.xlu0 %5587
    %5589 = vrot.lane.b32.xlu0 %v5527, 127
    %v5590 = vpop.permute.xlu0 %5589
    %5591 = vrot.lane.b32.xlu0 %v5533, 127
    %v5592 = vpop.permute.xlu0 %5591
    %5593 = vrot.lane.b32.xlu0 %v5537, 127
    %v5594 = vpop.permute.xlu0 %5593
    %v5595 = vsel %vm459, %v5580, %v5588
    %v5596 = vsel %vm459, %v5582, %v5590
    %v5597 = vsel %vm459, %v5584, %v5592
    %v5598 = vsel %vm459, %v5586, %v5594
    %v5599 = vsel %vm459, %v5588, %v5580
    %v5600 = vsel %vm459, %v5590, %v5582
    %v5601 = vsel %vm459, %v5592, %v5584
    %v5602 = vsel %vm459, %v5594, %v5586
    %v5603 = vmul.f32 %v5595, %v468
    %v5604 = vmul.f32 %v5599, %v469
    %v5605 = vmul.f32 %v5596, %v470
    %v5606 = vmul.f32 %v5600, %v471
    %v5607 = vmul.f32 %v5597, %v472
    %v5608 = vmul.f32 %v5601, %v473
    %v5609 = vmul.f32 %v5598, %v474
    %v5610 = vmul.f32 %v5602, %v475
    %v5611 = vadd.f32 %v5571, %v5603
    %v5612 = vadd.f32 %v5572, %v5604
    %v5613 = vadd.f32 %v5573, %v5605
    %v5614 = vadd.f32 %v5574, %v5606
    %v5615 = vadd.f32 %v5575, %v5607
    %v5616 = vadd.f32 %v5576, %v5608
    %v5617 = vadd.f32 %v5577, %v5609
    %v5618 = vadd.f32 %v5578, %v5610
    %5620 = vset.pattern.permute.xlu0 0
    %5621 = vperm.xlu0 %5620, %v5390
    %v5622 = vpop.permute.xlu0 %5621
    %5625 = vset.pattern.permute.xlu0 0
    %5626 = vperm.xlu0 %5625, %v5391
    %v5627 = vpop.permute.xlu0 %5626
    %5630 = vset.pattern.permute.xlu0 0
    %5631 = vperm.xlu0 %5630, %v5392
    %v5632 = vpop.permute.xlu0 %5631
    %5635 = vset.pattern.permute.xlu0 0
    %5636 = vperm.xlu0 %5635, %v5393
    %v5637 = vpop.permute.xlu0 %5636
    %v5639 = vadd.f32 %v5611, %v5622
    %v5640 = vadd.f32 %v5612, %v5622
    %v5641 = vadd.f32 %v5613, %v5627
    %v5642 = vadd.f32 %v5614, %v5627
    %v5643 = vadd.f32 %v5615, %v5632
    %v5644 = vadd.f32 %v5616, %v5632
    %v5645 = vadd.f32 %v5617, %v5637
    %v5646 = vadd.f32 %v5618, %v5637
    %s5647 = sld [smem:[#allocation2 + $0xe]]
    %vm5648 = vcmp.ge.f32.partialorder %v5639, 0.0
    %vm5649 = vcmp.ge.f32.partialorder %v5640, 0.0
    %vm5650 = vcmp.ge.f32.partialorder %v5641, 0.0
    %vm5651 = vcmp.ge.f32.partialorder %v5642, 0.0
    %vm5652 = vcmp.ge.f32.partialorder %v5643, 0.0
    %vm5653 = vcmp.ge.f32.partialorder %v5644, 0.0
    %vm5654 = vcmp.ge.f32.partialorder %v5645, 0.0
    %vm5655 = vcmp.ge.f32.partialorder %v5646, 0.0
    %v5656 = vstv %s5647
    %v5657 = vmul.f32 %v5639, %v5656
    %v5658 = vmul.f32 %v5640, %v5656
    %v5659 = vmul.f32 %v5641, %v5656
    %v5660 = vmul.f32 %v5642, %v5656
    %v5661 = vmul.f32 %v5643, %v5656
    %v5662 = vmul.f32 %v5644, %v5656
    %v5663 = vmul.f32 %v5645, %v5656
    %v5664 = vmul.f32 %v5646, %v5656
    %v5665 = vsel %vm5648, %v5639, %v5657
    %v5666 = vsel %vm5649, %v5640, %v5658
    %v5667 = vsel %vm5650, %v5641, %v5659
    %v5668 = vsel %vm5651, %v5642, %v5660
    %v5669 = vsel %vm5652, %v5643, %v5661
    %v5670 = vsel %vm5653, %v5644, %v5662
    %v5671 = vsel %vm5654, %v5645, %v5663
    %v5672 = vsel %vm5655, %v5646, %v5664
    %s5673 = scalar_lea.vmem %s6, 528
    %v5674 = vld [vmem:[%s5673] sm:$0xf]
    %v5675 = vld [vmem:[%s5673 + $0x4] sm:$0xf]
    %v5676 = vld [vmem:[%s5673 + $0x8] sm:$0xf]
    %v5677 = vld [vmem:[%s5673 + $0xc] sm:$0xf]
    %s5678 = scalar_lea.vmem %s7, 352
    %v5679 = vld [vmem:[%s5678] sm:$0xff]
    %v5680 = vpack.c.bf16 %v5667, %v5665
    %v5681 = vpack.c.bf16 %v5668, %v5666
    %v5682 = vpack.c.bf16 %v5671, %v5669
    %v5683 = vpack.c.bf16 %v5672, %v5670
    %v5688 = vunpack.c.l.b16 %v5674
    %v5689 = vunpack.c.l.b16 %v5675
    %v5690 = vunpack.c.l.b16 %v5676
    %v5691 = vunpack.c.l.b16 %v5677
    %v5692 = vpack.c.b16 %v5689, %v5688
    %v5693 = vpack.c.b16 %v5691, %v5690
    %v5695 = vsel %vm598, %v5692, 0
    %v5698 = vsel %vm598, %v5693, 0
    %5700 = vmatprep.subr.bf16.mxu0 %v5681
    %5701 = vmatpush1.bf16.msra.mxu0 %v5680
    %5702 = vmatprep.subr.bf16.mxu0 %v5683
    %5703 = vmatpush1.bf16.msra.mxu0 %v5682
    %5704 = vmatprep.subr.bf16.mxu0 0
    %5705 = vmatpush1.bf16.msra.mxu0 0
    %5706 = vmatprep.subr.bf16.mxu0 0
    %5707 = vmatpush1.bf16.msra.mxu0 0
    %5708 = vmatprep.subr.bf16.mxu0 0
    %5709 = vmatpush1.bf16.msra.mxu0 0
    %5710 = vmatprep.subr.bf16.mxu0 0
    %5711 = vmatpush1.bf16.msra.mxu0 0
    %5712 = vmatprep.subr.bf16.mxu0 0
    %5713 = vmatpush1.bf16.msra.mxu0 0
    %5714 = vmatprep.subr.bf16.mxu0 0
    %5715 = vmatpush1.bf16.msra.mxu0 0
    %5716 = vmatprep.subr.bf16.mxu0 0
    %5717 = vmatpush1.bf16.msra.mxu0 0
    %5718 = vmatprep.subr.bf16.mxu0 0
    %5719 = vmatpush1.bf16.msra.mxu0 0
    %5720 = vmatprep.subr.bf16.mxu0 0
    %5721 = vmatpush1.bf16.msra.mxu0 0
    %5722 = vmatprep.subr.bf16.mxu0 0
    %5723 = vmatpush1.bf16.msra.mxu0 0
    %5724 = vmatprep.subr.bf16.mxu0 0
    %5725 = vmatpush1.bf16.msra.mxu0 0
    %5726 = vmatprep.subr.bf16.mxu0 0
    %5727 = vmatpush1.bf16.msra.mxu0 0
    %5728 = vmatprep.subr.bf16.mxu0 0
    %5729 = vmatpush1.bf16.msra.mxu0 0
    %5730 = vmatprep.subr.bf16.mxu0 0
    %5731 = vmatpush1.bf16.msra.mxu0 0
    %5732 = vmatprep.mubr.bf16.mxu0 0
    %5733 = vmatmul.mubr.bf16.gmra.mrb[0].mxu0 %v5695
    %v5734 = vpop.f32.mrb[0].mxu0
    %v5735 = vadd.f32 0.0, %v5734
    %v5736 = vpop.f32.mrb[0].mxu0
    %v5737 = vadd.f32 0.0, %v5736
    %v5738 = vpop.f32.mrb[0].mxu0
    %v5739 = vadd.f32 0.0, %v5738
    %v5740 = vpop.f32.mrb[0].mxu0
    %v5741 = vadd.f32 0.0, %v5740
    %5742 = vmatprep.mubr.bf16.mxu0 0
    %5743 = vmatmul.mubr.bf16.gmra.mrb[0].mxu0 %v5698
    %v5744 = vpop.f32.mrb[0].mxu0
    %v5745 = vadd.f32 0.0, %v5744
    %v5746 = vpop.f32.mrb[0].mxu0
    %v5747 = vadd.f32 0.0, %v5746
    %v5748 = vpop.f32.mrb[0].mxu0
    %v5749 = vpop.f32.mrb[0].mxu0
    %5750 = vdwg.mxu0
    %5751 = vrot.lane.b32.xlu0 %v5735, 1
    %v5752 = vpop.permute.xlu0 %5751
    %5753 = vrot.lane.b32.xlu0 %v5737, 1
    %v5754 = vpop.permute.xlu0 %5753
    %v5755 = vsel %vm410, %v5752, %v5754
    %v5756 = vsel %vm410, %v5754, %v5752
    %v5757 = vmul.f32 %v5756, %v928
    %v5758 = vmul.f32 %v5755, %v929
    %v5759 = vadd.f32 %v5757, %v5739
    %v5760 = vadd.f32 %v5758, %v5741
    %5761 = vrot.lane.b32.xlu0 %v5745, 127
    %v5762 = vpop.permute.xlu0 %5761
    %5763 = vrot.lane.b32.xlu0 %v5747, 127
    %v5764 = vpop.permute.xlu0 %5763
    %v5765 = vsel %vm459, %v5762, %v5764
    %v5766 = vsel %vm459, %v5764, %v5762
    %v5767 = vmul.f32 %v5765, %v940
    %v5768 = vmul.f32 %v5766, %v941
    %v5769 = vadd.f32 %v5759, %v5767
    %v5770 = vadd.f32 %v5760, %v5768
    %5772 = vset.pattern.permute.xlu0 0
    %5773 = vperm.xlu0 %5772, %v5679
    %v5774 = vpop.permute.xlu0 %5773
    %v5776 = vadd.f32 %v5769, %v5774
    %v5777 = vadd.f32 %v5770, %v5774
    %v5778 = vadd.f32 %v3931, %v5776
    %v5779 = vadd.f32 %v3932, %v5777
    %v5782 = vcombine.low %v5778, %v5779
    %v5784 = vunpack.c.l.s4 1966171168
    %v5785 = vunpack.c.0.s8 %v5784
    %v5786 = vlaneseq
    %v5787 = vshrl.u32 %v5786, 7
    %v5788 = vsub.s32 %v5785, %v5787
    %v5789 = vrot.slane %v5782, %v5788
    %v5791 = vunpack.c.l.s4 1966171168
    %v5792 = vunpack.c.0.s8 %v5791
    %v5793 = vlaneseq
    %v5794 = vshrl.u32 %v5793, 7
    %v5795 = vsub.s32 %v5792, %v5794
    %v5796 = vrot.slane %v5789, %v5795
    %v5798 = vlaneseq
    %vm5799 = vcmp.ge.s32.totalorder %v5798, 0
    %vm5800 = vcmp.lt.s32.totalorder %v5798, 256
    %vm5801 = vmand %vm5799, %vm5800
    %5802 = vst.msk [vmem:[#allocation5] sm:$0x3] %vm5801, %v5796
    // Predicated region
    $region50: #{lpd_forward.1} parent=1 // pred_check
      _
    $region51: #{lpd_forward.1} parent=1 // pred_check_branch
      %5804 = sbr.rel (0) target = $region53
    $region52: #{lpd_forward.1} parent=1 // pred_region
      %s5806 = ssub.s32 32, 32
      %5807 = vsyncadd [#allocation3], %s5806
      %s5809 = sshll.u32 [#allocation5], 4
      %s5810 = int_to_ptr.vmem [resolvable:$true] %s5809
      %5812 = dma.vmem_to_hbm [thread:$0]  %s5810, 32, %s11, [#allocation3]
    $region53: #{lpd_forward.1} parent=1 // pred_fallthru
      _
    // Predicated region
    $region54: #{lpd_forward.1} parent=1 // pred_check
      _
    $region55: #{lpd_forward.1} parent=1 // pred_check_branch
      %5814 = sbr.rel (0) target = $region57
    $region56: #{lpd_forward.1} parent=1 // pred_region
      %5815 = dma.done [#allocation3], 32
    $region57: #{lpd_forward.1} parent=1 // pred_fallthru
      _
    %5816 = vsyncpa [#allocation3], 1
    %5817 = vsyncpa [#allocation4], 1

</llo_original>
